<compile_context>
chip_gen: v6e
topology: v6e:2x2x1
jax: 0.10.0
libtpu: 0.0.40
codegen_flags: <defaults>
</compile_context>

<pallas_src>
import functools

import jax
import jax.numpy as jnp
from jax import lax
from jax.experimental import pallas as pl
from jax.experimental.pallas import tpu as pltpu

K = 5        # conv kernel size
CPAD = 128   # lane-padded channel count for conv1/conv2 outputs
P1 = 128     # conv1 im2col depth: K*K*Cin = 75, zero-padded to 128


# --------------------------------------------------------------------------
# Single fused kernel: whole batch, everything VMEM-resident.
# --------------------------------------------------------------------------
def fused_forward_kernel(patches_ref, w1_ref, b1_ref, w2_ref, b2_ref,
                         fc1w_ref, fc1b_ref, fc2w_ref, fc2b_ref,
                         o_ref, col_ref, *, B, Ho, Wo):
    # patches_ref: (B*Ho*Wo, P1)        conv1 im2col, rows=(b,i,j), cols=(kh,kw,cin)
    # w1_ref     : (P1, CPAD)           conv1 weights (zero-padded rows & cols)
    # b1_ref     : (1, CPAD)
    # w2_ref     : (K*K*CPAD, CPAD)     conv2 weights, rows=(kh,kw,cin_padded)
    # b2_ref     : (1, CPAD)
    # fc1w_ref   : (CPAD, 4096) bf16    rows 32.. are zero
    # fc1b_ref   : (1, 4096)
    # fc2w_ref   : (1, 4096)
    # fc2b_ref   : (1, 1)
    # o_ref      : (B, 1)
    # col_ref    : (B*Ho2*Wo2, K*K*CPAD) VMEM scratch for the conv2 im2col
    Ho2, Wo2 = Ho - K + 1, Wo - K + 1

    # ---- conv1: single lane-dense im2col matmul + bias + relu ----
    h1 = jnp.dot(patches_ref[...], w1_ref[...], preferred_element_type=jnp.float32)
    h1 = jnp.maximum(h1 + b1_ref[...], 0.0)              # (B*Ho*Wo, CPAD)
    h1 = h1.reshape(B, Ho, Wo, CPAD)

    # ---- conv2: lane-aligned im2col into VMEM scratch, then ONE matmul ----
    for kh in range(K):
        for kw in range(K):
            tap = kh * K + kw
            slab = h1[:, kh:kh + Ho2, kw:kw + Wo2, :].reshape(B * Ho2 * Wo2, CPAD)
            col_ref[:, tap * CPAD:(tap + 1) * CPAD] = slab
    h2 = jnp.dot(col_ref[...], w2_ref[...], preferred_element_type=jnp.float32)
    h2 = jnp.maximum(h2 + b2_ref[...], 0.0)               # (B*Ho2*Wo2, CPAD)

    # ---- global average pool (lane-dense sublane reduce) ----
    pooled = jnp.mean(h2.reshape(B, Ho2 * Wo2, CPAD), axis=1)     # (B, CPAD)

    # ---- fc1 + relu (dropout p=0.5 is identity at inference) ----
    fc1w = fc1w_ref[...].astype(jnp.float32)               # bf16 storage, f32 math
    hidden = jnp.dot(pooled, fc1w, preferred_element_type=jnp.float32)
    hidden = jnp.maximum(hidden + fc1b_ref[...], 0.0)      # (B, 4096)

    # ---- fc2 (4096 -> 1) as VPU multiply + lane reduction ----
    o_ref[...] = (jnp.sum(hidden * fc2w_ref[...], axis=-1, keepdims=True)
                  + fc2b_ref[...])


def aesthetic_predictor_forward(x_nchw, params):
    x = jnp.transpose(x_nchw, (0, 2, 3, 1))               # NCHW -> NHWC (tiny)
    B, H, W, Cin = x.shape
    Ho, Wo = H - K + 1, W - K + 1
    Ho2, Wo2 = Ho - K + 1, Wo - K + 1
    H1 = params["fc1_w"].shape[1]

    # conv1 im2col in the jitted wrapper (input is only a few KB), padded to a
    # full 128-lane slab.  Column order (kh, kw, cin) matches w1's row order.
    slabs = [x[:, kh:kh + Ho, kw:kw + Wo, :] for kh in range(K) for kw in range(K)]
    patches = jnp.concatenate(slabs, axis=-1)              # (B, Ho, Wo, K*K*Cin)
    patches = jnp.pad(patches, ((0, 0), (0, 0), (0, 0),
                                (0, P1 - patches.shape[-1])))
    patches = patches.reshape(B * Ho * Wo, P1)

    args = (patches, params["w1"], params["b1"], params["w2"], params["b2"],
            params["fc1_w"], params["fc1_b"], params["fc2_w"], params["fc2_b"])

    # Actual (padded) MXU work + VPU fc2.
    flops = (2 * B * Ho * Wo * P1 * CPAD
             + 2 * B * Ho2 * Wo2 * (K * K * CPAD) * CPAD
             + 2 * B * CPAD * H1
             + 2 * B * H1)
    arg_bytes = sum(int(a.size) * a.dtype.itemsize for a in args)
    col_bytes = B * Ho2 * Wo2 * K * K * CPAD * 4
    # Inputs are single-buffered (no grid) + im2col scratch + headroom for the
    # compiler's matmul/activation temporaries.  ~12 MiB total; well under the
    # 64 MiB physical VMEM of v7x (vs. the previous blanket 32 MiB request).
    vmem_limit = int(arg_bytes + col_bytes + 8 * 1024 * 1024)

    def full_spec(a):
        nd = a.ndim
        return pl.BlockSpec(a.shape, lambda: (0,) * nd)

    kernel = functools.partial(fused_forward_kernel, B=B, Ho=Ho, Wo=Wo)

    return pl.pallas_call(
        kernel,
        out_shape=jax.ShapeDtypeStruct((B, 1), jnp.float32),
        in_specs=[full_spec(a) for a in args],
        out_specs=pl.BlockSpec((B, 1), lambda: (0, 0)),
        scratch_shapes=[pltpu.VMEM((B * Ho2 * Wo2, K * K * CPAD), jnp.float32)],
        compiler_params=pltpu.CompilerParams(vmem_limit_bytes=vmem_limit),
        cost_estimate=pl.CostEstimate(flops=int(flops), transcendentals=0,
                                      bytes_accessed=int(arg_bytes + 4 * B)),
    )(*args)


forward_jit = jax.jit(aesthetic_predictor_forward)


# --------------------------------------------------------------------------
# Parameter construction (deterministic; HF checkpoint replaced by RNG init).
# --------------------------------------------------------------------------
def make_params(key):
    ks = jax.random.split(key, 8)
    # PyTorch-layout weights.
    conv1_w = jax.random.normal(ks[0], (32, 3, K, K), jnp.float32) * 0.05
    conv1_b = jax.random.normal(ks[1], (32,), jnp.float32) * 0.05
    conv2_w = jax.random.normal(ks[2], (32, 32, K, K), jnp.float32) * 0.05
    conv2_b = jax.random.normal(ks[3], (32,), jnp.float32) * 0.05
    fc1_w = jax.random.normal(ks[4], (4096, 32), jnp.float32) * 0.05   # (out, in)
    fc1_b = jax.random.normal(ks[5], (4096,), jnp.float32) * 0.05
    fc2_w = jax.random.normal(ks[6], (1, 4096), jnp.float32) * 0.05    # (out, in)
    fc2_b = jax.random.normal(ks[7], (1,), jnp.float32) * 0.05

    # conv1: (Cout,Cin,K,K) -> rows ordered (kh,kw,cin); zero-pad rows 75->128
    # and cols 32->CPAD.
    w1 = jnp.transpose(conv1_w, (2, 3, 1, 0)).reshape(K * K * 3, 32)
    w1 = jnp.pad(w1, ((0, P1 - K * K * 3), (0, CPAD - 32)))
    b1 = jnp.pad(conv1_b, (0, CPAD - 32)).reshape(1, CPAD)

    # conv2: rows ordered (kh, kw, cin padded to CPAD); cols padded to CPAD.
    # Padding is zeros so padded input channels / output channels contribute 0.
    w2_t = jnp.transpose(conv2_w, (2, 3, 1, 0))                       # (K,K,32,32)
    w2 = jnp.zeros((K, K, CPAD, CPAD), jnp.float32).at[:, :, :32, :32].set(w2_t)
    w2 = w2.reshape(K * K * CPAD, CPAD)
    b2 = jnp.pad(conv2_b, (0, CPAD - 32)).reshape(1, CPAD)

    # fc1: (out,in) -> (in,out); zero-pad contraction rows 32->CPAD; store bf16
    # (halves the largest weight DMA; f32 accumulation in-kernel).
    fc1_in_out = fc1_w.T                                              # (32, 4096)
    fc1_pad_bf16 = jnp.pad(fc1_in_out, ((0, CPAD - 32), (0, 0))).astype(jnp.bfloat16)

    return {
        "w1": w1, "b1": b1, "w2": w2, "b2": b2,
        "fc1_w": fc1_pad_bf16, "fc1_b": fc1_b.reshape(1, -1),
        "fc2_w": fc2_w, "fc2_b": fc2_b.reshape(1, 1),
        # PyTorch-layout copies for the pure-JAX reference.  The reference uses
        # the SAME bf16-rounded fc1 values (upcast to f32) so the comparison is
        # apples-to-apples with the quantized parameter representation.
        "_conv1_w": conv1_w, "_conv1_b": conv1_b,
        "_conv2_w": conv2_w, "_conv2_b": conv2_b,
        "_fc1_w": fc1_in_out.astype(jnp.bfloat16).astype(jnp.float32),  # (32, 4096)
    }


def reference_forward(x_nchw, params):
    """Pure-JAX reference replicating the PyTorch forward (eval mode)."""
    dn = lax.conv_dimension_numbers(x_nchw.shape, params["_conv1_w"].shape,
                                    ("NCHW", "OIHW", "NCHW"))
    x = lax.conv_general_dilated(x_nchw, params["_conv1_w"], (1, 1), "VALID",
                                 dimension_numbers=dn)
    x = jnp.maximum(x + params["_conv1_b"].reshape(1, -1, 1, 1), 0.0)
    x = lax.conv_general_dilated(x, params["_conv2_w"], (1, 1), "VALID",
                                 dimension_numbers=dn)
    x = jnp.maximum(x + params["_conv2_b"].reshape(1, -1, 1, 1), 0.0)
    x = jnp.mean(x, axis=(2, 3))                                   # (B, 32)
    x = jnp.maximum(x @ params["_fc1_w"] + params["fc1_b"], 0.0)
    return x @ params["fc2_w"].T + params["fc2_b"]


if __name__ == "__main__":
    key = jax.random.PRNGKey(0)
    k_x, k_p = jax.random.split(key)
    B, C, Hs, Ws = 2, 3, 16, 16                     # small NCHW input (Cin=3 per module)
    x = jax.random.normal(k_x, (B, C, Hs, Ws), jnp.float32)
    params = make_params(k_p)

    out = forward_jit(x, params)
    out = jax.block_until_ready(out)

    ref = reference_forward(x, params)
    assert out.shape == (B, 1), out.shape
    assert jnp.allclose(out, ref, atol=1e-3, rtol=1e-3), (out, ref)
    print("KERNEL_OK")
</pallas_src>

<mosaic_0001>
module attributes {stable_mosaic.version = 11 : i64} {
  func.func @fused_forward_kernel(%arg0: memref<288x128xf32, #tpu.memory_space<vmem>>, %arg1: memref<128x128xf32, #tpu.memory_space<vmem>>, %arg2: memref<1x128xf32, #tpu.memory_space<vmem>>, %arg3: memref<3200x128xf32, #tpu.memory_space<vmem>>, %arg4: memref<1x128xf32, #tpu.memory_space<vmem>>, %arg5: memref<128x4096xbf16, #tpu.memory_space<vmem>>, %arg6: memref<1x4096xf32, #tpu.memory_space<vmem>>, %arg7: memref<1x4096xf32, #tpu.memory_space<vmem>>, %arg8: memref<1x1xf32, #tpu.memory_space<vmem>>, %arg9: memref<2x1xf32, #tpu.memory_space<vmem>>, %arg10: memref<128x3200xf32, #tpu.memory_space<vmem>>) attributes {dimension_semantics = [], scalar_prefetch = 0 : i64, scratch_operands = 1 : i64, tpu.core_type = #tpu.core_type<tc>} {
    %c0 = arith.constant 0 : index
    %c0_0 = arith.constant 0 : index
    %0 = vector.load %arg0[%c0, %c0_0] : memref<288x128xf32, #tpu.memory_space<vmem>>, vector<288x128xf32>
    %c0_1 = arith.constant 0 : index
    %c0_2 = arith.constant 0 : index
    %1 = vector.load %arg1[%c0_1, %c0_2] : memref<128x128xf32, #tpu.memory_space<vmem>>, vector<128x128xf32>
    %cst = arith.constant dense<0.000000e+00> : vector<288x128xf32>
    %2 = tpu.matmul %0, %1, %cst {dimension_numbers = #tpu.dot_dimension_numbers<[1], [0], [0], [1], [0, 0, 1, 1], [], []>} : vector<288x128xf32>, vector<128x128xf32>, vector<288x128xf32> -> vector<288x128xf32>
    %c0_3 = arith.constant 0 : index
    %c0_4 = arith.constant 0 : index
    %3 = vector.load %arg2[%c0_3, %c0_4] : memref<1x128xf32, #tpu.memory_space<vmem>>, vector<1x128xf32>
    %4 = vector.broadcast %3 : vector<1x128xf32> to vector<288x128xf32>
    %5 = arith.addf %2, %4 : vector<288x128xf32>
    %cst_5 = arith.constant 0.000000e+00 : f32
    %6 = vector.broadcast %cst_5 : f32 to vector<288x128xf32>
    %7 = arith.maximumf %5, %6 : vector<288x128xf32>
    %8 = vector.shape_cast %7 : vector<288x128xf32> to vector<2x12x12x128xf32>
    %9 = vector.extract_strided_slice %8 {offsets = [0, 0, 0, 0], sizes = [2, 8, 8, 128], strides = [1, 1, 1, 1]} : vector<2x12x12x128xf32> to vector<2x8x8x128xf32>
    %10 = vector.shape_cast %9 : vector<2x8x8x128xf32> to vector<128x128xf32>
    %c0_6 = arith.constant 0 : index
    %c0_7 = arith.constant 0 : index
    %11 = vector.load %arg10[%c0_6, %c0_7] : memref<128x3200xf32, #tpu.memory_space<vmem>>, vector<128x128xf32>
    tpu.vector_store %arg10[%c0_6, %c0_7], %10 {strides = array<i32>} : memref<128x3200xf32, #tpu.memory_space<vmem>>, vector<128x128xf32>,
    %12 = vector.extract_strided_slice %8 {offsets = [0, 0, 1, 0], sizes = [2, 8, 8, 128], strides = [1, 1, 1, 1]} : vector<2x12x12x128xf32> to vector<2x8x8x128xf32>
    %13 = vector.shape_cast %12 : vector<2x8x8x128xf32> to vector<128x128xf32>
    %c0_8 = arith.constant 0 : index
    %c128 = arith.constant 128 : index
    %14 = vector.load %arg10[%c0_8, %c128] : memref<128x3200xf32, #tpu.memory_space<vmem>>, vector<128x128xf32>
    tpu.vector_store %arg10[%c0_8, %c128], %13 {strides = array<i32>} : memref<128x3200xf32, #tpu.memory_space<vmem>>, vector<128x128xf32>,
    %15 = vector.extract_strided_slice %8 {offsets = [0, 0, 2, 0], sizes = [2, 8, 8, 128], strides = [1, 1, 1, 1]} : vector<2x12x12x128xf32> to vector<2x8x8x128xf32>
    %16 = vector.shape_cast %15 : vector<2x8x8x128xf32> to vector<128x128xf32>
    %c0_9 = arith.constant 0 : index
    %c256 = arith.constant 256 : index
    %17 = vector.load %arg10[%c0_9, %c256] : memref<128x3200xf32, #tpu.memory_space<vmem>>, vector<128x128xf32>
    tpu.vector_store %arg10[%c0_9, %c256], %16 {strides = array<i32>} : memref<128x3200xf32, #tpu.memory_space<vmem>>, vector<128x128xf32>,
    %18 = vector.extract_strided_slice %8 {offsets = [0, 0, 3, 0], sizes = [2, 8, 8, 128], strides = [1, 1, 1, 1]} : vector<2x12x12x128xf32> to vector<2x8x8x128xf32>
    %19 = vector.shape_cast %18 : vector<2x8x8x128xf32> to vector<128x128xf32>
    %c0_10 = arith.constant 0 : index
    %c384 = arith.constant 384 : index
    %20 = vector.load %arg10[%c0_10, %c384] : memref<128x3200xf32, #tpu.memory_space<vmem>>, vector<128x128xf32>
    tpu.vector_store %arg10[%c0_10, %c384], %19 {strides = array<i32>} : memref<128x3200xf32, #tpu.memory_space<vmem>>, vector<128x128xf32>,
    %21 = vector.extract_strided_slice %8 {offsets = [0, 0, 4, 0], sizes = [2, 8, 8, 128], strides = [1, 1, 1, 1]} : vector<2x12x12x128xf32> to vector<2x8x8x128xf32>
    %22 = vector.shape_cast %21 : vector<2x8x8x128xf32> to vector<128x128xf32>
    %c0_11 = arith.constant 0 : index
    %c512 = arith.constant 512 : index
    %23 = vector.load %arg10[%c0_11, %c512] : memref<128x3200xf32, #tpu.memory_space<vmem>>, vector<128x128xf32>
    tpu.vector_store %arg10[%c0_11, %c512], %22 {strides = array<i32>} : memref<128x3200xf32, #tpu.memory_space<vmem>>, vector<128x128xf32>,
    %24 = vector.extract_strided_slice %8 {offsets = [0, 1, 0, 0], sizes = [2, 8, 8, 128], strides = [1, 1, 1, 1]} : vector<2x12x12x128xf32> to vector<2x8x8x128xf32>
    %25 = vector.shape_cast %24 : vector<2x8x8x128xf32> to vector<128x128xf32>
    %c0_12 = arith.constant 0 : index
    %c640 = arith.constant 640 : index
    %26 = vector.load %arg10[%c0_12, %c640] : memref<128x3200xf32, #tpu.memory_space<vmem>>, vector<128x128xf32>
    tpu.vector_store %arg10[%c0_12, %c640], %25 {strides = array<i32>} : memref<128x3200xf32, #tpu.memory_space<vmem>>, vector<128x128xf32>,
    %27 = vector.extract_strided_slice %8 {offsets = [0, 1, 1, 0], sizes = [2, 8, 8, 128], strides = [1, 1, 1, 1]} : vector<2x12x12x128xf32> to vector<2x8x8x128xf32>
    %28 = vector.shape_cast %27 : vector<2x8x8x128xf32> to vector<128x128xf32>
    %c0_13 = arith.constant 0 : index
    %c768 = arith.constant 768 : index
    %29 = vector.load %arg10[%c0_13, %c768] : memref<128x3200xf32, #tpu.memory_space<vmem>>, vector<128x128xf32>
    tpu.vector_store %arg10[%c0_13, %c768], %28 {strides = array<i32>} : memref<128x3200xf32, #tpu.memory_space<vmem>>, vector<128x128xf32>,
    %30 = vector.extract_strided_slice %8 {offsets = [0, 1, 2, 0], sizes = [2, 8, 8, 128], strides = [1, 1, 1, 1]} : vector<2x12x12x128xf32> to vector<2x8x8x128xf32>
    %31 = vector.shape_cast %30 : vector<2x8x8x128xf32> to vector<128x128xf32>
    %c0_14 = arith.constant 0 : index
    %c896 = arith.constant 896 : index
    %32 = vector.load %arg10[%c0_14, %c896] : memref<128x3200xf32, #tpu.memory_space<vmem>>, vector<128x128xf32>
    tpu.vector_store %arg10[%c0_14, %c896], %31 {strides = array<i32>} : memref<128x3200xf32, #tpu.memory_space<vmem>>, vector<128x128xf32>,
    %33 = vector.extract_strided_slice %8 {offsets = [0, 1, 3, 0], sizes = [2, 8, 8, 128], strides = [1, 1, 1, 1]} : vector<2x12x12x128xf32> to vector<2x8x8x128xf32>
    %34 = vector.shape_cast %33 : vector<2x8x8x128xf32> to vector<128x128xf32>
    %c0_15 = arith.constant 0 : index
    %c1024 = arith.constant 1024 : index
    %35 = vector.load %arg10[%c0_15, %c1024] : memref<128x3200xf32, #tpu.memory_space<vmem>>, vector<128x128xf32>
    tpu.vector_store %arg10[%c0_15, %c1024], %34 {strides = array<i32>} : memref<128x3200xf32, #tpu.memory_space<vmem>>, vector<128x128xf32>,
    %36 = vector.extract_strided_slice %8 {offsets = [0, 1, 4, 0], sizes = [2, 8, 8, 128], strides = [1, 1, 1, 1]} : vector<2x12x12x128xf32> to vector<2x8x8x128xf32>
    %37 = vector.shape_cast %36 : vector<2x8x8x128xf32> to vector<128x128xf32>
    %c0_16 = arith.constant 0 : index
    %c1152 = arith.constant 1152 : index
    %38 = vector.load %arg10[%c0_16, %c1152] : memref<128x3200xf32, #tpu.memory_space<vmem>>, vector<128x128xf32>
    tpu.vector_store %arg10[%c0_16, %c1152], %37 {strides = array<i32>} : memref<128x3200xf32, #tpu.memory_space<vmem>>, vector<128x128xf32>,
    %39 = vector.extract_strided_slice %8 {offsets = [0, 2, 0, 0], sizes = [2, 8, 8, 128], strides = [1, 1, 1, 1]} : vector<2x12x12x128xf32> to vector<2x8x8x128xf32>
    %40 = vector.shape_cast %39 : vector<2x8x8x128xf32> to vector<128x128xf32>
    %c0_17 = arith.constant 0 : index
    %c1280 = arith.constant 1280 : index
    %41 = vector.load %arg10[%c0_17, %c1280] : memref<128x3200xf32, #tpu.memory_space<vmem>>, vector<128x128xf32>
    tpu.vector_store %arg10[%c0_17, %c1280], %40 {strides = array<i32>} : memref<128x3200xf32, #tpu.memory_space<vmem>>, vector<128x128xf32>,
    %42 = vector.extract_strided_slice %8 {offsets = [0, 2, 1, 0], sizes = [2, 8, 8, 128], strides = [1, 1, 1, 1]} : vector<2x12x12x128xf32> to vector<2x8x8x128xf32>
    %43 = vector.shape_cast %42 : vector<2x8x8x128xf32> to vector<128x128xf32>
    %c0_18 = arith.constant 0 : index
    %c1408 = arith.constant 1408 : index
    %44 = vector.load %arg10[%c0_18, %c1408] : memref<128x3200xf32, #tpu.memory_space<vmem>>, vector<128x128xf32>
    tpu.vector_store %arg10[%c0_18, %c1408], %43 {strides = array<i32>} : memref<128x3200xf32, #tpu.memory_space<vmem>>, vector<128x128xf32>,
    %45 = vector.extract_strided_slice %8 {offsets = [0, 2, 2, 0], sizes = [2, 8, 8, 128], strides = [1, 1, 1, 1]} : vector<2x12x12x128xf32> to vector<2x8x8x128xf32>
    %46 = vector.shape_cast %45 : vector<2x8x8x128xf32> to vector<128x128xf32>
    %c0_19 = arith.constant 0 : index
    %c1536 = arith.constant 1536 : index
    %47 = vector.load %arg10[%c0_19, %c1536] : memref<128x3200xf32, #tpu.memory_space<vmem>>, vector<128x128xf32>
    tpu.vector_store %arg10[%c0_19, %c1536], %46 {strides = array<i32>} : memref<128x3200xf32, #tpu.memory_space<vmem>>, vector<128x128xf32>,
    %48 = vector.extract_strided_slice %8 {offsets = [0, 2, 3, 0], sizes = [2, 8, 8, 128], strides = [1, 1, 1, 1]} : vector<2x12x12x128xf32> to vector<2x8x8x128xf32>
    %49 = vector.shape_cast %48 : vector<2x8x8x128xf32> to vector<128x128xf32>
    %c0_20 = arith.constant 0 : index
    %c1664 = arith.constant 1664 : index
    %50 = vector.load %arg10[%c0_20, %c1664] : memref<128x3200xf32, #tpu.memory_space<vmem>>, vector<128x128xf32>
    tpu.vector_store %arg10[%c0_20, %c1664], %49 {strides = array<i32>} : memref<128x3200xf32, #tpu.memory_space<vmem>>, vector<128x128xf32>,
    %51 = vector.extract_strided_slice %8 {offsets = [0, 2, 4, 0], sizes = [2, 8, 8, 128], strides = [1, 1, 1, 1]} : vector<2x12x12x128xf32> to vector<2x8x8x128xf32>
    %52 = vector.shape_cast %51 : vector<2x8x8x128xf32> to vector<128x128xf32>
    %c0_21 = arith.constant 0 : index
    %c1792 = arith.constant 1792 : index
    %53 = vector.load %arg10[%c0_21, %c1792] : memref<128x3200xf32, #tpu.memory_space<vmem>>, vector<128x128xf32>
    tpu.vector_store %arg10[%c0_21, %c1792], %52 {strides = array<i32>} : memref<128x3200xf32, #tpu.memory_space<vmem>>, vector<128x128xf32>,
    %54 = vector.extract_strided_slice %8 {offsets = [0, 3, 0, 0], sizes = [2, 8, 8, 128], strides = [1, 1, 1, 1]} : vector<2x12x12x128xf32> to vector<2x8x8x128xf32>
    %55 = vector.shape_cast %54 : vector<2x8x8x128xf32> to vector<128x128xf32>
    %c0_22 = arith.constant 0 : index
    %c1920 = arith.constant 1920 : index
    %56 = vector.load %arg10[%c0_22, %c1920] : memref<128x3200xf32, #tpu.memory_space<vmem>>, vector<128x128xf32>
    tpu.vector_store %arg10[%c0_22, %c1920], %55 {strides = array<i32>} : memref<128x3200xf32, #tpu.memory_space<vmem>>, vector<128x128xf32>,
    %57 = vector.extract_strided_slice %8 {offsets = [0, 3, 1, 0], sizes = [2, 8, 8, 128], strides = [1, 1, 1, 1]} : vector<2x12x12x128xf32> to vector<2x8x8x128xf32>
    %58 = vector.shape_cast %57 : vector<2x8x8x128xf32> to vector<128x128xf32>
    %c0_23 = arith.constant 0 : index
    %c2048 = arith.constant 2048 : index
    %59 = vector.load %arg10[%c0_23, %c2048] : memref<128x3200xf32, #tpu.memory_space<vmem>>, vector<128x128xf32>
    tpu.vector_store %arg10[%c0_23, %c2048], %58 {strides = array<i32>} : memref<128x3200xf32, #tpu.memory_space<vmem>>, vector<128x128xf32>,
    %60 = vector.extract_strided_slice %8 {offsets = [0, 3, 2, 0], sizes = [2, 8, 8, 128], strides = [1, 1, 1, 1]} : vector<2x12x12x128xf32> to vector<2x8x8x128xf32>
    %61 = vector.shape_cast %60 : vector<2x8x8x128xf32> to vector<128x128xf32>
    %c0_24 = arith.constant 0 : index
    %c2176 = arith.constant 2176 : index
    %62 = vector.load %arg10[%c0_24, %c2176] : memref<128x3200xf32, #tpu.memory_space<vmem>>, vector<128x128xf32>
    tpu.vector_store %arg10[%c0_24, %c2176], %61 {strides = array<i32>} : memref<128x3200xf32, #tpu.memory_space<vmem>>, vector<128x128xf32>,
    %63 = vector.extract_strided_slice %8 {offsets = [0, 3, 3, 0], sizes = [2, 8, 8, 128], strides = [1, 1, 1, 1]} : vector<2x12x12x128xf32> to vector<2x8x8x128xf32>
    %64 = vector.shape_cast %63 : vector<2x8x8x128xf32> to vector<128x128xf32>
    %c0_25 = arith.constant 0 : index
    %c2304 = arith.constant 2304 : index
    %65 = vector.load %arg10[%c0_25, %c2304] : memref<128x3200xf32, #tpu.memory_space<vmem>>, vector<128x128xf32>
    tpu.vector_store %arg10[%c0_25, %c2304], %64 {strides = array<i32>} : memref<128x3200xf32, #tpu.memory_space<vmem>>, vector<128x128xf32>,
    %66 = vector.extract_strided_slice %8 {offsets = [0, 3, 4, 0], sizes = [2, 8, 8, 128], strides = [1, 1, 1, 1]} : vector<2x12x12x128xf32> to vector<2x8x8x128xf32>
    %67 = vector.shape_cast %66 : vector<2x8x8x128xf32> to vector<128x128xf32>
    %c0_26 = arith.constant 0 : index
    %c2432 = arith.constant 2432 : index
    %68 = vector.load %arg10[%c0_26, %c2432] : memref<128x3200xf32, #tpu.memory_space<vmem>>, vector<128x128xf32>
    tpu.vector_store %arg10[%c0_26, %c2432], %67 {strides = array<i32>} : memref<128x3200xf32, #tpu.memory_space<vmem>>, vector<128x128xf32>,
    %69 = vector.extract_strided_slice %8 {offsets = [0, 4, 0, 0], sizes = [2, 8, 8, 128], strides = [1, 1, 1, 1]} : vector<2x12x12x128xf32> to vector<2x8x8x128xf32>
    %70 = vector.shape_cast %69 : vector<2x8x8x128xf32> to vector<128x128xf32>
    %c0_27 = arith.constant 0 : index
    %c2560 = arith.constant 2560 : index
    %71 = vector.load %arg10[%c0_27, %c2560] : memref<128x3200xf32, #tpu.memory_space<vmem>>, vector<128x128xf32>
    tpu.vector_store %arg10[%c0_27, %c2560], %70 {strides = array<i32>} : memref<128x3200xf32, #tpu.memory_space<vmem>>, vector<128x128xf32>,
    %72 = vector.extract_strided_slice %8 {offsets = [0, 4, 1, 0], sizes = [2, 8, 8, 128], strides = [1, 1, 1, 1]} : vector<2x12x12x128xf32> to vector<2x8x8x128xf32>
    %73 = vector.shape_cast %72 : vector<2x8x8x128xf32> to vector<128x128xf32>
    %c0_28 = arith.constant 0 : index
    %c2688 = arith.constant 2688 : index
    %74 = vector.load %arg10[%c0_28, %c2688] : memref<128x3200xf32, #tpu.memory_space<vmem>>, vector<128x128xf32>
    tpu.vector_store %arg10[%c0_28, %c2688], %73 {strides = array<i32>} : memref<128x3200xf32, #tpu.memory_space<vmem>>, vector<128x128xf32>,
    %75 = vector.extract_strided_slice %8 {offsets = [0, 4, 2, 0], sizes = [2, 8, 8, 128], strides = [1, 1, 1, 1]} : vector<2x12x12x128xf32> to vector<2x8x8x128xf32>
    %76 = vector.shape_cast %75 : vector<2x8x8x128xf32> to vector<128x128xf32>
    %c0_29 = arith.constant 0 : index
    %c2816 = arith.constant 2816 : index
    %77 = vector.load %arg10[%c0_29, %c2816] : memref<128x3200xf32, #tpu.memory_space<vmem>>, vector<128x128xf32>
    tpu.vector_store %arg10[%c0_29, %c2816], %76 {strides = array<i32>} : memref<128x3200xf32, #tpu.memory_space<vmem>>, vector<128x128xf32>,
    %78 = vector.extract_strided_slice %8 {offsets = [0, 4, 3, 0], sizes = [2, 8, 8, 128], strides = [1, 1, 1, 1]} : vector<2x12x12x128xf32> to vector<2x8x8x128xf32>
    %79 = vector.shape_cast %78 : vector<2x8x8x128xf32> to vector<128x128xf32>
    %c0_30 = arith.constant 0 : index
    %c2944 = arith.constant 2944 : index
    %80 = vector.load %arg10[%c0_30, %c2944] : memref<128x3200xf32, #tpu.memory_space<vmem>>, vector<128x128xf32>
    tpu.vector_store %arg10[%c0_30, %c2944], %79 {strides = array<i32>} : memref<128x3200xf32, #tpu.memory_space<vmem>>, vector<128x128xf32>,
    %81 = vector.extract_strided_slice %8 {offsets = [0, 4, 4, 0], sizes = [2, 8, 8, 128], strides = [1, 1, 1, 1]} : vector<2x12x12x128xf32> to vector<2x8x8x128xf32>
    %82 = vector.shape_cast %81 : vector<2x8x8x128xf32> to vector<128x128xf32>
    %c0_31 = arith.constant 0 : index
    %c3072 = arith.constant 3072 : index
    %83 = vector.load %arg10[%c0_31, %c3072] : memref<128x3200xf32, #tpu.memory_space<vmem>>, vector<128x128xf32>
    tpu.vector_store %arg10[%c0_31, %c3072], %82 {strides = array<i32>} : memref<128x3200xf32, #tpu.memory_space<vmem>>, vector<128x128xf32>,
    %c0_32 = arith.constant 0 : index
    %c0_33 = arith.constant 0 : index
    %84 = vector.load %arg10[%c0_32, %c0_33] : memref<128x3200xf32, #tpu.memory_space<vmem>>, vector<128x3200xf32>
    %c0_34 = arith.constant 0 : index
    %c0_35 = arith.constant 0 : index
    %85 = vector.load %arg3[%c0_34, %c0_35] : memref<3200x128xf32, #tpu.memory_space<vmem>>, vector<3200x128xf32>
    %cst_36 = arith.constant dense<0.000000e+00> : vector<128x128xf32>
    %86 = tpu.matmul %84, %85, %cst_36 {dimension_numbers = #tpu.dot_dimension_numbers<[1], [0], [0], [1], [0, 0, 1, 1], [], []>} : vector<128x3200xf32>, vector<3200x128xf32>, vector<128x128xf32> -> vector<128x128xf32>
    %c0_37 = arith.constant 0 : index
    %c0_38 = arith.constant 0 : index
    %87 = vector.load %arg4[%c0_37, %c0_38] : memref<1x128xf32, #tpu.memory_space<vmem>>, vector<1x128xf32>
    %88 = vector.broadcast %87 : vector<1x128xf32> to vector<128x128xf32>
    %89 = arith.addf %86, %88 : vector<128x128xf32>
    %cst_39 = arith.constant 0.000000e+00 : f32
    %90 = vector.broadcast %cst_39 : f32 to vector<128x128xf32>
    %91 = arith.maximumf %89, %90 : vector<128x128xf32>
    %92 = vector.shape_cast %91 : vector<128x128xf32> to vector<2x64x128xf32>
    %cst_40 = arith.constant dense<0.000000e+00> : vector<2x128xf32>
    %93 = vector.multi_reduction <add>, %92, %cst_40 [1] : vector<2x64x128xf32> to vector<2x128xf32>
    %cst_41 = arith.constant 6.400000e+01 : f32
    %94 = vector.broadcast %cst_41 : f32 to vector<2x128xf32>
    %95 = arith.divf %93, %94 : vector<2x128xf32>
    %c0_42 = arith.constant 0 : index
    %c0_43 = arith.constant 0 : index
    %96 = vector.load %arg5[%c0_42, %c0_43] : memref<128x4096xbf16, #tpu.memory_space<vmem>>, vector<128x4096xbf16>
    %97 = arith.extf %96 : vector<128x4096xbf16> to vector<128x4096xf32>
    %cst_44 = arith.constant dense<0.000000e+00> : vector<2x4096xf32>
    %98 = tpu.matmul %95, %97, %cst_44 {dimension_numbers = #tpu.dot_dimension_numbers<[1], [0], [0], [1], [0, 0, 1, 1], [], []>} : vector<2x128xf32>, vector<128x4096xf32>, vector<2x4096xf32> -> vector<2x4096xf32>
    %c0_45 = arith.constant 0 : index
    %c0_46 = arith.constant 0 : index
    %99 = vector.load %arg6[%c0_45, %c0_46] : memref<1x4096xf32, #tpu.memory_space<vmem>>, vector<1x4096xf32>
    %100 = vector.broadcast %99 : vector<1x4096xf32> to vector<2x4096xf32>
    %101 = arith.addf %98, %100 : vector<2x4096xf32>
    %cst_47 = arith.constant 0.000000e+00 : f32
    %102 = vector.broadcast %cst_47 : f32 to vector<2x4096xf32>
    %103 = arith.maximumf %101, %102 : vector<2x4096xf32>
    %c0_48 = arith.constant 0 : index
    %c0_49 = arith.constant 0 : index
    %104 = vector.load %arg7[%c0_48, %c0_49] : memref<1x4096xf32, #tpu.memory_space<vmem>>, vector<1x4096xf32>
    %105 = vector.broadcast %104 : vector<1x4096xf32> to vector<2x4096xf32>
    %106 = arith.mulf %103, %105 : vector<2x4096xf32>
    %cst_50 = arith.constant dense<0.000000e+00> : vector<2xf32>
    %107 = vector.multi_reduction <add>, %106, %cst_50 [1] : vector<2x4096xf32> to vector<2xf32>
    %108 = vector.shape_cast %107 : vector<2xf32> to vector<2x1xf32>
    %c0_51 = arith.constant 0 : index
    %c0_52 = arith.constant 0 : index
    %109 = vector.load %arg8[%c0_51, %c0_52] : memref<1x1xf32, #tpu.memory_space<vmem>>, vector<1x1xf32>
    %110 = vector.broadcast %109 : vector<1x1xf32> to vector<2x1xf32>
    %111 = arith.addf %108, %110 : vector<2x1xf32>
    %c0_53 = arith.constant 0 : index
    %c0_54 = arith.constant 0 : index
    %112 = vector.load %arg9[%c0_53, %c0_54] : memref<2x1xf32, #tpu.memory_space<vmem>>, vector<2x1xf32>
    tpu.vector_store %arg9[%c0_53, %c0_54], %111 {strides = array<i32>} : memref<2x1xf32, #tpu.memory_space<vmem>>, vector<2x1xf32>,
    return
  }
}

</mosaic_0001>

<llo_original>
// kernel: aesthetic_predictor_forward.1
$region0: #{aesthetic_predictor_forward.1}
  #allocation0 [shape = 'u32[]', space=smem, size = 0x4, offset = 0x4, fixed_abs, tag = 'smem constant byte address 0x4 - core index']
  #allocation1 [shape = 'u32[144,128]{1,0:T(1,128)}', space=vmem, size = 0x12000, scoped, tag = 'internal scratch']
  #allocation2 [shape = 'f32[128,3200]{1,0:T(8,128)}', space=vmem, size = 0x190000, scoped, tag = 'scratch operand']
  #allocation3 [shape = 'f32[1,1]{1,0:T(1,128)S(1)}', space=vmem, size = 0x200, scoped, tag = 'scoped memory for aesthetic_predictor_forward.1']
  %s0 = inlined_call_operand.vmem [shape: f32[288,128], index: 0, kind: input, shape index: {}]
  %s1 = inlined_call_operand.vmem [shape: f32[128,128], index: 1, kind: input, shape index: {}]
  %s2 = inlined_call_operand.vmem [shape: f32[1,128], index: 2, kind: input, shape index: {}]
  %s3 = inlined_call_operand.vmem [shape: f32[3200,128], index: 3, kind: input, shape index: {}]
  %s4 = inlined_call_operand.vmem [shape: f32[1,128], index: 4, kind: input, shape index: {}]
  %s5 = inlined_call_operand.vmem [shape: bf16[128,4096], index: 5, kind: input, shape index: {}]
  %s6 = inlined_call_operand.vmem [shape: f32[1,4096], index: 6, kind: input, shape index: {}]
  %s7 = inlined_call_operand.vmem [shape: f32[1,4096], index: 7, kind: input, shape index: {}]
  %s8 = inlined_call_operand.<no memory space> [shape: f32[1,1], index: 8, kind: input, shape index: {}]
  %s9 = inlined_call_operand.vmem [shape: f32[2,1], index: 9, kind: output, shape index: {}]
  %s10 = sld [smem:[#allocation0]]
  $region46: #{aesthetic_predictor_forward.1} parent=0
    _
  %s12 = ssub.s32 1, %s10
  %s13 = scalar_select 0, %s12, %s10
  %v14 = vstv %s8
  %15 = vst [vmem:[#allocation3] sm:$0x1] %v14
  // Predicated region
  $region2: #{aesthetic_predictor_forward.1} parent=0 // pred_check
    _
  $region3: #{aesthetic_predictor_forward.1} parent=0 // pred_check_branch
    %17 = sbr.rel (0) target = $region5
  $region4: #{aesthetic_predictor_forward.1} parent=0 // pred_region
    _
  $region5: #{aesthetic_predictor_forward.1} parent=0 // pred_fallthru
    _
  // Predicated region
  $region6: #{aesthetic_predictor_forward.1} parent=0 // pred_check
    _
  $region7: #{aesthetic_predictor_forward.1} parent=0 // pred_check_branch
    %19 = sbr.rel (0) target = $region9
  $region8: #{aesthetic_predictor_forward.1} parent=0 // pred_region
    _
  $region9: #{aesthetic_predictor_forward.1} parent=0 // pred_fallthru
    _
  // Predicated region
  $region10: #{aesthetic_predictor_forward.1} parent=0 // pred_check
    _
  $region11: #{aesthetic_predictor_forward.1} parent=0 // pred_check_branch
    %21 = sbr.rel (0) target = $region13
  $region12: #{aesthetic_predictor_forward.1} parent=0 // pred_region
    _
  $region13: #{aesthetic_predictor_forward.1} parent=0 // pred_fallthru
    _
  // Predicated region
  $region14: #{aesthetic_predictor_forward.1} parent=0 // pred_check
    _
  $region15: #{aesthetic_predictor_forward.1} parent=0 // pred_check_branch
    %23 = sbr.rel (0) target = $region17
  $region16: #{aesthetic_predictor_forward.1} parent=0 // pred_region
    _
  $region17: #{aesthetic_predictor_forward.1} parent=0 // pred_fallthru
    _
  // Predicated region
  $region18: #{aesthetic_predictor_forward.1} parent=0 // pred_check
    _
  $region19: #{aesthetic_predictor_forward.1} parent=0 // pred_check_branch
    %25 = sbr.rel (0) target = $region21
  $region20: #{aesthetic_predictor_forward.1} parent=0 // pred_region
    _
  $region21: #{aesthetic_predictor_forward.1} parent=0 // pred_fallthru
    _
  // Predicated region
  $region22: #{aesthetic_predictor_forward.1} parent=0 // pred_check
    _
  $region23: #{aesthetic_predictor_forward.1} parent=0 // pred_check_branch
    %27 = sbr.rel (0) target = $region25
  $region24: #{aesthetic_predictor_forward.1} parent=0 // pred_region
    _
  $region25: #{aesthetic_predictor_forward.1} parent=0 // pred_fallthru
    _
  // Predicated region
  $region26: #{aesthetic_predictor_forward.1} parent=0 // pred_check
    _
  $region27: #{aesthetic_predictor_forward.1} parent=0 // pred_check_branch
    %29 = sbr.rel (0) target = $region29
  $region28: #{aesthetic_predictor_forward.1} parent=0 // pred_region
    _
  $region29: #{aesthetic_predictor_forward.1} parent=0 // pred_fallthru
    _
  // Predicated region
  $region30: #{aesthetic_predictor_forward.1} parent=0 // pred_check
    _
  $region31: #{aesthetic_predictor_forward.1} parent=0 // pred_check_branch
    %31 = sbr.rel (0) target = $region33
  $region32: #{aesthetic_predictor_forward.1} parent=0 // pred_region
    _
  $region33: #{aesthetic_predictor_forward.1} parent=0 // pred_fallthru
    _
  // Predicated region
  $region34: #{aesthetic_predictor_forward.1} parent=0 // pred_check
    _
  $region35: #{aesthetic_predictor_forward.1} parent=0 // pred_check_branch
    %33 = sbr.rel (0) target = $region37
  $region36: #{aesthetic_predictor_forward.1} parent=0 // pred_region
    _
  $region37: #{aesthetic_predictor_forward.1} parent=0 // pred_fallthru
    _
  %v34 = vld [vmem:[%s0] sm:$0xff]
  %v35 = vld [vmem:[%s0 + $0x8] sm:$0xff]
  %v36 = vld [vmem:[%s0 + $0x10] sm:$0xff]
  %v37 = vld [vmem:[%s0 + $0x18] sm:$0xff]
  %v38 = vld [vmem:[%s0 + $0x20] sm:$0xff]
  %v39 = vld [vmem:[%s0 + $0x28] sm:$0xff]
  %v40 = vld [vmem:[%s0 + $0x30] sm:$0xff]
  %v41 = vld [vmem:[%s0 + $0x38] sm:$0xff]
  %v42 = vld [vmem:[%s0 + $0x40] sm:$0xff]
  %v43 = vld [vmem:[%s0 + $0x48] sm:$0xff]
  %v44 = vld [vmem:[%s0 + $0x50] sm:$0xff]
  %v45 = vld [vmem:[%s0 + $0x58] sm:$0xff]
  %v46 = vld [vmem:[%s0 + $0x60] sm:$0xff]
  %v47 = vld [vmem:[%s0 + $0x68] sm:$0xff]
  %v48 = vld [vmem:[%s0 + $0x70] sm:$0xff]
  %v49 = vld [vmem:[%s0 + $0x78] sm:$0xff]
  %v50 = vld [vmem:[%s0 + $0x80] sm:$0xff]
  %v51 = vld [vmem:[%s0 + $0x88] sm:$0xff]
  %v52 = vld [vmem:[%s0 + $0x90] sm:$0xff]
  %v53 = vld [vmem:[%s0 + $0x98] sm:$0xff]
  %v54 = vld [vmem:[%s0 + $0xa0] sm:$0xff]
  %v55 = vld [vmem:[%s0 + $0xa8] sm:$0xff]
  %v56 = vld [vmem:[%s0 + $0xb0] sm:$0xff]
  %v57 = vld [vmem:[%s0 + $0xb8] sm:$0xff]
  %v58 = vld [vmem:[%s0 + $0xc0] sm:$0xff]
  %v59 = vld [vmem:[%s0 + $0xc8] sm:$0xff]
  %v60 = vld [vmem:[%s0 + $0xd0] sm:$0xff]
  %v61 = vld [vmem:[%s0 + $0xd8] sm:$0xff]
  %v62 = vld [vmem:[%s0 + $0xe0] sm:$0xff]
  %v63 = vld [vmem:[%s0 + $0xe8] sm:$0xff]
  %v64 = vld [vmem:[%s0 + $0xf0] sm:$0xff]
  %v65 = vld [vmem:[%s0 + $0xf8] sm:$0xff]
  %v66 = vld [vmem:[%s0 + $0x100] sm:$0xff]
  %v67 = vld [vmem:[%s0 + $0x108] sm:$0xff]
  %v68 = vld [vmem:[%s0 + $0x110] sm:$0xff]
  %v69 = vld [vmem:[%s0 + $0x118] sm:$0xff]
  %v70 = vld [vmem:[%s1] sm:$0xff]
  %v71 = vld [vmem:[%s1 + $0x8] sm:$0xff]
  %v72 = vld [vmem:[%s1 + $0x10] sm:$0xff]
  %v73 = vld [vmem:[%s1 + $0x18] sm:$0xff]
  %v74 = vld [vmem:[%s1 + $0x20] sm:$0xff]
  %v75 = vld [vmem:[%s1 + $0x28] sm:$0xff]
  %v76 = vld [vmem:[%s1 + $0x30] sm:$0xff]
  %v77 = vld [vmem:[%s1 + $0x38] sm:$0xff]
  %v78 = vld [vmem:[%s1 + $0x40] sm:$0xff]
  %v79 = vld [vmem:[%s1 + $0x48] sm:$0xff]
  %v80 = vld [vmem:[%s1 + $0x50] sm:$0xff]
  %v81 = vld [vmem:[%s1 + $0x58] sm:$0xff]
  %v82 = vld [vmem:[%s1 + $0x60] sm:$0xff]
  %v83 = vld [vmem:[%s1 + $0x68] sm:$0xff]
  %v84 = vld [vmem:[%s1 + $0x70] sm:$0xff]
  %v85 = vld [vmem:[%s1 + $0x78] sm:$0xff]
  %v86 = vld [vmem:[%s2] sm:$0x1]
  %v88 = vlaneseq
  %v89 = vshrl.u32 %v88, 7
  %v90 = vsub.s32 0, %v89
  %v91 = vrot.slane %v86, %v90
  %93 = vmatprep.subr.mxu0 0.0
  %94 = vmatpush1.msra.mxu0 %v85
  %95 = vmatprep.subr.mxu0 0.0
  %96 = vmatpush1.msra.mxu0 %v84
  %97 = vmatprep.subr.mxu0 0.0
  %98 = vmatpush1.msra.mxu0 %v83
  %99 = vmatprep.subr.mxu0 0.0
  %100 = vmatpush1.msra.mxu0 %v82
  %101 = vmatprep.subr.mxu0 0.0
  %102 = vmatpush1.msra.mxu0 %v81
  %103 = vmatprep.subr.mxu0 0.0
  %104 = vmatpush1.msra.mxu0 %v80
  %105 = vmatprep.subr.mxu0 0.0
  %106 = vmatpush1.msra.mxu0 %v79
  %107 = vmatprep.subr.mxu0 0.0
  %108 = vmatpush1.msra.mxu0 %v78
  %109 = vmatprep.subr.mxu0 0.0
  %110 = vmatpush1.msra.mxu0 %v77
  %111 = vmatprep.subr.mxu0 0.0
  %112 = vmatpush1.msra.mxu0 %v76
  %113 = vmatprep.subr.mxu0 0.0
  %114 = vmatpush1.msra.mxu0 %v75
  %115 = vmatprep.subr.mxu0 0.0
  %116 = vmatpush1.msra.mxu0 %v74
  %117 = vmatprep.subr.mxu0 0.0
  %118 = vmatpush1.msra.mxu0 %v73
  %119 = vmatprep.subr.mxu0 0.0
  %120 = vmatpush1.msra.mxu0 %v72
  %121 = vmatprep.subr.mxu0 0.0
  %122 = vmatpush1.msra.mxu0 %v71
  %123 = vmatprep.subr.mxu0 0.0
  %124 = vmatpush1.msra.mxu0 %v70
  %125 = vmatprep.subr.mxu0 0.0
  %126 = vmatpush2.msra.mxu0 0.0
  %127 = vmatprep.subr.mxu0 0.0
  %128 = vmatpush2.msra.mxu0 0.0
  %129 = vmatprep.subr.mxu0 0.0
  %130 = vmatpush2.msra.mxu0 0.0
  %131 = vmatprep.subr.mxu0 0.0
  %132 = vmatpush2.msra.mxu0 0.0
  %133 = vmatprep.subr.mxu0 0.0
  %134 = vmatpush2.msra.mxu0 0.0
  %135 = vmatprep.subr.mxu0 0.0
  %136 = vmatpush2.msra.mxu0 0.0
  %137 = vmatprep.subr.mxu0 0.0
  %138 = vmatpush2.msra.mxu0 0.0
  %139 = vmatprep.subr.mxu0 0.0
  %140 = vmatpush2.msra.mxu0 0.0
  %141 = vmatprep.subr.mxu0 0.0
  %142 = vmatpush2.msra.mxu0 0.0
  %143 = vmatprep.subr.mxu0 0.0
  %144 = vmatpush2.msra.mxu0 0.0
  %145 = vmatprep.subr.mxu0 0.0
  %146 = vmatpush2.msra.mxu0 0.0
  %147 = vmatprep.subr.mxu0 0.0
  %148 = vmatpush2.msra.mxu0 0.0
  %149 = vmatprep.subr.mxu0 0.0
  %150 = vmatpush2.msra.mxu0 0.0
  %151 = vmatprep.subr.mxu0 0.0
  %152 = vmatpush2.msra.mxu0 0.0
  %153 = vmatprep.subr.mxu0 0.0
  %154 = vmatpush2.msra.mxu0 0.0
  %155 = vmatprep.subr.mxu0 0.0
  %156 = vmatpush2.msra.mxu0 0.0
  %157 = vmatprep.mubr.f32.mxu0 0.0
  %158 = vmatmul.mubr.f32.gmra.mxu0 %v34
  %v159 = vpop.f32.mrf.mxu0
  %v160 = vadd.f32 %v91, %v159
  %v161 = vpop.f32.mrf.mxu0
  %162 = vmatprep.mubr.f32.mxu0 0.0
  %163 = vmatmul.mubr.f32.gmra.mxu0 %v35
  %v164 = vpop.f32.mrf.mxu0
  %v165 = vadd.f32 %v91, %v164
  %v166 = vpop.f32.mrf.mxu0
  %167 = vmatprep.mubr.f32.mxu0 0.0
  %168 = vmatmul.mubr.f32.gmra.mxu0 %v36
  %v169 = vpop.f32.mrf.mxu0
  %v170 = vadd.f32 %v91, %v169
  %v171 = vpop.f32.mrf.mxu0
  %172 = vmatprep.mubr.f32.mxu0 0.0
  %173 = vmatmul.mubr.f32.gmra.mxu0 %v37
  %v174 = vpop.f32.mrf.mxu0
  %v175 = vadd.f32 %v91, %v174
  %v176 = vpop.f32.mrf.mxu0
  %177 = vmatprep.mubr.f32.mxu0 0.0
  %178 = vmatmul.mubr.f32.gmra.mxu0 %v38
  %v179 = vpop.f32.mrf.mxu0
  %v180 = vadd.f32 %v91, %v179
  %v181 = vpop.f32.mrf.mxu0
  %182 = vmatprep.mubr.f32.mxu0 0.0
  %183 = vmatmul.mubr.f32.gmra.mxu0 %v39
  %v184 = vpop.f32.mrf.mxu0
  %v185 = vadd.f32 %v91, %v184
  %v186 = vpop.f32.mrf.mxu0
  %187 = vmatprep.mubr.f32.mxu0 0.0
  %188 = vmatmul.mubr.f32.gmra.mxu0 %v40
  %v189 = vpop.f32.mrf.mxu0
  %v190 = vadd.f32 %v91, %v189
  %v191 = vpop.f32.mrf.mxu0
  %192 = vmatprep.mubr.f32.mxu0 0.0
  %193 = vmatmul.mubr.f32.gmra.mxu0 %v41
  %v194 = vpop.f32.mrf.mxu0
  %v195 = vadd.f32 %v91, %v194
  %v196 = vpop.f32.mrf.mxu0
  %197 = vmatprep.mubr.f32.mxu0 0.0
  %198 = vmatmul.mubr.f32.gmra.mxu0 %v42
  %v199 = vpop.f32.mrf.mxu0
  %v200 = vadd.f32 %v91, %v199
  %v201 = vpop.f32.mrf.mxu0
  %202 = vmatprep.mubr.f32.mxu0 0.0
  %203 = vmatmul.mubr.f32.gmra.mxu0 %v43
  %v204 = vpop.f32.mrf.mxu0
  %v205 = vadd.f32 %v91, %v204
  %v206 = vpop.f32.mrf.mxu0
  %207 = vmatprep.mubr.f32.mxu0 0.0
  %208 = vmatmul.mubr.f32.gmra.mxu0 %v44
  %v209 = vpop.f32.mrf.mxu0
  %v210 = vadd.f32 %v91, %v209
  %v211 = vpop.f32.mrf.mxu0
  %212 = vmatprep.mubr.f32.mxu0 0.0
  %213 = vmatmul.mubr.f32.gmra.mxu0 %v45
  %v214 = vpop.f32.mrf.mxu0
  %v215 = vadd.f32 %v91, %v214
  %v216 = vpop.f32.mrf.mxu0
  %217 = vmatprep.mubr.f32.mxu0 0.0
  %218 = vmatmul.mubr.f32.gmra.mxu0 %v46
  %v219 = vpop.f32.mrf.mxu0
  %v220 = vadd.f32 %v91, %v219
  %v221 = vpop.f32.mrf.mxu0
  %222 = vmatprep.mubr.f32.mxu0 0.0
  %223 = vmatmul.mubr.f32.gmra.mxu0 %v47
  %v224 = vpop.f32.mrf.mxu0
  %v225 = vadd.f32 %v91, %v224
  %v226 = vpop.f32.mrf.mxu0
  %227 = vmatprep.mubr.f32.mxu0 0.0
  %228 = vmatmul.mubr.f32.gmra.mxu0 %v48
  %v229 = vpop.f32.mrf.mxu0
  %v230 = vadd.f32 %v91, %v229
  %v231 = vpop.f32.mrf.mxu0
  %232 = vmatprep.mubr.f32.mxu0 0.0
  %233 = vmatmul.mubr.f32.gmra.mxu0 %v49
  %v234 = vpop.f32.mrf.mxu0
  %v235 = vadd.f32 %v91, %v234
  %v236 = vpop.f32.mrf.mxu0
  %237 = vmatprep.mubr.f32.mxu0 0.0
  %238 = vmatmul.mubr.f32.gmra.mxu0 %v50
  %v239 = vpop.f32.mrf.mxu0
  %v240 = vadd.f32 %v91, %v239
  %v241 = vpop.f32.mrf.mxu0
  %242 = vmatprep.mubr.f32.mxu0 0.0
  %243 = vmatmul.mubr.f32.gmra.mxu0 %v51
  %v244 = vpop.f32.mrf.mxu0
  %v245 = vadd.f32 %v91, %v244
  %v246 = vpop.f32.mrf.mxu0
  %247 = vmatprep.mubr.f32.mxu0 0.0
  %248 = vmatmul.mubr.f32.gmra.mxu0 %v52
  %v249 = vpop.f32.mrf.mxu0
  %v250 = vadd.f32 %v91, %v249
  %v251 = vpop.f32.mrf.mxu0
  %252 = vmatprep.mubr.f32.mxu0 0.0
  %253 = vmatmul.mubr.f32.gmra.mxu0 %v53
  %v254 = vpop.f32.mrf.mxu0
  %v255 = vadd.f32 %v91, %v254
  %v256 = vpop.f32.mrf.mxu0
  %257 = vmatprep.mubr.f32.mxu0 0.0
  %258 = vmatmul.mubr.f32.gmra.mxu0 %v54
  %v259 = vpop.f32.mrf.mxu0
  %v260 = vadd.f32 %v91, %v259
  %v261 = vpop.f32.mrf.mxu0
  %262 = vmatprep.mubr.f32.mxu0 0.0
  %263 = vmatmul.mubr.f32.gmra.mxu0 %v55
  %v264 = vpop.f32.mrf.mxu0
  %v265 = vadd.f32 %v91, %v264
  %v266 = vpop.f32.mrf.mxu0
  %267 = vmatprep.mubr.f32.mxu0 0.0
  %268 = vmatmul.mubr.f32.gmra.mxu0 %v56
  %v269 = vpop.f32.mrf.mxu0
  %v270 = vadd.f32 %v91, %v269
  %v271 = vpop.f32.mrf.mxu0
  %272 = vmatprep.mubr.f32.mxu0 0.0
  %273 = vmatmul.mubr.f32.gmra.mxu0 %v57
  %v274 = vpop.f32.mrf.mxu0
  %v275 = vadd.f32 %v91, %v274
  %v276 = vpop.f32.mrf.mxu0
  %277 = vmatprep.mubr.f32.mxu0 0.0
  %278 = vmatmul.mubr.f32.gmra.mxu0 %v58
  %v279 = vpop.f32.mrf.mxu0
  %v280 = vadd.f32 %v91, %v279
  %v281 = vpop.f32.mrf.mxu0
  %282 = vmatprep.mubr.f32.mxu0 0.0
  %283 = vmatmul.mubr.f32.gmra.mxu0 %v59
  %v284 = vpop.f32.mrf.mxu0
  %v285 = vadd.f32 %v91, %v284
  %v286 = vpop.f32.mrf.mxu0
  %287 = vmatprep.mubr.f32.mxu0 0.0
  %288 = vmatmul.mubr.f32.gmra.mxu0 %v60
  %v289 = vpop.f32.mrf.mxu0
  %v290 = vadd.f32 %v91, %v289
  %v291 = vpop.f32.mrf.mxu0
  %292 = vmatprep.mubr.f32.mxu0 0.0
  %293 = vmatmul.mubr.f32.gmra.mxu0 %v61
  %v294 = vpop.f32.mrf.mxu0
  %v295 = vadd.f32 %v91, %v294
  %v296 = vpop.f32.mrf.mxu0
  %297 = vmatprep.mubr.f32.mxu0 0.0
  %298 = vmatmul.mubr.f32.gmra.mxu0 %v62
  %v299 = vpop.f32.mrf.mxu0
  %v300 = vadd.f32 %v91, %v299
  %v301 = vpop.f32.mrf.mxu0
  %302 = vmatprep.mubr.f32.mxu0 0.0
  %303 = vmatmul.mubr.f32.gmra.mxu0 %v63
  %v304 = vpop.f32.mrf.mxu0
  %v305 = vadd.f32 %v91, %v304
  %v306 = vpop.f32.mrf.mxu0
  %307 = vmatprep.mubr.f32.mxu0 0.0
  %308 = vmatmul.mubr.f32.gmra.mxu0 %v64
  %v309 = vpop.f32.mrf.mxu0
  %v310 = vadd.f32 %v91, %v309
  %v311 = vpop.f32.mrf.mxu0
  %312 = vmatprep.mubr.f32.mxu0 0.0
  %313 = vmatmul.mubr.f32.gmra.mxu0 %v65
  %v314 = vpop.f32.mrf.mxu0
  %v315 = vadd.f32 %v91, %v314
  %v316 = vpop.f32.mrf.mxu0
  %317 = vmatprep.mubr.f32.mxu0 0.0
  %318 = vmatmul.mubr.f32.gmra.mxu0 %v66
  %v319 = vpop.f32.mrf.mxu0
  %v320 = vadd.f32 %v91, %v319
  %v321 = vpop.f32.mrf.mxu0
  %322 = vmatprep.mubr.f32.mxu0 0.0
  %323 = vmatmul.mubr.f32.gmra.mxu0 %v67
  %v324 = vpop.f32.mrf.mxu0
  %v325 = vadd.f32 %v91, %v324
  %v326 = vpop.f32.mrf.mxu0
  %327 = vmatprep.mubr.f32.mxu0 0.0
  %328 = vmatmul.mubr.f32.gmra.mxu0 %v68
  %v329 = vpop.f32.mrf.mxu0
  %v330 = vadd.f32 %v91, %v329
  %v331 = vpop.f32.mrf.mxu0
  %332 = vmatprep.mubr.f32.mxu0 0.0
  %333 = vmatmul.mubr.f32.gmra.mxu0 %v69
  %v334 = vpop.f32.mrf.mxu0
  %v335 = vadd.f32 %v91, %v334
  %v336 = vpop.f32.mrf.mxu0
  %337 = vdwg.mxu0
  %v338 = vmax.f32 %v160, 0.0
  %v339 = vmax.f32 %v165, 0.0
  %v340 = vmax.f32 %v170, 0.0
  %v341 = vmax.f32 %v175, 0.0
  %v342 = vmax.f32 %v180, 0.0
  %v343 = vmax.f32 %v185, 0.0
  %v344 = vmax.f32 %v190, 0.0
  %v345 = vmax.f32 %v195, 0.0
  %v346 = vmax.f32 %v200, 0.0
  %v347 = vmax.f32 %v205, 0.0
  %v348 = vmax.f32 %v210, 0.0
  %v349 = vmax.f32 %v215, 0.0
  %v350 = vmax.f32 %v220, 0.0
  %v351 = vmax.f32 %v225, 0.0
  %v352 = vmax.f32 %v230, 0.0
  %v353 = vmax.f32 %v235, 0.0
  %v354 = vmax.f32 %v240, 0.0
  %v355 = vmax.f32 %v245, 0.0
  %v356 = vmax.f32 %v250, 0.0
  %v357 = vmax.f32 %v255, 0.0
  %v358 = vmax.f32 %v260, 0.0
  %v359 = vmax.f32 %v265, 0.0
  %v360 = vmax.f32 %v270, 0.0
  %v361 = vmax.f32 %v275, 0.0
  %v362 = vmax.f32 %v280, 0.0
  %v363 = vmax.f32 %v285, 0.0
  %v364 = vmax.f32 %v290, 0.0
  %v365 = vmax.f32 %v295, 0.0
  %v366 = vmax.f32 %v300, 0.0
  %v367 = vmax.f32 %v305, 0.0
  %v368 = vmax.f32 %v310, 0.0
  %v369 = vmax.f32 %v315, 0.0
  %v370 = vmax.f32 %v320, 0.0
  %v371 = vmax.f32 %v325, 0.0
  %v372 = vmax.f32 %v330, 0.0
  %v373 = vmax.f32 %v335, 0.0
  %v410 = vcombine.high %v338, %v338
  %v411 = vcombine.high %v339, %v339
  %v412 = vcombine.high %v340, %v340
  %v413 = vcombine.high %v341, %v341
  %v414 = vcombine.high %v342, %v342
  %v415 = vcombine.high %v343, %v343
  %v416 = vcombine.high %v344, %v344
  %v417 = vcombine.high %v345, %v345
  %v418 = vcombine.high %v346, %v346
  %v419 = vcombine.high %v347, %v347
  %v420 = vcombine.high %v348, %v348
  %v421 = vcombine.high %v349, %v349
  %v422 = vcombine.high %v350, %v350
  %v423 = vcombine.high %v351, %v351
  %v424 = vcombine.high %v352, %v352
  %v425 = vcombine.high %v353, %v353
  %v426 = vcombine.high %v354, %v354
  %v427 = vcombine.high %v355, %v355
  %v428 = vcombine.high %v356, %v356
  %v429 = vcombine.high %v357, %v357
  %v430 = vcombine.high %v358, %v358
  %v431 = vcombine.high %v359, %v359
  %v432 = vcombine.high %v360, %v360
  %v433 = vcombine.high %v361, %v361
  %v434 = vcombine.high %v362, %v362
  %v435 = vcombine.high %v363, %v363
  %v436 = vcombine.high %v364, %v364
  %v437 = vcombine.high %v365, %v365
  %v438 = vcombine.high %v366, %v366
  %v439 = vcombine.high %v367, %v367
  %v440 = vcombine.high %v368, %v368
  %v441 = vcombine.high %v369, %v369
  %v442 = vcombine.high %v370, %v370
  %v443 = vcombine.high %v371, %v371
  %v444 = vcombine.high %v372, %v372
  %v445 = vcombine.high %v373, %v373
  %v446 = vcombine.low %v338, %v410
  %v447 = vcombine.low %v411, %v340
  %v448 = vcombine.low %v341, %v413
  %v449 = vcombine.low %v414, %v343
  %v450 = vcombine.low %v344, %v416
  %v451 = vcombine.low %v417, %v346
  %v452 = vcombine.low %v347, %v419
  %v453 = vcombine.low %v420, %v349
  %v454 = vcombine.low %v356, %v428
  %v455 = vcombine.low %v429, %v358
  %v456 = vcombine.low %v359, %v431
  %v457 = vcombine.low %v432, %v361
  %v458 = vcombine.low %v362, %v434
  %v459 = vcombine.low %v435, %v364
  %v460 = vcombine.low %v365, %v437
  %v461 = vcombine.low %v438, %v367
  %478 = vst [vmem:[#allocation2] sm:$0xff] %v446
  %479 = vst [vmem:[#allocation2 + $0xc8] sm:$0xff] %v447
  %480 = vst [vmem:[#allocation2 + $0x190] sm:$0xff] %v448
  %481 = vst [vmem:[#allocation2 + $0x258] sm:$0xff] %v449
  %482 = vst [vmem:[#allocation2 + $0x320] sm:$0xff] %v450
  %483 = vst [vmem:[#allocation2 + $0x3e8] sm:$0xff] %v451
  %484 = vst [vmem:[#allocation2 + $0x4b0] sm:$0xff] %v452
  %485 = vst [vmem:[#allocation2 + $0x578] sm:$0xff] %v453
  %486 = vst [vmem:[#allocation2 + $0x640] sm:$0xff] %v454
  %487 = vst [vmem:[#allocation2 + $0x708] sm:$0xff] %v455
  %488 = vst [vmem:[#allocation2 + $0x7d0] sm:$0xff] %v456
  %489 = vst [vmem:[#allocation2 + $0x898] sm:$0xff] %v457
  %490 = vst [vmem:[#allocation2 + $0x960] sm:$0xff] %v458
  %491 = vst [vmem:[#allocation2 + $0xa28] sm:$0xff] %v459
  %492 = vst [vmem:[#allocation2 + $0xaf0] sm:$0xff] %v460
  %493 = vst [vmem:[#allocation2 + $0xbb8] sm:$0xff] %v461
  %vm494 = vcmask 1042432
  %vm495 = vcmask 1046532
  %vm496 = vmor %vm494, %vm495
  %v497 = vrot.slane %v338, 5
  %v498 = vrot.slane %v497, 4
  %v499 = vrot.slane %v410, 5
  %v500 = vsel %vm496, %v498, %v499
  %v501 = vrot.slane %v499, 4
  %v502 = vrot.slane %v339, 5
  %v503 = vsel %vm496, %v501, %v502
  %v504 = vrot.slane %v411, 5
  %v505 = vrot.slane %v504, 4
  %v506 = vrot.slane %v340, 5
  %v507 = vsel %vm496, %v505, %v506
  %v508 = vrot.slane %v506, 4
  %v509 = vrot.slane %v412, 5
  %v510 = vsel %vm496, %v508, %v509
  %v511 = vrot.slane %v341, 5
  %v512 = vrot.slane %v511, 4
  %v513 = vrot.slane %v413, 5
  %v514 = vsel %vm496, %v512, %v513
  %v515 = vrot.slane %v513, 4
  %v516 = vrot.slane %v342, 5
  %v517 = vsel %vm496, %v515, %v516
  %v518 = vrot.slane %v414, 5
  %v519 = vrot.slane %v518, 4
  %v520 = vrot.slane %v343, 5
  %v521 = vsel %vm496, %v519, %v520
  %v522 = vrot.slane %v520, 4
  %v523 = vrot.slane %v415, 5
  %v524 = vsel %vm496, %v522, %v523
  %v525 = vrot.slane %v344, 5
  %v526 = vrot.slane %v525, 4
  %v527 = vrot.slane %v416, 5
  %v528 = vsel %vm496, %v526, %v527
  %v529 = vrot.slane %v527, 4
  %v530 = vrot.slane %v345, 5
  %v531 = vsel %vm496, %v529, %v530
  %v532 = vrot.slane %v417, 5
  %v533 = vrot.slane %v532, 4
  %v534 = vrot.slane %v346, 5
  %v535 = vsel %vm496, %v533, %v534
  %v536 = vrot.slane %v534, 4
  %v537 = vrot.slane %v418, 5
  %v538 = vsel %vm496, %v536, %v537
  %v539 = vrot.slane %v347, 5
  %v540 = vrot.slane %v539, 4
  %v541 = vrot.slane %v419, 5
  %v542 = vsel %vm496, %v540, %v541
  %v543 = vrot.slane %v541, 4
  %v544 = vrot.slane %v348, 5
  %v545 = vsel %vm496, %v543, %v544
  %v546 = vrot.slane %v420, 5
  %v547 = vrot.slane %v546, 4
  %v548 = vrot.slane %v349, 5
  %v549 = vsel %vm496, %v547, %v548
  %v550 = vrot.slane %v548, 4
  %v551 = vrot.slane %v421, 5
  %v552 = vsel %vm496, %v550, %v551
  %v553 = vrot.slane %v356, 5
  %v554 = vrot.slane %v553, 4
  %v555 = vrot.slane %v428, 5
  %v556 = vsel %vm496, %v554, %v555
  %v557 = vrot.slane %v555, 4
  %v558 = vrot.slane %v357, 5
  %v559 = vsel %vm496, %v557, %v558
  %v560 = vrot.slane %v429, 5
  %v561 = vrot.slane %v560, 4
  %v562 = vrot.slane %v358, 5
  %v563 = vsel %vm496, %v561, %v562
  %v564 = vrot.slane %v562, 4
  %v565 = vrot.slane %v430, 5
  %v566 = vsel %vm496, %v564, %v565
  %v567 = vrot.slane %v359, 5
  %v568 = vrot.slane %v567, 4
  %v569 = vrot.slane %v431, 5
  %v570 = vsel %vm496, %v568, %v569
  %v571 = vrot.slane %v569, 4
  %v572 = vrot.slane %v360, 5
  %v573 = vsel %vm496, %v571, %v572
  %v574 = vrot.slane %v432, 5
  %v575 = vrot.slane %v574, 4
  %v576 = vrot.slane %v361, 5
  %v577 = vsel %vm496, %v575, %v576
  %v578 = vrot.slane %v576, 4
  %v579 = vrot.slane %v433, 5
  %v580 = vsel %vm496, %v578, %v579
  %v581 = vrot.slane %v362, 5
  %v582 = vrot.slane %v581, 4
  %v583 = vrot.slane %v434, 5
  %v584 = vsel %vm496, %v582, %v583
  %v585 = vrot.slane %v583, 4
  %v586 = vrot.slane %v363, 5
  %v587 = vsel %vm496, %v585, %v586
  %v588 = vrot.slane %v435, 5
  %v589 = vrot.slane %v588, 4
  %v590 = vrot.slane %v364, 5
  %v591 = vsel %vm496, %v589, %v590
  %v592 = vrot.slane %v590, 4
  %v593 = vrot.slane %v436, 5
  %v594 = vsel %vm496, %v592, %v593
  %v595 = vrot.slane %v365, 5
  %v596 = vrot.slane %v595, 4
  %v597 = vrot.slane %v437, 5
  %v598 = vsel %vm496, %v596, %v597
  %v599 = vrot.slane %v597, 4
  %v600 = vrot.slane %v366, 5
  %v601 = vsel %vm496, %v599, %v600
  %v602 = vrot.slane %v438, 5
  %v603 = vrot.slane %v602, 4
  %v604 = vrot.slane %v367, 5
  %v605 = vsel %vm496, %v603, %v604
  %v606 = vrot.slane %v604, 4
  %v607 = vrot.slane %v439, 5
  %v608 = vsel %vm496, %v606, %v607
  %v609 = vcombine.low %v500, %v503
  %v610 = vcombine.low %v507, %v510
  %v611 = vcombine.low %v514, %v517
  %v612 = vcombine.low %v521, %v524
  %v613 = vcombine.low %v528, %v531
  %v614 = vcombine.low %v535, %v538
  %v615 = vcombine.low %v542, %v545
  %v616 = vcombine.low %v549, %v552
  %v617 = vcombine.low %v556, %v559
  %v618 = vcombine.low %v563, %v566
  %v619 = vcombine.low %v570, %v573
  %v620 = vcombine.low %v577, %v580
  %v621 = vcombine.low %v584, %v587
  %v622 = vcombine.low %v591, %v594
  %v623 = vcombine.low %v598, %v601
  %v624 = vcombine.low %v605, %v608
  %641 = vst [vmem:[#allocation2 + $0x8] sm:$0xff] %v609
  %642 = vst [vmem:[#allocation2 + $0xd0] sm:$0xff] %v610
  %643 = vst [vmem:[#allocation2 + $0x198] sm:$0xff] %v611
  %644 = vst [vmem:[#allocation2 + $0x260] sm:$0xff] %v612
  %645 = vst [vmem:[#allocation2 + $0x328] sm:$0xff] %v613
  %646 = vst [vmem:[#allocation2 + $0x3f0] sm:$0xff] %v614
  %647 = vst [vmem:[#allocation2 + $0x4b8] sm:$0xff] %v615
  %648 = vst [vmem:[#allocation2 + $0x580] sm:$0xff] %v616
  %649 = vst [vmem:[#allocation2 + $0x648] sm:$0xff] %v617
  %650 = vst [vmem:[#allocation2 + $0x710] sm:$0xff] %v618
  %651 = vst [vmem:[#allocation2 + $0x7d8] sm:$0xff] %v619
  %652 = vst [vmem:[#allocation2 + $0x8a0] sm:$0xff] %v620
  %653 = vst [vmem:[#allocation2 + $0x968] sm:$0xff] %v621
  %654 = vst [vmem:[#allocation2 + $0xa30] sm:$0xff] %v622
  %655 = vst [vmem:[#allocation2 + $0xaf8] sm:$0xff] %v623
  %656 = vst [vmem:[#allocation2 + $0xbc0] sm:$0xff] %v624
  %vm657 = vcmask 1041408
  %vm658 = vcmask 1045508
  %vm659 = vmor %vm657, %vm658
  %v660 = vrot.slane %v338, 6
  %v661 = vrot.slane %v660, 4
  %v662 = vrot.slane %v410, 6
  %v663 = vsel %vm659, %v661, %v662
  %v664 = vrot.slane %v662, 4
  %v665 = vrot.slane %v339, 6
  %v666 = vsel %vm659, %v664, %v665
  %v667 = vrot.slane %v411, 6
  %v668 = vrot.slane %v667, 4
  %v669 = vrot.slane %v340, 6
  %v670 = vsel %vm659, %v668, %v669
  %v671 = vrot.slane %v669, 4
  %v672 = vrot.slane %v412, 6
  %v673 = vsel %vm659, %v671, %v672
  %v674 = vrot.slane %v341, 6
  %v675 = vrot.slane %v674, 4
  %v676 = vrot.slane %v413, 6
  %v677 = vsel %vm659, %v675, %v676
  %v678 = vrot.slane %v676, 4
  %v679 = vrot.slane %v342, 6
  %v680 = vsel %vm659, %v678, %v679
  %v681 = vrot.slane %v414, 6
  %v682 = vrot.slane %v681, 4
  %v683 = vrot.slane %v343, 6
  %v684 = vsel %vm659, %v682, %v683
  %v685 = vrot.slane %v683, 4
  %v686 = vrot.slane %v415, 6
  %v687 = vsel %vm659, %v685, %v686
  %v688 = vrot.slane %v344, 6
  %v689 = vrot.slane %v688, 4
  %v690 = vrot.slane %v416, 6
  %v691 = vsel %vm659, %v689, %v690
  %v692 = vrot.slane %v690, 4
  %v693 = vrot.slane %v345, 6
  %v694 = vsel %vm659, %v692, %v693
  %v695 = vrot.slane %v417, 6
  %v696 = vrot.slane %v695, 4
  %v697 = vrot.slane %v346, 6
  %v698 = vsel %vm659, %v696, %v697
  %v699 = vrot.slane %v697, 4
  %v700 = vrot.slane %v418, 6
  %v701 = vsel %vm659, %v699, %v700
  %v702 = vrot.slane %v347, 6
  %v703 = vrot.slane %v702, 4
  %v704 = vrot.slane %v419, 6
  %v705 = vsel %vm659, %v703, %v704
  %v706 = vrot.slane %v704, 4
  %v707 = vrot.slane %v348, 6
  %v708 = vsel %vm659, %v706, %v707
  %v709 = vrot.slane %v420, 6
  %v710 = vrot.slane %v709, 4
  %v711 = vrot.slane %v349, 6
  %v712 = vsel %vm659, %v710, %v711
  %v713 = vrot.slane %v711, 4
  %v714 = vrot.slane %v421, 6
  %v715 = vsel %vm659, %v713, %v714
  %v716 = vrot.slane %v356, 6
  %v717 = vrot.slane %v716, 4
  %v718 = vrot.slane %v428, 6
  %v719 = vsel %vm659, %v717, %v718
  %v720 = vrot.slane %v718, 4
  %v721 = vrot.slane %v357, 6
  %v722 = vsel %vm659, %v720, %v721
  %v723 = vrot.slane %v429, 6
  %v724 = vrot.slane %v723, 4
  %v725 = vrot.slane %v358, 6
  %v726 = vsel %vm659, %v724, %v725
  %v727 = vrot.slane %v725, 4
  %v728 = vrot.slane %v430, 6
  %v729 = vsel %vm659, %v727, %v728
  %v730 = vrot.slane %v359, 6
  %v731 = vrot.slane %v730, 4
  %v732 = vrot.slane %v431, 6
  %v733 = vsel %vm659, %v731, %v732
  %v734 = vrot.slane %v732, 4
  %v735 = vrot.slane %v360, 6
  %v736 = vsel %vm659, %v734, %v735
  %v737 = vrot.slane %v432, 6
  %v738 = vrot.slane %v737, 4
  %v739 = vrot.slane %v361, 6
  %v740 = vsel %vm659, %v738, %v739
  %v741 = vrot.slane %v739, 4
  %v742 = vrot.slane %v433, 6
  %v743 = vsel %vm659, %v741, %v742
  %v744 = vrot.slane %v362, 6
  %v745 = vrot.slane %v744, 4
  %v746 = vrot.slane %v434, 6
  %v747 = vsel %vm659, %v745, %v746
  %v748 = vrot.slane %v746, 4
  %v749 = vrot.slane %v363, 6
  %v750 = vsel %vm659, %v748, %v749
  %v751 = vrot.slane %v435, 6
  %v752 = vrot.slane %v751, 4
  %v753 = vrot.slane %v364, 6
  %v754 = vsel %vm659, %v752, %v753
  %v755 = vrot.slane %v753, 4
  %v756 = vrot.slane %v436, 6
  %v757 = vsel %vm659, %v755, %v756
  %v758 = vrot.slane %v365, 6
  %v759 = vrot.slane %v758, 4
  %v760 = vrot.slane %v437, 6
  %v761 = vsel %vm659, %v759, %v760
  %v762 = vrot.slane %v760, 4
  %v763 = vrot.slane %v366, 6
  %v764 = vsel %vm659, %v762, %v763
  %v765 = vrot.slane %v438, 6
  %v766 = vrot.slane %v765, 4
  %v767 = vrot.slane %v367, 6
  %v768 = vsel %vm659, %v766, %v767
  %v769 = vrot.slane %v767, 4
  %v770 = vrot.slane %v439, 6
  %v771 = vsel %vm659, %v769, %v770
  %v772 = vcombine.low %v663, %v666
  %v773 = vcombine.low %v670, %v673
  %v774 = vcombine.low %v677, %v680
  %v775 = vcombine.low %v684, %v687
  %v776 = vcombine.low %v691, %v694
  %v777 = vcombine.low %v698, %v701
  %v778 = vcombine.low %v705, %v708
  %v779 = vcombine.low %v712, %v715
  %v780 = vcombine.low %v719, %v722
  %v781 = vcombine.low %v726, %v729
  %v782 = vcombine.low %v733, %v736
  %v783 = vcombine.low %v740, %v743
  %v784 = vcombine.low %v747, %v750
  %v785 = vcombine.low %v754, %v757
  %v786 = vcombine.low %v761, %v764
  %v787 = vcombine.low %v768, %v771
  %804 = vst [vmem:[#allocation2 + $0x10] sm:$0xff] %v772
  %805 = vst [vmem:[#allocation2 + $0xd8] sm:$0xff] %v773
  %806 = vst [vmem:[#allocation2 + $0x1a0] sm:$0xff] %v774
  %807 = vst [vmem:[#allocation2 + $0x268] sm:$0xff] %v775
  %808 = vst [vmem:[#allocation2 + $0x330] sm:$0xff] %v776
  %809 = vst [vmem:[#allocation2 + $0x3f8] sm:$0xff] %v777
  %810 = vst [vmem:[#allocation2 + $0x4c0] sm:$0xff] %v778
  %811 = vst [vmem:[#allocation2 + $0x588] sm:$0xff] %v779
  %812 = vst [vmem:[#allocation2 + $0x650] sm:$0xff] %v780
  %813 = vst [vmem:[#allocation2 + $0x718] sm:$0xff] %v781
  %814 = vst [vmem:[#allocation2 + $0x7e0] sm:$0xff] %v782
  %815 = vst [vmem:[#allocation2 + $0x8a8] sm:$0xff] %v783
  %816 = vst [vmem:[#allocation2 + $0x970] sm:$0xff] %v784
  %817 = vst [vmem:[#allocation2 + $0xa38] sm:$0xff] %v785
  %818 = vst [vmem:[#allocation2 + $0xb00] sm:$0xff] %v786
  %819 = vst [vmem:[#allocation2 + $0xbc8] sm:$0xff] %v787
  %vm820 = vcmask 1040384
  %vm821 = vcmask 1044484
  %vm822 = vmor %vm820, %vm821
  %v823 = vrot.slane %v338, 7
  %v824 = vrot.slane %v823, 4
  %v825 = vrot.slane %v410, 7
  %v826 = vsel %vm822, %v824, %v825
  %v827 = vrot.slane %v825, 4
  %v828 = vrot.slane %v339, 7
  %v829 = vsel %vm822, %v827, %v828
  %v830 = vrot.slane %v411, 7
  %v831 = vrot.slane %v830, 4
  %v832 = vrot.slane %v340, 7
  %v833 = vsel %vm822, %v831, %v832
  %v834 = vrot.slane %v832, 4
  %v835 = vrot.slane %v412, 7
  %v836 = vsel %vm822, %v834, %v835
  %v837 = vrot.slane %v341, 7
  %v838 = vrot.slane %v837, 4
  %v839 = vrot.slane %v413, 7
  %v840 = vsel %vm822, %v838, %v839
  %v841 = vrot.slane %v839, 4
  %v842 = vrot.slane %v342, 7
  %v843 = vsel %vm822, %v841, %v842
  %v844 = vrot.slane %v414, 7
  %v845 = vrot.slane %v844, 4
  %v846 = vrot.slane %v343, 7
  %v847 = vsel %vm822, %v845, %v846
  %v848 = vrot.slane %v846, 4
  %v849 = vrot.slane %v415, 7
  %v850 = vsel %vm822, %v848, %v849
  %v851 = vrot.slane %v344, 7
  %v852 = vrot.slane %v851, 4
  %v853 = vrot.slane %v416, 7
  %v854 = vsel %vm822, %v852, %v853
  %v855 = vrot.slane %v853, 4
  %v856 = vrot.slane %v345, 7
  %v857 = vsel %vm822, %v855, %v856
  %v858 = vrot.slane %v417, 7
  %v859 = vrot.slane %v858, 4
  %v860 = vrot.slane %v346, 7
  %v861 = vsel %vm822, %v859, %v860
  %v862 = vrot.slane %v860, 4
  %v863 = vrot.slane %v418, 7
  %v864 = vsel %vm822, %v862, %v863
  %v865 = vrot.slane %v347, 7
  %v866 = vrot.slane %v865, 4
  %v867 = vrot.slane %v419, 7
  %v868 = vsel %vm822, %v866, %v867
  %v869 = vrot.slane %v867, 4
  %v870 = vrot.slane %v348, 7
  %v871 = vsel %vm822, %v869, %v870
  %v872 = vrot.slane %v420, 7
  %v873 = vrot.slane %v872, 4
  %v874 = vrot.slane %v349, 7
  %v875 = vsel %vm822, %v873, %v874
  %v876 = vrot.slane %v874, 4
  %v877 = vrot.slane %v421, 7
  %v878 = vsel %vm822, %v876, %v877
  %v879 = vrot.slane %v356, 7
  %v880 = vrot.slane %v879, 4
  %v881 = vrot.slane %v428, 7
  %v882 = vsel %vm822, %v880, %v881
  %v883 = vrot.slane %v881, 4
  %v884 = vrot.slane %v357, 7
  %v885 = vsel %vm822, %v883, %v884
  %v886 = vrot.slane %v429, 7
  %v887 = vrot.slane %v886, 4
  %v888 = vrot.slane %v358, 7
  %v889 = vsel %vm822, %v887, %v888
  %v890 = vrot.slane %v888, 4
  %v891 = vrot.slane %v430, 7
  %v892 = vsel %vm822, %v890, %v891
  %v893 = vrot.slane %v359, 7
  %v894 = vrot.slane %v893, 4
  %v895 = vrot.slane %v431, 7
  %v896 = vsel %vm822, %v894, %v895
  %v897 = vrot.slane %v895, 4
  %v898 = vrot.slane %v360, 7
  %v899 = vsel %vm822, %v897, %v898
  %v900 = vrot.slane %v432, 7
  %v901 = vrot.slane %v900, 4
  %v902 = vrot.slane %v361, 7
  %v903 = vsel %vm822, %v901, %v902
  %v904 = vrot.slane %v902, 4
  %v905 = vrot.slane %v433, 7
  %v906 = vsel %vm822, %v904, %v905
  %v907 = vrot.slane %v362, 7
  %v908 = vrot.slane %v907, 4
  %v909 = vrot.slane %v434, 7
  %v910 = vsel %vm822, %v908, %v909
  %v911 = vrot.slane %v909, 4
  %v912 = vrot.slane %v363, 7
  %v913 = vsel %vm822, %v911, %v912
  %v914 = vrot.slane %v435, 7
  %v915 = vrot.slane %v914, 4
  %v916 = vrot.slane %v364, 7
  %v917 = vsel %vm822, %v915, %v916
  %v918 = vrot.slane %v916, 4
  %v919 = vrot.slane %v436, 7
  %v920 = vsel %vm822, %v918, %v919
  %v921 = vrot.slane %v365, 7
  %v922 = vrot.slane %v921, 4
  %v923 = vrot.slane %v437, 7
  %v924 = vsel %vm822, %v922, %v923
  %v925 = vrot.slane %v923, 4
  %v926 = vrot.slane %v366, 7
  %v927 = vsel %vm822, %v925, %v926
  %v928 = vrot.slane %v438, 7
  %v929 = vrot.slane %v928, 4
  %v930 = vrot.slane %v367, 7
  %v931 = vsel %vm822, %v929, %v930
  %v932 = vrot.slane %v930, 4
  %v933 = vrot.slane %v439, 7
  %v934 = vsel %vm822, %v932, %v933
  %v935 = vcombine.low %v826, %v829
  %v936 = vcombine.low %v833, %v836
  %v937 = vcombine.low %v840, %v843
  %v938 = vcombine.low %v847, %v850
  %v939 = vcombine.low %v854, %v857
  %v940 = vcombine.low %v861, %v864
  %v941 = vcombine.low %v868, %v871
  %v942 = vcombine.low %v875, %v878
  %v943 = vcombine.low %v882, %v885
  %v944 = vcombine.low %v889, %v892
  %v945 = vcombine.low %v896, %v899
  %v946 = vcombine.low %v903, %v906
  %v947 = vcombine.low %v910, %v913
  %v948 = vcombine.low %v917, %v920
  %v949 = vcombine.low %v924, %v927
  %v950 = vcombine.low %v931, %v934
  %967 = vst [vmem:[#allocation2 + $0x18] sm:$0xff] %v935
  %968 = vst [vmem:[#allocation2 + $0xe0] sm:$0xff] %v936
  %969 = vst [vmem:[#allocation2 + $0x1a8] sm:$0xff] %v937
  %970 = vst [vmem:[#allocation2 + $0x270] sm:$0xff] %v938
  %971 = vst [vmem:[#allocation2 + $0x338] sm:$0xff] %v939
  %972 = vst [vmem:[#allocation2 + $0x400] sm:$0xff] %v940
  %973 = vst [vmem:[#allocation2 + $0x4c8] sm:$0xff] %v941
  %974 = vst [vmem:[#allocation2 + $0x590] sm:$0xff] %v942
  %975 = vst [vmem:[#allocation2 + $0x658] sm:$0xff] %v943
  %976 = vst [vmem:[#allocation2 + $0x720] sm:$0xff] %v944
  %977 = vst [vmem:[#allocation2 + $0x7e8] sm:$0xff] %v945
  %978 = vst [vmem:[#allocation2 + $0x8b0] sm:$0xff] %v946
  %979 = vst [vmem:[#allocation2 + $0x978] sm:$0xff] %v947
  %980 = vst [vmem:[#allocation2 + $0xa40] sm:$0xff] %v948
  %981 = vst [vmem:[#allocation2 + $0xb08] sm:$0xff] %v949
  %982 = vst [vmem:[#allocation2 + $0xbd0] sm:$0xff] %v950
  %v983 = vcombine.low %v410, %v339
  %v984 = vcombine.low %v340, %v412
  %v985 = vcombine.low %v413, %v342
  %v986 = vcombine.low %v343, %v415
  %v987 = vcombine.low %v416, %v345
  %v988 = vcombine.low %v346, %v418
  %v989 = vcombine.low %v419, %v348
  %v990 = vcombine.low %v349, %v421
  %v991 = vcombine.low %v428, %v357
  %v992 = vcombine.low %v358, %v430
  %v993 = vcombine.low %v431, %v360
  %v994 = vcombine.low %v361, %v433
  %v995 = vcombine.low %v434, %v363
  %v996 = vcombine.low %v364, %v436
  %v997 = vcombine.low %v437, %v366
  %v998 = vcombine.low %v367, %v439
  %1015 = vst [vmem:[#allocation2 + $0x20] sm:$0xff] %v983
  %1016 = vst [vmem:[#allocation2 + $0xe8] sm:$0xff] %v984
  %1017 = vst [vmem:[#allocation2 + $0x1b0] sm:$0xff] %v985
  %1018 = vst [vmem:[#allocation2 + $0x278] sm:$0xff] %v986
  %1019 = vst [vmem:[#allocation2 + $0x340] sm:$0xff] %v987
  %1020 = vst [vmem:[#allocation2 + $0x408] sm:$0xff] %v988
  %1021 = vst [vmem:[#allocation2 + $0x4d0] sm:$0xff] %v989
  %1022 = vst [vmem:[#allocation2 + $0x598] sm:$0xff] %v990
  %1023 = vst [vmem:[#allocation2 + $0x660] sm:$0xff] %v991
  %1024 = vst [vmem:[#allocation2 + $0x728] sm:$0xff] %v992
  %1025 = vst [vmem:[#allocation2 + $0x7f0] sm:$0xff] %v993
  %1026 = vst [vmem:[#allocation2 + $0x8b8] sm:$0xff] %v994
  %1027 = vst [vmem:[#allocation2 + $0x980] sm:$0xff] %v995
  %1028 = vst [vmem:[#allocation2 + $0xa48] sm:$0xff] %v996
  %1029 = vst [vmem:[#allocation2 + $0xb10] sm:$0xff] %v997
  %1030 = vst [vmem:[#allocation2 + $0xbd8] sm:$0xff] %v998
  %v1031 = vcombine.low %v350, %v422
  %v1032 = vcombine.low %v368, %v440
  %1035 = vst [vmem:[#allocation2 + $0x28] sm:$0xff] %v447
  %1036 = vst [vmem:[#allocation2 + $0xf0] sm:$0xff] %v448
  %1037 = vst [vmem:[#allocation2 + $0x1b8] sm:$0xff] %v449
  %1038 = vst [vmem:[#allocation2 + $0x280] sm:$0xff] %v450
  %1039 = vst [vmem:[#allocation2 + $0x348] sm:$0xff] %v451
  %1040 = vst [vmem:[#allocation2 + $0x410] sm:$0xff] %v452
  %1041 = vst [vmem:[#allocation2 + $0x4d8] sm:$0xff] %v453
  %1042 = vst [vmem:[#allocation2 + $0x5a0] sm:$0xff] %v1031
  %1043 = vst [vmem:[#allocation2 + $0x668] sm:$0xff] %v455
  %1044 = vst [vmem:[#allocation2 + $0x730] sm:$0xff] %v456
  %1045 = vst [vmem:[#allocation2 + $0x7f8] sm:$0xff] %v457
  %1046 = vst [vmem:[#allocation2 + $0x8c0] sm:$0xff] %v458
  %1047 = vst [vmem:[#allocation2 + $0x988] sm:$0xff] %v459
  %1048 = vst [vmem:[#allocation2 + $0xa50] sm:$0xff] %v460
  %1049 = vst [vmem:[#allocation2 + $0xb18] sm:$0xff] %v461
  %1050 = vst [vmem:[#allocation2 + $0xbe0] sm:$0xff] %v1032
  %v1051 = vrot.slane %v350, 5
  %v1052 = vrot.slane %v1051, 4
  %v1053 = vrot.slane %v422, 5
  %v1054 = vsel %vm496, %v1052, %v1053
  %v1055 = vrot.slane %v1053, 4
  %v1056 = vrot.slane %v351, 5
  %v1057 = vsel %vm496, %v1055, %v1056
  %v1058 = vrot.slane %v368, 5
  %v1059 = vrot.slane %v1058, 4
  %v1060 = vrot.slane %v440, 5
  %v1061 = vsel %vm496, %v1059, %v1060
  %v1062 = vrot.slane %v1060, 4
  %v1063 = vrot.slane %v369, 5
  %v1064 = vsel %vm496, %v1062, %v1063
  %v1065 = vcombine.low %v1054, %v1057
  %v1066 = vcombine.low %v1061, %v1064
  %1069 = vst [vmem:[#allocation2 + $0x30] sm:$0xff] %v610
  %1070 = vst [vmem:[#allocation2 + $0xf8] sm:$0xff] %v611
  %1071 = vst [vmem:[#allocation2 + $0x1c0] sm:$0xff] %v612
  %1072 = vst [vmem:[#allocation2 + $0x288] sm:$0xff] %v613
  %1073 = vst [vmem:[#allocation2 + $0x350] sm:$0xff] %v614
  %1074 = vst [vmem:[#allocation2 + $0x418] sm:$0xff] %v615
  %1075 = vst [vmem:[#allocation2 + $0x4e0] sm:$0xff] %v616
  %1076 = vst [vmem:[#allocation2 + $0x5a8] sm:$0xff] %v1065
  %1077 = vst [vmem:[#allocation2 + $0x670] sm:$0xff] %v618
  %1078 = vst [vmem:[#allocation2 + $0x738] sm:$0xff] %v619
  %1079 = vst [vmem:[#allocation2 + $0x800] sm:$0xff] %v620
  %1080 = vst [vmem:[#allocation2 + $0x8c8] sm:$0xff] %v621
  %1081 = vst [vmem:[#allocation2 + $0x990] sm:$0xff] %v622
  %1082 = vst [vmem:[#allocation2 + $0xa58] sm:$0xff] %v623
  %1083 = vst [vmem:[#allocation2 + $0xb20] sm:$0xff] %v624
  %1084 = vst [vmem:[#allocation2 + $0xbe8] sm:$0xff] %v1066
  %v1085 = vrot.slane %v350, 6
  %v1086 = vrot.slane %v1085, 4
  %v1087 = vrot.slane %v422, 6
  %v1088 = vsel %vm659, %v1086, %v1087
  %v1089 = vrot.slane %v1087, 4
  %v1090 = vrot.slane %v351, 6
  %v1091 = vsel %vm659, %v1089, %v1090
  %v1092 = vrot.slane %v368, 6
  %v1093 = vrot.slane %v1092, 4
  %v1094 = vrot.slane %v440, 6
  %v1095 = vsel %vm659, %v1093, %v1094
  %v1096 = vrot.slane %v1094, 4
  %v1097 = vrot.slane %v369, 6
  %v1098 = vsel %vm659, %v1096, %v1097
  %v1099 = vcombine.low %v1088, %v1091
  %v1100 = vcombine.low %v1095, %v1098
  %1103 = vst [vmem:[#allocation2 + $0x38] sm:$0xff] %v773
  %1104 = vst [vmem:[#allocation2 + $0x100] sm:$0xff] %v774
  %1105 = vst [vmem:[#allocation2 + $0x1c8] sm:$0xff] %v775
  %1106 = vst [vmem:[#allocation2 + $0x290] sm:$0xff] %v776
  %1107 = vst [vmem:[#allocation2 + $0x358] sm:$0xff] %v777
  %1108 = vst [vmem:[#allocation2 + $0x420] sm:$0xff] %v778
  %1109 = vst [vmem:[#allocation2 + $0x4e8] sm:$0xff] %v779
  %1110 = vst [vmem:[#allocation2 + $0x5b0] sm:$0xff] %v1099
  %1111 = vst [vmem:[#allocation2 + $0x678] sm:$0xff] %v781
  %1112 = vst [vmem:[#allocation2 + $0x740] sm:$0xff] %v782
  %1113 = vst [vmem:[#allocation2 + $0x808] sm:$0xff] %v783
  %1114 = vst [vmem:[#allocation2 + $0x8d0] sm:$0xff] %v784
  %1115 = vst [vmem:[#allocation2 + $0x998] sm:$0xff] %v785
  %1116 = vst [vmem:[#allocation2 + $0xa60] sm:$0xff] %v786
  %1117 = vst [vmem:[#allocation2 + $0xb28] sm:$0xff] %v787
  %1118 = vst [vmem:[#allocation2 + $0xbf0] sm:$0xff] %v1100
  %v1119 = vrot.slane %v350, 7
  %v1120 = vrot.slane %v1119, 4
  %v1121 = vrot.slane %v422, 7
  %v1122 = vsel %vm822, %v1120, %v1121
  %v1123 = vrot.slane %v1121, 4
  %v1124 = vrot.slane %v351, 7
  %v1125 = vsel %vm822, %v1123, %v1124
  %v1126 = vrot.slane %v368, 7
  %v1127 = vrot.slane %v1126, 4
  %v1128 = vrot.slane %v440, 7
  %v1129 = vsel %vm822, %v1127, %v1128
  %v1130 = vrot.slane %v1128, 4
  %v1131 = vrot.slane %v369, 7
  %v1132 = vsel %vm822, %v1130, %v1131
  %v1133 = vcombine.low %v1122, %v1125
  %v1134 = vcombine.low %v1129, %v1132
  %1137 = vst [vmem:[#allocation2 + $0x40] sm:$0xff] %v936
  %1138 = vst [vmem:[#allocation2 + $0x108] sm:$0xff] %v937
  %1139 = vst [vmem:[#allocation2 + $0x1d0] sm:$0xff] %v938
  %1140 = vst [vmem:[#allocation2 + $0x298] sm:$0xff] %v939
  %1141 = vst [vmem:[#allocation2 + $0x360] sm:$0xff] %v940
  %1142 = vst [vmem:[#allocation2 + $0x428] sm:$0xff] %v941
  %1143 = vst [vmem:[#allocation2 + $0x4f0] sm:$0xff] %v942
  %1144 = vst [vmem:[#allocation2 + $0x5b8] sm:$0xff] %v1133
  %1145 = vst [vmem:[#allocation2 + $0x680] sm:$0xff] %v944
  %1146 = vst [vmem:[#allocation2 + $0x748] sm:$0xff] %v945
  %1147 = vst [vmem:[#allocation2 + $0x810] sm:$0xff] %v946
  %1148 = vst [vmem:[#allocation2 + $0x8d8] sm:$0xff] %v947
  %1149 = vst [vmem:[#allocation2 + $0x9a0] sm:$0xff] %v948
  %1150 = vst [vmem:[#allocation2 + $0xa68] sm:$0xff] %v949
  %1151 = vst [vmem:[#allocation2 + $0xb30] sm:$0xff] %v950
  %1152 = vst [vmem:[#allocation2 + $0xbf8] sm:$0xff] %v1134
  %v1153 = vcombine.low %v422, %v351
  %v1154 = vcombine.low %v440, %v369
  %1157 = vst [vmem:[#allocation2 + $0x48] sm:$0xff] %v984
  %1158 = vst [vmem:[#allocation2 + $0x110] sm:$0xff] %v985
  %1159 = vst [vmem:[#allocation2 + $0x1d8] sm:$0xff] %v986
  %1160 = vst [vmem:[#allocation2 + $0x2a0] sm:$0xff] %v987
  %1161 = vst [vmem:[#allocation2 + $0x368] sm:$0xff] %v988
  %1162 = vst [vmem:[#allocation2 + $0x430] sm:$0xff] %v989
  %1163 = vst [vmem:[#allocation2 + $0x4f8] sm:$0xff] %v990
  %1164 = vst [vmem:[#allocation2 + $0x5c0] sm:$0xff] %v1153
  %1165 = vst [vmem:[#allocation2 + $0x688] sm:$0xff] %v992
  %1166 = vst [vmem:[#allocation2 + $0x750] sm:$0xff] %v993
  %1167 = vst [vmem:[#allocation2 + $0x818] sm:$0xff] %v994
  %1168 = vst [vmem:[#allocation2 + $0x8e0] sm:$0xff] %v995
  %1169 = vst [vmem:[#allocation2 + $0x9a8] sm:$0xff] %v996
  %1170 = vst [vmem:[#allocation2 + $0xa70] sm:$0xff] %v997
  %1171 = vst [vmem:[#allocation2 + $0xb38] sm:$0xff] %v998
  %1172 = vst [vmem:[#allocation2 + $0xc00] sm:$0xff] %v1154
  %v1173 = vcombine.low %v423, %v352
  %v1174 = vcombine.low %v441, %v370
  %1177 = vst [vmem:[#allocation2 + $0x50] sm:$0xff] %v448
  %1178 = vst [vmem:[#allocation2 + $0x118] sm:$0xff] %v449
  %1179 = vst [vmem:[#allocation2 + $0x1e0] sm:$0xff] %v450
  %1180 = vst [vmem:[#allocation2 + $0x2a8] sm:$0xff] %v451
  %1181 = vst [vmem:[#allocation2 + $0x370] sm:$0xff] %v452
  %1182 = vst [vmem:[#allocation2 + $0x438] sm:$0xff] %v453
  %1183 = vst [vmem:[#allocation2 + $0x500] sm:$0xff] %v1031
  %1184 = vst [vmem:[#allocation2 + $0x5c8] sm:$0xff] %v1173
  %1185 = vst [vmem:[#allocation2 + $0x690] sm:$0xff] %v456
  %1186 = vst [vmem:[#allocation2 + $0x758] sm:$0xff] %v457
  %1187 = vst [vmem:[#allocation2 + $0x820] sm:$0xff] %v458
  %1188 = vst [vmem:[#allocation2 + $0x8e8] sm:$0xff] %v459
  %1189 = vst [vmem:[#allocation2 + $0x9b0] sm:$0xff] %v460
  %1190 = vst [vmem:[#allocation2 + $0xa78] sm:$0xff] %v461
  %1191 = vst [vmem:[#allocation2 + $0xb40] sm:$0xff] %v1032
  %1192 = vst [vmem:[#allocation2 + $0xc08] sm:$0xff] %v1174
  %v1193 = vrot.slane %v423, 5
  %v1194 = vrot.slane %v1193, 4
  %v1195 = vrot.slane %v352, 5
  %v1196 = vsel %vm496, %v1194, %v1195
  %v1197 = vrot.slane %v1195, 4
  %v1198 = vrot.slane %v424, 5
  %v1199 = vsel %vm496, %v1197, %v1198
  %v1200 = vrot.slane %v441, 5
  %v1201 = vrot.slane %v1200, 4
  %v1202 = vrot.slane %v370, 5
  %v1203 = vsel %vm496, %v1201, %v1202
  %v1204 = vrot.slane %v1202, 4
  %v1205 = vrot.slane %v442, 5
  %v1206 = vsel %vm496, %v1204, %v1205
  %v1207 = vcombine.low %v1196, %v1199
  %v1208 = vcombine.low %v1203, %v1206
  %1211 = vst [vmem:[#allocation2 + $0x58] sm:$0xff] %v611
  %1212 = vst [vmem:[#allocation2 + $0x120] sm:$0xff] %v612
  %1213 = vst [vmem:[#allocation2 + $0x1e8] sm:$0xff] %v613
  %1214 = vst [vmem:[#allocation2 + $0x2b0] sm:$0xff] %v614
  %1215 = vst [vmem:[#allocation2 + $0x378] sm:$0xff] %v615
  %1216 = vst [vmem:[#allocation2 + $0x440] sm:$0xff] %v616
  %1217 = vst [vmem:[#allocation2 + $0x508] sm:$0xff] %v1065
  %1218 = vst [vmem:[#allocation2 + $0x5d0] sm:$0xff] %v1207
  %1219 = vst [vmem:[#allocation2 + $0x698] sm:$0xff] %v619
  %1220 = vst [vmem:[#allocation2 + $0x760] sm:$0xff] %v620
  %1221 = vst [vmem:[#allocation2 + $0x828] sm:$0xff] %v621
  %1222 = vst [vmem:[#allocation2 + $0x8f0] sm:$0xff] %v622
  %1223 = vst [vmem:[#allocation2 + $0x9b8] sm:$0xff] %v623
  %1224 = vst [vmem:[#allocation2 + $0xa80] sm:$0xff] %v624
  %1225 = vst [vmem:[#allocation2 + $0xb48] sm:$0xff] %v1066
  %1226 = vst [vmem:[#allocation2 + $0xc10] sm:$0xff] %v1208
  %v1227 = vrot.slane %v423, 6
  %v1228 = vrot.slane %v1227, 4
  %v1229 = vrot.slane %v352, 6
  %v1230 = vsel %vm659, %v1228, %v1229
  %v1231 = vrot.slane %v1229, 4
  %v1232 = vrot.slane %v424, 6
  %v1233 = vsel %vm659, %v1231, %v1232
  %v1234 = vrot.slane %v441, 6
  %v1235 = vrot.slane %v1234, 4
  %v1236 = vrot.slane %v370, 6
  %v1237 = vsel %vm659, %v1235, %v1236
  %v1238 = vrot.slane %v1236, 4
  %v1239 = vrot.slane %v442, 6
  %v1240 = vsel %vm659, %v1238, %v1239
  %v1241 = vcombine.low %v1230, %v1233
  %v1242 = vcombine.low %v1237, %v1240
  %1245 = vst [vmem:[#allocation2 + $0x60] sm:$0xff] %v774
  %1246 = vst [vmem:[#allocation2 + $0x128] sm:$0xff] %v775
  %1247 = vst [vmem:[#allocation2 + $0x1f0] sm:$0xff] %v776
  %1248 = vst [vmem:[#allocation2 + $0x2b8] sm:$0xff] %v777
  %1249 = vst [vmem:[#allocation2 + $0x380] sm:$0xff] %v778
  %1250 = vst [vmem:[#allocation2 + $0x448] sm:$0xff] %v779
  %1251 = vst [vmem:[#allocation2 + $0x510] sm:$0xff] %v1099
  %1252 = vst [vmem:[#allocation2 + $0x5d8] sm:$0xff] %v1241
  %1253 = vst [vmem:[#allocation2 + $0x6a0] sm:$0xff] %v782
  %1254 = vst [vmem:[#allocation2 + $0x768] sm:$0xff] %v783
  %1255 = vst [vmem:[#allocation2 + $0x830] sm:$0xff] %v784
  %1256 = vst [vmem:[#allocation2 + $0x8f8] sm:$0xff] %v785
  %1257 = vst [vmem:[#allocation2 + $0x9c0] sm:$0xff] %v786
  %1258 = vst [vmem:[#allocation2 + $0xa88] sm:$0xff] %v787
  %1259 = vst [vmem:[#allocation2 + $0xb50] sm:$0xff] %v1100
  %1260 = vst [vmem:[#allocation2 + $0xc18] sm:$0xff] %v1242
  %v1261 = vrot.slane %v423, 7
  %v1262 = vrot.slane %v1261, 4
  %v1263 = vrot.slane %v352, 7
  %v1264 = vsel %vm822, %v1262, %v1263
  %v1265 = vrot.slane %v1263, 4
  %v1266 = vrot.slane %v424, 7
  %v1267 = vsel %vm822, %v1265, %v1266
  %v1268 = vrot.slane %v441, 7
  %v1269 = vrot.slane %v1268, 4
  %v1270 = vrot.slane %v370, 7
  %v1271 = vsel %vm822, %v1269, %v1270
  %v1272 = vrot.slane %v1270, 4
  %v1273 = vrot.slane %v442, 7
  %v1274 = vsel %vm822, %v1272, %v1273
  %v1275 = vcombine.low %v1264, %v1267
  %v1276 = vcombine.low %v1271, %v1274
  %1279 = vst [vmem:[#allocation2 + $0x68] sm:$0xff] %v937
  %1280 = vst [vmem:[#allocation2 + $0x130] sm:$0xff] %v938
  %1281 = vst [vmem:[#allocation2 + $0x1f8] sm:$0xff] %v939
  %1282 = vst [vmem:[#allocation2 + $0x2c0] sm:$0xff] %v940
  %1283 = vst [vmem:[#allocation2 + $0x388] sm:$0xff] %v941
  %1284 = vst [vmem:[#allocation2 + $0x450] sm:$0xff] %v942
  %1285 = vst [vmem:[#allocation2 + $0x518] sm:$0xff] %v1133
  %1286 = vst [vmem:[#allocation2 + $0x5e0] sm:$0xff] %v1275
  %1287 = vst [vmem:[#allocation2 + $0x6a8] sm:$0xff] %v945
  %1288 = vst [vmem:[#allocation2 + $0x770] sm:$0xff] %v946
  %1289 = vst [vmem:[#allocation2 + $0x838] sm:$0xff] %v947
  %1290 = vst [vmem:[#allocation2 + $0x900] sm:$0xff] %v948
  %1291 = vst [vmem:[#allocation2 + $0x9c8] sm:$0xff] %v949
  %1292 = vst [vmem:[#allocation2 + $0xa90] sm:$0xff] %v950
  %1293 = vst [vmem:[#allocation2 + $0xb58] sm:$0xff] %v1134
  %1294 = vst [vmem:[#allocation2 + $0xc20] sm:$0xff] %v1276
  %v1295 = vcombine.low %v352, %v424
  %v1296 = vcombine.low %v370, %v442
  %1299 = vst [vmem:[#allocation2 + $0x70] sm:$0xff] %v985
  %1300 = vst [vmem:[#allocation2 + $0x138] sm:$0xff] %v986
  %1301 = vst [vmem:[#allocation2 + $0x200] sm:$0xff] %v987
  %1302 = vst [vmem:[#allocation2 + $0x2c8] sm:$0xff] %v988
  %1303 = vst [vmem:[#allocation2 + $0x390] sm:$0xff] %v989
  %1304 = vst [vmem:[#allocation2 + $0x458] sm:$0xff] %v990
  %1305 = vst [vmem:[#allocation2 + $0x520] sm:$0xff] %v1153
  %1306 = vst [vmem:[#allocation2 + $0x5e8] sm:$0xff] %v1295
  %1307 = vst [vmem:[#allocation2 + $0x6b0] sm:$0xff] %v993
  %1308 = vst [vmem:[#allocation2 + $0x778] sm:$0xff] %v994
  %1309 = vst [vmem:[#allocation2 + $0x840] sm:$0xff] %v995
  %1310 = vst [vmem:[#allocation2 + $0x908] sm:$0xff] %v996
  %1311 = vst [vmem:[#allocation2 + $0x9d0] sm:$0xff] %v997
  %1312 = vst [vmem:[#allocation2 + $0xa98] sm:$0xff] %v998
  %1313 = vst [vmem:[#allocation2 + $0xb60] sm:$0xff] %v1154
  %1314 = vst [vmem:[#allocation2 + $0xc28] sm:$0xff] %v1296
  %v1315 = vcombine.low %v353, %v425
  %v1316 = vcombine.low %v371, %v443
  %1319 = vst [vmem:[#allocation2 + $0x78] sm:$0xff] %v449
  %1320 = vst [vmem:[#allocation2 + $0x140] sm:$0xff] %v450
  %1321 = vst [vmem:[#allocation2 + $0x208] sm:$0xff] %v451
  %1322 = vst [vmem:[#allocation2 + $0x2d0] sm:$0xff] %v452
  %1323 = vst [vmem:[#allocation2 + $0x398] sm:$0xff] %v453
  %1324 = vst [vmem:[#allocation2 + $0x460] sm:$0xff] %v1031
  %1325 = vst [vmem:[#allocation2 + $0x528] sm:$0xff] %v1173
  %1326 = vst [vmem:[#allocation2 + $0x5f0] sm:$0xff] %v1315
  %1327 = vst [vmem:[#allocation2 + $0x6b8] sm:$0xff] %v457
  %1328 = vst [vmem:[#allocation2 + $0x780] sm:$0xff] %v458
  %1329 = vst [vmem:[#allocation2 + $0x848] sm:$0xff] %v459
  %1330 = vst [vmem:[#allocation2 + $0x910] sm:$0xff] %v460
  %1331 = vst [vmem:[#allocation2 + $0x9d8] sm:$0xff] %v461
  %1332 = vst [vmem:[#allocation2 + $0xaa0] sm:$0xff] %v1032
  %1333 = vst [vmem:[#allocation2 + $0xb68] sm:$0xff] %v1174
  %1334 = vst [vmem:[#allocation2 + $0xc30] sm:$0xff] %v1316
  %v1335 = vrot.slane %v353, 5
  %v1336 = vrot.slane %v1335, 4
  %v1337 = vrot.slane %v425, 5
  %v1338 = vsel %vm496, %v1336, %v1337
  %v1339 = vrot.slane %v1337, 4
  %v1340 = vrot.slane %v354, 5
  %v1341 = vsel %vm496, %v1339, %v1340
  %v1342 = vrot.slane %v371, 5
  %v1343 = vrot.slane %v1342, 4
  %v1344 = vrot.slane %v443, 5
  %v1345 = vsel %vm496, %v1343, %v1344
  %v1346 = vrot.slane %v1344, 4
  %v1347 = vrot.slane %v372, 5
  %v1348 = vsel %vm496, %v1346, %v1347
  %v1349 = vcombine.low %v1338, %v1341
  %v1350 = vcombine.low %v1345, %v1348
  %1353 = vst [vmem:[#allocation2 + $0x80] sm:$0xff] %v612
  %1354 = vst [vmem:[#allocation2 + $0x148] sm:$0xff] %v613
  %1355 = vst [vmem:[#allocation2 + $0x210] sm:$0xff] %v614
  %1356 = vst [vmem:[#allocation2 + $0x2d8] sm:$0xff] %v615
  %1357 = vst [vmem:[#allocation2 + $0x3a0] sm:$0xff] %v616
  %1358 = vst [vmem:[#allocation2 + $0x468] sm:$0xff] %v1065
  %1359 = vst [vmem:[#allocation2 + $0x530] sm:$0xff] %v1207
  %1360 = vst [vmem:[#allocation2 + $0x5f8] sm:$0xff] %v1349
  %1361 = vst [vmem:[#allocation2 + $0x6c0] sm:$0xff] %v620
  %1362 = vst [vmem:[#allocation2 + $0x788] sm:$0xff] %v621
  %1363 = vst [vmem:[#allocation2 + $0x850] sm:$0xff] %v622
  %1364 = vst [vmem:[#allocation2 + $0x918] sm:$0xff] %v623
  %1365 = vst [vmem:[#allocation2 + $0x9e0] sm:$0xff] %v624
  %1366 = vst [vmem:[#allocation2 + $0xaa8] sm:$0xff] %v1066
  %1367 = vst [vmem:[#allocation2 + $0xb70] sm:$0xff] %v1208
  %1368 = vst [vmem:[#allocation2 + $0xc38] sm:$0xff] %v1350
  %v1369 = vrot.slane %v353, 6
  %v1370 = vrot.slane %v1369, 4
  %v1371 = vrot.slane %v425, 6
  %v1372 = vsel %vm659, %v1370, %v1371
  %v1373 = vrot.slane %v1371, 4
  %v1374 = vrot.slane %v354, 6
  %v1375 = vsel %vm659, %v1373, %v1374
  %v1376 = vrot.slane %v371, 6
  %v1377 = vrot.slane %v1376, 4
  %v1378 = vrot.slane %v443, 6
  %v1379 = vsel %vm659, %v1377, %v1378
  %v1380 = vrot.slane %v1378, 4
  %v1381 = vrot.slane %v372, 6
  %v1382 = vsel %vm659, %v1380, %v1381
  %v1383 = vcombine.low %v1372, %v1375
  %v1384 = vcombine.low %v1379, %v1382
  %1387 = vst [vmem:[#allocation2 + $0x88] sm:$0xff] %v775
  %1388 = vst [vmem:[#allocation2 + $0x150] sm:$0xff] %v776
  %1389 = vst [vmem:[#allocation2 + $0x218] sm:$0xff] %v777
  %1390 = vst [vmem:[#allocation2 + $0x2e0] sm:$0xff] %v778
  %1391 = vst [vmem:[#allocation2 + $0x3a8] sm:$0xff] %v779
  %1392 = vst [vmem:[#allocation2 + $0x470] sm:$0xff] %v1099
  %1393 = vst [vmem:[#allocation2 + $0x538] sm:$0xff] %v1241
  %1394 = vst [vmem:[#allocation2 + $0x600] sm:$0xff] %v1383
  %1395 = vst [vmem:[#allocation2 + $0x6c8] sm:$0xff] %v783
  %1396 = vst [vmem:[#allocation2 + $0x790] sm:$0xff] %v784
  %1397 = vst [vmem:[#allocation2 + $0x858] sm:$0xff] %v785
  %1398 = vst [vmem:[#allocation2 + $0x920] sm:$0xff] %v786
  %1399 = vst [vmem:[#allocation2 + $0x9e8] sm:$0xff] %v787
  %1400 = vst [vmem:[#allocation2 + $0xab0] sm:$0xff] %v1100
  %1401 = vst [vmem:[#allocation2 + $0xb78] sm:$0xff] %v1242
  %1402 = vst [vmem:[#allocation2 + $0xc40] sm:$0xff] %v1384
  %v1403 = vrot.slane %v353, 7
  %v1404 = vrot.slane %v1403, 4
  %v1405 = vrot.slane %v425, 7
  %v1406 = vsel %vm822, %v1404, %v1405
  %v1407 = vrot.slane %v1405, 4
  %v1408 = vrot.slane %v354, 7
  %v1409 = vsel %vm822, %v1407, %v1408
  %v1410 = vrot.slane %v371, 7
  %v1411 = vrot.slane %v1410, 4
  %v1412 = vrot.slane %v443, 7
  %v1413 = vsel %vm822, %v1411, %v1412
  %v1414 = vrot.slane %v1412, 4
  %v1415 = vrot.slane %v372, 7
  %v1416 = vsel %vm822, %v1414, %v1415
  %v1417 = vcombine.low %v1406, %v1409
  %v1418 = vcombine.low %v1413, %v1416
  %1421 = vst [vmem:[#allocation2 + $0x90] sm:$0xff] %v938
  %1422 = vst [vmem:[#allocation2 + $0x158] sm:$0xff] %v939
  %1423 = vst [vmem:[#allocation2 + $0x220] sm:$0xff] %v940
  %1424 = vst [vmem:[#allocation2 + $0x2e8] sm:$0xff] %v941
  %1425 = vst [vmem:[#allocation2 + $0x3b0] sm:$0xff] %v942
  %1426 = vst [vmem:[#allocation2 + $0x478] sm:$0xff] %v1133
  %1427 = vst [vmem:[#allocation2 + $0x540] sm:$0xff] %v1275
  %1428 = vst [vmem:[#allocation2 + $0x608] sm:$0xff] %v1417
  %1429 = vst [vmem:[#allocation2 + $0x6d0] sm:$0xff] %v946
  %1430 = vst [vmem:[#allocation2 + $0x798] sm:$0xff] %v947
  %1431 = vst [vmem:[#allocation2 + $0x860] sm:$0xff] %v948
  %1432 = vst [vmem:[#allocation2 + $0x928] sm:$0xff] %v949
  %1433 = vst [vmem:[#allocation2 + $0x9f0] sm:$0xff] %v950
  %1434 = vst [vmem:[#allocation2 + $0xab8] sm:$0xff] %v1134
  %1435 = vst [vmem:[#allocation2 + $0xb80] sm:$0xff] %v1276
  %1436 = vst [vmem:[#allocation2 + $0xc48] sm:$0xff] %v1418
  %v1437 = vcombine.low %v425, %v354
  %v1438 = vcombine.low %v443, %v372
  %1441 = vst [vmem:[#allocation2 + $0x98] sm:$0xff] %v986
  %1442 = vst [vmem:[#allocation2 + $0x160] sm:$0xff] %v987
  %1443 = vst [vmem:[#allocation2 + $0x228] sm:$0xff] %v988
  %1444 = vst [vmem:[#allocation2 + $0x2f0] sm:$0xff] %v989
  %1445 = vst [vmem:[#allocation2 + $0x3b8] sm:$0xff] %v990
  %1446 = vst [vmem:[#allocation2 + $0x480] sm:$0xff] %v1153
  %1447 = vst [vmem:[#allocation2 + $0x548] sm:$0xff] %v1295
  %1448 = vst [vmem:[#allocation2 + $0x610] sm:$0xff] %v1437
  %1449 = vst [vmem:[#allocation2 + $0x6d8] sm:$0xff] %v994
  %1450 = vst [vmem:[#allocation2 + $0x7a0] sm:$0xff] %v995
  %1451 = vst [vmem:[#allocation2 + $0x868] sm:$0xff] %v996
  %1452 = vst [vmem:[#allocation2 + $0x930] sm:$0xff] %v997
  %1453 = vst [vmem:[#allocation2 + $0x9f8] sm:$0xff] %v998
  %1454 = vst [vmem:[#allocation2 + $0xac0] sm:$0xff] %v1154
  %1455 = vst [vmem:[#allocation2 + $0xb88] sm:$0xff] %v1296
  %1456 = vst [vmem:[#allocation2 + $0xc50] sm:$0xff] %v1438
  %v1457 = vcombine.low %v426, %v355
  %v1458 = vcombine.low %v444, %v373
  %1461 = vst [vmem:[#allocation2 + $0xa0] sm:$0xff] %v450
  %1462 = vst [vmem:[#allocation2 + $0x168] sm:$0xff] %v451
  %1463 = vst [vmem:[#allocation2 + $0x230] sm:$0xff] %v452
  %1464 = vst [vmem:[#allocation2 + $0x2f8] sm:$0xff] %v453
  %1465 = vst [vmem:[#allocation2 + $0x3c0] sm:$0xff] %v1031
  %1466 = vst [vmem:[#allocation2 + $0x488] sm:$0xff] %v1173
  %1467 = vst [vmem:[#allocation2 + $0x550] sm:$0xff] %v1315
  %1468 = vst [vmem:[#allocation2 + $0x618] sm:$0xff] %v1457
  %1469 = vst [vmem:[#allocation2 + $0x6e0] sm:$0xff] %v458
  %1470 = vst [vmem:[#allocation2 + $0x7a8] sm:$0xff] %v459
  %1471 = vst [vmem:[#allocation2 + $0x870] sm:$0xff] %v460
  %1472 = vst [vmem:[#allocation2 + $0x938] sm:$0xff] %v461
  %1473 = vst [vmem:[#allocation2 + $0xa00] sm:$0xff] %v1032
  %1474 = vst [vmem:[#allocation2 + $0xac8] sm:$0xff] %v1174
  %1475 = vst [vmem:[#allocation2 + $0xb90] sm:$0xff] %v1316
  %1476 = vst [vmem:[#allocation2 + $0xc58] sm:$0xff] %v1458
  %v1477 = vrot.slane %v426, 5
  %v1478 = vrot.slane %v1477, 4
  %v1479 = vrot.slane %v355, 5
  %v1480 = vsel %vm496, %v1478, %v1479
  %v1481 = vrot.slane %v1479, 4
  %v1482 = vrot.slane %v427, 5
  %v1483 = vsel %vm496, %v1481, %v1482
  %v1484 = vrot.slane %v444, 5
  %v1485 = vrot.slane %v1484, 4
  %v1486 = vrot.slane %v373, 5
  %v1487 = vsel %vm496, %v1485, %v1486
  %v1488 = vrot.slane %v1486, 4
  %v1489 = vrot.slane %v445, 5
  %v1490 = vsel %vm496, %v1488, %v1489
  %v1491 = vcombine.low %v1480, %v1483
  %v1492 = vcombine.low %v1487, %v1490
  %1495 = vst [vmem:[#allocation2 + $0xa8] sm:$0xff] %v613
  %1496 = vst [vmem:[#allocation2 + $0x170] sm:$0xff] %v614
  %1497 = vst [vmem:[#allocation2 + $0x238] sm:$0xff] %v615
  %1498 = vst [vmem:[#allocation2 + $0x300] sm:$0xff] %v616
  %1499 = vst [vmem:[#allocation2 + $0x3c8] sm:$0xff] %v1065
  %1500 = vst [vmem:[#allocation2 + $0x490] sm:$0xff] %v1207
  %1501 = vst [vmem:[#allocation2 + $0x558] sm:$0xff] %v1349
  %1502 = vst [vmem:[#allocation2 + $0x620] sm:$0xff] %v1491
  %1503 = vst [vmem:[#allocation2 + $0x6e8] sm:$0xff] %v621
  %1504 = vst [vmem:[#allocation2 + $0x7b0] sm:$0xff] %v622
  %1505 = vst [vmem:[#allocation2 + $0x878] sm:$0xff] %v623
  %1506 = vst [vmem:[#allocation2 + $0x940] sm:$0xff] %v624
  %1507 = vst [vmem:[#allocation2 + $0xa08] sm:$0xff] %v1066
  %1508 = vst [vmem:[#allocation2 + $0xad0] sm:$0xff] %v1208
  %1509 = vst [vmem:[#allocation2 + $0xb98] sm:$0xff] %v1350
  %1510 = vst [vmem:[#allocation2 + $0xc60] sm:$0xff] %v1492
  %v1511 = vrot.slane %v426, 6
  %v1512 = vrot.slane %v1511, 4
  %v1513 = vrot.slane %v355, 6
  %v1514 = vsel %vm659, %v1512, %v1513
  %v1515 = vrot.slane %v1513, 4
  %v1516 = vrot.slane %v427, 6
  %v1517 = vsel %vm659, %v1515, %v1516
  %v1518 = vrot.slane %v444, 6
  %v1519 = vrot.slane %v1518, 4
  %v1520 = vrot.slane %v373, 6
  %v1521 = vsel %vm659, %v1519, %v1520
  %v1522 = vrot.slane %v1520, 4
  %v1523 = vrot.slane %v445, 6
  %v1524 = vsel %vm659, %v1522, %v1523
  %v1525 = vcombine.low %v1514, %v1517
  %v1526 = vcombine.low %v1521, %v1524
  %1529 = vst [vmem:[#allocation2 + $0xb0] sm:$0xff] %v776
  %1530 = vst [vmem:[#allocation2 + $0x178] sm:$0xff] %v777
  %1531 = vst [vmem:[#allocation2 + $0x240] sm:$0xff] %v778
  %1532 = vst [vmem:[#allocation2 + $0x308] sm:$0xff] %v779
  %1533 = vst [vmem:[#allocation2 + $0x3d0] sm:$0xff] %v1099
  %1534 = vst [vmem:[#allocation2 + $0x498] sm:$0xff] %v1241
  %1535 = vst [vmem:[#allocation2 + $0x560] sm:$0xff] %v1383
  %1536 = vst [vmem:[#allocation2 + $0x628] sm:$0xff] %v1525
  %1537 = vst [vmem:[#allocation2 + $0x6f0] sm:$0xff] %v784
  %1538 = vst [vmem:[#allocation2 + $0x7b8] sm:$0xff] %v785
  %1539 = vst [vmem:[#allocation2 + $0x880] sm:$0xff] %v786
  %1540 = vst [vmem:[#allocation2 + $0x948] sm:$0xff] %v787
  %1541 = vst [vmem:[#allocation2 + $0xa10] sm:$0xff] %v1100
  %1542 = vst [vmem:[#allocation2 + $0xad8] sm:$0xff] %v1242
  %1543 = vst [vmem:[#allocation2 + $0xba0] sm:$0xff] %v1384
  %1544 = vst [vmem:[#allocation2 + $0xc68] sm:$0xff] %v1526
  %v1545 = vrot.slane %v426, 7
  %v1546 = vrot.slane %v1545, 4
  %v1547 = vrot.slane %v355, 7
  %v1548 = vsel %vm822, %v1546, %v1547
  %v1549 = vrot.slane %v1547, 4
  %v1550 = vrot.slane %v427, 7
  %v1551 = vsel %vm822, %v1549, %v1550
  %v1552 = vrot.slane %v444, 7
  %v1553 = vrot.slane %v1552, 4
  %v1554 = vrot.slane %v373, 7
  %v1555 = vsel %vm822, %v1553, %v1554
  %v1556 = vrot.slane %v1554, 4
  %v1557 = vrot.slane %v445, 7
  %v1558 = vsel %vm822, %v1556, %v1557
  %v1559 = vcombine.low %v1548, %v1551
  %v1560 = vcombine.low %v1555, %v1558
  %1563 = vst [vmem:[#allocation2 + $0xb8] sm:$0xff] %v939
  %1564 = vst [vmem:[#allocation2 + $0x180] sm:$0xff] %v940
  %1565 = vst [vmem:[#allocation2 + $0x248] sm:$0xff] %v941
  %1566 = vst [vmem:[#allocation2 + $0x310] sm:$0xff] %v942
  %1567 = vst [vmem:[#allocation2 + $0x3d8] sm:$0xff] %v1133
  %1568 = vst [vmem:[#allocation2 + $0x4a0] sm:$0xff] %v1275
  %1569 = vst [vmem:[#allocation2 + $0x568] sm:$0xff] %v1417
  %1570 = vst [vmem:[#allocation2 + $0x630] sm:$0xff] %v1559
  %1571 = vst [vmem:[#allocation2 + $0x6f8] sm:$0xff] %v947
  %1572 = vst [vmem:[#allocation2 + $0x7c0] sm:$0xff] %v948
  %1573 = vst [vmem:[#allocation2 + $0x888] sm:$0xff] %v949
  %1574 = vst [vmem:[#allocation2 + $0x950] sm:$0xff] %v950
  %1575 = vst [vmem:[#allocation2 + $0xa18] sm:$0xff] %v1134
  %1576 = vst [vmem:[#allocation2 + $0xae0] sm:$0xff] %v1276
  %1577 = vst [vmem:[#allocation2 + $0xba8] sm:$0xff] %v1418
  %1578 = vst [vmem:[#allocation2 + $0xc70] sm:$0xff] %v1560
  %v1579 = vcombine.low %v355, %v427
  %v1580 = vcombine.low %v373, %v445
  %1583 = vst [vmem:[#allocation2 + $0xc0] sm:$0xff] %v987
  %1584 = vst [vmem:[#allocation2 + $0x188] sm:$0xff] %v988
  %1585 = vst [vmem:[#allocation2 + $0x250] sm:$0xff] %v989
  %1586 = vst [vmem:[#allocation2 + $0x318] sm:$0xff] %v990
  %1587 = vst [vmem:[#allocation2 + $0x3e0] sm:$0xff] %v1153
  %1588 = vst [vmem:[#allocation2 + $0x4a8] sm:$0xff] %v1295
  %1589 = vst [vmem:[#allocation2 + $0x570] sm:$0xff] %v1437
  %1590 = vst [vmem:[#allocation2 + $0x638] sm:$0xff] %v1579
  %1591 = vst [vmem:[#allocation2 + $0x700] sm:$0xff] %v995
  %1592 = vst [vmem:[#allocation2 + $0x7c8] sm:$0xff] %v996
  %1593 = vst [vmem:[#allocation2 + $0x890] sm:$0xff] %v997
  %1594 = vst [vmem:[#allocation2 + $0x958] sm:$0xff] %v998
  %1595 = vst [vmem:[#allocation2 + $0xa20] sm:$0xff] %v1154
  %1596 = vst [vmem:[#allocation2 + $0xae8] sm:$0xff] %v1296
  %1597 = vst [vmem:[#allocation2 + $0xbb0] sm:$0xff] %v1438
  %1598 = vst [vmem:[#allocation2 + $0xc78] sm:$0xff] %v1580
  %v1599 = vld [vmem:[#allocation2] sm:$0xff]
  %v1600 = vld [vmem:[#allocation2 + $0x8] sm:$0xff]
  %v1601 = vld [vmem:[#allocation2 + $0x10] sm:$0xff]
  %v1602 = vld [vmem:[#allocation2 + $0x18] sm:$0xff]
  %v1603 = vld [vmem:[#allocation2 + $0x20] sm:$0xff]
  %v1604 = vld [vmem:[#allocation2 + $0x28] sm:$0xff]
  %v1605 = vld [vmem:[#allocation2 + $0x30] sm:$0xff]
  %v1606 = vld [vmem:[#allocation2 + $0x38] sm:$0xff]
  %v1607 = vld [vmem:[#allocation2 + $0x40] sm:$0xff]
  %v1608 = vld [vmem:[#allocation2 + $0x48] sm:$0xff]
  %v1609 = vld [vmem:[#allocation2 + $0x50] sm:$0xff]
  %v1610 = vld [vmem:[#allocation2 + $0x58] sm:$0xff]
  %v1611 = vld [vmem:[#allocation2 + $0x60] sm:$0xff]
  %v1612 = vld [vmem:[#allocation2 + $0x68] sm:$0xff]
  %v1613 = vld [vmem:[#allocation2 + $0x70] sm:$0xff]
  %v1614 = vld [vmem:[#allocation2 + $0x78] sm:$0xff]
  %v1615 = vld [vmem:[#allocation2 + $0x80] sm:$0xff]
  %v1616 = vld [vmem:[#allocation2 + $0x88] sm:$0xff]
  %v1617 = vld [vmem:[#allocation2 + $0x90] sm:$0xff]
  %v1618 = vld [vmem:[#allocation2 + $0x98] sm:$0xff]
  %v1619 = vld [vmem:[#allocation2 + $0xa0] sm:$0xff]
  %v1620 = vld [vmem:[#allocation2 + $0xa8] sm:$0xff]
  %v1621 = vld [vmem:[#allocation2 + $0xb0] sm:$0xff]
  %v1622 = vld [vmem:[#allocation2 + $0xb8] sm:$0xff]
  %v1623 = vld [vmem:[#allocation2 + $0xc0] sm:$0xff]
  %v1624 = vld [vmem:[#allocation2 + $0xc8] sm:$0xff]
  %v1625 = vld [vmem:[#allocation2 + $0xd0] sm:$0xff]
  %v1626 = vld [vmem:[#allocation2 + $0xd8] sm:$0xff]
  %v1627 = vld [vmem:[#allocation2 + $0xe0] sm:$0xff]
  %v1628 = vld [vmem:[#allocation2 + $0xe8] sm:$0xff]
  %v1629 = vld [vmem:[#allocation2 + $0xf0] sm:$0xff]
  %v1630 = vld [vmem:[#allocation2 + $0xf8] sm:$0xff]
  %v1631 = vld [vmem:[#allocation2 + $0x100] sm:$0xff]
  %v1632 = vld [vmem:[#allocation2 + $0x108] sm:$0xff]
  %v1633 = vld [vmem:[#allocation2 + $0x110] sm:$0xff]
  %v1634 = vld [vmem:[#allocation2 + $0x118] sm:$0xff]
  %v1635 = vld [vmem:[#allocation2 + $0x120] sm:$0xff]
  %v1636 = vld [vmem:[#allocation2 + $0x128] sm:$0xff]
  %v1637 = vld [vmem:[#allocation2 + $0x130] sm:$0xff]
  %v1638 = vld [vmem:[#allocation2 + $0x138] sm:$0xff]
  %v1639 = vld [vmem:[#allocation2 + $0x140] sm:$0xff]
  %v1640 = vld [vmem:[#allocation2 + $0x148] sm:$0xff]
  %v1641 = vld [vmem:[#allocation2 + $0x150] sm:$0xff]
  %v1642 = vld [vmem:[#allocation2 + $0x158] sm:$0xff]
  %v1643 = vld [vmem:[#allocation2 + $0x160] sm:$0xff]
  %v1644 = vld [vmem:[#allocation2 + $0x168] sm:$0xff]
  %v1645 = vld [vmem:[#allocation2 + $0x170] sm:$0xff]
  %v1646 = vld [vmem:[#allocation2 + $0x178] sm:$0xff]
  %v1647 = vld [vmem:[#allocation2 + $0x180] sm:$0xff]
  %v1648 = vld [vmem:[#allocation2 + $0x188] sm:$0xff]
  %v1649 = vld [vmem:[#allocation2 + $0x190] sm:$0xff]
  %v1650 = vld [vmem:[#allocation2 + $0x198] sm:$0xff]
  %v1651 = vld [vmem:[#allocation2 + $0x1a0] sm:$0xff]
  %v1652 = vld [vmem:[#allocation2 + $0x1a8] sm:$0xff]
  %v1653 = vld [vmem:[#allocation2 + $0x1b0] sm:$0xff]
  %v1654 = vld [vmem:[#allocation2 + $0x1b8] sm:$0xff]
  %v1655 = vld [vmem:[#allocation2 + $0x1c0] sm:$0xff]
  %v1656 = vld [vmem:[#allocation2 + $0x1c8] sm:$0xff]
  %v1657 = vld [vmem:[#allocation2 + $0x1d0] sm:$0xff]
  %v1658 = vld [vmem:[#allocation2 + $0x1d8] sm:$0xff]
  %v1659 = vld [vmem:[#allocation2 + $0x1e0] sm:$0xff]
  %v1660 = vld [vmem:[#allocation2 + $0x1e8] sm:$0xff]
  %v1661 = vld [vmem:[#allocation2 + $0x1f0] sm:$0xff]
  %v1662 = vld [vmem:[#allocation2 + $0x1f8] sm:$0xff]
  %v1663 = vld [vmem:[#allocation2 + $0x200] sm:$0xff]
  %v1664 = vld [vmem:[#allocation2 + $0x208] sm:$0xff]
  %v1665 = vld [vmem:[#allocation2 + $0x210] sm:$0xff]
  %v1666 = vld [vmem:[#allocation2 + $0x218] sm:$0xff]
  %v1667 = vld [vmem:[#allocation2 + $0x220] sm:$0xff]
  %v1668 = vld [vmem:[#allocation2 + $0x228] sm:$0xff]
  %v1669 = vld [vmem:[#allocation2 + $0x230] sm:$0xff]
  %v1670 = vld [vmem:[#allocation2 + $0x238] sm:$0xff]
  %v1671 = vld [vmem:[#allocation2 + $0x240] sm:$0xff]
  %v1672 = vld [vmem:[#allocation2 + $0x248] sm:$0xff]
  %v1673 = vld [vmem:[#allocation2 + $0x250] sm:$0xff]
  %v1674 = vld [vmem:[#allocation2 + $0x258] sm:$0xff]
  %v1675 = vld [vmem:[#allocation2 + $0x260] sm:$0xff]
  %v1676 = vld [vmem:[#allocation2 + $0x268] sm:$0xff]
  %v1677 = vld [vmem:[#allocation2 + $0x270] sm:$0xff]
  %v1678 = vld [vmem:[#allocation2 + $0x278] sm:$0xff]
  %v1679 = vld [vmem:[#allocation2 + $0x280] sm:$0xff]
  %v1680 = vld [vmem:[#allocation2 + $0x288] sm:$0xff]
  %v1681 = vld [vmem:[#allocation2 + $0x290] sm:$0xff]
  %v1682 = vld [vmem:[#allocation2 + $0x298] sm:$0xff]
  %v1683 = vld [vmem:[#allocation2 + $0x2a0] sm:$0xff]
  %v1684 = vld [vmem:[#allocation2 + $0x2a8] sm:$0xff]
  %v1685 = vld [vmem:[#allocation2 + $0x2b0] sm:$0xff]
  %v1686 = vld [vmem:[#allocation2 + $0x2b8] sm:$0xff]
  %v1687 = vld [vmem:[#allocation2 + $0x2c0] sm:$0xff]
  %v1688 = vld [vmem:[#allocation2 + $0x2c8] sm:$0xff]
  %v1689 = vld [vmem:[#allocation2 + $0x2d0] sm:$0xff]
  %v1690 = vld [vmem:[#allocation2 + $0x2d8] sm:$0xff]
  %v1691 = vld [vmem:[#allocation2 + $0x2e0] sm:$0xff]
  %v1692 = vld [vmem:[#allocation2 + $0x2e8] sm:$0xff]
  %v1693 = vld [vmem:[#allocation2 + $0x2f0] sm:$0xff]
  %v1694 = vld [vmem:[#allocation2 + $0x2f8] sm:$0xff]
  %v1695 = vld [vmem:[#allocation2 + $0x300] sm:$0xff]
  %v1696 = vld [vmem:[#allocation2 + $0x308] sm:$0xff]
  %v1697 = vld [vmem:[#allocation2 + $0x310] sm:$0xff]
  %v1698 = vld [vmem:[#allocation2 + $0x318] sm:$0xff]
  %v1699 = vld [vmem:[#allocation2 + $0x320] sm:$0xff]
  %v1700 = vld [vmem:[#allocation2 + $0x328] sm:$0xff]
  %v1701 = vld [vmem:[#allocation2 + $0x330] sm:$0xff]
  %v1702 = vld [vmem:[#allocation2 + $0x338] sm:$0xff]
  %v1703 = vld [vmem:[#allocation2 + $0x340] sm:$0xff]
  %v1704 = vld [vmem:[#allocation2 + $0x348] sm:$0xff]
  %v1705 = vld [vmem:[#allocation2 + $0x350] sm:$0xff]
  %v1706 = vld [vmem:[#allocation2 + $0x358] sm:$0xff]
  %v1707 = vld [vmem:[#allocation2 + $0x360] sm:$0xff]
  %v1708 = vld [vmem:[#allocation2 + $0x368] sm:$0xff]
  %v1709 = vld [vmem:[#allocation2 + $0x370] sm:$0xff]
  %v1710 = vld [vmem:[#allocation2 + $0x378] sm:$0xff]
  %v1711 = vld [vmem:[#allocation2 + $0x380] sm:$0xff]
  %v1712 = vld [vmem:[#allocation2 + $0x388] sm:$0xff]
  %v1713 = vld [vmem:[#allocation2 + $0x390] sm:$0xff]
  %v1714 = vld [vmem:[#allocation2 + $0x398] sm:$0xff]
  %v1715 = vld [vmem:[#allocation2 + $0x3a0] sm:$0xff]
  %v1716 = vld [vmem:[#allocation2 + $0x3a8] sm:$0xff]
  %v1717 = vld [vmem:[#allocation2 + $0x3b0] sm:$0xff]
  %v1718 = vld [vmem:[#allocation2 + $0x3b8] sm:$0xff]
  %v1719 = vld [vmem:[#allocation2 + $0x3c0] sm:$0xff]
  %v1720 = vld [vmem:[#allocation2 + $0x3c8] sm:$0xff]
  %v1721 = vld [vmem:[#allocation2 + $0x3d0] sm:$0xff]
  %v1722 = vld [vmem:[#allocation2 + $0x3d8] sm:$0xff]
  %v1723 = vld [vmem:[#allocation2 + $0x3e0] sm:$0xff]
  %v1724 = vld [vmem:[#allocation2 + $0x3e8] sm:$0xff]
  %v1725 = vld [vmem:[#allocation2 + $0x3f0] sm:$0xff]
  %v1726 = vld [vmem:[#allocation2 + $0x3f8] sm:$0xff]
  %v1727 = vld [vmem:[#allocation2 + $0x400] sm:$0xff]
  %v1728 = vld [vmem:[#allocation2 + $0x408] sm:$0xff]
  %v1729 = vld [vmem:[#allocation2 + $0x410] sm:$0xff]
  %v1730 = vld [vmem:[#allocation2 + $0x418] sm:$0xff]
  %v1731 = vld [vmem:[#allocation2 + $0x420] sm:$0xff]
  %v1732 = vld [vmem:[#allocation2 + $0x428] sm:$0xff]
  %v1733 = vld [vmem:[#allocation2 + $0x430] sm:$0xff]
  %v1734 = vld [vmem:[#allocation2 + $0x438] sm:$0xff]
  %v1735 = vld [vmem:[#allocation2 + $0x440] sm:$0xff]
  %v1736 = vld [vmem:[#allocation2 + $0x448] sm:$0xff]
  %v1737 = vld [vmem:[#allocation2 + $0x450] sm:$0xff]
  %v1738 = vld [vmem:[#allocation2 + $0x458] sm:$0xff]
  %v1739 = vld [vmem:[#allocation2 + $0x460] sm:$0xff]
  %v1740 = vld [vmem:[#allocation2 + $0x468] sm:$0xff]
  %v1741 = vld [vmem:[#allocation2 + $0x470] sm:$0xff]
  %v1742 = vld [vmem:[#allocation2 + $0x478] sm:$0xff]
  %v1743 = vld [vmem:[#allocation2 + $0x480] sm:$0xff]
  %v1744 = vld [vmem:[#allocation2 + $0x488] sm:$0xff]
  %v1745 = vld [vmem:[#allocation2 + $0x490] sm:$0xff]
  %v1746 = vld [vmem:[#allocation2 + $0x498] sm:$0xff]
  %v1747 = vld [vmem:[#allocation2 + $0x4a0] sm:$0xff]
  %v1748 = vld [vmem:[#allocation2 + $0x4a8] sm:$0xff]
  %v1749 = vld [vmem:[#allocation2 + $0x4b0] sm:$0xff]
  %v1750 = vld [vmem:[#allocation2 + $0x4b8] sm:$0xff]
  %v1751 = vld [vmem:[#allocation2 + $0x4c0] sm:$0xff]
  %v1752 = vld [vmem:[#allocation2 + $0x4c8] sm:$0xff]
  %v1753 = vld [vmem:[#allocation2 + $0x4d0] sm:$0xff]
  %v1754 = vld [vmem:[#allocation2 + $0x4d8] sm:$0xff]
  %v1755 = vld [vmem:[#allocation2 + $0x4e0] sm:$0xff]
  %v1756 = vld [vmem:[#allocation2 + $0x4e8] sm:$0xff]
  %v1757 = vld [vmem:[#allocation2 + $0x4f0] sm:$0xff]
  %v1758 = vld [vmem:[#allocation2 + $0x4f8] sm:$0xff]
  %v1759 = vld [vmem:[#allocation2 + $0x500] sm:$0xff]
  %v1760 = vld [vmem:[#allocation2 + $0x508] sm:$0xff]
  %v1761 = vld [vmem:[#allocation2 + $0x510] sm:$0xff]
  %v1762 = vld [vmem:[#allocation2 + $0x518] sm:$0xff]
  %v1763 = vld [vmem:[#allocation2 + $0x520] sm:$0xff]
  %v1764 = vld [vmem:[#allocation2 + $0x528] sm:$0xff]
  %v1765 = vld [vmem:[#allocation2 + $0x530] sm:$0xff]
  %v1766 = vld [vmem:[#allocation2 + $0x538] sm:$0xff]
  %v1767 = vld [vmem:[#allocation2 + $0x540] sm:$0xff]
  %v1768 = vld [vmem:[#allocation2 + $0x548] sm:$0xff]
  %v1769 = vld [vmem:[#allocation2 + $0x550] sm:$0xff]
  %v1770 = vld [vmem:[#allocation2 + $0x558] sm:$0xff]
  %v1771 = vld [vmem:[#allocation2 + $0x560] sm:$0xff]
  %v1772 = vld [vmem:[#allocation2 + $0x568] sm:$0xff]
  %v1773 = vld [vmem:[#allocation2 + $0x570] sm:$0xff]
  %v1774 = vld [vmem:[#allocation2 + $0x578] sm:$0xff]
  %v1775 = vld [vmem:[#allocation2 + $0x580] sm:$0xff]
  %v1776 = vld [vmem:[#allocation2 + $0x588] sm:$0xff]
  %v1777 = vld [vmem:[#allocation2 + $0x590] sm:$0xff]
  %v1778 = vld [vmem:[#allocation2 + $0x598] sm:$0xff]
  %v1779 = vld [vmem:[#allocation2 + $0x5a0] sm:$0xff]
  %v1780 = vld [vmem:[#allocation2 + $0x5a8] sm:$0xff]
  %v1781 = vld [vmem:[#allocation2 + $0x5b0] sm:$0xff]
  %v1782 = vld [vmem:[#allocation2 + $0x5b8] sm:$0xff]
  %v1783 = vld [vmem:[#allocation2 + $0x5c0] sm:$0xff]
  %v1784 = vld [vmem:[#allocation2 + $0x5c8] sm:$0xff]
  %v1785 = vld [vmem:[#allocation2 + $0x5d0] sm:$0xff]
  %v1786 = vld [vmem:[#allocation2 + $0x5d8] sm:$0xff]
  %v1787 = vld [vmem:[#allocation2 + $0x5e0] sm:$0xff]
  %v1788 = vld [vmem:[#allocation2 + $0x5e8] sm:$0xff]
  %v1789 = vld [vmem:[#allocation2 + $0x5f0] sm:$0xff]
  %v1790 = vld [vmem:[#allocation2 + $0x5f8] sm:$0xff]
  %v1791 = vld [vmem:[#allocation2 + $0x600] sm:$0xff]
  %v1792 = vld [vmem:[#allocation2 + $0x608] sm:$0xff]
  %v1793 = vld [vmem:[#allocation2 + $0x610] sm:$0xff]
  %v1794 = vld [vmem:[#allocation2 + $0x618] sm:$0xff]
  %v1795 = vld [vmem:[#allocation2 + $0x620] sm:$0xff]
  %v1796 = vld [vmem:[#allocation2 + $0x628] sm:$0xff]
  %v1797 = vld [vmem:[#allocation2 + $0x630] sm:$0xff]
  %v1798 = vld [vmem:[#allocation2 + $0x638] sm:$0xff]
  %v1799 = vld [vmem:[#allocation2 + $0x640] sm:$0xff]
  %v1800 = vld [vmem:[#allocation2 + $0x648] sm:$0xff]
  %v1801 = vld [vmem:[#allocation2 + $0x650] sm:$0xff]
  %v1802 = vld [vmem:[#allocation2 + $0x658] sm:$0xff]
  %v1803 = vld [vmem:[#allocation2 + $0x660] sm:$0xff]
  %v1804 = vld [vmem:[#allocation2 + $0x668] sm:$0xff]
  %v1805 = vld [vmem:[#allocation2 + $0x670] sm:$0xff]
  %v1806 = vld [vmem:[#allocation2 + $0x678] sm:$0xff]
  %v1807 = vld [vmem:[#allocation2 + $0x680] sm:$0xff]
  %v1808 = vld [vmem:[#allocation2 + $0x688] sm:$0xff]
  %v1809 = vld [vmem:[#allocation2 + $0x690] sm:$0xff]
  %v1810 = vld [vmem:[#allocation2 + $0x698] sm:$0xff]
  %v1811 = vld [vmem:[#allocation2 + $0x6a0] sm:$0xff]
  %v1812 = vld [vmem:[#allocation2 + $0x6a8] sm:$0xff]
  %v1813 = vld [vmem:[#allocation2 + $0x6b0] sm:$0xff]
  %v1814 = vld [vmem:[#allocation2 + $0x6b8] sm:$0xff]
  %v1815 = vld [vmem:[#allocation2 + $0x6c0] sm:$0xff]
  %v1816 = vld [vmem:[#allocation2 + $0x6c8] sm:$0xff]
  %v1817 = vld [vmem:[#allocation2 + $0x6d0] sm:$0xff]
  %v1818 = vld [vmem:[#allocation2 + $0x6d8] sm:$0xff]
  %v1819 = vld [vmem:[#allocation2 + $0x6e0] sm:$0xff]
  %v1820 = vld [vmem:[#allocation2 + $0x6e8] sm:$0xff]
  %v1821 = vld [vmem:[#allocation2 + $0x6f0] sm:$0xff]
  %v1822 = vld [vmem:[#allocation2 + $0x6f8] sm:$0xff]
  %v1823 = vld [vmem:[#allocation2 + $0x700] sm:$0xff]
  %v1824 = vld [vmem:[#allocation2 + $0x708] sm:$0xff]
  %v1825 = vld [vmem:[#allocation2 + $0x710] sm:$0xff]
  %v1826 = vld [vmem:[#allocation2 + $0x718] sm:$0xff]
  %v1827 = vld [vmem:[#allocation2 + $0x720] sm:$0xff]
  %v1828 = vld [vmem:[#allocation2 + $0x728] sm:$0xff]
  %v1829 = vld [vmem:[#allocation2 + $0x730] sm:$0xff]
  %v1830 = vld [vmem:[#allocation2 + $0x738] sm:$0xff]
  %v1831 = vld [vmem:[#allocation2 + $0x740] sm:$0xff]
  %v1832 = vld [vmem:[#allocation2 + $0x748] sm:$0xff]
  %v1833 = vld [vmem:[#allocation2 + $0x750] sm:$0xff]
  %v1834 = vld [vmem:[#allocation2 + $0x758] sm:$0xff]
  %v1835 = vld [vmem:[#allocation2 + $0x760] sm:$0xff]
  %v1836 = vld [vmem:[#allocation2 + $0x768] sm:$0xff]
  %v1837 = vld [vmem:[#allocation2 + $0x770] sm:$0xff]
  %v1838 = vld [vmem:[#allocation2 + $0x778] sm:$0xff]
  %v1839 = vld [vmem:[#allocation2 + $0x780] sm:$0xff]
  %v1840 = vld [vmem:[#allocation2 + $0x788] sm:$0xff]
  %v1841 = vld [vmem:[#allocation2 + $0x790] sm:$0xff]
  %v1842 = vld [vmem:[#allocation2 + $0x798] sm:$0xff]
  %v1843 = vld [vmem:[#allocation2 + $0x7a0] sm:$0xff]
  %v1844 = vld [vmem:[#allocation2 + $0x7a8] sm:$0xff]
  %v1845 = vld [vmem:[#allocation2 + $0x7b0] sm:$0xff]
  %v1846 = vld [vmem:[#allocation2 + $0x7b8] sm:$0xff]
  %v1847 = vld [vmem:[#allocation2 + $0x7c0] sm:$0xff]
  %v1848 = vld [vmem:[#allocation2 + $0x7c8] sm:$0xff]
  %v1849 = vld [vmem:[#allocation2 + $0x7d0] sm:$0xff]
  %v1850 = vld [vmem:[#allocation2 + $0x7d8] sm:$0xff]
  %v1851 = vld [vmem:[#allocation2 + $0x7e0] sm:$0xff]
  %v1852 = vld [vmem:[#allocation2 + $0x7e8] sm:$0xff]
  %v1853 = vld [vmem:[#allocation2 + $0x7f0] sm:$0xff]
  %v1854 = vld [vmem:[#allocation2 + $0x7f8] sm:$0xff]
  %v1855 = vld [vmem:[#allocation2 + $0x800] sm:$0xff]
  %v1856 = vld [vmem:[#allocation2 + $0x808] sm:$0xff]
  %v1857 = vld [vmem:[#allocation2 + $0x810] sm:$0xff]
  %v1858 = vld [vmem:[#allocation2 + $0x818] sm:$0xff]
  %v1859 = vld [vmem:[#allocation2 + $0x820] sm:$0xff]
  %v1860 = vld [vmem:[#allocation2 + $0x828] sm:$0xff]
  %v1861 = vld [vmem:[#allocation2 + $0x830] sm:$0xff]
  %v1862 = vld [vmem:[#allocation2 + $0x838] sm:$0xff]
  %v1863 = vld [vmem:[#allocation2 + $0x840] sm:$0xff]
  %v1864 = vld [vmem:[#allocation2 + $0x848] sm:$0xff]
  %v1865 = vld [vmem:[#allocation2 + $0x850] sm:$0xff]
  %v1866 = vld [vmem:[#allocation2 + $0x858] sm:$0xff]
  %v1867 = vld [vmem:[#allocation2 + $0x860] sm:$0xff]
  %v1868 = vld [vmem:[#allocation2 + $0x868] sm:$0xff]
  %v1869 = vld [vmem:[#allocation2 + $0x870] sm:$0xff]
  %v1870 = vld [vmem:[#allocation2 + $0x878] sm:$0xff]
  %v1871 = vld [vmem:[#allocation2 + $0x880] sm:$0xff]
  %v1872 = vld [vmem:[#allocation2 + $0x888] sm:$0xff]
  %v1873 = vld [vmem:[#allocation2 + $0x890] sm:$0xff]
  %v1874 = vld [vmem:[#allocation2 + $0x898] sm:$0xff]
  %v1875 = vld [vmem:[#allocation2 + $0x8a0] sm:$0xff]
  %v1876 = vld [vmem:[#allocation2 + $0x8a8] sm:$0xff]
  %v1877 = vld [vmem:[#allocation2 + $0x8b0] sm:$0xff]
  %v1878 = vld [vmem:[#allocation2 + $0x8b8] sm:$0xff]
  %v1879 = vld [vmem:[#allocation2 + $0x8c0] sm:$0xff]
  %v1880 = vld [vmem:[#allocation2 + $0x8c8] sm:$0xff]
  %v1881 = vld [vmem:[#allocation2 + $0x8d0] sm:$0xff]
  %v1882 = vld [vmem:[#allocation2 + $0x8d8] sm:$0xff]
  %v1883 = vld [vmem:[#allocation2 + $0x8e0] sm:$0xff]
  %v1884 = vld [vmem:[#allocation2 + $0x8e8] sm:$0xff]
  %v1885 = vld [vmem:[#allocation2 + $0x8f0] sm:$0xff]
  %v1886 = vld [vmem:[#allocation2 + $0x8f8] sm:$0xff]
  %v1887 = vld [vmem:[#allocation2 + $0x900] sm:$0xff]
  %v1888 = vld [vmem:[#allocation2 + $0x908] sm:$0xff]
  %v1889 = vld [vmem:[#allocation2 + $0x910] sm:$0xff]
  %v1890 = vld [vmem:[#allocation2 + $0x918] sm:$0xff]
  %v1891 = vld [vmem:[#allocation2 + $0x920] sm:$0xff]
  %v1892 = vld [vmem:[#allocation2 + $0x928] sm:$0xff]
  %v1893 = vld [vmem:[#allocation2 + $0x930] sm:$0xff]
  %v1894 = vld [vmem:[#allocation2 + $0x938] sm:$0xff]
  %v1895 = vld [vmem:[#allocation2 + $0x940] sm:$0xff]
  %v1896 = vld [vmem:[#allocation2 + $0x948] sm:$0xff]
  %v1897 = vld [vmem:[#allocation2 + $0x950] sm:$0xff]
  %v1898 = vld [vmem:[#allocation2 + $0x958] sm:$0xff]
  %v1899 = vld [vmem:[#allocation2 + $0x960] sm:$0xff]
  %v1900 = vld [vmem:[#allocation2 + $0x968] sm:$0xff]
  %v1901 = vld [vmem:[#allocation2 + $0x970] sm:$0xff]
  %v1902 = vld [vmem:[#allocation2 + $0x978] sm:$0xff]
  %v1903 = vld [vmem:[#allocation2 + $0x980] sm:$0xff]
  %v1904 = vld [vmem:[#allocation2 + $0x988] sm:$0xff]
  %v1905 = vld [vmem:[#allocation2 + $0x990] sm:$0xff]
  %v1906 = vld [vmem:[#allocation2 + $0x998] sm:$0xff]
  %v1907 = vld [vmem:[#allocation2 + $0x9a0] sm:$0xff]
  %v1908 = vld [vmem:[#allocation2 + $0x9a8] sm:$0xff]
  %v1909 = vld [vmem:[#allocation2 + $0x9b0] sm:$0xff]
  %v1910 = vld [vmem:[#allocation2 + $0x9b8] sm:$0xff]
  %v1911 = vld [vmem:[#allocation2 + $0x9c0] sm:$0xff]
  %v1912 = vld [vmem:[#allocation2 + $0x9c8] sm:$0xff]
  %v1913 = vld [vmem:[#allocation2 + $0x9d0] sm:$0xff]
  %v1914 = vld [vmem:[#allocation2 + $0x9d8] sm:$0xff]
  %v1915 = vld [vmem:[#allocation2 + $0x9e0] sm:$0xff]
  %v1916 = vld [vmem:[#allocation2 + $0x9e8] sm:$0xff]
  %v1917 = vld [vmem:[#allocation2 + $0x9f0] sm:$0xff]
  %v1918 = vld [vmem:[#allocation2 + $0x9f8] sm:$0xff]
  %v1919 = vld [vmem:[#allocation2 + $0xa00] sm:$0xff]
  %v1920 = vld [vmem:[#allocation2 + $0xa08] sm:$0xff]
  %v1921 = vld [vmem:[#allocation2 + $0xa10] sm:$0xff]
  %v1922 = vld [vmem:[#allocation2 + $0xa18] sm:$0xff]
  %v1923 = vld [vmem:[#allocation2 + $0xa20] sm:$0xff]
  %v1924 = vld [vmem:[#allocation2 + $0xa28] sm:$0xff]
  %v1925 = vld [vmem:[#allocation2 + $0xa30] sm:$0xff]
  %v1926 = vld [vmem:[#allocation2 + $0xa38] sm:$0xff]
  %v1927 = vld [vmem:[#allocation2 + $0xa40] sm:$0xff]
  %v1928 = vld [vmem:[#allocation2 + $0xa48] sm:$0xff]
  %v1929 = vld [vmem:[#allocation2 + $0xa50] sm:$0xff]
  %v1930 = vld [vmem:[#allocation2 + $0xa58] sm:$0xff]
  %v1931 = vld [vmem:[#allocation2 + $0xa60] sm:$0xff]
  %v1932 = vld [vmem:[#allocation2 + $0xa68] sm:$0xff]
  %v1933 = vld [vmem:[#allocation2 + $0xa70] sm:$0xff]
  %v1934 = vld [vmem:[#allocation2 + $0xa78] sm:$0xff]
  %v1935 = vld [vmem:[#allocation2 + $0xa80] sm:$0xff]
  %v1936 = vld [vmem:[#allocation2 + $0xa88] sm:$0xff]
  %v1937 = vld [vmem:[#allocation2 + $0xa90] sm:$0xff]
  %v1938 = vld [vmem:[#allocation2 + $0xa98] sm:$0xff]
  %v1939 = vld [vmem:[#allocation2 + $0xaa0] sm:$0xff]
  %v1940 = vld [vmem:[#allocation2 + $0xaa8] sm:$0xff]
  %v1941 = vld [vmem:[#allocation2 + $0xab0] sm:$0xff]
  %v1942 = vld [vmem:[#allocation2 + $0xab8] sm:$0xff]
  %v1943 = vld [vmem:[#allocation2 + $0xac0] sm:$0xff]
  %v1944 = vld [vmem:[#allocation2 + $0xac8] sm:$0xff]
  %v1945 = vld [vmem:[#allocation2 + $0xad0] sm:$0xff]
  %v1946 = vld [vmem:[#allocation2 + $0xad8] sm:$0xff]
  %v1947 = vld [vmem:[#allocation2 + $0xae0] sm:$0xff]
  %v1948 = vld [vmem:[#allocation2 + $0xae8] sm:$0xff]
  %v1949 = vld [vmem:[#allocation2 + $0xaf0] sm:$0xff]
  %v1950 = vld [vmem:[#allocation2 + $0xaf8] sm:$0xff]
  %v1951 = vld [vmem:[#allocation2 + $0xb00] sm:$0xff]
  %v1952 = vld [vmem:[#allocation2 + $0xb08] sm:$0xff]
  %v1953 = vld [vmem:[#allocation2 + $0xb10] sm:$0xff]
  %v1954 = vld [vmem:[#allocation2 + $0xb18] sm:$0xff]
  %v1955 = vld [vmem:[#allocation2 + $0xb20] sm:$0xff]
  %v1956 = vld [vmem:[#allocation2 + $0xb28] sm:$0xff]
  %v1957 = vld [vmem:[#allocation2 + $0xb30] sm:$0xff]
  %v1958 = vld [vmem:[#allocation2 + $0xb38] sm:$0xff]
  %v1959 = vld [vmem:[#allocation2 + $0xb40] sm:$0xff]
  %v1960 = vld [vmem:[#allocation2 + $0xb48] sm:$0xff]
  %v1961 = vld [vmem:[#allocation2 + $0xb50] sm:$0xff]
  %v1962 = vld [vmem:[#allocation2 + $0xb58] sm:$0xff]
  %v1963 = vld [vmem:[#allocation2 + $0xb60] sm:$0xff]
  %v1964 = vld [vmem:[#allocation2 + $0xb68] sm:$0xff]
  %v1965 = vld [vmem:[#allocation2 + $0xb70] sm:$0xff]
  %v1966 = vld [vmem:[#allocation2 + $0xb78] sm:$0xff]
  %v1967 = vld [vmem:[#allocation2 + $0xb80] sm:$0xff]
  %v1968 = vld [vmem:[#allocation2 + $0xb88] sm:$0xff]
  %v1969 = vld [vmem:[#allocation2 + $0xb90] sm:$0xff]
  %v1970 = vld [vmem:[#allocation2 + $0xb98] sm:$0xff]
  %v1971 = vld [vmem:[#allocation2 + $0xba0] sm:$0xff]
  %v1972 = vld [vmem:[#allocation2 + $0xba8] sm:$0xff]
  %v1973 = vld [vmem:[#allocation2 + $0xbb0] sm:$0xff]
  %v1974 = vld [vmem:[#allocation2 + $0xbb8] sm:$0xff]
  %v1975 = vld [vmem:[#allocation2 + $0xbc0] sm:$0xff]
  %v1976 = vld [vmem:[#allocation2 + $0xbc8] sm:$0xff]
  %v1977 = vld [vmem:[#allocation2 + $0xbd0] sm:$0xff]
  %v1978 = vld [vmem:[#allocation2 + $0xbd8] sm:$0xff]
  %v1979 = vld [vmem:[#allocation2 + $0xbe0] sm:$0xff]
  %v1980 = vld [vmem:[#allocation2 + $0xbe8] sm:$0xff]
  %v1981 = vld [vmem:[#allocation2 + $0xbf0] sm:$0xff]
  %v1982 = vld [vmem:[#allocation2 + $0xbf8] sm:$0xff]
  %v1983 = vld [vmem:[#allocation2 + $0xc00] sm:$0xff]
  %v1984 = vld [vmem:[#allocation2 + $0xc08] sm:$0xff]
  %v1985 = vld [vmem:[#allocation2 + $0xc10] sm:$0xff]
  %v1986 = vld [vmem:[#allocation2 + $0xc18] sm:$0xff]
  %v1987 = vld [vmem:[#allocation2 + $0xc20] sm:$0xff]
  %v1988 = vld [vmem:[#allocation2 + $0xc28] sm:$0xff]
  %v1989 = vld [vmem:[#allocation2 + $0xc30] sm:$0xff]
  %v1990 = vld [vmem:[#allocation2 + $0xc38] sm:$0xff]
  %v1991 = vld [vmem:[#allocation2 + $0xc40] sm:$0xff]
  %v1992 = vld [vmem:[#allocation2 + $0xc48] sm:$0xff]
  %v1993 = vld [vmem:[#allocation2 + $0xc50] sm:$0xff]
  %v1994 = vld [vmem:[#allocation2 + $0xc58] sm:$0xff]
  %v1995 = vld [vmem:[#allocation2 + $0xc60] sm:$0xff]
  %v1996 = vld [vmem:[#allocation2 + $0xc68] sm:$0xff]
  %v1997 = vld [vmem:[#allocation2 + $0xc70] sm:$0xff]
  %v1998 = vld [vmem:[#allocation2 + $0xc78] sm:$0xff]
  %v1999 = vld [vmem:[%s3] sm:$0xff]
  %v2000 = vld [vmem:[%s3 + $0x8] sm:$0xff]
  %v2001 = vld [vmem:[%s3 + $0x10] sm:$0xff]
  %v2002 = vld [vmem:[%s3 + $0x18] sm:$0xff]
  %v2003 = vld [vmem:[%s3 + $0x20] sm:$0xff]
  %v2004 = vld [vmem:[%s3 + $0x28] sm:$0xff]
  %v2005 = vld [vmem:[%s3 + $0x30] sm:$0xff]
  %v2006 = vld [vmem:[%s3 + $0x38] sm:$0xff]
  %v2007 = vld [vmem:[%s3 + $0x40] sm:$0xff]
  %v2008 = vld [vmem:[%s3 + $0x48] sm:$0xff]
  %v2009 = vld [vmem:[%s3 + $0x50] sm:$0xff]
  %v2010 = vld [vmem:[%s3 + $0x58] sm:$0xff]
  %v2011 = vld [vmem:[%s3 + $0x60] sm:$0xff]
  %v2012 = vld [vmem:[%s3 + $0x68] sm:$0xff]
  %v2013 = vld [vmem:[%s3 + $0x70] sm:$0xff]
  %v2014 = vld [vmem:[%s3 + $0x78] sm:$0xff]
  %v2015 = vld [vmem:[%s3 + $0x80] sm:$0xff]
  %v2016 = vld [vmem:[%s3 + $0x88] sm:$0xff]
  %v2017 = vld [vmem:[%s3 + $0x90] sm:$0xff]
  %v2018 = vld [vmem:[%s3 + $0x98] sm:$0xff]
  %v2019 = vld [vmem:[%s3 + $0xa0] sm:$0xff]
  %v2020 = vld [vmem:[%s3 + $0xa8] sm:$0xff]
  %v2021 = vld [vmem:[%s3 + $0xb0] sm:$0xff]
  %v2022 = vld [vmem:[%s3 + $0xb8] sm:$0xff]
  %v2023 = vld [vmem:[%s3 + $0xc0] sm:$0xff]
  %v2024 = vld [vmem:[%s3 + $0xc8] sm:$0xff]
  %v2025 = vld [vmem:[%s3 + $0xd0] sm:$0xff]
  %v2026 = vld [vmem:[%s3 + $0xd8] sm:$0xff]
  %v2027 = vld [vmem:[%s3 + $0xe0] sm:$0xff]
  %v2028 = vld [vmem:[%s3 + $0xe8] sm:$0xff]
  %v2029 = vld [vmem:[%s3 + $0xf0] sm:$0xff]
  %v2030 = vld [vmem:[%s3 + $0xf8] sm:$0xff]
  %v2031 = vld [vmem:[%s3 + $0x100] sm:$0xff]
  %v2032 = vld [vmem:[%s3 + $0x108] sm:$0xff]
  %v2033 = vld [vmem:[%s3 + $0x110] sm:$0xff]
  %v2034 = vld [vmem:[%s3 + $0x118] sm:$0xff]
  %v2035 = vld [vmem:[%s3 + $0x120] sm:$0xff]
  %v2036 = vld [vmem:[%s3 + $0x128] sm:$0xff]
  %v2037 = vld [vmem:[%s3 + $0x130] sm:$0xff]
  %v2038 = vld [vmem:[%s3 + $0x138] sm:$0xff]
  %v2039 = vld [vmem:[%s3 + $0x140] sm:$0xff]
  %v2040 = vld [vmem:[%s3 + $0x148] sm:$0xff]
  %v2041 = vld [vmem:[%s3 + $0x150] sm:$0xff]
  %v2042 = vld [vmem:[%s3 + $0x158] sm:$0xff]
  %v2043 = vld [vmem:[%s3 + $0x160] sm:$0xff]
  %v2044 = vld [vmem:[%s3 + $0x168] sm:$0xff]
  %v2045 = vld [vmem:[%s3 + $0x170] sm:$0xff]
  %v2046 = vld [vmem:[%s3 + $0x178] sm:$0xff]
  %v2047 = vld [vmem:[%s3 + $0x180] sm:$0xff]
  %v2048 = vld [vmem:[%s3 + $0x188] sm:$0xff]
  %v2049 = vld [vmem:[%s3 + $0x190] sm:$0xff]
  %v2050 = vld [vmem:[%s3 + $0x198] sm:$0xff]
  %v2051 = vld [vmem:[%s3 + $0x1a0] sm:$0xff]
  %v2052 = vld [vmem:[%s3 + $0x1a8] sm:$0xff]
  %v2053 = vld [vmem:[%s3 + $0x1b0] sm:$0xff]
  %v2054 = vld [vmem:[%s3 + $0x1b8] sm:$0xff]
  %v2055 = vld [vmem:[%s3 + $0x1c0] sm:$0xff]
  %v2056 = vld [vmem:[%s3 + $0x1c8] sm:$0xff]
  %v2057 = vld [vmem:[%s3 + $0x1d0] sm:$0xff]
  %v2058 = vld [vmem:[%s3 + $0x1d8] sm:$0xff]
  %v2059 = vld [vmem:[%s3 + $0x1e0] sm:$0xff]
  %v2060 = vld [vmem:[%s3 + $0x1e8] sm:$0xff]
  %v2061 = vld [vmem:[%s3 + $0x1f0] sm:$0xff]
  %v2062 = vld [vmem:[%s3 + $0x1f8] sm:$0xff]
  %v2063 = vld [vmem:[%s3 + $0x200] sm:$0xff]
  %v2064 = vld [vmem:[%s3 + $0x208] sm:$0xff]
  %v2065 = vld [vmem:[%s3 + $0x210] sm:$0xff]
  %v2066 = vld [vmem:[%s3 + $0x218] sm:$0xff]
  %v2067 = vld [vmem:[%s3 + $0x220] sm:$0xff]
  %v2068 = vld [vmem:[%s3 + $0x228] sm:$0xff]
  %v2069 = vld [vmem:[%s3 + $0x230] sm:$0xff]
  %v2070 = vld [vmem:[%s3 + $0x238] sm:$0xff]
  %v2071 = vld [vmem:[%s3 + $0x240] sm:$0xff]
  %v2072 = vld [vmem:[%s3 + $0x248] sm:$0xff]
  %v2073 = vld [vmem:[%s3 + $0x250] sm:$0xff]
  %v2074 = vld [vmem:[%s3 + $0x258] sm:$0xff]
  %v2075 = vld [vmem:[%s3 + $0x260] sm:$0xff]
  %v2076 = vld [vmem:[%s3 + $0x268] sm:$0xff]
  %v2077 = vld [vmem:[%s3 + $0x270] sm:$0xff]
  %v2078 = vld [vmem:[%s3 + $0x278] sm:$0xff]
  %v2079 = vld [vmem:[%s3 + $0x280] sm:$0xff]
  %v2080 = vld [vmem:[%s3 + $0x288] sm:$0xff]
  %v2081 = vld [vmem:[%s3 + $0x290] sm:$0xff]
  %v2082 = vld [vmem:[%s3 + $0x298] sm:$0xff]
  %v2083 = vld [vmem:[%s3 + $0x2a0] sm:$0xff]
  %v2084 = vld [vmem:[%s3 + $0x2a8] sm:$0xff]
  %v2085 = vld [vmem:[%s3 + $0x2b0] sm:$0xff]
  %v2086 = vld [vmem:[%s3 + $0x2b8] sm:$0xff]
  %v2087 = vld [vmem:[%s3 + $0x2c0] sm:$0xff]
  %v2088 = vld [vmem:[%s3 + $0x2c8] sm:$0xff]
  %v2089 = vld [vmem:[%s3 + $0x2d0] sm:$0xff]
  %v2090 = vld [vmem:[%s3 + $0x2d8] sm:$0xff]
  %v2091 = vld [vmem:[%s3 + $0x2e0] sm:$0xff]
  %v2092 = vld [vmem:[%s3 + $0x2e8] sm:$0xff]
  %v2093 = vld [vmem:[%s3 + $0x2f0] sm:$0xff]
  %v2094 = vld [vmem:[%s3 + $0x2f8] sm:$0xff]
  %v2095 = vld [vmem:[%s3 + $0x300] sm:$0xff]
  %v2096 = vld [vmem:[%s3 + $0x308] sm:$0xff]
  %v2097 = vld [vmem:[%s3 + $0x310] sm:$0xff]
  %v2098 = vld [vmem:[%s3 + $0x318] sm:$0xff]
  %v2099 = vld [vmem:[%s3 + $0x320] sm:$0xff]
  %v2100 = vld [vmem:[%s3 + $0x328] sm:$0xff]
  %v2101 = vld [vmem:[%s3 + $0x330] sm:$0xff]
  %v2102 = vld [vmem:[%s3 + $0x338] sm:$0xff]
  %v2103 = vld [vmem:[%s3 + $0x340] sm:$0xff]
  %v2104 = vld [vmem:[%s3 + $0x348] sm:$0xff]
  %v2105 = vld [vmem:[%s3 + $0x350] sm:$0xff]
  %v2106 = vld [vmem:[%s3 + $0x358] sm:$0xff]
  %v2107 = vld [vmem:[%s3 + $0x360] sm:$0xff]
  %v2108 = vld [vmem:[%s3 + $0x368] sm:$0xff]
  %v2109 = vld [vmem:[%s3 + $0x370] sm:$0xff]
  %v2110 = vld [vmem:[%s3 + $0x378] sm:$0xff]
  %v2111 = vld [vmem:[%s3 + $0x380] sm:$0xff]
  %v2112 = vld [vmem:[%s3 + $0x388] sm:$0xff]
  %v2113 = vld [vmem:[%s3 + $0x390] sm:$0xff]
  %v2114 = vld [vmem:[%s3 + $0x398] sm:$0xff]
  %v2115 = vld [vmem:[%s3 + $0x3a0] sm:$0xff]
  %v2116 = vld [vmem:[%s3 + $0x3a8] sm:$0xff]
  %v2117 = vld [vmem:[%s3 + $0x3b0] sm:$0xff]
  %v2118 = vld [vmem:[%s3 + $0x3b8] sm:$0xff]
  %v2119 = vld [vmem:[%s3 + $0x3c0] sm:$0xff]
  %v2120 = vld [vmem:[%s3 + $0x3c8] sm:$0xff]
  %v2121 = vld [vmem:[%s3 + $0x3d0] sm:$0xff]
  %v2122 = vld [vmem:[%s3 + $0x3d8] sm:$0xff]
  %v2123 = vld [vmem:[%s3 + $0x3e0] sm:$0xff]
  %v2124 = vld [vmem:[%s3 + $0x3e8] sm:$0xff]
  %v2125 = vld [vmem:[%s3 + $0x3f0] sm:$0xff]
  %v2126 = vld [vmem:[%s3 + $0x3f8] sm:$0xff]
  %v2127 = vld [vmem:[%s3 + $0x400] sm:$0xff]
  %v2128 = vld [vmem:[%s3 + $0x408] sm:$0xff]
  %v2129 = vld [vmem:[%s3 + $0x410] sm:$0xff]
  %v2130 = vld [vmem:[%s3 + $0x418] sm:$0xff]
  %v2131 = vld [vmem:[%s3 + $0x420] sm:$0xff]
  %v2132 = vld [vmem:[%s3 + $0x428] sm:$0xff]
  %v2133 = vld [vmem:[%s3 + $0x430] sm:$0xff]
  %v2134 = vld [vmem:[%s3 + $0x438] sm:$0xff]
  %v2135 = vld [vmem:[%s3 + $0x440] sm:$0xff]
  %v2136 = vld [vmem:[%s3 + $0x448] sm:$0xff]
  %v2137 = vld [vmem:[%s3 + $0x450] sm:$0xff]
  %v2138 = vld [vmem:[%s3 + $0x458] sm:$0xff]
  %v2139 = vld [vmem:[%s3 + $0x460] sm:$0xff]
  %v2140 = vld [vmem:[%s3 + $0x468] sm:$0xff]
  %v2141 = vld [vmem:[%s3 + $0x470] sm:$0xff]
  %v2142 = vld [vmem:[%s3 + $0x478] sm:$0xff]
  %v2143 = vld [vmem:[%s3 + $0x480] sm:$0xff]
  %v2144 = vld [vmem:[%s3 + $0x488] sm:$0xff]
  %v2145 = vld [vmem:[%s3 + $0x490] sm:$0xff]
  %v2146 = vld [vmem:[%s3 + $0x498] sm:$0xff]
  %v2147 = vld [vmem:[%s3 + $0x4a0] sm:$0xff]
  %v2148 = vld [vmem:[%s3 + $0x4a8] sm:$0xff]
  %v2149 = vld [vmem:[%s3 + $0x4b0] sm:$0xff]
  %v2150 = vld [vmem:[%s3 + $0x4b8] sm:$0xff]
  %v2151 = vld [vmem:[%s3 + $0x4c0] sm:$0xff]
  %v2152 = vld [vmem:[%s3 + $0x4c8] sm:$0xff]
  %v2153 = vld [vmem:[%s3 + $0x4d0] sm:$0xff]
  %v2154 = vld [vmem:[%s3 + $0x4d8] sm:$0xff]
  %v2155 = vld [vmem:[%s3 + $0x4e0] sm:$0xff]
  %v2156 = vld [vmem:[%s3 + $0x4e8] sm:$0xff]
  %v2157 = vld [vmem:[%s3 + $0x4f0] sm:$0xff]
  %v2158 = vld [vmem:[%s3 + $0x4f8] sm:$0xff]
  %v2159 = vld [vmem:[%s3 + $0x500] sm:$0xff]
  %v2160 = vld [vmem:[%s3 + $0x508] sm:$0xff]
  %v2161 = vld [vmem:[%s3 + $0x510] sm:$0xff]
  %v2162 = vld [vmem:[%s3 + $0x518] sm:$0xff]
  %v2163 = vld [vmem:[%s3 + $0x520] sm:$0xff]
  %v2164 = vld [vmem:[%s3 + $0x528] sm:$0xff]
  %v2165 = vld [vmem:[%s3 + $0x530] sm:$0xff]
  %v2166 = vld [vmem:[%s3 + $0x538] sm:$0xff]
  %v2167 = vld [vmem:[%s3 + $0x540] sm:$0xff]
  %v2168 = vld [vmem:[%s3 + $0x548] sm:$0xff]
  %v2169 = vld [vmem:[%s3 + $0x550] sm:$0xff]
  %v2170 = vld [vmem:[%s3 + $0x558] sm:$0xff]
  %v2171 = vld [vmem:[%s3 + $0x560] sm:$0xff]
  %v2172 = vld [vmem:[%s3 + $0x568] sm:$0xff]
  %v2173 = vld [vmem:[%s3 + $0x570] sm:$0xff]
  %v2174 = vld [vmem:[%s3 + $0x578] sm:$0xff]
  %v2175 = vld [vmem:[%s3 + $0x580] sm:$0xff]
  %v2176 = vld [vmem:[%s3 + $0x588] sm:$0xff]
  %v2177 = vld [vmem:[%s3 + $0x590] sm:$0xff]
  %v2178 = vld [vmem:[%s3 + $0x598] sm:$0xff]
  %v2179 = vld [vmem:[%s3 + $0x5a0] sm:$0xff]
  %v2180 = vld [vmem:[%s3 + $0x5a8] sm:$0xff]
  %v2181 = vld [vmem:[%s3 + $0x5b0] sm:$0xff]
  %v2182 = vld [vmem:[%s3 + $0x5b8] sm:$0xff]
  %v2183 = vld [vmem:[%s3 + $0x5c0] sm:$0xff]
  %v2184 = vld [vmem:[%s3 + $0x5c8] sm:$0xff]
  %v2185 = vld [vmem:[%s3 + $0x5d0] sm:$0xff]
  %v2186 = vld [vmem:[%s3 + $0x5d8] sm:$0xff]
  %v2187 = vld [vmem:[%s3 + $0x5e0] sm:$0xff]
  %v2188 = vld [vmem:[%s3 + $0x5e8] sm:$0xff]
  %v2189 = vld [vmem:[%s3 + $0x5f0] sm:$0xff]
  %v2190 = vld [vmem:[%s3 + $0x5f8] sm:$0xff]
  %v2191 = vld [vmem:[%s3 + $0x600] sm:$0xff]
  %v2192 = vld [vmem:[%s3 + $0x608] sm:$0xff]
  %v2193 = vld [vmem:[%s3 + $0x610] sm:$0xff]
  %v2194 = vld [vmem:[%s3 + $0x618] sm:$0xff]
  %v2195 = vld [vmem:[%s3 + $0x620] sm:$0xff]
  %v2196 = vld [vmem:[%s3 + $0x628] sm:$0xff]
  %v2197 = vld [vmem:[%s3 + $0x630] sm:$0xff]
  %v2198 = vld [vmem:[%s3 + $0x638] sm:$0xff]
  %v2199 = vld [vmem:[%s3 + $0x640] sm:$0xff]
  %v2200 = vld [vmem:[%s3 + $0x648] sm:$0xff]
  %v2201 = vld [vmem:[%s3 + $0x650] sm:$0xff]
  %v2202 = vld [vmem:[%s3 + $0x658] sm:$0xff]
  %v2203 = vld [vmem:[%s3 + $0x660] sm:$0xff]
  %v2204 = vld [vmem:[%s3 + $0x668] sm:$0xff]
  %v2205 = vld [vmem:[%s3 + $0x670] sm:$0xff]
  %v2206 = vld [vmem:[%s3 + $0x678] sm:$0xff]
  %v2207 = vld [vmem:[%s3 + $0x680] sm:$0xff]
  %v2208 = vld [vmem:[%s3 + $0x688] sm:$0xff]
  %v2209 = vld [vmem:[%s3 + $0x690] sm:$0xff]
  %v2210 = vld [vmem:[%s3 + $0x698] sm:$0xff]
  %v2211 = vld [vmem:[%s3 + $0x6a0] sm:$0xff]
  %v2212 = vld [vmem:[%s3 + $0x6a8] sm:$0xff]
  %v2213 = vld [vmem:[%s3 + $0x6b0] sm:$0xff]
  %v2214 = vld [vmem:[%s3 + $0x6b8] sm:$0xff]
  %v2215 = vld [vmem:[%s3 + $0x6c0] sm:$0xff]
  %v2216 = vld [vmem:[%s3 + $0x6c8] sm:$0xff]
  %v2217 = vld [vmem:[%s3 + $0x6d0] sm:$0xff]
  %v2218 = vld [vmem:[%s3 + $0x6d8] sm:$0xff]
  %v2219 = vld [vmem:[%s3 + $0x6e0] sm:$0xff]
  %v2220 = vld [vmem:[%s3 + $0x6e8] sm:$0xff]
  %v2221 = vld [vmem:[%s3 + $0x6f0] sm:$0xff]
  %v2222 = vld [vmem:[%s3 + $0x6f8] sm:$0xff]
  %v2223 = vld [vmem:[%s3 + $0x700] sm:$0xff]
  %v2224 = vld [vmem:[%s3 + $0x708] sm:$0xff]
  %v2225 = vld [vmem:[%s3 + $0x710] sm:$0xff]
  %v2226 = vld [vmem:[%s3 + $0x718] sm:$0xff]
  %v2227 = vld [vmem:[%s3 + $0x720] sm:$0xff]
  %v2228 = vld [vmem:[%s3 + $0x728] sm:$0xff]
  %v2229 = vld [vmem:[%s3 + $0x730] sm:$0xff]
  %v2230 = vld [vmem:[%s3 + $0x738] sm:$0xff]
  %v2231 = vld [vmem:[%s3 + $0x740] sm:$0xff]
  %v2232 = vld [vmem:[%s3 + $0x748] sm:$0xff]
  %v2233 = vld [vmem:[%s3 + $0x750] sm:$0xff]
  %v2234 = vld [vmem:[%s3 + $0x758] sm:$0xff]
  %v2235 = vld [vmem:[%s3 + $0x760] sm:$0xff]
  %v2236 = vld [vmem:[%s3 + $0x768] sm:$0xff]
  %v2237 = vld [vmem:[%s3 + $0x770] sm:$0xff]
  %v2238 = vld [vmem:[%s3 + $0x778] sm:$0xff]
  %v2239 = vld [vmem:[%s3 + $0x780] sm:$0xff]
  %v2240 = vld [vmem:[%s3 + $0x788] sm:$0xff]
  %v2241 = vld [vmem:[%s3 + $0x790] sm:$0xff]
  %v2242 = vld [vmem:[%s3 + $0x798] sm:$0xff]
  %v2243 = vld [vmem:[%s3 + $0x7a0] sm:$0xff]
  %v2244 = vld [vmem:[%s3 + $0x7a8] sm:$0xff]
  %v2245 = vld [vmem:[%s3 + $0x7b0] sm:$0xff]
  %v2246 = vld [vmem:[%s3 + $0x7b8] sm:$0xff]
  %v2247 = vld [vmem:[%s3 + $0x7c0] sm:$0xff]
  %v2248 = vld [vmem:[%s3 + $0x7c8] sm:$0xff]
  %v2249 = vld [vmem:[%s3 + $0x7d0] sm:$0xff]
  %v2250 = vld [vmem:[%s3 + $0x7d8] sm:$0xff]
  %v2251 = vld [vmem:[%s3 + $0x7e0] sm:$0xff]
  %v2252 = vld [vmem:[%s3 + $0x7e8] sm:$0xff]
  %v2253 = vld [vmem:[%s3 + $0x7f0] sm:$0xff]
  %v2254 = vld [vmem:[%s3 + $0x7f8] sm:$0xff]
  %v2255 = vld [vmem:[%s3 + $0x800] sm:$0xff]
  %v2256 = vld [vmem:[%s3 + $0x808] sm:$0xff]
  %v2257 = vld [vmem:[%s3 + $0x810] sm:$0xff]
  %v2258 = vld [vmem:[%s3 + $0x818] sm:$0xff]
  %v2259 = vld [vmem:[%s3 + $0x820] sm:$0xff]
  %v2260 = vld [vmem:[%s3 + $0x828] sm:$0xff]
  %v2261 = vld [vmem:[%s3 + $0x830] sm:$0xff]
  %v2262 = vld [vmem:[%s3 + $0x838] sm:$0xff]
  %v2263 = vld [vmem:[%s3 + $0x840] sm:$0xff]
  %v2264 = vld [vmem:[%s3 + $0x848] sm:$0xff]
  %v2265 = vld [vmem:[%s3 + $0x850] sm:$0xff]
  %v2266 = vld [vmem:[%s3 + $0x858] sm:$0xff]
  %v2267 = vld [vmem:[%s3 + $0x860] sm:$0xff]
  %v2268 = vld [vmem:[%s3 + $0x868] sm:$0xff]
  %v2269 = vld [vmem:[%s3 + $0x870] sm:$0xff]
  %v2270 = vld [vmem:[%s3 + $0x878] sm:$0xff]
  %v2271 = vld [vmem:[%s3 + $0x880] sm:$0xff]
  %v2272 = vld [vmem:[%s3 + $0x888] sm:$0xff]
  %v2273 = vld [vmem:[%s3 + $0x890] sm:$0xff]
  %v2274 = vld [vmem:[%s3 + $0x898] sm:$0xff]
  %v2275 = vld [vmem:[%s3 + $0x8a0] sm:$0xff]
  %v2276 = vld [vmem:[%s3 + $0x8a8] sm:$0xff]
  %v2277 = vld [vmem:[%s3 + $0x8b0] sm:$0xff]
  %v2278 = vld [vmem:[%s3 + $0x8b8] sm:$0xff]
  %v2279 = vld [vmem:[%s3 + $0x8c0] sm:$0xff]
  %v2280 = vld [vmem:[%s3 + $0x8c8] sm:$0xff]
  %v2281 = vld [vmem:[%s3 + $0x8d0] sm:$0xff]
  %v2282 = vld [vmem:[%s3 + $0x8d8] sm:$0xff]
  %v2283 = vld [vmem:[%s3 + $0x8e0] sm:$0xff]
  %v2284 = vld [vmem:[%s3 + $0x8e8] sm:$0xff]
  %v2285 = vld [vmem:[%s3 + $0x8f0] sm:$0xff]
  %v2286 = vld [vmem:[%s3 + $0x8f8] sm:$0xff]
  %v2287 = vld [vmem:[%s3 + $0x900] sm:$0xff]
  %v2288 = vld [vmem:[%s3 + $0x908] sm:$0xff]
  %v2289 = vld [vmem:[%s3 + $0x910] sm:$0xff]
  %v2290 = vld [vmem:[%s3 + $0x918] sm:$0xff]
  %v2291 = vld [vmem:[%s3 + $0x920] sm:$0xff]
  %v2292 = vld [vmem:[%s3 + $0x928] sm:$0xff]
  %v2293 = vld [vmem:[%s3 + $0x930] sm:$0xff]
  %v2294 = vld [vmem:[%s3 + $0x938] sm:$0xff]
  %v2295 = vld [vmem:[%s3 + $0x940] sm:$0xff]
  %v2296 = vld [vmem:[%s3 + $0x948] sm:$0xff]
  %v2297 = vld [vmem:[%s3 + $0x950] sm:$0xff]
  %v2298 = vld [vmem:[%s3 + $0x958] sm:$0xff]
  %v2299 = vld [vmem:[%s3 + $0x960] sm:$0xff]
  %v2300 = vld [vmem:[%s3 + $0x968] sm:$0xff]
  %v2301 = vld [vmem:[%s3 + $0x970] sm:$0xff]
  %v2302 = vld [vmem:[%s3 + $0x978] sm:$0xff]
  %v2303 = vld [vmem:[%s3 + $0x980] sm:$0xff]
  %v2304 = vld [vmem:[%s3 + $0x988] sm:$0xff]
  %v2305 = vld [vmem:[%s3 + $0x990] sm:$0xff]
  %v2306 = vld [vmem:[%s3 + $0x998] sm:$0xff]
  %v2307 = vld [vmem:[%s3 + $0x9a0] sm:$0xff]
  %v2308 = vld [vmem:[%s3 + $0x9a8] sm:$0xff]
  %v2309 = vld [vmem:[%s3 + $0x9b0] sm:$0xff]
  %v2310 = vld [vmem:[%s3 + $0x9b8] sm:$0xff]
  %v2311 = vld [vmem:[%s3 + $0x9c0] sm:$0xff]
  %v2312 = vld [vmem:[%s3 + $0x9c8] sm:$0xff]
  %v2313 = vld [vmem:[%s3 + $0x9d0] sm:$0xff]
  %v2314 = vld [vmem:[%s3 + $0x9d8] sm:$0xff]
  %v2315 = vld [vmem:[%s3 + $0x9e0] sm:$0xff]
  %v2316 = vld [vmem:[%s3 + $0x9e8] sm:$0xff]
  %v2317 = vld [vmem:[%s3 + $0x9f0] sm:$0xff]
  %v2318 = vld [vmem:[%s3 + $0x9f8] sm:$0xff]
  %v2319 = vld [vmem:[%s3 + $0xa00] sm:$0xff]
  %v2320 = vld [vmem:[%s3 + $0xa08] sm:$0xff]
  %v2321 = vld [vmem:[%s3 + $0xa10] sm:$0xff]
  %v2322 = vld [vmem:[%s3 + $0xa18] sm:$0xff]
  %v2323 = vld [vmem:[%s3 + $0xa20] sm:$0xff]
  %v2324 = vld [vmem:[%s3 + $0xa28] sm:$0xff]
  %v2325 = vld [vmem:[%s3 + $0xa30] sm:$0xff]
  %v2326 = vld [vmem:[%s3 + $0xa38] sm:$0xff]
  %v2327 = vld [vmem:[%s3 + $0xa40] sm:$0xff]
  %v2328 = vld [vmem:[%s3 + $0xa48] sm:$0xff]
  %v2329 = vld [vmem:[%s3 + $0xa50] sm:$0xff]
  %v2330 = vld [vmem:[%s3 + $0xa58] sm:$0xff]
  %v2331 = vld [vmem:[%s3 + $0xa60] sm:$0xff]
  %v2332 = vld [vmem:[%s3 + $0xa68] sm:$0xff]
  %v2333 = vld [vmem:[%s3 + $0xa70] sm:$0xff]
  %v2334 = vld [vmem:[%s3 + $0xa78] sm:$0xff]
  %v2335 = vld [vmem:[%s3 + $0xa80] sm:$0xff]
  %v2336 = vld [vmem:[%s3 + $0xa88] sm:$0xff]
  %v2337 = vld [vmem:[%s3 + $0xa90] sm:$0xff]
  %v2338 = vld [vmem:[%s3 + $0xa98] sm:$0xff]
  %v2339 = vld [vmem:[%s3 + $0xaa0] sm:$0xff]
  %v2340 = vld [vmem:[%s3 + $0xaa8] sm:$0xff]
  %v2341 = vld [vmem:[%s3 + $0xab0] sm:$0xff]
  %v2342 = vld [vmem:[%s3 + $0xab8] sm:$0xff]
  %v2343 = vld [vmem:[%s3 + $0xac0] sm:$0xff]
  %v2344 = vld [vmem:[%s3 + $0xac8] sm:$0xff]
  %v2345 = vld [vmem:[%s3 + $0xad0] sm:$0xff]
  %v2346 = vld [vmem:[%s3 + $0xad8] sm:$0xff]
  %v2347 = vld [vmem:[%s3 + $0xae0] sm:$0xff]
  %v2348 = vld [vmem:[%s3 + $0xae8] sm:$0xff]
  %v2349 = vld [vmem:[%s3 + $0xaf0] sm:$0xff]
  %v2350 = vld [vmem:[%s3 + $0xaf8] sm:$0xff]
  %v2351 = vld [vmem:[%s3 + $0xb00] sm:$0xff]
  %v2352 = vld [vmem:[%s3 + $0xb08] sm:$0xff]
  %v2353 = vld [vmem:[%s3 + $0xb10] sm:$0xff]
  %v2354 = vld [vmem:[%s3 + $0xb18] sm:$0xff]
  %v2355 = vld [vmem:[%s3 + $0xb20] sm:$0xff]
  %v2356 = vld [vmem:[%s3 + $0xb28] sm:$0xff]
  %v2357 = vld [vmem:[%s3 + $0xb30] sm:$0xff]
  %v2358 = vld [vmem:[%s3 + $0xb38] sm:$0xff]
  %v2359 = vld [vmem:[%s3 + $0xb40] sm:$0xff]
  %v2360 = vld [vmem:[%s3 + $0xb48] sm:$0xff]
  %v2361 = vld [vmem:[%s3 + $0xb50] sm:$0xff]
  %v2362 = vld [vmem:[%s3 + $0xb58] sm:$0xff]
  %v2363 = vld [vmem:[%s3 + $0xb60] sm:$0xff]
  %v2364 = vld [vmem:[%s3 + $0xb68] sm:$0xff]
  %v2365 = vld [vmem:[%s3 + $0xb70] sm:$0xff]
  %v2366 = vld [vmem:[%s3 + $0xb78] sm:$0xff]
  %v2367 = vld [vmem:[%s3 + $0xb80] sm:$0xff]
  %v2368 = vld [vmem:[%s3 + $0xb88] sm:$0xff]
  %v2369 = vld [vmem:[%s3 + $0xb90] sm:$0xff]
  %v2370 = vld [vmem:[%s3 + $0xb98] sm:$0xff]
  %v2371 = vld [vmem:[%s3 + $0xba0] sm:$0xff]
  %v2372 = vld [vmem:[%s3 + $0xba8] sm:$0xff]
  %v2373 = vld [vmem:[%s3 + $0xbb0] sm:$0xff]
  %v2374 = vld [vmem:[%s3 + $0xbb8] sm:$0xff]
  %v2375 = vld [vmem:[%s3 + $0xbc0] sm:$0xff]
  %v2376 = vld [vmem:[%s3 + $0xbc8] sm:$0xff]
  %v2377 = vld [vmem:[%s3 + $0xbd0] sm:$0xff]
  %v2378 = vld [vmem:[%s3 + $0xbd8] sm:$0xff]
  %v2379 = vld [vmem:[%s3 + $0xbe0] sm:$0xff]
  %v2380 = vld [vmem:[%s3 + $0xbe8] sm:$0xff]
  %v2381 = vld [vmem:[%s3 + $0xbf0] sm:$0xff]
  %v2382 = vld [vmem:[%s3 + $0xbf8] sm:$0xff]
  %v2383 = vld [vmem:[%s3 + $0xc00] sm:$0xff]
  %v2384 = vld [vmem:[%s3 + $0xc08] sm:$0xff]
  %v2385 = vld [vmem:[%s3 + $0xc10] sm:$0xff]
  %v2386 = vld [vmem:[%s3 + $0xc18] sm:$0xff]
  %v2387 = vld [vmem:[%s3 + $0xc20] sm:$0xff]
  %v2388 = vld [vmem:[%s3 + $0xc28] sm:$0xff]
  %v2389 = vld [vmem:[%s3 + $0xc30] sm:$0xff]
  %v2390 = vld [vmem:[%s3 + $0xc38] sm:$0xff]
  %v2391 = vld [vmem:[%s3 + $0xc40] sm:$0xff]
  %v2392 = vld [vmem:[%s3 + $0xc48] sm:$0xff]
  %v2393 = vld [vmem:[%s3 + $0xc50] sm:$0xff]
  %v2394 = vld [vmem:[%s3 + $0xc58] sm:$0xff]
  %v2395 = vld [vmem:[%s3 + $0xc60] sm:$0xff]
  %v2396 = vld [vmem:[%s3 + $0xc68] sm:$0xff]
  %v2397 = vld [vmem:[%s3 + $0xc70] sm:$0xff]
  %v2398 = vld [vmem:[%s3 + $0xc78] sm:$0xff]
  %v2399 = vld [vmem:[%s4] sm:$0x1]
  %v2401 = vlaneseq
  %v2402 = vshrl.u32 %v2401, 7
  %v2403 = vsub.s32 0, %v2402
  %v2404 = vrot.slane %v2399, %v2403
  %2406 = vmatprep.subr.mxu0 0.0
  %2407 = vmatpush1.msra.mxu0 %v2014
  %2408 = vmatprep.subr.mxu0 0.0
  %2409 = vmatpush1.msra.mxu0 %v2013
  %2410 = vmatprep.subr.mxu0 0.0
  %2411 = vmatpush1.msra.mxu0 %v2012
  %2412 = vmatprep.subr.mxu0 0.0
  %2413 = vmatpush1.msra.mxu0 %v2011
  %2414 = vmatprep.subr.mxu0 0.0
  %2415 = vmatpush1.msra.mxu0 %v2010
  %2416 = vmatprep.subr.mxu0 0.0
  %2417 = vmatpush1.msra.mxu0 %v2009
  %2418 = vmatprep.subr.mxu0 0.0
  %2419 = vmatpush1.msra.mxu0 %v2008
  %2420 = vmatprep.subr.mxu0 0.0
  %2421 = vmatpush1.msra.mxu0 %v2007
  %2422 = vmatprep.subr.mxu0 0.0
  %2423 = vmatpush1.msra.mxu0 %v2006
  %2424 = vmatprep.subr.mxu0 0.0
  %2425 = vmatpush1.msra.mxu0 %v2005
  %2426 = vmatprep.subr.mxu0 0.0
  %2427 = vmatpush1.msra.mxu0 %v2004
  %2428 = vmatprep.subr.mxu0 0.0
  %2429 = vmatpush1.msra.mxu0 %v2003
  %2430 = vmatprep.subr.mxu0 0.0
  %2431 = vmatpush1.msra.mxu0 %v2002
  %2432 = vmatprep.subr.mxu0 0.0
  %2433 = vmatpush1.msra.mxu0 %v2001
  %2434 = vmatprep.subr.mxu0 0.0
  %2435 = vmatpush1.msra.mxu0 %v2000
  %2436 = vmatprep.subr.mxu0 0.0
  %2437 = vmatpush1.msra.mxu0 %v1999
  %2438 = vmatprep.subr.mxu0 0.0
  %2439 = vmatpush2.msra.mxu0 %v2030
  %2440 = vmatprep.subr.mxu0 0.0
  %2441 = vmatpush2.msra.mxu0 %v2029
  %2442 = vmatprep.subr.mxu0 0.0
  %2443 = vmatpush2.msra.mxu0 %v2028
  %2444 = vmatprep.subr.mxu0 0.0
  %2445 = vmatpush2.msra.mxu0 %v2027
  %2446 = vmatprep.subr.mxu0 0.0
  %2447 = vmatpush2.msra.mxu0 %v2026
  %2448 = vmatprep.subr.mxu0 0.0
  %2449 = vmatpush2.msra.mxu0 %v2025
  %2450 = vmatprep.subr.mxu0 0.0
  %2451 = vmatpush2.msra.mxu0 %v2024
  %2452 = vmatprep.subr.mxu0 0.0
  %2453 = vmatpush2.msra.mxu0 %v2023
  %2454 = vmatprep.subr.mxu0 0.0
  %2455 = vmatpush2.msra.mxu0 %v2022
  %2456 = vmatprep.subr.mxu0 0.0
  %2457 = vmatpush2.msra.mxu0 %v2021
  %2458 = vmatprep.subr.mxu0 0.0
  %2459 = vmatpush2.msra.mxu0 %v2020
  %2460 = vmatprep.subr.mxu0 0.0
  %2461 = vmatpush2.msra.mxu0 %v2019
  %2462 = vmatprep.subr.mxu0 0.0
  %2463 = vmatpush2.msra.mxu0 %v2018
  %2464 = vmatprep.subr.mxu0 0.0
  %2465 = vmatpush2.msra.mxu0 %v2017
  %2466 = vmatprep.subr.mxu0 0.0
  %2467 = vmatpush2.msra.mxu0 %v2016
  %2468 = vmatprep.subr.mxu0 0.0
  %2469 = vmatpush2.msra.mxu0 %v2015
  %2470 = vmatprep.mubr.f32.mxu0 %v1600
  %2471 = vmatmul.mubr.f32.gmra.mxu0 %v1599
  %v2472 = vpop.f32.mrf.mxu0
  %v2473 = vadd.f32 %v2404, %v2472
  %v2474 = vpop.f32.mrf.mxu0
  %2475 = vmatprep.mubr.f32.mxu0 %v1625
  %2476 = vmatmul.mubr.f32.gmra.mxu0 %v1624
  %v2477 = vpop.f32.mrf.mxu0
  %v2478 = vadd.f32 %v2404, %v2477
  %v2479 = vpop.f32.mrf.mxu0
  %2480 = vmatprep.mubr.f32.mxu0 %v1650
  %2481 = vmatmul.mubr.f32.gmra.mxu0 %v1649
  %v2482 = vpop.f32.mrf.mxu0
  %v2483 = vadd.f32 %v2404, %v2482
  %v2484 = vpop.f32.mrf.mxu0
  %2485 = vmatprep.mubr.f32.mxu0 %v1675
  %2486 = vmatmul.mubr.f32.gmra.mxu0 %v1674
  %v2487 = vpop.f32.mrf.mxu0
  %v2488 = vadd.f32 %v2404, %v2487
  %v2489 = vpop.f32.mrf.mxu0
  %2490 = vmatprep.mubr.f32.mxu0 %v1700
  %2491 = vmatmul.mubr.f32.gmra.mxu0 %v1699
  %v2492 = vpop.f32.mrf.mxu0
  %v2493 = vadd.f32 %v2404, %v2492
  %v2494 = vpop.f32.mrf.mxu0
  %2495 = vmatprep.mubr.f32.mxu0 %v1725
  %2496 = vmatmul.mubr.f32.gmra.mxu0 %v1724
  %v2497 = vpop.f32.mrf.mxu0
  %v2498 = vadd.f32 %v2404, %v2497
  %v2499 = vpop.f32.mrf.mxu0
  %2500 = vmatprep.mubr.f32.mxu0 %v1750
  %2501 = vmatmul.mubr.f32.gmra.mxu0 %v1749
  %v2502 = vpop.f32.mrf.mxu0
  %v2503 = vadd.f32 %v2404, %v2502
  %v2504 = vpop.f32.mrf.mxu0
  %2505 = vmatprep.mubr.f32.mxu0 %v1775
  %2506 = vmatmul.mubr.f32.gmra.mxu0 %v1774
  %v2507 = vpop.f32.mrf.mxu0
  %v2508 = vadd.f32 %v2404, %v2507
  %v2509 = vpop.f32.mrf.mxu0
  %2510 = vmatprep.mubr.f32.mxu0 %v1800
  %2511 = vmatmul.mubr.f32.gmra.mxu0 %v1799
  %v2512 = vpop.f32.mrf.mxu0
  %v2513 = vadd.f32 %v2404, %v2512
  %v2514 = vpop.f32.mrf.mxu0
  %2515 = vmatprep.mubr.f32.mxu0 %v1825
  %2516 = vmatmul.mubr.f32.gmra.mxu0 %v1824
  %v2517 = vpop.f32.mrf.mxu0
  %v2518 = vadd.f32 %v2404, %v2517
  %v2519 = vpop.f32.mrf.mxu0
  %2520 = vmatprep.mubr.f32.mxu0 %v1850
  %2521 = vmatmul.mubr.f32.gmra.mxu0 %v1849
  %v2522 = vpop.f32.mrf.mxu0
  %v2523 = vadd.f32 %v2404, %v2522
  %v2524 = vpop.f32.mrf.mxu0
  %2525 = vmatprep.mubr.f32.mxu0 %v1875
  %2526 = vmatmul.mubr.f32.gmra.mxu0 %v1874
  %v2527 = vpop.f32.mrf.mxu0
  %v2528 = vadd.f32 %v2404, %v2527
  %v2529 = vpop.f32.mrf.mxu0
  %2530 = vmatprep.mubr.f32.mxu0 %v1900
  %2531 = vmatmul.mubr.f32.gmra.mxu0 %v1899
  %v2532 = vpop.f32.mrf.mxu0
  %v2533 = vadd.f32 %v2404, %v2532
  %v2534 = vpop.f32.mrf.mxu0
  %2535 = vmatprep.mubr.f32.mxu0 %v1925
  %2536 = vmatmul.mubr.f32.gmra.mxu0 %v1924
  %v2537 = vpop.f32.mrf.mxu0
  %v2538 = vadd.f32 %v2404, %v2537
  %v2539 = vpop.f32.mrf.mxu0
  %2540 = vmatprep.mubr.f32.mxu0 %v1950
  %2541 = vmatmul.mubr.f32.gmra.mxu0 %v1949
  %v2542 = vpop.f32.mrf.mxu0
  %v2543 = vadd.f32 %v2404, %v2542
  %v2544 = vpop.f32.mrf.mxu0
  %2545 = vmatprep.mubr.f32.mxu0 %v1975
  %2546 = vmatmul.mubr.f32.gmra.mxu0 %v1974
  %v2547 = vpop.f32.mrf.mxu0
  %v2548 = vadd.f32 %v2404, %v2547
  %v2549 = vpop.f32.mrf.mxu0
  %2550 = vdwg.mxu0
  %2551 = vmatprep.subr.mxu0 0.0
  %2552 = vmatpush1.msra.mxu0 %v2046
  %2553 = vmatprep.subr.mxu0 0.0
  %2554 = vmatpush1.msra.mxu0 %v2045
  %2555 = vmatprep.subr.mxu0 0.0
  %2556 = vmatpush1.msra.mxu0 %v2044
  %2557 = vmatprep.subr.mxu0 0.0
  %2558 = vmatpush1.msra.mxu0 %v2043
  %2559 = vmatprep.subr.mxu0 0.0
  %2560 = vmatpush1.msra.mxu0 %v2042
  %2561 = vmatprep.subr.mxu0 0.0
  %2562 = vmatpush1.msra.mxu0 %v2041
  %2563 = vmatprep.subr.mxu0 0.0
  %2564 = vmatpush1.msra.mxu0 %v2040
  %2565 = vmatprep.subr.mxu0 0.0
  %2566 = vmatpush1.msra.mxu0 %v2039
  %2567 = vmatprep.subr.mxu0 0.0
  %2568 = vmatpush1.msra.mxu0 %v2038
  %2569 = vmatprep.subr.mxu0 0.0
  %2570 = vmatpush1.msra.mxu0 %v2037
  %2571 = vmatprep.subr.mxu0 0.0
  %2572 = vmatpush1.msra.mxu0 %v2036
  %2573 = vmatprep.subr.mxu0 0.0
  %2574 = vmatpush1.msra.mxu0 %v2035
  %2575 = vmatprep.subr.mxu0 0.0
  %2576 = vmatpush1.msra.mxu0 %v2034
  %2577 = vmatprep.subr.mxu0 0.0
  %2578 = vmatpush1.msra.mxu0 %v2033
  %2579 = vmatprep.subr.mxu0 0.0
  %2580 = vmatpush1.msra.mxu0 %v2032
  %2581 = vmatprep.subr.mxu0 0.0
  %2582 = vmatpush1.msra.mxu0 %v2031
  %2583 = vmatprep.subr.mxu0 0.0
  %2584 = vmatpush2.msra.mxu0 %v2062
  %2585 = vmatprep.subr.mxu0 0.0
  %2586 = vmatpush2.msra.mxu0 %v2061
  %2587 = vmatprep.subr.mxu0 0.0
  %2588 = vmatpush2.msra.mxu0 %v2060
  %2589 = vmatprep.subr.mxu0 0.0
  %2590 = vmatpush2.msra.mxu0 %v2059
  %2591 = vmatprep.subr.mxu0 0.0
  %2592 = vmatpush2.msra.mxu0 %v2058
  %2593 = vmatprep.subr.mxu0 0.0
  %2594 = vmatpush2.msra.mxu0 %v2057
  %2595 = vmatprep.subr.mxu0 0.0
  %2596 = vmatpush2.msra.mxu0 %v2056
  %2597 = vmatprep.subr.mxu0 0.0
  %2598 = vmatpush2.msra.mxu0 %v2055
  %2599 = vmatprep.subr.mxu0 0.0
  %2600 = vmatpush2.msra.mxu0 %v2054
  %2601 = vmatprep.subr.mxu0 0.0
  %2602 = vmatpush2.msra.mxu0 %v2053
  %2603 = vmatprep.subr.mxu0 0.0
  %2604 = vmatpush2.msra.mxu0 %v2052
  %2605 = vmatprep.subr.mxu0 0.0
  %2606 = vmatpush2.msra.mxu0 %v2051
  %2607 = vmatprep.subr.mxu0 0.0
  %2608 = vmatpush2.msra.mxu0 %v2050
  %2609 = vmatprep.subr.mxu0 0.0
  %2610 = vmatpush2.msra.mxu0 %v2049
  %2611 = vmatprep.subr.mxu0 0.0
  %2612 = vmatpush2.msra.mxu0 %v2048
  %2613 = vmatprep.subr.mxu0 0.0
  %2614 = vmatpush2.msra.mxu0 %v2047
  %2615 = vmatprep.mubr.f32.mxu0 %v1602
  %2616 = vmatmul.mubr.f32.gmra.mxu0 %v1601
  %v2617 = vpop.f32.mrf.mxu0
  %v2618 = vadd.f32 %v2473, %v2617
  %v2619 = vpop.f32.mrf.mxu0
  %2620 = vmatprep.mubr.f32.mxu0 %v1627
  %2621 = vmatmul.mubr.f32.gmra.mxu0 %v1626
  %v2622 = vpop.f32.mrf.mxu0
  %v2623 = vadd.f32 %v2478, %v2622
  %v2624 = vpop.f32.mrf.mxu0
  %2625 = vmatprep.mubr.f32.mxu0 %v1652
  %2626 = vmatmul.mubr.f32.gmra.mxu0 %v1651
  %v2627 = vpop.f32.mrf.mxu0
  %v2628 = vadd.f32 %v2483, %v2627
  %v2629 = vpop.f32.mrf.mxu0
  %2630 = vmatprep.mubr.f32.mxu0 %v1677
  %2631 = vmatmul.mubr.f32.gmra.mxu0 %v1676
  %v2632 = vpop.f32.mrf.mxu0
  %v2633 = vadd.f32 %v2488, %v2632
  %v2634 = vpop.f32.mrf.mxu0
  %2635 = vmatprep.mubr.f32.mxu0 %v1702
  %2636 = vmatmul.mubr.f32.gmra.mxu0 %v1701
  %v2637 = vpop.f32.mrf.mxu0
  %v2638 = vadd.f32 %v2493, %v2637
  %v2639 = vpop.f32.mrf.mxu0
  %2640 = vmatprep.mubr.f32.mxu0 %v1727
  %2641 = vmatmul.mubr.f32.gmra.mxu0 %v1726
  %v2642 = vpop.f32.mrf.mxu0
  %v2643 = vadd.f32 %v2498, %v2642
  %v2644 = vpop.f32.mrf.mxu0
  %2645 = vmatprep.mubr.f32.mxu0 %v1752
  %2646 = vmatmul.mubr.f32.gmra.mxu0 %v1751
  %v2647 = vpop.f32.mrf.mxu0
  %v2648 = vadd.f32 %v2503, %v2647
  %v2649 = vpop.f32.mrf.mxu0
  %2650 = vmatprep.mubr.f32.mxu0 %v1777
  %2651 = vmatmul.mubr.f32.gmra.mxu0 %v1776
  %v2652 = vpop.f32.mrf.mxu0
  %v2653 = vadd.f32 %v2508, %v2652
  %v2654 = vpop.f32.mrf.mxu0
  %2655 = vmatprep.mubr.f32.mxu0 %v1802
  %2656 = vmatmul.mubr.f32.gmra.mxu0 %v1801
  %v2657 = vpop.f32.mrf.mxu0
  %v2658 = vadd.f32 %v2513, %v2657
  %v2659 = vpop.f32.mrf.mxu0
  %2660 = vmatprep.mubr.f32.mxu0 %v1827
  %2661 = vmatmul.mubr.f32.gmra.mxu0 %v1826
  %v2662 = vpop.f32.mrf.mxu0
  %v2663 = vadd.f32 %v2518, %v2662
  %v2664 = vpop.f32.mrf.mxu0
  %2665 = vmatprep.mubr.f32.mxu0 %v1852
  %2666 = vmatmul.mubr.f32.gmra.mxu0 %v1851
  %v2667 = vpop.f32.mrf.mxu0
  %v2668 = vadd.f32 %v2523, %v2667
  %v2669 = vpop.f32.mrf.mxu0
  %2670 = vmatprep.mubr.f32.mxu0 %v1877
  %2671 = vmatmul.mubr.f32.gmra.mxu0 %v1876
  %v2672 = vpop.f32.mrf.mxu0
  %v2673 = vadd.f32 %v2528, %v2672
  %v2674 = vpop.f32.mrf.mxu0
  %2675 = vmatprep.mubr.f32.mxu0 %v1902
  %2676 = vmatmul.mubr.f32.gmra.mxu0 %v1901
  %v2677 = vpop.f32.mrf.mxu0
  %v2678 = vadd.f32 %v2533, %v2677
  %v2679 = vpop.f32.mrf.mxu0
  %2680 = vmatprep.mubr.f32.mxu0 %v1927
  %2681 = vmatmul.mubr.f32.gmra.mxu0 %v1926
  %v2682 = vpop.f32.mrf.mxu0
  %v2683 = vadd.f32 %v2538, %v2682
  %v2684 = vpop.f32.mrf.mxu0
  %2685 = vmatprep.mubr.f32.mxu0 %v1952
  %2686 = vmatmul.mubr.f32.gmra.mxu0 %v1951
  %v2687 = vpop.f32.mrf.mxu0
  %v2688 = vadd.f32 %v2543, %v2687
  %v2689 = vpop.f32.mrf.mxu0
  %2690 = vmatprep.mubr.f32.mxu0 %v1977
  %2691 = vmatmul.mubr.f32.gmra.mxu0 %v1976
  %v2692 = vpop.f32.mrf.mxu0
  %v2693 = vadd.f32 %v2548, %v2692
  %v2694 = vpop.f32.mrf.mxu0
  %2695 = vdwg.mxu0
  %2696 = vmatprep.subr.mxu0 0.0
  %2697 = vmatpush1.msra.mxu0 %v2078
  %2698 = vmatprep.subr.mxu0 0.0
  %2699 = vmatpush1.msra.mxu0 %v2077
  %2700 = vmatprep.subr.mxu0 0.0
  %2701 = vmatpush1.msra.mxu0 %v2076
  %2702 = vmatprep.subr.mxu0 0.0
  %2703 = vmatpush1.msra.mxu0 %v2075
  %2704 = vmatprep.subr.mxu0 0.0
  %2705 = vmatpush1.msra.mxu0 %v2074
  %2706 = vmatprep.subr.mxu0 0.0
  %2707 = vmatpush1.msra.mxu0 %v2073
  %2708 = vmatprep.subr.mxu0 0.0
  %2709 = vmatpush1.msra.mxu0 %v2072
  %2710 = vmatprep.subr.mxu0 0.0
  %2711 = vmatpush1.msra.mxu0 %v2071
  %2712 = vmatprep.subr.mxu0 0.0
  %2713 = vmatpush1.msra.mxu0 %v2070
  %2714 = vmatprep.subr.mxu0 0.0
  %2715 = vmatpush1.msra.mxu0 %v2069
  %2716 = vmatprep.subr.mxu0 0.0
  %2717 = vmatpush1.msra.mxu0 %v2068
  %2718 = vmatprep.subr.mxu0 0.0
  %2719 = vmatpush1.msra.mxu0 %v2067
  %2720 = vmatprep.subr.mxu0 0.0
  %2721 = vmatpush1.msra.mxu0 %v2066
  %2722 = vmatprep.subr.mxu0 0.0
  %2723 = vmatpush1.msra.mxu0 %v2065
  %2724 = vmatprep.subr.mxu0 0.0
  %2725 = vmatpush1.msra.mxu0 %v2064
  %2726 = vmatprep.subr.mxu0 0.0
  %2727 = vmatpush1.msra.mxu0 %v2063
  %2728 = vmatprep.subr.mxu0 0.0
  %2729 = vmatpush2.msra.mxu0 %v2094
  %2730 = vmatprep.subr.mxu0 0.0
  %2731 = vmatpush2.msra.mxu0 %v2093
  %2732 = vmatprep.subr.mxu0 0.0
  %2733 = vmatpush2.msra.mxu0 %v2092
  %2734 = vmatprep.subr.mxu0 0.0
  %2735 = vmatpush2.msra.mxu0 %v2091
  %2736 = vmatprep.subr.mxu0 0.0
  %2737 = vmatpush2.msra.mxu0 %v2090
  %2738 = vmatprep.subr.mxu0 0.0
  %2739 = vmatpush2.msra.mxu0 %v2089
  %2740 = vmatprep.subr.mxu0 0.0
  %2741 = vmatpush2.msra.mxu0 %v2088
  %2742 = vmatprep.subr.mxu0 0.0
  %2743 = vmatpush2.msra.mxu0 %v2087
  %2744 = vmatprep.subr.mxu0 0.0
  %2745 = vmatpush2.msra.mxu0 %v2086
  %2746 = vmatprep.subr.mxu0 0.0
  %2747 = vmatpush2.msra.mxu0 %v2085
  %2748 = vmatprep.subr.mxu0 0.0
  %2749 = vmatpush2.msra.mxu0 %v2084
  %2750 = vmatprep.subr.mxu0 0.0
  %2751 = vmatpush2.msra.mxu0 %v2083
  %2752 = vmatprep.subr.mxu0 0.0
  %2753 = vmatpush2.msra.mxu0 %v2082
  %2754 = vmatprep.subr.mxu0 0.0
  %2755 = vmatpush2.msra.mxu0 %v2081
  %2756 = vmatprep.subr.mxu0 0.0
  %2757 = vmatpush2.msra.mxu0 %v2080
  %2758 = vmatprep.subr.mxu0 0.0
  %2759 = vmatpush2.msra.mxu0 %v2079
  %2760 = vmatprep.mubr.f32.mxu0 %v1604
  %2761 = vmatmul.mubr.f32.gmra.mxu0 %v1603
  %v2762 = vpop.f32.mrf.mxu0
  %v2763 = vadd.f32 %v2618, %v2762
  %v2764 = vpop.f32.mrf.mxu0
  %2765 = vmatprep.mubr.f32.mxu0 %v1629
  %2766 = vmatmul.mubr.f32.gmra.mxu0 %v1628
  %v2767 = vpop.f32.mrf.mxu0
  %v2768 = vadd.f32 %v2623, %v2767
  %v2769 = vpop.f32.mrf.mxu0
  %2770 = vmatprep.mubr.f32.mxu0 %v1654
  %2771 = vmatmul.mubr.f32.gmra.mxu0 %v1653
  %v2772 = vpop.f32.mrf.mxu0
  %v2773 = vadd.f32 %v2628, %v2772
  %v2774 = vpop.f32.mrf.mxu0
  %2775 = vmatprep.mubr.f32.mxu0 %v1679
  %2776 = vmatmul.mubr.f32.gmra.mxu0 %v1678
  %v2777 = vpop.f32.mrf.mxu0
  %v2778 = vadd.f32 %v2633, %v2777
  %v2779 = vpop.f32.mrf.mxu0
  %2780 = vmatprep.mubr.f32.mxu0 %v1704
  %2781 = vmatmul.mubr.f32.gmra.mxu0 %v1703
  %v2782 = vpop.f32.mrf.mxu0
  %v2783 = vadd.f32 %v2638, %v2782
  %v2784 = vpop.f32.mrf.mxu0
  %2785 = vmatprep.mubr.f32.mxu0 %v1729
  %2786 = vmatmul.mubr.f32.gmra.mxu0 %v1728
  %v2787 = vpop.f32.mrf.mxu0
  %v2788 = vadd.f32 %v2643, %v2787
  %v2789 = vpop.f32.mrf.mxu0
  %2790 = vmatprep.mubr.f32.mxu0 %v1754
  %2791 = vmatmul.mubr.f32.gmra.mxu0 %v1753
  %v2792 = vpop.f32.mrf.mxu0
  %v2793 = vadd.f32 %v2648, %v2792
  %v2794 = vpop.f32.mrf.mxu0
  %2795 = vmatprep.mubr.f32.mxu0 %v1779
  %2796 = vmatmul.mubr.f32.gmra.mxu0 %v1778
  %v2797 = vpop.f32.mrf.mxu0
  %v2798 = vadd.f32 %v2653, %v2797
  %v2799 = vpop.f32.mrf.mxu0
  %2800 = vmatprep.mubr.f32.mxu0 %v1804
  %2801 = vmatmul.mubr.f32.gmra.mxu0 %v1803
  %v2802 = vpop.f32.mrf.mxu0
  %v2803 = vadd.f32 %v2658, %v2802
  %v2804 = vpop.f32.mrf.mxu0
  %2805 = vmatprep.mubr.f32.mxu0 %v1829
  %2806 = vmatmul.mubr.f32.gmra.mxu0 %v1828
  %v2807 = vpop.f32.mrf.mxu0
  %v2808 = vadd.f32 %v2663, %v2807
  %v2809 = vpop.f32.mrf.mxu0
  %2810 = vmatprep.mubr.f32.mxu0 %v1854
  %2811 = vmatmul.mubr.f32.gmra.mxu0 %v1853
  %v2812 = vpop.f32.mrf.mxu0
  %v2813 = vadd.f32 %v2668, %v2812
  %v2814 = vpop.f32.mrf.mxu0
  %2815 = vmatprep.mubr.f32.mxu0 %v1879
  %2816 = vmatmul.mubr.f32.gmra.mxu0 %v1878
  %v2817 = vpop.f32.mrf.mxu0
  %v2818 = vadd.f32 %v2673, %v2817
  %v2819 = vpop.f32.mrf.mxu0
  %2820 = vmatprep.mubr.f32.mxu0 %v1904
  %2821 = vmatmul.mubr.f32.gmra.mxu0 %v1903
  %v2822 = vpop.f32.mrf.mxu0
  %v2823 = vadd.f32 %v2678, %v2822
  %v2824 = vpop.f32.mrf.mxu0
  %2825 = vmatprep.mubr.f32.mxu0 %v1929
  %2826 = vmatmul.mubr.f32.gmra.mxu0 %v1928
  %v2827 = vpop.f32.mrf.mxu0
  %v2828 = vadd.f32 %v2683, %v2827
  %v2829 = vpop.f32.mrf.mxu0
  %2830 = vmatprep.mubr.f32.mxu0 %v1954
  %2831 = vmatmul.mubr.f32.gmra.mxu0 %v1953
  %v2832 = vpop.f32.mrf.mxu0
  %v2833 = vadd.f32 %v2688, %v2832
  %v2834 = vpop.f32.mrf.mxu0
  %2835 = vmatprep.mubr.f32.mxu0 %v1979
  %2836 = vmatmul.mubr.f32.gmra.mxu0 %v1978
  %v2837 = vpop.f32.mrf.mxu0
  %v2838 = vadd.f32 %v2693, %v2837
  %v2839 = vpop.f32.mrf.mxu0
  %2840 = vdwg.mxu0
  %2841 = vmatprep.subr.mxu0 0.0
  %2842 = vmatpush1.msra.mxu0 %v2110
  %2843 = vmatprep.subr.mxu0 0.0
  %2844 = vmatpush1.msra.mxu0 %v2109
  %2845 = vmatprep.subr.mxu0 0.0
  %2846 = vmatpush1.msra.mxu0 %v2108
  %2847 = vmatprep.subr.mxu0 0.0
  %2848 = vmatpush1.msra.mxu0 %v2107
  %2849 = vmatprep.subr.mxu0 0.0
  %2850 = vmatpush1.msra.mxu0 %v2106
  %2851 = vmatprep.subr.mxu0 0.0
  %2852 = vmatpush1.msra.mxu0 %v2105
  %2853 = vmatprep.subr.mxu0 0.0
  %2854 = vmatpush1.msra.mxu0 %v2104
  %2855 = vmatprep.subr.mxu0 0.0
  %2856 = vmatpush1.msra.mxu0 %v2103
  %2857 = vmatprep.subr.mxu0 0.0
  %2858 = vmatpush1.msra.mxu0 %v2102
  %2859 = vmatprep.subr.mxu0 0.0
  %2860 = vmatpush1.msra.mxu0 %v2101
  %2861 = vmatprep.subr.mxu0 0.0
  %2862 = vmatpush1.msra.mxu0 %v2100
  %2863 = vmatprep.subr.mxu0 0.0
  %2864 = vmatpush1.msra.mxu0 %v2099
  %2865 = vmatprep.subr.mxu0 0.0
  %2866 = vmatpush1.msra.mxu0 %v2098
  %2867 = vmatprep.subr.mxu0 0.0
  %2868 = vmatpush1.msra.mxu0 %v2097
  %2869 = vmatprep.subr.mxu0 0.0
  %2870 = vmatpush1.msra.mxu0 %v2096
  %2871 = vmatprep.subr.mxu0 0.0
  %2872 = vmatpush1.msra.mxu0 %v2095
  %2873 = vmatprep.subr.mxu0 0.0
  %2874 = vmatpush2.msra.mxu0 %v2126
  %2875 = vmatprep.subr.mxu0 0.0
  %2876 = vmatpush2.msra.mxu0 %v2125
  %2877 = vmatprep.subr.mxu0 0.0
  %2878 = vmatpush2.msra.mxu0 %v2124
  %2879 = vmatprep.subr.mxu0 0.0
  %2880 = vmatpush2.msra.mxu0 %v2123
  %2881 = vmatprep.subr.mxu0 0.0
  %2882 = vmatpush2.msra.mxu0 %v2122
  %2883 = vmatprep.subr.mxu0 0.0
  %2884 = vmatpush2.msra.mxu0 %v2121
  %2885 = vmatprep.subr.mxu0 0.0
  %2886 = vmatpush2.msra.mxu0 %v2120
  %2887 = vmatprep.subr.mxu0 0.0
  %2888 = vmatpush2.msra.mxu0 %v2119
  %2889 = vmatprep.subr.mxu0 0.0
  %2890 = vmatpush2.msra.mxu0 %v2118
  %2891 = vmatprep.subr.mxu0 0.0
  %2892 = vmatpush2.msra.mxu0 %v2117
  %2893 = vmatprep.subr.mxu0 0.0
  %2894 = vmatpush2.msra.mxu0 %v2116
  %2895 = vmatprep.subr.mxu0 0.0
  %2896 = vmatpush2.msra.mxu0 %v2115
  %2897 = vmatprep.subr.mxu0 0.0
  %2898 = vmatpush2.msra.mxu0 %v2114
  %2899 = vmatprep.subr.mxu0 0.0
  %2900 = vmatpush2.msra.mxu0 %v2113
  %2901 = vmatprep.subr.mxu0 0.0
  %2902 = vmatpush2.msra.mxu0 %v2112
  %2903 = vmatprep.subr.mxu0 0.0
  %2904 = vmatpush2.msra.mxu0 %v2111
  %2905 = vmatprep.mubr.f32.mxu0 %v1606
  %2906 = vmatmul.mubr.f32.gmra.mxu0 %v1605
  %v2907 = vpop.f32.mrf.mxu0
  %v2908 = vadd.f32 %v2763, %v2907
  %v2909 = vpop.f32.mrf.mxu0
  %2910 = vmatprep.mubr.f32.mxu0 %v1631
  %2911 = vmatmul.mubr.f32.gmra.mxu0 %v1630
  %v2912 = vpop.f32.mrf.mxu0
  %v2913 = vadd.f32 %v2768, %v2912
  %v2914 = vpop.f32.mrf.mxu0
  %2915 = vmatprep.mubr.f32.mxu0 %v1656
  %2916 = vmatmul.mubr.f32.gmra.mxu0 %v1655
  %v2917 = vpop.f32.mrf.mxu0
  %v2918 = vadd.f32 %v2773, %v2917
  %v2919 = vpop.f32.mrf.mxu0
  %2920 = vmatprep.mubr.f32.mxu0 %v1681
  %2921 = vmatmul.mubr.f32.gmra.mxu0 %v1680
  %v2922 = vpop.f32.mrf.mxu0
  %v2923 = vadd.f32 %v2778, %v2922
  %v2924 = vpop.f32.mrf.mxu0
  %2925 = vmatprep.mubr.f32.mxu0 %v1706
  %2926 = vmatmul.mubr.f32.gmra.mxu0 %v1705
  %v2927 = vpop.f32.mrf.mxu0
  %v2928 = vadd.f32 %v2783, %v2927
  %v2929 = vpop.f32.mrf.mxu0
  %2930 = vmatprep.mubr.f32.mxu0 %v1731
  %2931 = vmatmul.mubr.f32.gmra.mxu0 %v1730
  %v2932 = vpop.f32.mrf.mxu0
  %v2933 = vadd.f32 %v2788, %v2932
  %v2934 = vpop.f32.mrf.mxu0
  %2935 = vmatprep.mubr.f32.mxu0 %v1756
  %2936 = vmatmul.mubr.f32.gmra.mxu0 %v1755
  %v2937 = vpop.f32.mrf.mxu0
  %v2938 = vadd.f32 %v2793, %v2937
  %v2939 = vpop.f32.mrf.mxu0
  %2940 = vmatprep.mubr.f32.mxu0 %v1781
  %2941 = vmatmul.mubr.f32.gmra.mxu0 %v1780
  %v2942 = vpop.f32.mrf.mxu0
  %v2943 = vadd.f32 %v2798, %v2942
  %v2944 = vpop.f32.mrf.mxu0
  %2945 = vmatprep.mubr.f32.mxu0 %v1806
  %2946 = vmatmul.mubr.f32.gmra.mxu0 %v1805
  %v2947 = vpop.f32.mrf.mxu0
  %v2948 = vadd.f32 %v2803, %v2947
  %v2949 = vpop.f32.mrf.mxu0
  %2950 = vmatprep.mubr.f32.mxu0 %v1831
  %2951 = vmatmul.mubr.f32.gmra.mxu0 %v1830
  %v2952 = vpop.f32.mrf.mxu0
  %v2953 = vadd.f32 %v2808, %v2952
  %v2954 = vpop.f32.mrf.mxu0
  %2955 = vmatprep.mubr.f32.mxu0 %v1856
  %2956 = vmatmul.mubr.f32.gmra.mxu0 %v1855
  %v2957 = vpop.f32.mrf.mxu0
  %v2958 = vadd.f32 %v2813, %v2957
  %v2959 = vpop.f32.mrf.mxu0
  %2960 = vmatprep.mubr.f32.mxu0 %v1881
  %2961 = vmatmul.mubr.f32.gmra.mxu0 %v1880
  %v2962 = vpop.f32.mrf.mxu0
  %v2963 = vadd.f32 %v2818, %v2962
  %v2964 = vpop.f32.mrf.mxu0
  %2965 = vmatprep.mubr.f32.mxu0 %v1906
  %2966 = vmatmul.mubr.f32.gmra.mxu0 %v1905
  %v2967 = vpop.f32.mrf.mxu0
  %v2968 = vadd.f32 %v2823, %v2967
  %v2969 = vpop.f32.mrf.mxu0
  %2970 = vmatprep.mubr.f32.mxu0 %v1931
  %2971 = vmatmul.mubr.f32.gmra.mxu0 %v1930
  %v2972 = vpop.f32.mrf.mxu0
  %v2973 = vadd.f32 %v2828, %v2972
  %v2974 = vpop.f32.mrf.mxu0
  %2975 = vmatprep.mubr.f32.mxu0 %v1956
  %2976 = vmatmul.mubr.f32.gmra.mxu0 %v1955
  %v2977 = vpop.f32.mrf.mxu0
  %v2978 = vadd.f32 %v2833, %v2977
  %v2979 = vpop.f32.mrf.mxu0
  %2980 = vmatprep.mubr.f32.mxu0 %v1981
  %2981 = vmatmul.mubr.f32.gmra.mxu0 %v1980
  %v2982 = vpop.f32.mrf.mxu0
  %v2983 = vadd.f32 %v2838, %v2982
  %v2984 = vpop.f32.mrf.mxu0
  %2985 = vdwg.mxu0
  %2986 = vmatprep.subr.mxu0 0.0
  %2987 = vmatpush1.msra.mxu0 %v2142
  %2988 = vmatprep.subr.mxu0 0.0
  %2989 = vmatpush1.msra.mxu0 %v2141
  %2990 = vmatprep.subr.mxu0 0.0
  %2991 = vmatpush1.msra.mxu0 %v2140
  %2992 = vmatprep.subr.mxu0 0.0
  %2993 = vmatpush1.msra.mxu0 %v2139
  %2994 = vmatprep.subr.mxu0 0.0
  %2995 = vmatpush1.msra.mxu0 %v2138
  %2996 = vmatprep.subr.mxu0 0.0
  %2997 = vmatpush1.msra.mxu0 %v2137
  %2998 = vmatprep.subr.mxu0 0.0
  %2999 = vmatpush1.msra.mxu0 %v2136
  %3000 = vmatprep.subr.mxu0 0.0
  %3001 = vmatpush1.msra.mxu0 %v2135
  %3002 = vmatprep.subr.mxu0 0.0
  %3003 = vmatpush1.msra.mxu0 %v2134
  %3004 = vmatprep.subr.mxu0 0.0
  %3005 = vmatpush1.msra.mxu0 %v2133
  %3006 = vmatprep.subr.mxu0 0.0
  %3007 = vmatpush1.msra.mxu0 %v2132
  %3008 = vmatprep.subr.mxu0 0.0
  %3009 = vmatpush1.msra.mxu0 %v2131
  %3010 = vmatprep.subr.mxu0 0.0
  %3011 = vmatpush1.msra.mxu0 %v2130
  %3012 = vmatprep.subr.mxu0 0.0
  %3013 = vmatpush1.msra.mxu0 %v2129
  %3014 = vmatprep.subr.mxu0 0.0
  %3015 = vmatpush1.msra.mxu0 %v2128
  %3016 = vmatprep.subr.mxu0 0.0
  %3017 = vmatpush1.msra.mxu0 %v2127
  %3018 = vmatprep.subr.mxu0 0.0
  %3019 = vmatpush2.msra.mxu0 %v2158
  %3020 = vmatprep.subr.mxu0 0.0
  %3021 = vmatpush2.msra.mxu0 %v2157
  %3022 = vmatprep.subr.mxu0 0.0
  %3023 = vmatpush2.msra.mxu0 %v2156
  %3024 = vmatprep.subr.mxu0 0.0
  %3025 = vmatpush2.msra.mxu0 %v2155
  %3026 = vmatprep.subr.mxu0 0.0
  %3027 = vmatpush2.msra.mxu0 %v2154
  %3028 = vmatprep.subr.mxu0 0.0
  %3029 = vmatpush2.msra.mxu0 %v2153
  %3030 = vmatprep.subr.mxu0 0.0
  %3031 = vmatpush2.msra.mxu0 %v2152
  %3032 = vmatprep.subr.mxu0 0.0
  %3033 = vmatpush2.msra.mxu0 %v2151
  %3034 = vmatprep.subr.mxu0 0.0
  %3035 = vmatpush2.msra.mxu0 %v2150
  %3036 = vmatprep.subr.mxu0 0.0
  %3037 = vmatpush2.msra.mxu0 %v2149
  %3038 = vmatprep.subr.mxu0 0.0
  %3039 = vmatpush2.msra.mxu0 %v2148
  %3040 = vmatprep.subr.mxu0 0.0
  %3041 = vmatpush2.msra.mxu0 %v2147
  %3042 = vmatprep.subr.mxu0 0.0
  %3043 = vmatpush2.msra.mxu0 %v2146
  %3044 = vmatprep.subr.mxu0 0.0
  %3045 = vmatpush2.msra.mxu0 %v2145
  %3046 = vmatprep.subr.mxu0 0.0
  %3047 = vmatpush2.msra.mxu0 %v2144
  %3048 = vmatprep.subr.mxu0 0.0
  %3049 = vmatpush2.msra.mxu0 %v2143
  %3050 = vmatprep.mubr.f32.mxu0 %v1608
  %3051 = vmatmul.mubr.f32.gmra.mxu0 %v1607
  %v3052 = vpop.f32.mrf.mxu0
  %v3053 = vadd.f32 %v2908, %v3052
  %v3054 = vpop.f32.mrf.mxu0
  %3055 = vmatprep.mubr.f32.mxu0 %v1633
  %3056 = vmatmul.mubr.f32.gmra.mxu0 %v1632
  %v3057 = vpop.f32.mrf.mxu0
  %v3058 = vadd.f32 %v2913, %v3057
  %v3059 = vpop.f32.mrf.mxu0
  %3060 = vmatprep.mubr.f32.mxu0 %v1658
  %3061 = vmatmul.mubr.f32.gmra.mxu0 %v1657
  %v3062 = vpop.f32.mrf.mxu0
  %v3063 = vadd.f32 %v2918, %v3062
  %v3064 = vpop.f32.mrf.mxu0
  %3065 = vmatprep.mubr.f32.mxu0 %v1683
  %3066 = vmatmul.mubr.f32.gmra.mxu0 %v1682
  %v3067 = vpop.f32.mrf.mxu0
  %v3068 = vadd.f32 %v2923, %v3067
  %v3069 = vpop.f32.mrf.mxu0
  %3070 = vmatprep.mubr.f32.mxu0 %v1708
  %3071 = vmatmul.mubr.f32.gmra.mxu0 %v1707
  %v3072 = vpop.f32.mrf.mxu0
  %v3073 = vadd.f32 %v2928, %v3072
  %v3074 = vpop.f32.mrf.mxu0
  %3075 = vmatprep.mubr.f32.mxu0 %v1733
  %3076 = vmatmul.mubr.f32.gmra.mxu0 %v1732
  %v3077 = vpop.f32.mrf.mxu0
  %v3078 = vadd.f32 %v2933, %v3077
  %v3079 = vpop.f32.mrf.mxu0
  %3080 = vmatprep.mubr.f32.mxu0 %v1758
  %3081 = vmatmul.mubr.f32.gmra.mxu0 %v1757
  %v3082 = vpop.f32.mrf.mxu0
  %v3083 = vadd.f32 %v2938, %v3082
  %v3084 = vpop.f32.mrf.mxu0
  %3085 = vmatprep.mubr.f32.mxu0 %v1783
  %3086 = vmatmul.mubr.f32.gmra.mxu0 %v1782
  %v3087 = vpop.f32.mrf.mxu0
  %v3088 = vadd.f32 %v2943, %v3087
  %v3089 = vpop.f32.mrf.mxu0
  %3090 = vmatprep.mubr.f32.mxu0 %v1808
  %3091 = vmatmul.mubr.f32.gmra.mxu0 %v1807
  %v3092 = vpop.f32.mrf.mxu0
  %v3093 = vadd.f32 %v2948, %v3092
  %v3094 = vpop.f32.mrf.mxu0
  %3095 = vmatprep.mubr.f32.mxu0 %v1833
  %3096 = vmatmul.mubr.f32.gmra.mxu0 %v1832
  %v3097 = vpop.f32.mrf.mxu0
  %v3098 = vadd.f32 %v2953, %v3097
  %v3099 = vpop.f32.mrf.mxu0
  %3100 = vmatprep.mubr.f32.mxu0 %v1858
  %3101 = vmatmul.mubr.f32.gmra.mxu0 %v1857
  %v3102 = vpop.f32.mrf.mxu0
  %v3103 = vadd.f32 %v2958, %v3102
  %v3104 = vpop.f32.mrf.mxu0
  %3105 = vmatprep.mubr.f32.mxu0 %v1883
  %3106 = vmatmul.mubr.f32.gmra.mxu0 %v1882
  %v3107 = vpop.f32.mrf.mxu0
  %v3108 = vadd.f32 %v2963, %v3107
  %v3109 = vpop.f32.mrf.mxu0
  %3110 = vmatprep.mubr.f32.mxu0 %v1908
  %3111 = vmatmul.mubr.f32.gmra.mxu0 %v1907
  %v3112 = vpop.f32.mrf.mxu0
  %v3113 = vadd.f32 %v2968, %v3112
  %v3114 = vpop.f32.mrf.mxu0
  %3115 = vmatprep.mubr.f32.mxu0 %v1933
  %3116 = vmatmul.mubr.f32.gmra.mxu0 %v1932
  %v3117 = vpop.f32.mrf.mxu0
  %v3118 = vadd.f32 %v2973, %v3117
  %v3119 = vpop.f32.mrf.mxu0
  %3120 = vmatprep.mubr.f32.mxu0 %v1958
  %3121 = vmatmul.mubr.f32.gmra.mxu0 %v1957
  %v3122 = vpop.f32.mrf.mxu0
  %v3123 = vadd.f32 %v2978, %v3122
  %v3124 = vpop.f32.mrf.mxu0
  %3125 = vmatprep.mubr.f32.mxu0 %v1983
  %3126 = vmatmul.mubr.f32.gmra.mxu0 %v1982
  %v3127 = vpop.f32.mrf.mxu0
  %v3128 = vadd.f32 %v2983, %v3127
  %v3129 = vpop.f32.mrf.mxu0
  %3130 = vdwg.mxu0
  %3131 = vmatprep.subr.mxu0 0.0
  %3132 = vmatpush1.msra.mxu0 %v2174
  %3133 = vmatprep.subr.mxu0 0.0
  %3134 = vmatpush1.msra.mxu0 %v2173
  %3135 = vmatprep.subr.mxu0 0.0
  %3136 = vmatpush1.msra.mxu0 %v2172
  %3137 = vmatprep.subr.mxu0 0.0
  %3138 = vmatpush1.msra.mxu0 %v2171
  %3139 = vmatprep.subr.mxu0 0.0
  %3140 = vmatpush1.msra.mxu0 %v2170
  %3141 = vmatprep.subr.mxu0 0.0
  %3142 = vmatpush1.msra.mxu0 %v2169
  %3143 = vmatprep.subr.mxu0 0.0
  %3144 = vmatpush1.msra.mxu0 %v2168
  %3145 = vmatprep.subr.mxu0 0.0
  %3146 = vmatpush1.msra.mxu0 %v2167
  %3147 = vmatprep.subr.mxu0 0.0
  %3148 = vmatpush1.msra.mxu0 %v2166
  %3149 = vmatprep.subr.mxu0 0.0
  %3150 = vmatpush1.msra.mxu0 %v2165
  %3151 = vmatprep.subr.mxu0 0.0
  %3152 = vmatpush1.msra.mxu0 %v2164
  %3153 = vmatprep.subr.mxu0 0.0
  %3154 = vmatpush1.msra.mxu0 %v2163
  %3155 = vmatprep.subr.mxu0 0.0
  %3156 = vmatpush1.msra.mxu0 %v2162
  %3157 = vmatprep.subr.mxu0 0.0
  %3158 = vmatpush1.msra.mxu0 %v2161
  %3159 = vmatprep.subr.mxu0 0.0
  %3160 = vmatpush1.msra.mxu0 %v2160
  %3161 = vmatprep.subr.mxu0 0.0
  %3162 = vmatpush1.msra.mxu0 %v2159
  %3163 = vmatprep.subr.mxu0 0.0
  %3164 = vmatpush2.msra.mxu0 %v2190
  %3165 = vmatprep.subr.mxu0 0.0
  %3166 = vmatpush2.msra.mxu0 %v2189
  %3167 = vmatprep.subr.mxu0 0.0
  %3168 = vmatpush2.msra.mxu0 %v2188
  %3169 = vmatprep.subr.mxu0 0.0
  %3170 = vmatpush2.msra.mxu0 %v2187
  %3171 = vmatprep.subr.mxu0 0.0
  %3172 = vmatpush2.msra.mxu0 %v2186
  %3173 = vmatprep.subr.mxu0 0.0
  %3174 = vmatpush2.msra.mxu0 %v2185
  %3175 = vmatprep.subr.mxu0 0.0
  %3176 = vmatpush2.msra.mxu0 %v2184
  %3177 = vmatprep.subr.mxu0 0.0
  %3178 = vmatpush2.msra.mxu0 %v2183
  %3179 = vmatprep.subr.mxu0 0.0
  %3180 = vmatpush2.msra.mxu0 %v2182
  %3181 = vmatprep.subr.mxu0 0.0
  %3182 = vmatpush2.msra.mxu0 %v2181
  %3183 = vmatprep.subr.mxu0 0.0
  %3184 = vmatpush2.msra.mxu0 %v2180
  %3185 = vmatprep.subr.mxu0 0.0
  %3186 = vmatpush2.msra.mxu0 %v2179
  %3187 = vmatprep.subr.mxu0 0.0
  %3188 = vmatpush2.msra.mxu0 %v2178
  %3189 = vmatprep.subr.mxu0 0.0
  %3190 = vmatpush2.msra.mxu0 %v2177
  %3191 = vmatprep.subr.mxu0 0.0
  %3192 = vmatpush2.msra.mxu0 %v2176
  %3193 = vmatprep.subr.mxu0 0.0
  %3194 = vmatpush2.msra.mxu0 %v2175
  %3195 = vmatprep.mubr.f32.mxu0 %v1610
  %3196 = vmatmul.mubr.f32.gmra.mxu0 %v1609
  %v3197 = vpop.f32.mrf.mxu0
  %v3198 = vadd.f32 %v3053, %v3197
  %v3199 = vpop.f32.mrf.mxu0
  %3200 = vmatprep.mubr.f32.mxu0 %v1635
  %3201 = vmatmul.mubr.f32.gmra.mxu0 %v1634
  %v3202 = vpop.f32.mrf.mxu0
  %v3203 = vadd.f32 %v3058, %v3202
  %v3204 = vpop.f32.mrf.mxu0
  %3205 = vmatprep.mubr.f32.mxu0 %v1660
  %3206 = vmatmul.mubr.f32.gmra.mxu0 %v1659
  %v3207 = vpop.f32.mrf.mxu0
  %v3208 = vadd.f32 %v3063, %v3207
  %v3209 = vpop.f32.mrf.mxu0
  %3210 = vmatprep.mubr.f32.mxu0 %v1685
  %3211 = vmatmul.mubr.f32.gmra.mxu0 %v1684
  %v3212 = vpop.f32.mrf.mxu0
  %v3213 = vadd.f32 %v3068, %v3212
  %v3214 = vpop.f32.mrf.mxu0
  %3215 = vmatprep.mubr.f32.mxu0 %v1710
  %3216 = vmatmul.mubr.f32.gmra.mxu0 %v1709
  %v3217 = vpop.f32.mrf.mxu0
  %v3218 = vadd.f32 %v3073, %v3217
  %v3219 = vpop.f32.mrf.mxu0
  %3220 = vmatprep.mubr.f32.mxu0 %v1735
  %3221 = vmatmul.mubr.f32.gmra.mxu0 %v1734
  %v3222 = vpop.f32.mrf.mxu0
  %v3223 = vadd.f32 %v3078, %v3222
  %v3224 = vpop.f32.mrf.mxu0
  %3225 = vmatprep.mubr.f32.mxu0 %v1760
  %3226 = vmatmul.mubr.f32.gmra.mxu0 %v1759
  %v3227 = vpop.f32.mrf.mxu0
  %v3228 = vadd.f32 %v3083, %v3227
  %v3229 = vpop.f32.mrf.mxu0
  %3230 = vmatprep.mubr.f32.mxu0 %v1785
  %3231 = vmatmul.mubr.f32.gmra.mxu0 %v1784
  %v3232 = vpop.f32.mrf.mxu0
  %v3233 = vadd.f32 %v3088, %v3232
  %v3234 = vpop.f32.mrf.mxu0
  %3235 = vmatprep.mubr.f32.mxu0 %v1810
  %3236 = vmatmul.mubr.f32.gmra.mxu0 %v1809
  %v3237 = vpop.f32.mrf.mxu0
  %v3238 = vadd.f32 %v3093, %v3237
  %v3239 = vpop.f32.mrf.mxu0
  %3240 = vmatprep.mubr.f32.mxu0 %v1835
  %3241 = vmatmul.mubr.f32.gmra.mxu0 %v1834
  %v3242 = vpop.f32.mrf.mxu0
  %v3243 = vadd.f32 %v3098, %v3242
  %v3244 = vpop.f32.mrf.mxu0
  %3245 = vmatprep.mubr.f32.mxu0 %v1860
  %3246 = vmatmul.mubr.f32.gmra.mxu0 %v1859
  %v3247 = vpop.f32.mrf.mxu0
  %v3248 = vadd.f32 %v3103, %v3247
  %v3249 = vpop.f32.mrf.mxu0
  %3250 = vmatprep.mubr.f32.mxu0 %v1885
  %3251 = vmatmul.mubr.f32.gmra.mxu0 %v1884
  %v3252 = vpop.f32.mrf.mxu0
  %v3253 = vadd.f32 %v3108, %v3252
  %v3254 = vpop.f32.mrf.mxu0
  %3255 = vmatprep.mubr.f32.mxu0 %v1910
  %3256 = vmatmul.mubr.f32.gmra.mxu0 %v1909
  %v3257 = vpop.f32.mrf.mxu0
  %v3258 = vadd.f32 %v3113, %v3257
  %v3259 = vpop.f32.mrf.mxu0
  %3260 = vmatprep.mubr.f32.mxu0 %v1935
  %3261 = vmatmul.mubr.f32.gmra.mxu0 %v1934
  %v3262 = vpop.f32.mrf.mxu0
  %v3263 = vadd.f32 %v3118, %v3262
  %v3264 = vpop.f32.mrf.mxu0
  %3265 = vmatprep.mubr.f32.mxu0 %v1960
  %3266 = vmatmul.mubr.f32.gmra.mxu0 %v1959
  %v3267 = vpop.f32.mrf.mxu0
  %v3268 = vadd.f32 %v3123, %v3267
  %v3269 = vpop.f32.mrf.mxu0
  %3270 = vmatprep.mubr.f32.mxu0 %v1985
  %3271 = vmatmul.mubr.f32.gmra.mxu0 %v1984
  %v3272 = vpop.f32.mrf.mxu0
  %v3273 = vadd.f32 %v3128, %v3272
  %v3274 = vpop.f32.mrf.mxu0
  %3275 = vdwg.mxu0
  %3276 = vmatprep.subr.mxu0 0.0
  %3277 = vmatpush1.msra.mxu0 %v2206
  %3278 = vmatprep.subr.mxu0 0.0
  %3279 = vmatpush1.msra.mxu0 %v2205
  %3280 = vmatprep.subr.mxu0 0.0
  %3281 = vmatpush1.msra.mxu0 %v2204
  %3282 = vmatprep.subr.mxu0 0.0
  %3283 = vmatpush1.msra.mxu0 %v2203
  %3284 = vmatprep.subr.mxu0 0.0
  %3285 = vmatpush1.msra.mxu0 %v2202
  %3286 = vmatprep.subr.mxu0 0.0
  %3287 = vmatpush1.msra.mxu0 %v2201
  %3288 = vmatprep.subr.mxu0 0.0
  %3289 = vmatpush1.msra.mxu0 %v2200
  %3290 = vmatprep.subr.mxu0 0.0
  %3291 = vmatpush1.msra.mxu0 %v2199
  %3292 = vmatprep.subr.mxu0 0.0
  %3293 = vmatpush1.msra.mxu0 %v2198
  %3294 = vmatprep.subr.mxu0 0.0
  %3295 = vmatpush1.msra.mxu0 %v2197
  %3296 = vmatprep.subr.mxu0 0.0
  %3297 = vmatpush1.msra.mxu0 %v2196
  %3298 = vmatprep.subr.mxu0 0.0
  %3299 = vmatpush1.msra.mxu0 %v2195
  %3300 = vmatprep.subr.mxu0 0.0
  %3301 = vmatpush1.msra.mxu0 %v2194
  %3302 = vmatprep.subr.mxu0 0.0
  %3303 = vmatpush1.msra.mxu0 %v2193
  %3304 = vmatprep.subr.mxu0 0.0
  %3305 = vmatpush1.msra.mxu0 %v2192
  %3306 = vmatprep.subr.mxu0 0.0
  %3307 = vmatpush1.msra.mxu0 %v2191
  %3308 = vmatprep.subr.mxu0 0.0
  %3309 = vmatpush2.msra.mxu0 %v2222
  %3310 = vmatprep.subr.mxu0 0.0
  %3311 = vmatpush2.msra.mxu0 %v2221
  %3312 = vmatprep.subr.mxu0 0.0
  %3313 = vmatpush2.msra.mxu0 %v2220
  %3314 = vmatprep.subr.mxu0 0.0
  %3315 = vmatpush2.msra.mxu0 %v2219
  %3316 = vmatprep.subr.mxu0 0.0
  %3317 = vmatpush2.msra.mxu0 %v2218
  %3318 = vmatprep.subr.mxu0 0.0
  %3319 = vmatpush2.msra.mxu0 %v2217
  %3320 = vmatprep.subr.mxu0 0.0
  %3321 = vmatpush2.msra.mxu0 %v2216
  %3322 = vmatprep.subr.mxu0 0.0
  %3323 = vmatpush2.msra.mxu0 %v2215
  %3324 = vmatprep.subr.mxu0 0.0
  %3325 = vmatpush2.msra.mxu0 %v2214
  %3326 = vmatprep.subr.mxu0 0.0
  %3327 = vmatpush2.msra.mxu0 %v2213
  %3328 = vmatprep.subr.mxu0 0.0
  %3329 = vmatpush2.msra.mxu0 %v2212
  %3330 = vmatprep.subr.mxu0 0.0
  %3331 = vmatpush2.msra.mxu0 %v2211
  %3332 = vmatprep.subr.mxu0 0.0
  %3333 = vmatpush2.msra.mxu0 %v2210
  %3334 = vmatprep.subr.mxu0 0.0
  %3335 = vmatpush2.msra.mxu0 %v2209
  %3336 = vmatprep.subr.mxu0 0.0
  %3337 = vmatpush2.msra.mxu0 %v2208
  %3338 = vmatprep.subr.mxu0 0.0
  %3339 = vmatpush2.msra.mxu0 %v2207
  %3340 = vmatprep.mubr.f32.mxu0 %v1612
  %3341 = vmatmul.mubr.f32.gmra.mxu0 %v1611
  %v3342 = vpop.f32.mrf.mxu0
  %v3343 = vadd.f32 %v3198, %v3342
  %v3344 = vpop.f32.mrf.mxu0
  %3345 = vmatprep.mubr.f32.mxu0 %v1637
  %3346 = vmatmul.mubr.f32.gmra.mxu0 %v1636
  %v3347 = vpop.f32.mrf.mxu0
  %v3348 = vadd.f32 %v3203, %v3347
  %v3349 = vpop.f32.mrf.mxu0
  %3350 = vmatprep.mubr.f32.mxu0 %v1662
  %3351 = vmatmul.mubr.f32.gmra.mxu0 %v1661
  %v3352 = vpop.f32.mrf.mxu0
  %v3353 = vadd.f32 %v3208, %v3352
  %v3354 = vpop.f32.mrf.mxu0
  %3355 = vmatprep.mubr.f32.mxu0 %v1687
  %3356 = vmatmul.mubr.f32.gmra.mxu0 %v1686
  %v3357 = vpop.f32.mrf.mxu0
  %v3358 = vadd.f32 %v3213, %v3357
  %v3359 = vpop.f32.mrf.mxu0
  %3360 = vmatprep.mubr.f32.mxu0 %v1712
  %3361 = vmatmul.mubr.f32.gmra.mxu0 %v1711
  %v3362 = vpop.f32.mrf.mxu0
  %v3363 = vadd.f32 %v3218, %v3362
  %v3364 = vpop.f32.mrf.mxu0
  %3365 = vmatprep.mubr.f32.mxu0 %v1737
  %3366 = vmatmul.mubr.f32.gmra.mxu0 %v1736
  %v3367 = vpop.f32.mrf.mxu0
  %v3368 = vadd.f32 %v3223, %v3367
  %v3369 = vpop.f32.mrf.mxu0
  %3370 = vmatprep.mubr.f32.mxu0 %v1762
  %3371 = vmatmul.mubr.f32.gmra.mxu0 %v1761
  %v3372 = vpop.f32.mrf.mxu0
  %v3373 = vadd.f32 %v3228, %v3372
  %v3374 = vpop.f32.mrf.mxu0
  %3375 = vmatprep.mubr.f32.mxu0 %v1787
  %3376 = vmatmul.mubr.f32.gmra.mxu0 %v1786
  %v3377 = vpop.f32.mrf.mxu0
  %v3378 = vadd.f32 %v3233, %v3377
  %v3379 = vpop.f32.mrf.mxu0
  %3380 = vmatprep.mubr.f32.mxu0 %v1812
  %3381 = vmatmul.mubr.f32.gmra.mxu0 %v1811
  %v3382 = vpop.f32.mrf.mxu0
  %v3383 = vadd.f32 %v3238, %v3382
  %v3384 = vpop.f32.mrf.mxu0
  %3385 = vmatprep.mubr.f32.mxu0 %v1837
  %3386 = vmatmul.mubr.f32.gmra.mxu0 %v1836
  %v3387 = vpop.f32.mrf.mxu0
  %v3388 = vadd.f32 %v3243, %v3387
  %v3389 = vpop.f32.mrf.mxu0
  %3390 = vmatprep.mubr.f32.mxu0 %v1862
  %3391 = vmatmul.mubr.f32.gmra.mxu0 %v1861
  %v3392 = vpop.f32.mrf.mxu0
  %v3393 = vadd.f32 %v3248, %v3392
  %v3394 = vpop.f32.mrf.mxu0
  %3395 = vmatprep.mubr.f32.mxu0 %v1887
  %3396 = vmatmul.mubr.f32.gmra.mxu0 %v1886
  %v3397 = vpop.f32.mrf.mxu0
  %v3398 = vadd.f32 %v3253, %v3397
  %v3399 = vpop.f32.mrf.mxu0
  %3400 = vmatprep.mubr.f32.mxu0 %v1912
  %3401 = vmatmul.mubr.f32.gmra.mxu0 %v1911
  %v3402 = vpop.f32.mrf.mxu0
  %v3403 = vadd.f32 %v3258, %v3402
  %v3404 = vpop.f32.mrf.mxu0
  %3405 = vmatprep.mubr.f32.mxu0 %v1937
  %3406 = vmatmul.mubr.f32.gmra.mxu0 %v1936
  %v3407 = vpop.f32.mrf.mxu0
  %v3408 = vadd.f32 %v3263, %v3407
  %v3409 = vpop.f32.mrf.mxu0
  %3410 = vmatprep.mubr.f32.mxu0 %v1962
  %3411 = vmatmul.mubr.f32.gmra.mxu0 %v1961
  %v3412 = vpop.f32.mrf.mxu0
  %v3413 = vadd.f32 %v3268, %v3412
  %v3414 = vpop.f32.mrf.mxu0
  %3415 = vmatprep.mubr.f32.mxu0 %v1987
  %3416 = vmatmul.mubr.f32.gmra.mxu0 %v1986
  %v3417 = vpop.f32.mrf.mxu0
  %v3418 = vadd.f32 %v3273, %v3417
  %v3419 = vpop.f32.mrf.mxu0
  %3420 = vdwg.mxu0
  %3421 = vmatprep.subr.mxu0 0.0
  %3422 = vmatpush1.msra.mxu0 %v2238
  %3423 = vmatprep.subr.mxu0 0.0
  %3424 = vmatpush1.msra.mxu0 %v2237
  %3425 = vmatprep.subr.mxu0 0.0
  %3426 = vmatpush1.msra.mxu0 %v2236
  %3427 = vmatprep.subr.mxu0 0.0
  %3428 = vmatpush1.msra.mxu0 %v2235
  %3429 = vmatprep.subr.mxu0 0.0
  %3430 = vmatpush1.msra.mxu0 %v2234
  %3431 = vmatprep.subr.mxu0 0.0
  %3432 = vmatpush1.msra.mxu0 %v2233
  %3433 = vmatprep.subr.mxu0 0.0
  %3434 = vmatpush1.msra.mxu0 %v2232
  %3435 = vmatprep.subr.mxu0 0.0
  %3436 = vmatpush1.msra.mxu0 %v2231
  %3437 = vmatprep.subr.mxu0 0.0
  %3438 = vmatpush1.msra.mxu0 %v2230
  %3439 = vmatprep.subr.mxu0 0.0
  %3440 = vmatpush1.msra.mxu0 %v2229
  %3441 = vmatprep.subr.mxu0 0.0
  %3442 = vmatpush1.msra.mxu0 %v2228
  %3443 = vmatprep.subr.mxu0 0.0
  %3444 = vmatpush1.msra.mxu0 %v2227
  %3445 = vmatprep.subr.mxu0 0.0
  %3446 = vmatpush1.msra.mxu0 %v2226
  %3447 = vmatprep.subr.mxu0 0.0
  %3448 = vmatpush1.msra.mxu0 %v2225
  %3449 = vmatprep.subr.mxu0 0.0
  %3450 = vmatpush1.msra.mxu0 %v2224
  %3451 = vmatprep.subr.mxu0 0.0
  %3452 = vmatpush1.msra.mxu0 %v2223
  %3453 = vmatprep.subr.mxu0 0.0
  %3454 = vmatpush2.msra.mxu0 %v2254
  %3455 = vmatprep.subr.mxu0 0.0
  %3456 = vmatpush2.msra.mxu0 %v2253
  %3457 = vmatprep.subr.mxu0 0.0
  %3458 = vmatpush2.msra.mxu0 %v2252
  %3459 = vmatprep.subr.mxu0 0.0
  %3460 = vmatpush2.msra.mxu0 %v2251
  %3461 = vmatprep.subr.mxu0 0.0
  %3462 = vmatpush2.msra.mxu0 %v2250
  %3463 = vmatprep.subr.mxu0 0.0
  %3464 = vmatpush2.msra.mxu0 %v2249
  %3465 = vmatprep.subr.mxu0 0.0
  %3466 = vmatpush2.msra.mxu0 %v2248
  %3467 = vmatprep.subr.mxu0 0.0
  %3468 = vmatpush2.msra.mxu0 %v2247
  %3469 = vmatprep.subr.mxu0 0.0
  %3470 = vmatpush2.msra.mxu0 %v2246
  %3471 = vmatprep.subr.mxu0 0.0
  %3472 = vmatpush2.msra.mxu0 %v2245
  %3473 = vmatprep.subr.mxu0 0.0
  %3474 = vmatpush2.msra.mxu0 %v2244
  %3475 = vmatprep.subr.mxu0 0.0
  %3476 = vmatpush2.msra.mxu0 %v2243
  %3477 = vmatprep.subr.mxu0 0.0
  %3478 = vmatpush2.msra.mxu0 %v2242
  %3479 = vmatprep.subr.mxu0 0.0
  %3480 = vmatpush2.msra.mxu0 %v2241
  %3481 = vmatprep.subr.mxu0 0.0
  %3482 = vmatpush2.msra.mxu0 %v2240
  %3483 = vmatprep.subr.mxu0 0.0
  %3484 = vmatpush2.msra.mxu0 %v2239
  %3485 = vmatprep.mubr.f32.mxu0 %v1614
  %3486 = vmatmul.mubr.f32.gmra.mxu0 %v1613
  %v3487 = vpop.f32.mrf.mxu0
  %v3488 = vadd.f32 %v3343, %v3487
  %v3489 = vpop.f32.mrf.mxu0
  %3490 = vmatprep.mubr.f32.mxu0 %v1639
  %3491 = vmatmul.mubr.f32.gmra.mxu0 %v1638
  %v3492 = vpop.f32.mrf.mxu0
  %v3493 = vadd.f32 %v3348, %v3492
  %v3494 = vpop.f32.mrf.mxu0
  %3495 = vmatprep.mubr.f32.mxu0 %v1664
  %3496 = vmatmul.mubr.f32.gmra.mxu0 %v1663
  %v3497 = vpop.f32.mrf.mxu0
  %v3498 = vadd.f32 %v3353, %v3497
  %v3499 = vpop.f32.mrf.mxu0
  %3500 = vmatprep.mubr.f32.mxu0 %v1689
  %3501 = vmatmul.mubr.f32.gmra.mxu0 %v1688
  %v3502 = vpop.f32.mrf.mxu0
  %v3503 = vadd.f32 %v3358, %v3502
  %v3504 = vpop.f32.mrf.mxu0
  %3505 = vmatprep.mubr.f32.mxu0 %v1714
  %3506 = vmatmul.mubr.f32.gmra.mxu0 %v1713
  %v3507 = vpop.f32.mrf.mxu0
  %v3508 = vadd.f32 %v3363, %v3507
  %v3509 = vpop.f32.mrf.mxu0
  %3510 = vmatprep.mubr.f32.mxu0 %v1739
  %3511 = vmatmul.mubr.f32.gmra.mxu0 %v1738
  %v3512 = vpop.f32.mrf.mxu0
  %v3513 = vadd.f32 %v3368, %v3512
  %v3514 = vpop.f32.mrf.mxu0
  %3515 = vmatprep.mubr.f32.mxu0 %v1764
  %3516 = vmatmul.mubr.f32.gmra.mxu0 %v1763
  %v3517 = vpop.f32.mrf.mxu0
  %v3518 = vadd.f32 %v3373, %v3517
  %v3519 = vpop.f32.mrf.mxu0
  %3520 = vmatprep.mubr.f32.mxu0 %v1789
  %3521 = vmatmul.mubr.f32.gmra.mxu0 %v1788
  %v3522 = vpop.f32.mrf.mxu0
  %v3523 = vadd.f32 %v3378, %v3522
  %v3524 = vpop.f32.mrf.mxu0
  %3525 = vmatprep.mubr.f32.mxu0 %v1814
  %3526 = vmatmul.mubr.f32.gmra.mxu0 %v1813
  %v3527 = vpop.f32.mrf.mxu0
  %v3528 = vadd.f32 %v3383, %v3527
  %v3529 = vpop.f32.mrf.mxu0
  %3530 = vmatprep.mubr.f32.mxu0 %v1839
  %3531 = vmatmul.mubr.f32.gmra.mxu0 %v1838
  %v3532 = vpop.f32.mrf.mxu0
  %v3533 = vadd.f32 %v3388, %v3532
  %v3534 = vpop.f32.mrf.mxu0
  %3535 = vmatprep.mubr.f32.mxu0 %v1864
  %3536 = vmatmul.mubr.f32.gmra.mxu0 %v1863
  %v3537 = vpop.f32.mrf.mxu0
  %v3538 = vadd.f32 %v3393, %v3537
  %v3539 = vpop.f32.mrf.mxu0
  %3540 = vmatprep.mubr.f32.mxu0 %v1889
  %3541 = vmatmul.mubr.f32.gmra.mxu0 %v1888
  %v3542 = vpop.f32.mrf.mxu0
  %v3543 = vadd.f32 %v3398, %v3542
  %v3544 = vpop.f32.mrf.mxu0
  %3545 = vmatprep.mubr.f32.mxu0 %v1914
  %3546 = vmatmul.mubr.f32.gmra.mxu0 %v1913
  %v3547 = vpop.f32.mrf.mxu0
  %v3548 = vadd.f32 %v3403, %v3547
  %v3549 = vpop.f32.mrf.mxu0
  %3550 = vmatprep.mubr.f32.mxu0 %v1939
  %3551 = vmatmul.mubr.f32.gmra.mxu0 %v1938
  %v3552 = vpop.f32.mrf.mxu0
  %v3553 = vadd.f32 %v3408, %v3552
  %v3554 = vpop.f32.mrf.mxu0
  %3555 = vmatprep.mubr.f32.mxu0 %v1964
  %3556 = vmatmul.mubr.f32.gmra.mxu0 %v1963
  %v3557 = vpop.f32.mrf.mxu0
  %v3558 = vadd.f32 %v3413, %v3557
  %v3559 = vpop.f32.mrf.mxu0
  %3560 = vmatprep.mubr.f32.mxu0 %v1989
  %3561 = vmatmul.mubr.f32.gmra.mxu0 %v1988
  %v3562 = vpop.f32.mrf.mxu0
  %v3563 = vadd.f32 %v3418, %v3562
  %v3564 = vpop.f32.mrf.mxu0
  %3565 = vdwg.mxu0
  %3566 = vmatprep.subr.mxu0 0.0
  %3567 = vmatpush1.msra.mxu0 %v2270
  %3568 = vmatprep.subr.mxu0 0.0
  %3569 = vmatpush1.msra.mxu0 %v2269
  %3570 = vmatprep.subr.mxu0 0.0
  %3571 = vmatpush1.msra.mxu0 %v2268
  %3572 = vmatprep.subr.mxu0 0.0
  %3573 = vmatpush1.msra.mxu0 %v2267
  %3574 = vmatprep.subr.mxu0 0.0
  %3575 = vmatpush1.msra.mxu0 %v2266
  %3576 = vmatprep.subr.mxu0 0.0
  %3577 = vmatpush1.msra.mxu0 %v2265
  %3578 = vmatprep.subr.mxu0 0.0
  %3579 = vmatpush1.msra.mxu0 %v2264
  %3580 = vmatprep.subr.mxu0 0.0
  %3581 = vmatpush1.msra.mxu0 %v2263
  %3582 = vmatprep.subr.mxu0 0.0
  %3583 = vmatpush1.msra.mxu0 %v2262
  %3584 = vmatprep.subr.mxu0 0.0
  %3585 = vmatpush1.msra.mxu0 %v2261
  %3586 = vmatprep.subr.mxu0 0.0
  %3587 = vmatpush1.msra.mxu0 %v2260
  %3588 = vmatprep.subr.mxu0 0.0
  %3589 = vmatpush1.msra.mxu0 %v2259
  %3590 = vmatprep.subr.mxu0 0.0
  %3591 = vmatpush1.msra.mxu0 %v2258
  %3592 = vmatprep.subr.mxu0 0.0
  %3593 = vmatpush1.msra.mxu0 %v2257
  %3594 = vmatprep.subr.mxu0 0.0
  %3595 = vmatpush1.msra.mxu0 %v2256
  %3596 = vmatprep.subr.mxu0 0.0
  %3597 = vmatpush1.msra.mxu0 %v2255
  %3598 = vmatprep.subr.mxu0 0.0
  %3599 = vmatpush2.msra.mxu0 %v2286
  %3600 = vmatprep.subr.mxu0 0.0
  %3601 = vmatpush2.msra.mxu0 %v2285
  %3602 = vmatprep.subr.mxu0 0.0
  %3603 = vmatpush2.msra.mxu0 %v2284
  %3604 = vmatprep.subr.mxu0 0.0
  %3605 = vmatpush2.msra.mxu0 %v2283
  %3606 = vmatprep.subr.mxu0 0.0
  %3607 = vmatpush2.msra.mxu0 %v2282
  %3608 = vmatprep.subr.mxu0 0.0
  %3609 = vmatpush2.msra.mxu0 %v2281
  %3610 = vmatprep.subr.mxu0 0.0
  %3611 = vmatpush2.msra.mxu0 %v2280
  %3612 = vmatprep.subr.mxu0 0.0
  %3613 = vmatpush2.msra.mxu0 %v2279
  %3614 = vmatprep.subr.mxu0 0.0
  %3615 = vmatpush2.msra.mxu0 %v2278
  %3616 = vmatprep.subr.mxu0 0.0
  %3617 = vmatpush2.msra.mxu0 %v2277
  %3618 = vmatprep.subr.mxu0 0.0
  %3619 = vmatpush2.msra.mxu0 %v2276
  %3620 = vmatprep.subr.mxu0 0.0
  %3621 = vmatpush2.msra.mxu0 %v2275
  %3622 = vmatprep.subr.mxu0 0.0
  %3623 = vmatpush2.msra.mxu0 %v2274
  %3624 = vmatprep.subr.mxu0 0.0
  %3625 = vmatpush2.msra.mxu0 %v2273
  %3626 = vmatprep.subr.mxu0 0.0
  %3627 = vmatpush2.msra.mxu0 %v2272
  %3628 = vmatprep.subr.mxu0 0.0
  %3629 = vmatpush2.msra.mxu0 %v2271
  %3630 = vmatprep.mubr.f32.mxu0 %v1616
  %3631 = vmatmul.mubr.f32.gmra.mxu0 %v1615
  %v3632 = vpop.f32.mrf.mxu0
  %v3633 = vadd.f32 %v3488, %v3632
  %v3634 = vpop.f32.mrf.mxu0
  %3635 = vmatprep.mubr.f32.mxu0 %v1641
  %3636 = vmatmul.mubr.f32.gmra.mxu0 %v1640
  %v3637 = vpop.f32.mrf.mxu0
  %v3638 = vadd.f32 %v3493, %v3637
  %v3639 = vpop.f32.mrf.mxu0
  %3640 = vmatprep.mubr.f32.mxu0 %v1666
  %3641 = vmatmul.mubr.f32.gmra.mxu0 %v1665
  %v3642 = vpop.f32.mrf.mxu0
  %v3643 = vadd.f32 %v3498, %v3642
  %v3644 = vpop.f32.mrf.mxu0
  %3645 = vmatprep.mubr.f32.mxu0 %v1691
  %3646 = vmatmul.mubr.f32.gmra.mxu0 %v1690
  %v3647 = vpop.f32.mrf.mxu0
  %v3648 = vadd.f32 %v3503, %v3647
  %v3649 = vpop.f32.mrf.mxu0
  %3650 = vmatprep.mubr.f32.mxu0 %v1716
  %3651 = vmatmul.mubr.f32.gmra.mxu0 %v1715
  %v3652 = vpop.f32.mrf.mxu0
  %v3653 = vadd.f32 %v3508, %v3652
  %v3654 = vpop.f32.mrf.mxu0
  %3655 = vmatprep.mubr.f32.mxu0 %v1741
  %3656 = vmatmul.mubr.f32.gmra.mxu0 %v1740
  %v3657 = vpop.f32.mrf.mxu0
  %v3658 = vadd.f32 %v3513, %v3657
  %v3659 = vpop.f32.mrf.mxu0
  %3660 = vmatprep.mubr.f32.mxu0 %v1766
  %3661 = vmatmul.mubr.f32.gmra.mxu0 %v1765
  %v3662 = vpop.f32.mrf.mxu0
  %v3663 = vadd.f32 %v3518, %v3662
  %v3664 = vpop.f32.mrf.mxu0
  %3665 = vmatprep.mubr.f32.mxu0 %v1791
  %3666 = vmatmul.mubr.f32.gmra.mxu0 %v1790
  %v3667 = vpop.f32.mrf.mxu0
  %v3668 = vadd.f32 %v3523, %v3667
  %v3669 = vpop.f32.mrf.mxu0
  %3670 = vmatprep.mubr.f32.mxu0 %v1816
  %3671 = vmatmul.mubr.f32.gmra.mxu0 %v1815
  %v3672 = vpop.f32.mrf.mxu0
  %v3673 = vadd.f32 %v3528, %v3672
  %v3674 = vpop.f32.mrf.mxu0
  %3675 = vmatprep.mubr.f32.mxu0 %v1841
  %3676 = vmatmul.mubr.f32.gmra.mxu0 %v1840
  %v3677 = vpop.f32.mrf.mxu0
  %v3678 = vadd.f32 %v3533, %v3677
  %v3679 = vpop.f32.mrf.mxu0
  %3680 = vmatprep.mubr.f32.mxu0 %v1866
  %3681 = vmatmul.mubr.f32.gmra.mxu0 %v1865
  %v3682 = vpop.f32.mrf.mxu0
  %v3683 = vadd.f32 %v3538, %v3682
  %v3684 = vpop.f32.mrf.mxu0
  %3685 = vmatprep.mubr.f32.mxu0 %v1891
  %3686 = vmatmul.mubr.f32.gmra.mxu0 %v1890
  %v3687 = vpop.f32.mrf.mxu0
  %v3688 = vadd.f32 %v3543, %v3687
  %v3689 = vpop.f32.mrf.mxu0
  %3690 = vmatprep.mubr.f32.mxu0 %v1916
  %3691 = vmatmul.mubr.f32.gmra.mxu0 %v1915
  %v3692 = vpop.f32.mrf.mxu0
  %v3693 = vadd.f32 %v3548, %v3692
  %v3694 = vpop.f32.mrf.mxu0
  %3695 = vmatprep.mubr.f32.mxu0 %v1941
  %3696 = vmatmul.mubr.f32.gmra.mxu0 %v1940
  %v3697 = vpop.f32.mrf.mxu0
  %v3698 = vadd.f32 %v3553, %v3697
  %v3699 = vpop.f32.mrf.mxu0
  %3700 = vmatprep.mubr.f32.mxu0 %v1966
  %3701 = vmatmul.mubr.f32.gmra.mxu0 %v1965
  %v3702 = vpop.f32.mrf.mxu0
  %v3703 = vadd.f32 %v3558, %v3702
  %v3704 = vpop.f32.mrf.mxu0
  %3705 = vmatprep.mubr.f32.mxu0 %v1991
  %3706 = vmatmul.mubr.f32.gmra.mxu0 %v1990
  %v3707 = vpop.f32.mrf.mxu0
  %v3708 = vadd.f32 %v3563, %v3707
  %v3709 = vpop.f32.mrf.mxu0
  %3710 = vdwg.mxu0
  %3711 = vmatprep.subr.mxu0 0.0
  %3712 = vmatpush1.msra.mxu0 %v2302
  %3713 = vmatprep.subr.mxu0 0.0
  %3714 = vmatpush1.msra.mxu0 %v2301
  %3715 = vmatprep.subr.mxu0 0.0
  %3716 = vmatpush1.msra.mxu0 %v2300
  %3717 = vmatprep.subr.mxu0 0.0
  %3718 = vmatpush1.msra.mxu0 %v2299
  %3719 = vmatprep.subr.mxu0 0.0
  %3720 = vmatpush1.msra.mxu0 %v2298
  %3721 = vmatprep.subr.mxu0 0.0
  %3722 = vmatpush1.msra.mxu0 %v2297
  %3723 = vmatprep.subr.mxu0 0.0
  %3724 = vmatpush1.msra.mxu0 %v2296
  %3725 = vmatprep.subr.mxu0 0.0
  %3726 = vmatpush1.msra.mxu0 %v2295
  %3727 = vmatprep.subr.mxu0 0.0
  %3728 = vmatpush1.msra.mxu0 %v2294
  %3729 = vmatprep.subr.mxu0 0.0
  %3730 = vmatpush1.msra.mxu0 %v2293
  %3731 = vmatprep.subr.mxu0 0.0
  %3732 = vmatpush1.msra.mxu0 %v2292
  %3733 = vmatprep.subr.mxu0 0.0
  %3734 = vmatpush1.msra.mxu0 %v2291
  %3735 = vmatprep.subr.mxu0 0.0
  %3736 = vmatpush1.msra.mxu0 %v2290
  %3737 = vmatprep.subr.mxu0 0.0
  %3738 = vmatpush1.msra.mxu0 %v2289
  %3739 = vmatprep.subr.mxu0 0.0
  %3740 = vmatpush1.msra.mxu0 %v2288
  %3741 = vmatprep.subr.mxu0 0.0
  %3742 = vmatpush1.msra.mxu0 %v2287
  %3743 = vmatprep.subr.mxu0 0.0
  %3744 = vmatpush2.msra.mxu0 %v2318
  %3745 = vmatprep.subr.mxu0 0.0
  %3746 = vmatpush2.msra.mxu0 %v2317
  %3747 = vmatprep.subr.mxu0 0.0
  %3748 = vmatpush2.msra.mxu0 %v2316
  %3749 = vmatprep.subr.mxu0 0.0
  %3750 = vmatpush2.msra.mxu0 %v2315
  %3751 = vmatprep.subr.mxu0 0.0
  %3752 = vmatpush2.msra.mxu0 %v2314
  %3753 = vmatprep.subr.mxu0 0.0
  %3754 = vmatpush2.msra.mxu0 %v2313
  %3755 = vmatprep.subr.mxu0 0.0
  %3756 = vmatpush2.msra.mxu0 %v2312
  %3757 = vmatprep.subr.mxu0 0.0
  %3758 = vmatpush2.msra.mxu0 %v2311
  %3759 = vmatprep.subr.mxu0 0.0
  %3760 = vmatpush2.msra.mxu0 %v2310
  %3761 = vmatprep.subr.mxu0 0.0
  %3762 = vmatpush2.msra.mxu0 %v2309
  %3763 = vmatprep.subr.mxu0 0.0
  %3764 = vmatpush2.msra.mxu0 %v2308
  %3765 = vmatprep.subr.mxu0 0.0
  %3766 = vmatpush2.msra.mxu0 %v2307
  %3767 = vmatprep.subr.mxu0 0.0
  %3768 = vmatpush2.msra.mxu0 %v2306
  %3769 = vmatprep.subr.mxu0 0.0
  %3770 = vmatpush2.msra.mxu0 %v2305
  %3771 = vmatprep.subr.mxu0 0.0
  %3772 = vmatpush2.msra.mxu0 %v2304
  %3773 = vmatprep.subr.mxu0 0.0
  %3774 = vmatpush2.msra.mxu0 %v2303
  %3775 = vmatprep.mubr.f32.mxu0 %v1618
  %3776 = vmatmul.mubr.f32.gmra.mxu0 %v1617
  %v3777 = vpop.f32.mrf.mxu0
  %v3778 = vadd.f32 %v3633, %v3777
  %v3779 = vpop.f32.mrf.mxu0
  %3780 = vmatprep.mubr.f32.mxu0 %v1643
  %3781 = vmatmul.mubr.f32.gmra.mxu0 %v1642
  %v3782 = vpop.f32.mrf.mxu0
  %v3783 = vadd.f32 %v3638, %v3782
  %v3784 = vpop.f32.mrf.mxu0
  %3785 = vmatprep.mubr.f32.mxu0 %v1668
  %3786 = vmatmul.mubr.f32.gmra.mxu0 %v1667
  %v3787 = vpop.f32.mrf.mxu0
  %v3788 = vadd.f32 %v3643, %v3787
  %v3789 = vpop.f32.mrf.mxu0
  %3790 = vmatprep.mubr.f32.mxu0 %v1693
  %3791 = vmatmul.mubr.f32.gmra.mxu0 %v1692
  %v3792 = vpop.f32.mrf.mxu0
  %v3793 = vadd.f32 %v3648, %v3792
  %v3794 = vpop.f32.mrf.mxu0
  %3795 = vmatprep.mubr.f32.mxu0 %v1718
  %3796 = vmatmul.mubr.f32.gmra.mxu0 %v1717
  %v3797 = vpop.f32.mrf.mxu0
  %v3798 = vadd.f32 %v3653, %v3797
  %v3799 = vpop.f32.mrf.mxu0
  %3800 = vmatprep.mubr.f32.mxu0 %v1743
  %3801 = vmatmul.mubr.f32.gmra.mxu0 %v1742
  %v3802 = vpop.f32.mrf.mxu0
  %v3803 = vadd.f32 %v3658, %v3802
  %v3804 = vpop.f32.mrf.mxu0
  %3805 = vmatprep.mubr.f32.mxu0 %v1768
  %3806 = vmatmul.mubr.f32.gmra.mxu0 %v1767
  %v3807 = vpop.f32.mrf.mxu0
  %v3808 = vadd.f32 %v3663, %v3807
  %v3809 = vpop.f32.mrf.mxu0
  %3810 = vmatprep.mubr.f32.mxu0 %v1793
  %3811 = vmatmul.mubr.f32.gmra.mxu0 %v1792
  %v3812 = vpop.f32.mrf.mxu0
  %v3813 = vadd.f32 %v3668, %v3812
  %v3814 = vpop.f32.mrf.mxu0
  %3815 = vmatprep.mubr.f32.mxu0 %v1818
  %3816 = vmatmul.mubr.f32.gmra.mxu0 %v1817
  %v3817 = vpop.f32.mrf.mxu0
  %v3818 = vadd.f32 %v3673, %v3817
  %v3819 = vpop.f32.mrf.mxu0
  %3820 = vmatprep.mubr.f32.mxu0 %v1843
  %3821 = vmatmul.mubr.f32.gmra.mxu0 %v1842
  %v3822 = vpop.f32.mrf.mxu0
  %v3823 = vadd.f32 %v3678, %v3822
  %v3824 = vpop.f32.mrf.mxu0
  %3825 = vmatprep.mubr.f32.mxu0 %v1868
  %3826 = vmatmul.mubr.f32.gmra.mxu0 %v1867
  %v3827 = vpop.f32.mrf.mxu0
  %v3828 = vadd.f32 %v3683, %v3827
  %v3829 = vpop.f32.mrf.mxu0
  %3830 = vmatprep.mubr.f32.mxu0 %v1893
  %3831 = vmatmul.mubr.f32.gmra.mxu0 %v1892
  %v3832 = vpop.f32.mrf.mxu0
  %v3833 = vadd.f32 %v3688, %v3832
  %v3834 = vpop.f32.mrf.mxu0
  %3835 = vmatprep.mubr.f32.mxu0 %v1918
  %3836 = vmatmul.mubr.f32.gmra.mxu0 %v1917
  %v3837 = vpop.f32.mrf.mxu0
  %v3838 = vadd.f32 %v3693, %v3837
  %v3839 = vpop.f32.mrf.mxu0
  %3840 = vmatprep.mubr.f32.mxu0 %v1943
  %3841 = vmatmul.mubr.f32.gmra.mxu0 %v1942
  %v3842 = vpop.f32.mrf.mxu0
  %v3843 = vadd.f32 %v3698, %v3842
  %v3844 = vpop.f32.mrf.mxu0
  %3845 = vmatprep.mubr.f32.mxu0 %v1968
  %3846 = vmatmul.mubr.f32.gmra.mxu0 %v1967
  %v3847 = vpop.f32.mrf.mxu0
  %v3848 = vadd.f32 %v3703, %v3847
  %v3849 = vpop.f32.mrf.mxu0
  %3850 = vmatprep.mubr.f32.mxu0 %v1993
  %3851 = vmatmul.mubr.f32.gmra.mxu0 %v1992
  %v3852 = vpop.f32.mrf.mxu0
  %v3853 = vadd.f32 %v3708, %v3852
  %v3854 = vpop.f32.mrf.mxu0
  %3855 = vdwg.mxu0
  %3856 = vmatprep.subr.mxu0 0.0
  %3857 = vmatpush1.msra.mxu0 %v2334
  %3858 = vmatprep.subr.mxu0 0.0
  %3859 = vmatpush1.msra.mxu0 %v2333
  %3860 = vmatprep.subr.mxu0 0.0
  %3861 = vmatpush1.msra.mxu0 %v2332
  %3862 = vmatprep.subr.mxu0 0.0
  %3863 = vmatpush1.msra.mxu0 %v2331
  %3864 = vmatprep.subr.mxu0 0.0
  %3865 = vmatpush1.msra.mxu0 %v2330
  %3866 = vmatprep.subr.mxu0 0.0
  %3867 = vmatpush1.msra.mxu0 %v2329
  %3868 = vmatprep.subr.mxu0 0.0
  %3869 = vmatpush1.msra.mxu0 %v2328
  %3870 = vmatprep.subr.mxu0 0.0
  %3871 = vmatpush1.msra.mxu0 %v2327
  %3872 = vmatprep.subr.mxu0 0.0
  %3873 = vmatpush1.msra.mxu0 %v2326
  %3874 = vmatprep.subr.mxu0 0.0
  %3875 = vmatpush1.msra.mxu0 %v2325
  %3876 = vmatprep.subr.mxu0 0.0
  %3877 = vmatpush1.msra.mxu0 %v2324
  %3878 = vmatprep.subr.mxu0 0.0
  %3879 = vmatpush1.msra.mxu0 %v2323
  %3880 = vmatprep.subr.mxu0 0.0
  %3881 = vmatpush1.msra.mxu0 %v2322
  %3882 = vmatprep.subr.mxu0 0.0
  %3883 = vmatpush1.msra.mxu0 %v2321
  %3884 = vmatprep.subr.mxu0 0.0
  %3885 = vmatpush1.msra.mxu0 %v2320
  %3886 = vmatprep.subr.mxu0 0.0
  %3887 = vmatpush1.msra.mxu0 %v2319
  %3888 = vmatprep.subr.mxu0 0.0
  %3889 = vmatpush2.msra.mxu0 %v2350
  %3890 = vmatprep.subr.mxu0 0.0
  %3891 = vmatpush2.msra.mxu0 %v2349
  %3892 = vmatprep.subr.mxu0 0.0
  %3893 = vmatpush2.msra.mxu0 %v2348
  %3894 = vmatprep.subr.mxu0 0.0
  %3895 = vmatpush2.msra.mxu0 %v2347
  %3896 = vmatprep.subr.mxu0 0.0
  %3897 = vmatpush2.msra.mxu0 %v2346
  %3898 = vmatprep.subr.mxu0 0.0
  %3899 = vmatpush2.msra.mxu0 %v2345
  %3900 = vmatprep.subr.mxu0 0.0
  %3901 = vmatpush2.msra.mxu0 %v2344
  %3902 = vmatprep.subr.mxu0 0.0
  %3903 = vmatpush2.msra.mxu0 %v2343
  %3904 = vmatprep.subr.mxu0 0.0
  %3905 = vmatpush2.msra.mxu0 %v2342
  %3906 = vmatprep.subr.mxu0 0.0
  %3907 = vmatpush2.msra.mxu0 %v2341
  %3908 = vmatprep.subr.mxu0 0.0
  %3909 = vmatpush2.msra.mxu0 %v2340
  %3910 = vmatprep.subr.mxu0 0.0
  %3911 = vmatpush2.msra.mxu0 %v2339
  %3912 = vmatprep.subr.mxu0 0.0
  %3913 = vmatpush2.msra.mxu0 %v2338
  %3914 = vmatprep.subr.mxu0 0.0
  %3915 = vmatpush2.msra.mxu0 %v2337
  %3916 = vmatprep.subr.mxu0 0.0
  %3917 = vmatpush2.msra.mxu0 %v2336
  %3918 = vmatprep.subr.mxu0 0.0
  %3919 = vmatpush2.msra.mxu0 %v2335
  %3920 = vmatprep.mubr.f32.mxu0 %v1620
  %3921 = vmatmul.mubr.f32.gmra.mxu0 %v1619
  %v3922 = vpop.f32.mrf.mxu0
  %v3923 = vadd.f32 %v3778, %v3922
  %v3924 = vpop.f32.mrf.mxu0
  %3925 = vmatprep.mubr.f32.mxu0 %v1645
  %3926 = vmatmul.mubr.f32.gmra.mxu0 %v1644
  %v3927 = vpop.f32.mrf.mxu0
  %v3928 = vadd.f32 %v3783, %v3927
  %v3929 = vpop.f32.mrf.mxu0
  %3930 = vmatprep.mubr.f32.mxu0 %v1670
  %3931 = vmatmul.mubr.f32.gmra.mxu0 %v1669
  %v3932 = vpop.f32.mrf.mxu0
  %v3933 = vadd.f32 %v3788, %v3932
  %v3934 = vpop.f32.mrf.mxu0
  %3935 = vmatprep.mubr.f32.mxu0 %v1695
  %3936 = vmatmul.mubr.f32.gmra.mxu0 %v1694
  %v3937 = vpop.f32.mrf.mxu0
  %v3938 = vadd.f32 %v3793, %v3937
  %v3939 = vpop.f32.mrf.mxu0
  %3940 = vmatprep.mubr.f32.mxu0 %v1720
  %3941 = vmatmul.mubr.f32.gmra.mxu0 %v1719
  %v3942 = vpop.f32.mrf.mxu0
  %v3943 = vadd.f32 %v3798, %v3942
  %v3944 = vpop.f32.mrf.mxu0
  %3945 = vmatprep.mubr.f32.mxu0 %v1745
  %3946 = vmatmul.mubr.f32.gmra.mxu0 %v1744
  %v3947 = vpop.f32.mrf.mxu0
  %v3948 = vadd.f32 %v3803, %v3947
  %v3949 = vpop.f32.mrf.mxu0
  %3950 = vmatprep.mubr.f32.mxu0 %v1770
  %3951 = vmatmul.mubr.f32.gmra.mxu0 %v1769
  %v3952 = vpop.f32.mrf.mxu0
  %v3953 = vadd.f32 %v3808, %v3952
  %v3954 = vpop.f32.mrf.mxu0
  %3955 = vmatprep.mubr.f32.mxu0 %v1795
  %3956 = vmatmul.mubr.f32.gmra.mxu0 %v1794
  %v3957 = vpop.f32.mrf.mxu0
  %v3958 = vadd.f32 %v3813, %v3957
  %v3959 = vpop.f32.mrf.mxu0
  %3960 = vmatprep.mubr.f32.mxu0 %v1820
  %3961 = vmatmul.mubr.f32.gmra.mxu0 %v1819
  %v3962 = vpop.f32.mrf.mxu0
  %v3963 = vadd.f32 %v3818, %v3962
  %v3964 = vpop.f32.mrf.mxu0
  %3965 = vmatprep.mubr.f32.mxu0 %v1845
  %3966 = vmatmul.mubr.f32.gmra.mxu0 %v1844
  %v3967 = vpop.f32.mrf.mxu0
  %v3968 = vadd.f32 %v3823, %v3967
  %v3969 = vpop.f32.mrf.mxu0
  %3970 = vmatprep.mubr.f32.mxu0 %v1870
  %3971 = vmatmul.mubr.f32.gmra.mxu0 %v1869
  %v3972 = vpop.f32.mrf.mxu0
  %v3973 = vadd.f32 %v3828, %v3972
  %v3974 = vpop.f32.mrf.mxu0
  %3975 = vmatprep.mubr.f32.mxu0 %v1895
  %3976 = vmatmul.mubr.f32.gmra.mxu0 %v1894
  %v3977 = vpop.f32.mrf.mxu0
  %v3978 = vadd.f32 %v3833, %v3977
  %v3979 = vpop.f32.mrf.mxu0
  %3980 = vmatprep.mubr.f32.mxu0 %v1920
  %3981 = vmatmul.mubr.f32.gmra.mxu0 %v1919
  %v3982 = vpop.f32.mrf.mxu0
  %v3983 = vadd.f32 %v3838, %v3982
  %v3984 = vpop.f32.mrf.mxu0
  %3985 = vmatprep.mubr.f32.mxu0 %v1945
  %3986 = vmatmul.mubr.f32.gmra.mxu0 %v1944
  %v3987 = vpop.f32.mrf.mxu0
  %v3988 = vadd.f32 %v3843, %v3987
  %v3989 = vpop.f32.mrf.mxu0
  %3990 = vmatprep.mubr.f32.mxu0 %v1970
  %3991 = vmatmul.mubr.f32.gmra.mxu0 %v1969
  %v3992 = vpop.f32.mrf.mxu0
  %v3993 = vadd.f32 %v3848, %v3992
  %v3994 = vpop.f32.mrf.mxu0
  %3995 = vmatprep.mubr.f32.mxu0 %v1995
  %3996 = vmatmul.mubr.f32.gmra.mxu0 %v1994
  %v3997 = vpop.f32.mrf.mxu0
  %v3998 = vadd.f32 %v3853, %v3997
  %v3999 = vpop.f32.mrf.mxu0
  %4000 = vdwg.mxu0
  %4001 = vmatprep.subr.mxu0 0.0
  %4002 = vmatpush1.msra.mxu0 %v2366
  %4003 = vmatprep.subr.mxu0 0.0
  %4004 = vmatpush1.msra.mxu0 %v2365
  %4005 = vmatprep.subr.mxu0 0.0
  %4006 = vmatpush1.msra.mxu0 %v2364
  %4007 = vmatprep.subr.mxu0 0.0
  %4008 = vmatpush1.msra.mxu0 %v2363
  %4009 = vmatprep.subr.mxu0 0.0
  %4010 = vmatpush1.msra.mxu0 %v2362
  %4011 = vmatprep.subr.mxu0 0.0
  %4012 = vmatpush1.msra.mxu0 %v2361
  %4013 = vmatprep.subr.mxu0 0.0
  %4014 = vmatpush1.msra.mxu0 %v2360
  %4015 = vmatprep.subr.mxu0 0.0
  %4016 = vmatpush1.msra.mxu0 %v2359
  %4017 = vmatprep.subr.mxu0 0.0
  %4018 = vmatpush1.msra.mxu0 %v2358
  %4019 = vmatprep.subr.mxu0 0.0
  %4020 = vmatpush1.msra.mxu0 %v2357
  %4021 = vmatprep.subr.mxu0 0.0
  %4022 = vmatpush1.msra.mxu0 %v2356
  %4023 = vmatprep.subr.mxu0 0.0
  %4024 = vmatpush1.msra.mxu0 %v2355
  %4025 = vmatprep.subr.mxu0 0.0
  %4026 = vmatpush1.msra.mxu0 %v2354
  %4027 = vmatprep.subr.mxu0 0.0
  %4028 = vmatpush1.msra.mxu0 %v2353
  %4029 = vmatprep.subr.mxu0 0.0
  %4030 = vmatpush1.msra.mxu0 %v2352
  %4031 = vmatprep.subr.mxu0 0.0
  %4032 = vmatpush1.msra.mxu0 %v2351
  %4033 = vmatprep.subr.mxu0 0.0
  %4034 = vmatpush2.msra.mxu0 %v2382
  %4035 = vmatprep.subr.mxu0 0.0
  %4036 = vmatpush2.msra.mxu0 %v2381
  %4037 = vmatprep.subr.mxu0 0.0
  %4038 = vmatpush2.msra.mxu0 %v2380
  %4039 = vmatprep.subr.mxu0 0.0
  %4040 = vmatpush2.msra.mxu0 %v2379
  %4041 = vmatprep.subr.mxu0 0.0
  %4042 = vmatpush2.msra.mxu0 %v2378
  %4043 = vmatprep.subr.mxu0 0.0
  %4044 = vmatpush2.msra.mxu0 %v2377
  %4045 = vmatprep.subr.mxu0 0.0
  %4046 = vmatpush2.msra.mxu0 %v2376
  %4047 = vmatprep.subr.mxu0 0.0
  %4048 = vmatpush2.msra.mxu0 %v2375
  %4049 = vmatprep.subr.mxu0 0.0
  %4050 = vmatpush2.msra.mxu0 %v2374
  %4051 = vmatprep.subr.mxu0 0.0
  %4052 = vmatpush2.msra.mxu0 %v2373
  %4053 = vmatprep.subr.mxu0 0.0
  %4054 = vmatpush2.msra.mxu0 %v2372
  %4055 = vmatprep.subr.mxu0 0.0
  %4056 = vmatpush2.msra.mxu0 %v2371
  %4057 = vmatprep.subr.mxu0 0.0
  %4058 = vmatpush2.msra.mxu0 %v2370
  %4059 = vmatprep.subr.mxu0 0.0
  %4060 = vmatpush2.msra.mxu0 %v2369
  %4061 = vmatprep.subr.mxu0 0.0
  %4062 = vmatpush2.msra.mxu0 %v2368
  %4063 = vmatprep.subr.mxu0 0.0
  %4064 = vmatpush2.msra.mxu0 %v2367
  %4065 = vmatprep.mubr.f32.mxu0 %v1622
  %4066 = vmatmul.mubr.f32.gmra.mxu0 %v1621
  %v4067 = vpop.f32.mrf.mxu0
  %v4068 = vadd.f32 %v3923, %v4067
  %v4069 = vpop.f32.mrf.mxu0
  %4070 = vmatprep.mubr.f32.mxu0 %v1647
  %4071 = vmatmul.mubr.f32.gmra.mxu0 %v1646
  %v4072 = vpop.f32.mrf.mxu0
  %v4073 = vadd.f32 %v3928, %v4072
  %v4074 = vpop.f32.mrf.mxu0
  %4075 = vmatprep.mubr.f32.mxu0 %v1672
  %4076 = vmatmul.mubr.f32.gmra.mxu0 %v1671
  %v4077 = vpop.f32.mrf.mxu0
  %v4078 = vadd.f32 %v3933, %v4077
  %v4079 = vpop.f32.mrf.mxu0
  %4080 = vmatprep.mubr.f32.mxu0 %v1697
  %4081 = vmatmul.mubr.f32.gmra.mxu0 %v1696
  %v4082 = vpop.f32.mrf.mxu0
  %v4083 = vadd.f32 %v3938, %v4082
  %v4084 = vpop.f32.mrf.mxu0
  %4085 = vmatprep.mubr.f32.mxu0 %v1722
  %4086 = vmatmul.mubr.f32.gmra.mxu0 %v1721
  %v4087 = vpop.f32.mrf.mxu0
  %v4088 = vadd.f32 %v3943, %v4087
  %v4089 = vpop.f32.mrf.mxu0
  %4090 = vmatprep.mubr.f32.mxu0 %v1747
  %4091 = vmatmul.mubr.f32.gmra.mxu0 %v1746
  %v4092 = vpop.f32.mrf.mxu0
  %v4093 = vadd.f32 %v3948, %v4092
  %v4094 = vpop.f32.mrf.mxu0
  %4095 = vmatprep.mubr.f32.mxu0 %v1772
  %4096 = vmatmul.mubr.f32.gmra.mxu0 %v1771
  %v4097 = vpop.f32.mrf.mxu0
  %v4098 = vadd.f32 %v3953, %v4097
  %v4099 = vpop.f32.mrf.mxu0
  %4100 = vmatprep.mubr.f32.mxu0 %v1797
  %4101 = vmatmul.mubr.f32.gmra.mxu0 %v1796
  %v4102 = vpop.f32.mrf.mxu0
  %v4103 = vadd.f32 %v3958, %v4102
  %v4104 = vpop.f32.mrf.mxu0
  %4105 = vmatprep.mubr.f32.mxu0 %v1822
  %4106 = vmatmul.mubr.f32.gmra.mxu0 %v1821
  %v4107 = vpop.f32.mrf.mxu0
  %v4108 = vadd.f32 %v3963, %v4107
  %v4109 = vpop.f32.mrf.mxu0
  %4110 = vmatprep.mubr.f32.mxu0 %v1847
  %4111 = vmatmul.mubr.f32.gmra.mxu0 %v1846
  %v4112 = vpop.f32.mrf.mxu0
  %v4113 = vadd.f32 %v3968, %v4112
  %v4114 = vpop.f32.mrf.mxu0
  %4115 = vmatprep.mubr.f32.mxu0 %v1872
  %4116 = vmatmul.mubr.f32.gmra.mxu0 %v1871
  %v4117 = vpop.f32.mrf.mxu0
  %v4118 = vadd.f32 %v3973, %v4117
  %v4119 = vpop.f32.mrf.mxu0
  %4120 = vmatprep.mubr.f32.mxu0 %v1897
  %4121 = vmatmul.mubr.f32.gmra.mxu0 %v1896
  %v4122 = vpop.f32.mrf.mxu0
  %v4123 = vadd.f32 %v3978, %v4122
  %v4124 = vpop.f32.mrf.mxu0
  %4125 = vmatprep.mubr.f32.mxu0 %v1922
  %4126 = vmatmul.mubr.f32.gmra.mxu0 %v1921
  %v4127 = vpop.f32.mrf.mxu0
  %v4128 = vadd.f32 %v3983, %v4127
  %v4129 = vpop.f32.mrf.mxu0
  %4130 = vmatprep.mubr.f32.mxu0 %v1947
  %4131 = vmatmul.mubr.f32.gmra.mxu0 %v1946
  %v4132 = vpop.f32.mrf.mxu0
  %v4133 = vadd.f32 %v3988, %v4132
  %v4134 = vpop.f32.mrf.mxu0
  %4135 = vmatprep.mubr.f32.mxu0 %v1972
  %4136 = vmatmul.mubr.f32.gmra.mxu0 %v1971
  %v4137 = vpop.f32.mrf.mxu0
  %v4138 = vadd.f32 %v3993, %v4137
  %v4139 = vpop.f32.mrf.mxu0
  %4140 = vmatprep.mubr.f32.mxu0 %v1997
  %4141 = vmatmul.mubr.f32.gmra.mxu0 %v1996
  %v4142 = vpop.f32.mrf.mxu0
  %v4143 = vadd.f32 %v3998, %v4142
  %v4144 = vpop.f32.mrf.mxu0
  %4145 = vdwg.mxu0
  %4146 = vmatprep.subr.mxu0 0.0
  %4147 = vmatpush1.msra.mxu0 %v2398
  %4148 = vmatprep.subr.mxu0 0.0
  %4149 = vmatpush1.msra.mxu0 %v2397
  %4150 = vmatprep.subr.mxu0 0.0
  %4151 = vmatpush1.msra.mxu0 %v2396
  %4152 = vmatprep.subr.mxu0 0.0
  %4153 = vmatpush1.msra.mxu0 %v2395
  %4154 = vmatprep.subr.mxu0 0.0
  %4155 = vmatpush1.msra.mxu0 %v2394
  %4156 = vmatprep.subr.mxu0 0.0
  %4157 = vmatpush1.msra.mxu0 %v2393
  %4158 = vmatprep.subr.mxu0 0.0
  %4159 = vmatpush1.msra.mxu0 %v2392
  %4160 = vmatprep.subr.mxu0 0.0
  %4161 = vmatpush1.msra.mxu0 %v2391
  %4162 = vmatprep.subr.mxu0 0.0
  %4163 = vmatpush1.msra.mxu0 %v2390
  %4164 = vmatprep.subr.mxu0 0.0
  %4165 = vmatpush1.msra.mxu0 %v2389
  %4166 = vmatprep.subr.mxu0 0.0
  %4167 = vmatpush1.msra.mxu0 %v2388
  %4168 = vmatprep.subr.mxu0 0.0
  %4169 = vmatpush1.msra.mxu0 %v2387
  %4170 = vmatprep.subr.mxu0 0.0
  %4171 = vmatpush1.msra.mxu0 %v2386
  %4172 = vmatprep.subr.mxu0 0.0
  %4173 = vmatpush1.msra.mxu0 %v2385
  %4174 = vmatprep.subr.mxu0 0.0
  %4175 = vmatpush1.msra.mxu0 %v2384
  %4176 = vmatprep.subr.mxu0 0.0
  %4177 = vmatpush1.msra.mxu0 %v2383
  %4178 = vmatprep.subr.mxu0 0.0
  %4179 = vmatpush2.msra.mxu0 0.0
  %4180 = vmatprep.subr.mxu0 0.0
  %4181 = vmatpush2.msra.mxu0 0.0
  %4182 = vmatprep.subr.mxu0 0.0
  %4183 = vmatpush2.msra.mxu0 0.0
  %4184 = vmatprep.subr.mxu0 0.0
  %4185 = vmatpush2.msra.mxu0 0.0
  %4186 = vmatprep.subr.mxu0 0.0
  %4187 = vmatpush2.msra.mxu0 0.0
  %4188 = vmatprep.subr.mxu0 0.0
  %4189 = vmatpush2.msra.mxu0 0.0
  %4190 = vmatprep.subr.mxu0 0.0
  %4191 = vmatpush2.msra.mxu0 0.0
  %4192 = vmatprep.subr.mxu0 0.0
  %4193 = vmatpush2.msra.mxu0 0.0
  %4194 = vmatprep.subr.mxu0 0.0
  %4195 = vmatpush2.msra.mxu0 0.0
  %4196 = vmatprep.subr.mxu0 0.0
  %4197 = vmatpush2.msra.mxu0 0.0
  %4198 = vmatprep.subr.mxu0 0.0
  %4199 = vmatpush2.msra.mxu0 0.0
  %4200 = vmatprep.subr.mxu0 0.0
  %4201 = vmatpush2.msra.mxu0 0.0
  %4202 = vmatprep.subr.mxu0 0.0
  %4203 = vmatpush2.msra.mxu0 0.0
  %4204 = vmatprep.subr.mxu0 0.0
  %4205 = vmatpush2.msra.mxu0 0.0
  %4206 = vmatprep.subr.mxu0 0.0
  %4207 = vmatpush2.msra.mxu0 0.0
  %4208 = vmatprep.subr.mxu0 0.0
  %4209 = vmatpush2.msra.mxu0 0.0
  %4210 = vmatprep.mubr.f32.mxu0 0.0
  %4211 = vmatmul.mubr.f32.gmra.mxu0 %v1623
  %v4212 = vpop.f32.mrf.mxu0
  %v4213 = vadd.f32 %v4068, %v4212
  %v4214 = vpop.f32.mrf.mxu0
  %4215 = vmatprep.mubr.f32.mxu0 0.0
  %4216 = vmatmul.mubr.f32.gmra.mxu0 %v1648
  %v4217 = vpop.f32.mrf.mxu0
  %v4218 = vadd.f32 %v4073, %v4217
  %v4219 = vpop.f32.mrf.mxu0
  %4220 = vmatprep.mubr.f32.mxu0 0.0
  %4221 = vmatmul.mubr.f32.gmra.mxu0 %v1673
  %v4222 = vpop.f32.mrf.mxu0
  %v4223 = vadd.f32 %v4078, %v4222
  %v4224 = vpop.f32.mrf.mxu0
  %4225 = vmatprep.mubr.f32.mxu0 0.0
  %4226 = vmatmul.mubr.f32.gmra.mxu0 %v1698
  %v4227 = vpop.f32.mrf.mxu0
  %v4228 = vadd.f32 %v4083, %v4227
  %v4229 = vpop.f32.mrf.mxu0
  %4230 = vmatprep.mubr.f32.mxu0 0.0
  %4231 = vmatmul.mubr.f32.gmra.mxu0 %v1723
  %v4232 = vpop.f32.mrf.mxu0
  %v4233 = vadd.f32 %v4088, %v4232
  %v4234 = vpop.f32.mrf.mxu0
  %4235 = vmatprep.mubr.f32.mxu0 0.0
  %4236 = vmatmul.mubr.f32.gmra.mxu0 %v1748
  %v4237 = vpop.f32.mrf.mxu0
  %v4238 = vadd.f32 %v4093, %v4237
  %v4239 = vpop.f32.mrf.mxu0
  %4240 = vmatprep.mubr.f32.mxu0 0.0
  %4241 = vmatmul.mubr.f32.gmra.mxu0 %v1773
  %v4242 = vpop.f32.mrf.mxu0
  %v4243 = vadd.f32 %v4098, %v4242
  %v4244 = vpop.f32.mrf.mxu0
  %4245 = vmatprep.mubr.f32.mxu0 0.0
  %4246 = vmatmul.mubr.f32.gmra.mxu0 %v1798
  %v4247 = vpop.f32.mrf.mxu0
  %v4248 = vadd.f32 %v4103, %v4247
  %v4249 = vpop.f32.mrf.mxu0
  %4250 = vmatprep.mubr.f32.mxu0 0.0
  %4251 = vmatmul.mubr.f32.gmra.mxu0 %v1823
  %v4252 = vpop.f32.mrf.mxu0
  %v4253 = vadd.f32 %v4108, %v4252
  %v4254 = vpop.f32.mrf.mxu0
  %4255 = vmatprep.mubr.f32.mxu0 0.0
  %4256 = vmatmul.mubr.f32.gmra.mxu0 %v1848
  %v4257 = vpop.f32.mrf.mxu0
  %v4258 = vadd.f32 %v4113, %v4257
  %v4259 = vpop.f32.mrf.mxu0
  %4260 = vmatprep.mubr.f32.mxu0 0.0
  %4261 = vmatmul.mubr.f32.gmra.mxu0 %v1873
  %v4262 = vpop.f32.mrf.mxu0
  %v4263 = vadd.f32 %v4118, %v4262
  %v4264 = vpop.f32.mrf.mxu0
  %4265 = vmatprep.mubr.f32.mxu0 0.0
  %4266 = vmatmul.mubr.f32.gmra.mxu0 %v1898
  %v4267 = vpop.f32.mrf.mxu0
  %v4268 = vadd.f32 %v4123, %v4267
  %v4269 = vpop.f32.mrf.mxu0
  %4270 = vmatprep.mubr.f32.mxu0 0.0
  %4271 = vmatmul.mubr.f32.gmra.mxu0 %v1923
  %v4272 = vpop.f32.mrf.mxu0
  %v4273 = vadd.f32 %v4128, %v4272
  %v4274 = vpop.f32.mrf.mxu0
  %4275 = vmatprep.mubr.f32.mxu0 0.0
  %4276 = vmatmul.mubr.f32.gmra.mxu0 %v1948
  %v4277 = vpop.f32.mrf.mxu0
  %v4278 = vadd.f32 %v4133, %v4277
  %v4279 = vpop.f32.mrf.mxu0
  %4280 = vmatprep.mubr.f32.mxu0 0.0
  %4281 = vmatmul.mubr.f32.gmra.mxu0 %v1973
  %v4282 = vpop.f32.mrf.mxu0
  %v4283 = vadd.f32 %v4138, %v4282
  %v4284 = vpop.f32.mrf.mxu0
  %4285 = vmatprep.mubr.f32.mxu0 0.0
  %4286 = vmatmul.mubr.f32.gmra.mxu0 %v1998
  %v4287 = vpop.f32.mrf.mxu0
  %v4288 = vadd.f32 %v4143, %v4287
  %v4289 = vpop.f32.mrf.mxu0
  %4290 = vdwg.mxu0
  %v4291 = vmax.f32 %v4213, 0.0
  %v4292 = vmax.f32 %v4218, 0.0
  %v4293 = vmax.f32 %v4223, 0.0
  %v4294 = vmax.f32 %v4228, 0.0
  %v4295 = vmax.f32 %v4233, 0.0
  %v4296 = vmax.f32 %v4238, 0.0
  %v4297 = vmax.f32 %v4243, 0.0
  %v4298 = vmax.f32 %v4248, 0.0
  %v4299 = vmax.f32 %v4253, 0.0
  %v4300 = vmax.f32 %v4258, 0.0
  %v4301 = vmax.f32 %v4263, 0.0
  %v4302 = vmax.f32 %v4268, 0.0
  %v4303 = vmax.f32 %v4273, 0.0
  %v4304 = vmax.f32 %v4278, 0.0
  %v4305 = vmax.f32 %v4283, 0.0
  %v4306 = vmax.f32 %v4288, 0.0
  %v4307 = vadd.f32 %v4291, %v4292
  %v4308 = vadd.f32 %v4307, %v4293
  %v4309 = vadd.f32 %v4308, %v4294
  %v4310 = vadd.f32 %v4309, %v4295
  %v4311 = vadd.f32 %v4310, %v4296
  %v4312 = vadd.f32 %v4311, %v4297
  %v4313 = vadd.f32 %v4312, %v4298
  %v4314 = vrot.slane %v4313, 4
  %v4315 = vadd.f32 %v4313, %v4314
  %v4316 = vrot.slane %v4315, 2
  %v4317 = vadd.f32 %v4315, %v4316
  %v4318 = vrot.slane %v4317, 1
  %v4319 = vadd.f32 %v4317, %v4318
  %v4320 = vadd.f32 %v4299, %v4300
  %v4321 = vadd.f32 %v4320, %v4301
  %v4322 = vadd.f32 %v4321, %v4302
  %v4323 = vadd.f32 %v4322, %v4303
  %v4324 = vadd.f32 %v4323, %v4304
  %v4325 = vadd.f32 %v4324, %v4305
  %v4326 = vadd.f32 %v4325, %v4306
  %v4327 = vrot.slane %v4326, 4
  %v4328 = vadd.f32 %v4326, %v4327
  %v4329 = vrot.slane %v4328, 2
  %v4330 = vadd.f32 %v4328, %v4329
  %v4331 = vrot.slane %v4330, 1
  %v4332 = vadd.f32 %v4330, %v4331
  %v4333 = vrcp.pop 64.0
  %v4334 = vmul.f32 %v4319, %v4333
  %v4335 = vmul.f32 %v4332, %v4333
  %v4336 = vld [vmem:[%s5] sm:$0xff]
  %v4337 = vld [vmem:[%s5 + $0x8] sm:$0xff]
  %v4338 = vld [vmem:[%s5 + $0x10] sm:$0xff]
  %v4339 = vld [vmem:[%s5 + $0x18] sm:$0xff]
  %v4340 = vld [vmem:[%s5 + $0x20] sm:$0xff]
  %v4341 = vld [vmem:[%s5 + $0x28] sm:$0xff]
  %v4342 = vld [vmem:[%s5 + $0x30] sm:$0xff]
  %v4343 = vld [vmem:[%s5 + $0x38] sm:$0xff]
  %v4344 = vld [vmem:[%s5 + $0x40] sm:$0xff]
  %v4345 = vld [vmem:[%s5 + $0x48] sm:$0xff]
  %v4346 = vld [vmem:[%s5 + $0x50] sm:$0xff]
  %v4347 = vld [vmem:[%s5 + $0x58] sm:$0xff]
  %v4348 = vld [vmem:[%s5 + $0x60] sm:$0xff]
  %v4349 = vld [vmem:[%s5 + $0x68] sm:$0xff]
  %v4350 = vld [vmem:[%s5 + $0x70] sm:$0xff]
  %v4351 = vld [vmem:[%s5 + $0x78] sm:$0xff]
  %v4352 = vld [vmem:[%s5 + $0x80] sm:$0xff]
  %v4353 = vld [vmem:[%s5 + $0x88] sm:$0xff]
  %v4354 = vld [vmem:[%s5 + $0x90] sm:$0xff]
  %v4355 = vld [vmem:[%s5 + $0x98] sm:$0xff]
  %v4356 = vld [vmem:[%s5 + $0xa0] sm:$0xff]
  %v4357 = vld [vmem:[%s5 + $0xa8] sm:$0xff]
  %v4358 = vld [vmem:[%s5 + $0xb0] sm:$0xff]
  %v4359 = vld [vmem:[%s5 + $0xb8] sm:$0xff]
  %v4360 = vld [vmem:[%s5 + $0xc0] sm:$0xff]
  %v4361 = vld [vmem:[%s5 + $0xc8] sm:$0xff]
  %v4362 = vld [vmem:[%s5 + $0xd0] sm:$0xff]
  %v4363 = vld [vmem:[%s5 + $0xd8] sm:$0xff]
  %v4364 = vld [vmem:[%s5 + $0xe0] sm:$0xff]
  %v4365 = vld [vmem:[%s5 + $0xe8] sm:$0xff]
  %v4366 = vld [vmem:[%s5 + $0xf0] sm:$0xff]
  %v4367 = vld [vmem:[%s5 + $0xf8] sm:$0xff]
  %v4368 = vld [vmem:[%s5 + $0x100] sm:$0xff]
  %v4369 = vld [vmem:[%s5 + $0x108] sm:$0xff]
  %v4370 = vld [vmem:[%s5 + $0x110] sm:$0xff]
  %v4371 = vld [vmem:[%s5 + $0x118] sm:$0xff]
  %v4372 = vld [vmem:[%s5 + $0x120] sm:$0xff]
  %v4373 = vld [vmem:[%s5 + $0x128] sm:$0xff]
  %v4374 = vld [vmem:[%s5 + $0x130] sm:$0xff]
  %v4375 = vld [vmem:[%s5 + $0x138] sm:$0xff]
  %v4376 = vld [vmem:[%s5 + $0x140] sm:$0xff]
  %v4377 = vld [vmem:[%s5 + $0x148] sm:$0xff]
  %v4378 = vld [vmem:[%s5 + $0x150] sm:$0xff]
  %v4379 = vld [vmem:[%s5 + $0x158] sm:$0xff]
  %v4380 = vld [vmem:[%s5 + $0x160] sm:$0xff]
  %v4381 = vld [vmem:[%s5 + $0x168] sm:$0xff]
  %v4382 = vld [vmem:[%s5 + $0x170] sm:$0xff]
  %v4383 = vld [vmem:[%s5 + $0x178] sm:$0xff]
  %v4384 = vld [vmem:[%s5 + $0x180] sm:$0xff]
  %v4385 = vld [vmem:[%s5 + $0x188] sm:$0xff]
  %v4386 = vld [vmem:[%s5 + $0x190] sm:$0xff]
  %v4387 = vld [vmem:[%s5 + $0x198] sm:$0xff]
  %v4388 = vld [vmem:[%s5 + $0x1a0] sm:$0xff]
  %v4389 = vld [vmem:[%s5 + $0x1a8] sm:$0xff]
  %v4390 = vld [vmem:[%s5 + $0x1b0] sm:$0xff]
  %v4391 = vld [vmem:[%s5 + $0x1b8] sm:$0xff]
  %v4392 = vld [vmem:[%s5 + $0x1c0] sm:$0xff]
  %v4393 = vld [vmem:[%s5 + $0x1c8] sm:$0xff]
  %v4394 = vld [vmem:[%s5 + $0x1d0] sm:$0xff]
  %v4395 = vld [vmem:[%s5 + $0x1d8] sm:$0xff]
  %v4396 = vld [vmem:[%s5 + $0x1e0] sm:$0xff]
  %v4397 = vld [vmem:[%s5 + $0x1e8] sm:$0xff]
  %v4398 = vld [vmem:[%s5 + $0x1f0] sm:$0xff]
  %v4399 = vld [vmem:[%s5 + $0x1f8] sm:$0xff]
  %v4400 = vld [vmem:[%s5 + $0x200] sm:$0xff]
  %v4401 = vld [vmem:[%s5 + $0x208] sm:$0xff]
  %v4402 = vld [vmem:[%s5 + $0x210] sm:$0xff]
  %v4403 = vld [vmem:[%s5 + $0x218] sm:$0xff]
  %v4404 = vld [vmem:[%s5 + $0x220] sm:$0xff]
  %v4405 = vld [vmem:[%s5 + $0x228] sm:$0xff]
  %v4406 = vld [vmem:[%s5 + $0x230] sm:$0xff]
  %v4407 = vld [vmem:[%s5 + $0x238] sm:$0xff]
  %v4408 = vld [vmem:[%s5 + $0x240] sm:$0xff]
  %v4409 = vld [vmem:[%s5 + $0x248] sm:$0xff]
  %v4410 = vld [vmem:[%s5 + $0x250] sm:$0xff]
  %v4411 = vld [vmem:[%s5 + $0x258] sm:$0xff]
  %v4412 = vld [vmem:[%s5 + $0x260] sm:$0xff]
  %v4413 = vld [vmem:[%s5 + $0x268] sm:$0xff]
  %v4414 = vld [vmem:[%s5 + $0x270] sm:$0xff]
  %v4415 = vld [vmem:[%s5 + $0x278] sm:$0xff]
  %v4416 = vld [vmem:[%s5 + $0x280] sm:$0xff]
  %v4417 = vld [vmem:[%s5 + $0x288] sm:$0xff]
  %v4418 = vld [vmem:[%s5 + $0x290] sm:$0xff]
  %v4419 = vld [vmem:[%s5 + $0x298] sm:$0xff]
  %v4420 = vld [vmem:[%s5 + $0x2a0] sm:$0xff]
  %v4421 = vld [vmem:[%s5 + $0x2a8] sm:$0xff]
  %v4422 = vld [vmem:[%s5 + $0x2b0] sm:$0xff]
  %v4423 = vld [vmem:[%s5 + $0x2b8] sm:$0xff]
  %v4424 = vld [vmem:[%s5 + $0x2c0] sm:$0xff]
  %v4425 = vld [vmem:[%s5 + $0x2c8] sm:$0xff]
  %v4426 = vld [vmem:[%s5 + $0x2d0] sm:$0xff]
  %v4427 = vld [vmem:[%s5 + $0x2d8] sm:$0xff]
  %v4428 = vld [vmem:[%s5 + $0x2e0] sm:$0xff]
  %v4429 = vld [vmem:[%s5 + $0x2e8] sm:$0xff]
  %v4430 = vld [vmem:[%s5 + $0x2f0] sm:$0xff]
  %v4431 = vld [vmem:[%s5 + $0x2f8] sm:$0xff]
  %v4432 = vld [vmem:[%s5 + $0x300] sm:$0xff]
  %v4433 = vld [vmem:[%s5 + $0x308] sm:$0xff]
  %v4434 = vld [vmem:[%s5 + $0x310] sm:$0xff]
  %v4435 = vld [vmem:[%s5 + $0x318] sm:$0xff]
  %v4436 = vld [vmem:[%s5 + $0x320] sm:$0xff]
  %v4437 = vld [vmem:[%s5 + $0x328] sm:$0xff]
  %v4438 = vld [vmem:[%s5 + $0x330] sm:$0xff]
  %v4439 = vld [vmem:[%s5 + $0x338] sm:$0xff]
  %v4440 = vld [vmem:[%s5 + $0x340] sm:$0xff]
  %v4441 = vld [vmem:[%s5 + $0x348] sm:$0xff]
  %v4442 = vld [vmem:[%s5 + $0x350] sm:$0xff]
  %v4443 = vld [vmem:[%s5 + $0x358] sm:$0xff]
  %v4444 = vld [vmem:[%s5 + $0x360] sm:$0xff]
  %v4445 = vld [vmem:[%s5 + $0x368] sm:$0xff]
  %v4446 = vld [vmem:[%s5 + $0x370] sm:$0xff]
  %v4447 = vld [vmem:[%s5 + $0x378] sm:$0xff]
  %v4448 = vld [vmem:[%s5 + $0x380] sm:$0xff]
  %v4449 = vld [vmem:[%s5 + $0x388] sm:$0xff]
  %v4450 = vld [vmem:[%s5 + $0x390] sm:$0xff]
  %v4451 = vld [vmem:[%s5 + $0x398] sm:$0xff]
  %v4452 = vld [vmem:[%s5 + $0x3a0] sm:$0xff]
  %v4453 = vld [vmem:[%s5 + $0x3a8] sm:$0xff]
  %v4454 = vld [vmem:[%s5 + $0x3b0] sm:$0xff]
  %v4455 = vld [vmem:[%s5 + $0x3b8] sm:$0xff]
  %v4456 = vld [vmem:[%s5 + $0x3c0] sm:$0xff]
  %v4457 = vld [vmem:[%s5 + $0x3c8] sm:$0xff]
  %v4458 = vld [vmem:[%s5 + $0x3d0] sm:$0xff]
  %v4459 = vld [vmem:[%s5 + $0x3d8] sm:$0xff]
  %v4460 = vld [vmem:[%s5 + $0x3e0] sm:$0xff]
  %v4461 = vld [vmem:[%s5 + $0x3e8] sm:$0xff]
  %v4462 = vld [vmem:[%s5 + $0x3f0] sm:$0xff]
  %v4463 = vld [vmem:[%s5 + $0x3f8] sm:$0xff]
  %v4464 = vld [vmem:[%s5 + $0x400] sm:$0xff]
  %v4465 = vld [vmem:[%s5 + $0x408] sm:$0xff]
  %v4466 = vld [vmem:[%s5 + $0x410] sm:$0xff]
  %v4467 = vld [vmem:[%s5 + $0x418] sm:$0xff]
  %v4468 = vld [vmem:[%s5 + $0x420] sm:$0xff]
  %v4469 = vld [vmem:[%s5 + $0x428] sm:$0xff]
  %v4470 = vld [vmem:[%s5 + $0x430] sm:$0xff]
  %v4471 = vld [vmem:[%s5 + $0x438] sm:$0xff]
  %v4472 = vld [vmem:[%s5 + $0x440] sm:$0xff]
  %v4473 = vld [vmem:[%s5 + $0x448] sm:$0xff]
  %v4474 = vld [vmem:[%s5 + $0x450] sm:$0xff]
  %v4475 = vld [vmem:[%s5 + $0x458] sm:$0xff]
  %v4476 = vld [vmem:[%s5 + $0x460] sm:$0xff]
  %v4477 = vld [vmem:[%s5 + $0x468] sm:$0xff]
  %v4478 = vld [vmem:[%s5 + $0x470] sm:$0xff]
  %v4479 = vld [vmem:[%s5 + $0x478] sm:$0xff]
  %v4480 = vld [vmem:[%s5 + $0x480] sm:$0xff]
  %v4481 = vld [vmem:[%s5 + $0x488] sm:$0xff]
  %v4482 = vld [vmem:[%s5 + $0x490] sm:$0xff]
  %v4483 = vld [vmem:[%s5 + $0x498] sm:$0xff]
  %v4484 = vld [vmem:[%s5 + $0x4a0] sm:$0xff]
  %v4485 = vld [vmem:[%s5 + $0x4a8] sm:$0xff]
  %v4486 = vld [vmem:[%s5 + $0x4b0] sm:$0xff]
  %v4487 = vld [vmem:[%s5 + $0x4b8] sm:$0xff]
  %v4488 = vld [vmem:[%s5 + $0x4c0] sm:$0xff]
  %v4489 = vld [vmem:[%s5 + $0x4c8] sm:$0xff]
  %v4490 = vld [vmem:[%s5 + $0x4d0] sm:$0xff]
  %v4491 = vld [vmem:[%s5 + $0x4d8] sm:$0xff]
  %v4492 = vld [vmem:[%s5 + $0x4e0] sm:$0xff]
  %v4493 = vld [vmem:[%s5 + $0x4e8] sm:$0xff]
  %v4494 = vld [vmem:[%s5 + $0x4f0] sm:$0xff]
  %v4495 = vld [vmem:[%s5 + $0x4f8] sm:$0xff]
  %v4496 = vld [vmem:[%s5 + $0x500] sm:$0xff]
  %v4497 = vld [vmem:[%s5 + $0x508] sm:$0xff]
  %v4498 = vld [vmem:[%s5 + $0x510] sm:$0xff]
  %v4499 = vld [vmem:[%s5 + $0x518] sm:$0xff]
  %v4500 = vld [vmem:[%s5 + $0x520] sm:$0xff]
  %v4501 = vld [vmem:[%s5 + $0x528] sm:$0xff]
  %v4502 = vld [vmem:[%s5 + $0x530] sm:$0xff]
  %v4503 = vld [vmem:[%s5 + $0x538] sm:$0xff]
  %v4504 = vld [vmem:[%s5 + $0x540] sm:$0xff]
  %v4505 = vld [vmem:[%s5 + $0x548] sm:$0xff]
  %v4506 = vld [vmem:[%s5 + $0x550] sm:$0xff]
  %v4507 = vld [vmem:[%s5 + $0x558] sm:$0xff]
  %v4508 = vld [vmem:[%s5 + $0x560] sm:$0xff]
  %v4509 = vld [vmem:[%s5 + $0x568] sm:$0xff]
  %v4510 = vld [vmem:[%s5 + $0x570] sm:$0xff]
  %v4511 = vld [vmem:[%s5 + $0x578] sm:$0xff]
  %v4512 = vld [vmem:[%s5 + $0x580] sm:$0xff]
  %v4513 = vld [vmem:[%s5 + $0x588] sm:$0xff]
  %v4514 = vld [vmem:[%s5 + $0x590] sm:$0xff]
  %v4515 = vld [vmem:[%s5 + $0x598] sm:$0xff]
  %v4516 = vld [vmem:[%s5 + $0x5a0] sm:$0xff]
  %v4517 = vld [vmem:[%s5 + $0x5a8] sm:$0xff]
  %v4518 = vld [vmem:[%s5 + $0x5b0] sm:$0xff]
  %v4519 = vld [vmem:[%s5 + $0x5b8] sm:$0xff]
  %v4520 = vld [vmem:[%s5 + $0x5c0] sm:$0xff]
  %v4521 = vld [vmem:[%s5 + $0x5c8] sm:$0xff]
  %v4522 = vld [vmem:[%s5 + $0x5d0] sm:$0xff]
  %v4523 = vld [vmem:[%s5 + $0x5d8] sm:$0xff]
  %v4524 = vld [vmem:[%s5 + $0x5e0] sm:$0xff]
  %v4525 = vld [vmem:[%s5 + $0x5e8] sm:$0xff]
  %v4526 = vld [vmem:[%s5 + $0x5f0] sm:$0xff]
  %v4527 = vld [vmem:[%s5 + $0x5f8] sm:$0xff]
  %v4528 = vld [vmem:[%s5 + $0x600] sm:$0xff]
  %v4529 = vld [vmem:[%s5 + $0x608] sm:$0xff]
  %v4530 = vld [vmem:[%s5 + $0x610] sm:$0xff]
  %v4531 = vld [vmem:[%s5 + $0x618] sm:$0xff]
  %v4532 = vld [vmem:[%s5 + $0x620] sm:$0xff]
  %v4533 = vld [vmem:[%s5 + $0x628] sm:$0xff]
  %v4534 = vld [vmem:[%s5 + $0x630] sm:$0xff]
  %v4535 = vld [vmem:[%s5 + $0x638] sm:$0xff]
  %v4536 = vld [vmem:[%s5 + $0x640] sm:$0xff]
  %v4537 = vld [vmem:[%s5 + $0x648] sm:$0xff]
  %v4538 = vld [vmem:[%s5 + $0x650] sm:$0xff]
  %v4539 = vld [vmem:[%s5 + $0x658] sm:$0xff]
  %v4540 = vld [vmem:[%s5 + $0x660] sm:$0xff]
  %v4541 = vld [vmem:[%s5 + $0x668] sm:$0xff]
  %v4542 = vld [vmem:[%s5 + $0x670] sm:$0xff]
  %v4543 = vld [vmem:[%s5 + $0x678] sm:$0xff]
  %v4544 = vld [vmem:[%s5 + $0x680] sm:$0xff]
  %v4545 = vld [vmem:[%s5 + $0x688] sm:$0xff]
  %v4546 = vld [vmem:[%s5 + $0x690] sm:$0xff]
  %v4547 = vld [vmem:[%s5 + $0x698] sm:$0xff]
  %v4548 = vld [vmem:[%s5 + $0x6a0] sm:$0xff]
  %v4549 = vld [vmem:[%s5 + $0x6a8] sm:$0xff]
  %v4550 = vld [vmem:[%s5 + $0x6b0] sm:$0xff]
  %v4551 = vld [vmem:[%s5 + $0x6b8] sm:$0xff]
  %v4552 = vld [vmem:[%s5 + $0x6c0] sm:$0xff]
  %v4553 = vld [vmem:[%s5 + $0x6c8] sm:$0xff]
  %v4554 = vld [vmem:[%s5 + $0x6d0] sm:$0xff]
  %v4555 = vld [vmem:[%s5 + $0x6d8] sm:$0xff]
  %v4556 = vld [vmem:[%s5 + $0x6e0] sm:$0xff]
  %v4557 = vld [vmem:[%s5 + $0x6e8] sm:$0xff]
  %v4558 = vld [vmem:[%s5 + $0x6f0] sm:$0xff]
  %v4559 = vld [vmem:[%s5 + $0x6f8] sm:$0xff]
  %v4560 = vld [vmem:[%s5 + $0x700] sm:$0xff]
  %v4561 = vld [vmem:[%s5 + $0x708] sm:$0xff]
  %v4562 = vld [vmem:[%s5 + $0x710] sm:$0xff]
  %v4563 = vld [vmem:[%s5 + $0x718] sm:$0xff]
  %v4564 = vld [vmem:[%s5 + $0x720] sm:$0xff]
  %v4565 = vld [vmem:[%s5 + $0x728] sm:$0xff]
  %v4566 = vld [vmem:[%s5 + $0x730] sm:$0xff]
  %v4567 = vld [vmem:[%s5 + $0x738] sm:$0xff]
  %v4568 = vld [vmem:[%s5 + $0x740] sm:$0xff]
  %v4569 = vld [vmem:[%s5 + $0x748] sm:$0xff]
  %v4570 = vld [vmem:[%s5 + $0x750] sm:$0xff]
  %v4571 = vld [vmem:[%s5 + $0x758] sm:$0xff]
  %v4572 = vld [vmem:[%s5 + $0x760] sm:$0xff]
  %v4573 = vld [vmem:[%s5 + $0x768] sm:$0xff]
  %v4574 = vld [vmem:[%s5 + $0x770] sm:$0xff]
  %v4575 = vld [vmem:[%s5 + $0x778] sm:$0xff]
  %v4576 = vld [vmem:[%s5 + $0x780] sm:$0xff]
  %v4577 = vld [vmem:[%s5 + $0x788] sm:$0xff]
  %v4578 = vld [vmem:[%s5 + $0x790] sm:$0xff]
  %v4579 = vld [vmem:[%s5 + $0x798] sm:$0xff]
  %v4580 = vld [vmem:[%s5 + $0x7a0] sm:$0xff]
  %v4581 = vld [vmem:[%s5 + $0x7a8] sm:$0xff]
  %v4582 = vld [vmem:[%s5 + $0x7b0] sm:$0xff]
  %v4583 = vld [vmem:[%s5 + $0x7b8] sm:$0xff]
  %v4584 = vld [vmem:[%s5 + $0x7c0] sm:$0xff]
  %v4585 = vld [vmem:[%s5 + $0x7c8] sm:$0xff]
  %v4586 = vld [vmem:[%s5 + $0x7d0] sm:$0xff]
  %v4587 = vld [vmem:[%s5 + $0x7d8] sm:$0xff]
  %v4588 = vld [vmem:[%s5 + $0x7e0] sm:$0xff]
  %v4589 = vld [vmem:[%s5 + $0x7e8] sm:$0xff]
  %v4590 = vld [vmem:[%s5 + $0x7f0] sm:$0xff]
  %v4591 = vld [vmem:[%s5 + $0x7f8] sm:$0xff]
  %v4592 = vunpack.c.l.bf16 %v4336
  %v4593 = vunpack.c.h.bf16 %v4336
  %v4594 = vunpack.c.l.bf16 %v4337
  %v4595 = vunpack.c.h.bf16 %v4337
  %v4596 = vunpack.c.l.bf16 %v4338
  %v4597 = vunpack.c.h.bf16 %v4338
  %v4598 = vunpack.c.l.bf16 %v4339
  %v4599 = vunpack.c.h.bf16 %v4339
  %v4600 = vunpack.c.l.bf16 %v4340
  %v4601 = vunpack.c.h.bf16 %v4340
  %v4602 = vunpack.c.l.bf16 %v4341
  %v4603 = vunpack.c.h.bf16 %v4341
  %v4604 = vunpack.c.l.bf16 %v4342
  %v4605 = vunpack.c.h.bf16 %v4342
  %v4606 = vunpack.c.l.bf16 %v4343
  %v4607 = vunpack.c.h.bf16 %v4343
  %v4608 = vunpack.c.l.bf16 %v4344
  %v4609 = vunpack.c.h.bf16 %v4344
  %v4610 = vunpack.c.l.bf16 %v4345
  %v4611 = vunpack.c.h.bf16 %v4345
  %v4612 = vunpack.c.l.bf16 %v4346
  %v4613 = vunpack.c.h.bf16 %v4346
  %v4614 = vunpack.c.l.bf16 %v4347
  %v4615 = vunpack.c.h.bf16 %v4347
  %v4616 = vunpack.c.l.bf16 %v4348
  %v4617 = vunpack.c.h.bf16 %v4348
  %v4618 = vunpack.c.l.bf16 %v4349
  %v4619 = vunpack.c.h.bf16 %v4349
  %v4620 = vunpack.c.l.bf16 %v4350
  %v4621 = vunpack.c.h.bf16 %v4350
  %v4622 = vunpack.c.l.bf16 %v4351
  %v4623 = vunpack.c.h.bf16 %v4351
  %v4624 = vunpack.c.l.bf16 %v4352
  %v4625 = vunpack.c.h.bf16 %v4352
  %v4626 = vunpack.c.l.bf16 %v4353
  %v4627 = vunpack.c.h.bf16 %v4353
  %v4628 = vunpack.c.l.bf16 %v4354
  %v4629 = vunpack.c.h.bf16 %v4354
  %v4630 = vunpack.c.l.bf16 %v4355
  %v4631 = vunpack.c.h.bf16 %v4355
  %v4632 = vunpack.c.l.bf16 %v4356
  %v4633 = vunpack.c.h.bf16 %v4356
  %v4634 = vunpack.c.l.bf16 %v4357
  %v4635 = vunpack.c.h.bf16 %v4357
  %v4636 = vunpack.c.l.bf16 %v4358
  %v4637 = vunpack.c.h.bf16 %v4358
  %v4638 = vunpack.c.l.bf16 %v4359
  %v4639 = vunpack.c.h.bf16 %v4359
  %v4640 = vunpack.c.l.bf16 %v4360
  %v4641 = vunpack.c.h.bf16 %v4360
  %v4642 = vunpack.c.l.bf16 %v4361
  %v4643 = vunpack.c.h.bf16 %v4361
  %v4644 = vunpack.c.l.bf16 %v4362
  %v4645 = vunpack.c.h.bf16 %v4362
  %v4646 = vunpack.c.l.bf16 %v4363
  %v4647 = vunpack.c.h.bf16 %v4363
  %v4648 = vunpack.c.l.bf16 %v4364
  %v4649 = vunpack.c.h.bf16 %v4364
  %v4650 = vunpack.c.l.bf16 %v4365
  %v4651 = vunpack.c.h.bf16 %v4365
  %v4652 = vunpack.c.l.bf16 %v4366
  %v4653 = vunpack.c.h.bf16 %v4366
  %v4654 = vunpack.c.l.bf16 %v4367
  %v4655 = vunpack.c.h.bf16 %v4367
  %v4656 = vunpack.c.l.bf16 %v4368
  %v4657 = vunpack.c.h.bf16 %v4368
  %v4658 = vunpack.c.l.bf16 %v4369
  %v4659 = vunpack.c.h.bf16 %v4369
  %v4660 = vunpack.c.l.bf16 %v4370
  %v4661 = vunpack.c.h.bf16 %v4370
  %v4662 = vunpack.c.l.bf16 %v4371
  %v4663 = vunpack.c.h.bf16 %v4371
  %v4664 = vunpack.c.l.bf16 %v4372
  %v4665 = vunpack.c.h.bf16 %v4372
  %v4666 = vunpack.c.l.bf16 %v4373
  %v4667 = vunpack.c.h.bf16 %v4373
  %v4668 = vunpack.c.l.bf16 %v4374
  %v4669 = vunpack.c.h.bf16 %v4374
  %v4670 = vunpack.c.l.bf16 %v4375
  %v4671 = vunpack.c.h.bf16 %v4375
  %v4672 = vunpack.c.l.bf16 %v4376
  %v4673 = vunpack.c.h.bf16 %v4376
  %v4674 = vunpack.c.l.bf16 %v4377
  %v4675 = vunpack.c.h.bf16 %v4377
  %v4676 = vunpack.c.l.bf16 %v4378
  %v4677 = vunpack.c.h.bf16 %v4378
  %v4678 = vunpack.c.l.bf16 %v4379
  %v4679 = vunpack.c.h.bf16 %v4379
  %v4680 = vunpack.c.l.bf16 %v4380
  %v4681 = vunpack.c.h.bf16 %v4380
  %v4682 = vunpack.c.l.bf16 %v4381
  %v4683 = vunpack.c.h.bf16 %v4381
  %v4684 = vunpack.c.l.bf16 %v4382
  %v4685 = vunpack.c.h.bf16 %v4382
  %v4686 = vunpack.c.l.bf16 %v4383
  %v4687 = vunpack.c.h.bf16 %v4383
  %v4688 = vunpack.c.l.bf16 %v4384
  %v4689 = vunpack.c.h.bf16 %v4384
  %v4690 = vunpack.c.l.bf16 %v4385
  %v4691 = vunpack.c.h.bf16 %v4385
  %v4692 = vunpack.c.l.bf16 %v4386
  %v4693 = vunpack.c.h.bf16 %v4386
  %v4694 = vunpack.c.l.bf16 %v4387
  %v4695 = vunpack.c.h.bf16 %v4387
  %v4696 = vunpack.c.l.bf16 %v4388
  %v4697 = vunpack.c.h.bf16 %v4388
  %v4698 = vunpack.c.l.bf16 %v4389
  %v4699 = vunpack.c.h.bf16 %v4389
  %v4700 = vunpack.c.l.bf16 %v4390
  %v4701 = vunpack.c.h.bf16 %v4390
  %v4702 = vunpack.c.l.bf16 %v4391
  %v4703 = vunpack.c.h.bf16 %v4391
  %v4704 = vunpack.c.l.bf16 %v4392
  %v4705 = vunpack.c.h.bf16 %v4392
  %v4706 = vunpack.c.l.bf16 %v4393
  %v4707 = vunpack.c.h.bf16 %v4393
  %v4708 = vunpack.c.l.bf16 %v4394
  %v4709 = vunpack.c.h.bf16 %v4394
  %v4710 = vunpack.c.l.bf16 %v4395
  %v4711 = vunpack.c.h.bf16 %v4395
  %v4712 = vunpack.c.l.bf16 %v4396
  %v4713 = vunpack.c.h.bf16 %v4396
  %v4714 = vunpack.c.l.bf16 %v4397
  %v4715 = vunpack.c.h.bf16 %v4397
  %v4716 = vunpack.c.l.bf16 %v4398
  %v4717 = vunpack.c.h.bf16 %v4398
  %v4718 = vunpack.c.l.bf16 %v4399
  %v4719 = vunpack.c.h.bf16 %v4399
  %v4720 = vunpack.c.l.bf16 %v4400
  %v4721 = vunpack.c.h.bf16 %v4400
  %v4722 = vunpack.c.l.bf16 %v4401
  %v4723 = vunpack.c.h.bf16 %v4401
  %v4724 = vunpack.c.l.bf16 %v4402
  %v4725 = vunpack.c.h.bf16 %v4402
  %v4726 = vunpack.c.l.bf16 %v4403
  %v4727 = vunpack.c.h.bf16 %v4403
  %v4728 = vunpack.c.l.bf16 %v4404
  %v4729 = vunpack.c.h.bf16 %v4404
  %v4730 = vunpack.c.l.bf16 %v4405
  %v4731 = vunpack.c.h.bf16 %v4405
  %v4732 = vunpack.c.l.bf16 %v4406
  %v4733 = vunpack.c.h.bf16 %v4406
  %v4734 = vunpack.c.l.bf16 %v4407
  %v4735 = vunpack.c.h.bf16 %v4407
  %v4736 = vunpack.c.l.bf16 %v4408
  %v4737 = vunpack.c.h.bf16 %v4408
  %v4738 = vunpack.c.l.bf16 %v4409
  %v4739 = vunpack.c.h.bf16 %v4409
  %v4740 = vunpack.c.l.bf16 %v4410
  %v4741 = vunpack.c.h.bf16 %v4410
  %v4742 = vunpack.c.l.bf16 %v4411
  %v4743 = vunpack.c.h.bf16 %v4411
  %v4744 = vunpack.c.l.bf16 %v4412
  %v4745 = vunpack.c.h.bf16 %v4412
  %v4746 = vunpack.c.l.bf16 %v4413
  %v4747 = vunpack.c.h.bf16 %v4413
  %v4748 = vunpack.c.l.bf16 %v4414
  %v4749 = vunpack.c.h.bf16 %v4414
  %v4750 = vunpack.c.l.bf16 %v4415
  %v4751 = vunpack.c.h.bf16 %v4415
  %v4752 = vunpack.c.l.bf16 %v4416
  %v4753 = vunpack.c.h.bf16 %v4416
  %v4754 = vunpack.c.l.bf16 %v4417
  %v4755 = vunpack.c.h.bf16 %v4417
  %v4756 = vunpack.c.l.bf16 %v4418
  %v4757 = vunpack.c.h.bf16 %v4418
  %v4758 = vunpack.c.l.bf16 %v4419
  %v4759 = vunpack.c.h.bf16 %v4419
  %v4760 = vunpack.c.l.bf16 %v4420
  %v4761 = vunpack.c.h.bf16 %v4420
  %v4762 = vunpack.c.l.bf16 %v4421
  %v4763 = vunpack.c.h.bf16 %v4421
  %v4764 = vunpack.c.l.bf16 %v4422
  %v4765 = vunpack.c.h.bf16 %v4422
  %v4766 = vunpack.c.l.bf16 %v4423
  %v4767 = vunpack.c.h.bf16 %v4423
  %v4768 = vunpack.c.l.bf16 %v4424
  %v4769 = vunpack.c.h.bf16 %v4424
  %v4770 = vunpack.c.l.bf16 %v4425
  %v4771 = vunpack.c.h.bf16 %v4425
  %v4772 = vunpack.c.l.bf16 %v4426
  %v4773 = vunpack.c.h.bf16 %v4426
  %v4774 = vunpack.c.l.bf16 %v4427
  %v4775 = vunpack.c.h.bf16 %v4427
  %v4776 = vunpack.c.l.bf16 %v4428
  %v4777 = vunpack.c.h.bf16 %v4428
  %v4778 = vunpack.c.l.bf16 %v4429
  %v4779 = vunpack.c.h.bf16 %v4429
  %v4780 = vunpack.c.l.bf16 %v4430
  %v4781 = vunpack.c.h.bf16 %v4430
  %v4782 = vunpack.c.l.bf16 %v4431
  %v4783 = vunpack.c.h.bf16 %v4431
  %v4784 = vunpack.c.l.bf16 %v4432
  %v4785 = vunpack.c.h.bf16 %v4432
  %v4786 = vunpack.c.l.bf16 %v4433
  %v4787 = vunpack.c.h.bf16 %v4433
  %v4788 = vunpack.c.l.bf16 %v4434
  %v4789 = vunpack.c.h.bf16 %v4434
  %v4790 = vunpack.c.l.bf16 %v4435
  %v4791 = vunpack.c.h.bf16 %v4435
  %v4792 = vunpack.c.l.bf16 %v4436
  %v4793 = vunpack.c.h.bf16 %v4436
  %v4794 = vunpack.c.l.bf16 %v4437
  %v4795 = vunpack.c.h.bf16 %v4437
  %v4796 = vunpack.c.l.bf16 %v4438
  %v4797 = vunpack.c.h.bf16 %v4438
  %v4798 = vunpack.c.l.bf16 %v4439
  %v4799 = vunpack.c.h.bf16 %v4439
  %v4800 = vunpack.c.l.bf16 %v4440
  %v4801 = vunpack.c.h.bf16 %v4440
  %v4802 = vunpack.c.l.bf16 %v4441
  %v4803 = vunpack.c.h.bf16 %v4441
  %v4804 = vunpack.c.l.bf16 %v4442
  %v4805 = vunpack.c.h.bf16 %v4442
  %v4806 = vunpack.c.l.bf16 %v4443
  %v4807 = vunpack.c.h.bf16 %v4443
  %v4808 = vunpack.c.l.bf16 %v4444
  %v4809 = vunpack.c.h.bf16 %v4444
  %v4810 = vunpack.c.l.bf16 %v4445
  %v4811 = vunpack.c.h.bf16 %v4445
  %v4812 = vunpack.c.l.bf16 %v4446
  %v4813 = vunpack.c.h.bf16 %v4446
  %v4814 = vunpack.c.l.bf16 %v4447
  %v4815 = vunpack.c.h.bf16 %v4447
  %v4816 = vunpack.c.l.bf16 %v4448
  %v4817 = vunpack.c.h.bf16 %v4448
  %v4818 = vunpack.c.l.bf16 %v4449
  %v4819 = vunpack.c.h.bf16 %v4449
  %v4820 = vunpack.c.l.bf16 %v4450
  %v4821 = vunpack.c.h.bf16 %v4450
  %v4822 = vunpack.c.l.bf16 %v4451
  %v4823 = vunpack.c.h.bf16 %v4451
  %v4824 = vunpack.c.l.bf16 %v4452
  %v4825 = vunpack.c.h.bf16 %v4452
  %v4826 = vunpack.c.l.bf16 %v4453
  %v4827 = vunpack.c.h.bf16 %v4453
  %v4828 = vunpack.c.l.bf16 %v4454
  %v4829 = vunpack.c.h.bf16 %v4454
  %v4830 = vunpack.c.l.bf16 %v4455
  %v4831 = vunpack.c.h.bf16 %v4455
  %v4832 = vunpack.c.l.bf16 %v4456
  %v4833 = vunpack.c.h.bf16 %v4456
  %v4834 = vunpack.c.l.bf16 %v4457
  %v4835 = vunpack.c.h.bf16 %v4457
  %v4836 = vunpack.c.l.bf16 %v4458
  %v4837 = vunpack.c.h.bf16 %v4458
  %v4838 = vunpack.c.l.bf16 %v4459
  %v4839 = vunpack.c.h.bf16 %v4459
  %v4840 = vunpack.c.l.bf16 %v4460
  %v4841 = vunpack.c.h.bf16 %v4460
  %v4842 = vunpack.c.l.bf16 %v4461
  %v4843 = vunpack.c.h.bf16 %v4461
  %v4844 = vunpack.c.l.bf16 %v4462
  %v4845 = vunpack.c.h.bf16 %v4462
  %v4846 = vunpack.c.l.bf16 %v4463
  %v4847 = vunpack.c.h.bf16 %v4463
  %v4848 = vunpack.c.l.bf16 %v4464
  %v4849 = vunpack.c.h.bf16 %v4464
  %v4850 = vunpack.c.l.bf16 %v4465
  %v4851 = vunpack.c.h.bf16 %v4465
  %v4852 = vunpack.c.l.bf16 %v4466
  %v4853 = vunpack.c.h.bf16 %v4466
  %v4854 = vunpack.c.l.bf16 %v4467
  %v4855 = vunpack.c.h.bf16 %v4467
  %v4856 = vunpack.c.l.bf16 %v4468
  %v4857 = vunpack.c.h.bf16 %v4468
  %v4858 = vunpack.c.l.bf16 %v4469
  %v4859 = vunpack.c.h.bf16 %v4469
  %v4860 = vunpack.c.l.bf16 %v4470
  %v4861 = vunpack.c.h.bf16 %v4470
  %v4862 = vunpack.c.l.bf16 %v4471
  %v4863 = vunpack.c.h.bf16 %v4471
  %v4864 = vunpack.c.l.bf16 %v4472
  %v4865 = vunpack.c.h.bf16 %v4472
  %v4866 = vunpack.c.l.bf16 %v4473
  %v4867 = vunpack.c.h.bf16 %v4473
  %v4868 = vunpack.c.l.bf16 %v4474
  %v4869 = vunpack.c.h.bf16 %v4474
  %v4870 = vunpack.c.l.bf16 %v4475
  %v4871 = vunpack.c.h.bf16 %v4475
  %v4872 = vunpack.c.l.bf16 %v4476
  %v4873 = vunpack.c.h.bf16 %v4476
  %v4874 = vunpack.c.l.bf16 %v4477
  %v4875 = vunpack.c.h.bf16 %v4477
  %v4876 = vunpack.c.l.bf16 %v4478
  %v4877 = vunpack.c.h.bf16 %v4478
  %v4878 = vunpack.c.l.bf16 %v4479
  %v4879 = vunpack.c.h.bf16 %v4479
  %v4880 = vunpack.c.l.bf16 %v4480
  %v4881 = vunpack.c.h.bf16 %v4480
  %v4882 = vunpack.c.l.bf16 %v4481
  %v4883 = vunpack.c.h.bf16 %v4481
  %v4884 = vunpack.c.l.bf16 %v4482
  %v4885 = vunpack.c.h.bf16 %v4482
  %v4886 = vunpack.c.l.bf16 %v4483
  %v4887 = vunpack.c.h.bf16 %v4483
  %v4888 = vunpack.c.l.bf16 %v4484
  %v4889 = vunpack.c.h.bf16 %v4484
  %v4890 = vunpack.c.l.bf16 %v4485
  %v4891 = vunpack.c.h.bf16 %v4485
  %v4892 = vunpack.c.l.bf16 %v4486
  %v4893 = vunpack.c.h.bf16 %v4486
  %v4894 = vunpack.c.l.bf16 %v4487
  %v4895 = vunpack.c.h.bf16 %v4487
  %v4896 = vunpack.c.l.bf16 %v4488
  %v4897 = vunpack.c.h.bf16 %v4488
  %v4898 = vunpack.c.l.bf16 %v4489
  %v4899 = vunpack.c.h.bf16 %v4489
  %v4900 = vunpack.c.l.bf16 %v4490
  %v4901 = vunpack.c.h.bf16 %v4490
  %v4902 = vunpack.c.l.bf16 %v4491
  %v4903 = vunpack.c.h.bf16 %v4491
  %v4904 = vunpack.c.l.bf16 %v4492
  %v4905 = vunpack.c.h.bf16 %v4492
  %v4906 = vunpack.c.l.bf16 %v4493
  %v4907 = vunpack.c.h.bf16 %v4493
  %v4908 = vunpack.c.l.bf16 %v4494
  %v4909 = vunpack.c.h.bf16 %v4494
  %v4910 = vunpack.c.l.bf16 %v4495
  %v4911 = vunpack.c.h.bf16 %v4495
  %v4912 = vunpack.c.l.bf16 %v4496
  %v4913 = vunpack.c.h.bf16 %v4496
  %v4914 = vunpack.c.l.bf16 %v4497
  %v4915 = vunpack.c.h.bf16 %v4497
  %v4916 = vunpack.c.l.bf16 %v4498
  %v4917 = vunpack.c.h.bf16 %v4498
  %v4918 = vunpack.c.l.bf16 %v4499
  %v4919 = vunpack.c.h.bf16 %v4499
  %v4920 = vunpack.c.l.bf16 %v4500
  %v4921 = vunpack.c.h.bf16 %v4500
  %v4922 = vunpack.c.l.bf16 %v4501
  %v4923 = vunpack.c.h.bf16 %v4501
  %v4924 = vunpack.c.l.bf16 %v4502
  %v4925 = vunpack.c.h.bf16 %v4502
  %v4926 = vunpack.c.l.bf16 %v4503
  %v4927 = vunpack.c.h.bf16 %v4503
  %v4928 = vunpack.c.l.bf16 %v4504
  %v4929 = vunpack.c.h.bf16 %v4504
  %v4930 = vunpack.c.l.bf16 %v4505
  %v4931 = vunpack.c.h.bf16 %v4505
  %v4932 = vunpack.c.l.bf16 %v4506
  %v4933 = vunpack.c.h.bf16 %v4506
  %v4934 = vunpack.c.l.bf16 %v4507
  %v4935 = vunpack.c.h.bf16 %v4507
  %v4936 = vunpack.c.l.bf16 %v4508
  %v4937 = vunpack.c.h.bf16 %v4508
  %v4938 = vunpack.c.l.bf16 %v4509
  %v4939 = vunpack.c.h.bf16 %v4509
  %v4940 = vunpack.c.l.bf16 %v4510
  %v4941 = vunpack.c.h.bf16 %v4510
  %v4942 = vunpack.c.l.bf16 %v4511
  %v4943 = vunpack.c.h.bf16 %v4511
  %v4944 = vunpack.c.l.bf16 %v4512
  %v4945 = vunpack.c.h.bf16 %v4512
  %v4946 = vunpack.c.l.bf16 %v4513
  %v4947 = vunpack.c.h.bf16 %v4513
  %v4948 = vunpack.c.l.bf16 %v4514
  %v4949 = vunpack.c.h.bf16 %v4514
  %v4950 = vunpack.c.l.bf16 %v4515
  %v4951 = vunpack.c.h.bf16 %v4515
  %v4952 = vunpack.c.l.bf16 %v4516
  %v4953 = vunpack.c.h.bf16 %v4516
  %v4954 = vunpack.c.l.bf16 %v4517
  %v4955 = vunpack.c.h.bf16 %v4517
  %v4956 = vunpack.c.l.bf16 %v4518
  %v4957 = vunpack.c.h.bf16 %v4518
  %v4958 = vunpack.c.l.bf16 %v4519
  %v4959 = vunpack.c.h.bf16 %v4519
  %v4960 = vunpack.c.l.bf16 %v4520
  %v4961 = vunpack.c.h.bf16 %v4520
  %v4962 = vunpack.c.l.bf16 %v4521
  %v4963 = vunpack.c.h.bf16 %v4521
  %v4964 = vunpack.c.l.bf16 %v4522
  %v4965 = vunpack.c.h.bf16 %v4522
  %v4966 = vunpack.c.l.bf16 %v4523
  %v4967 = vunpack.c.h.bf16 %v4523
  %v4968 = vunpack.c.l.bf16 %v4524
  %v4969 = vunpack.c.h.bf16 %v4524
  %v4970 = vunpack.c.l.bf16 %v4525
  %v4971 = vunpack.c.h.bf16 %v4525
  %v4972 = vunpack.c.l.bf16 %v4526
  %v4973 = vunpack.c.h.bf16 %v4526
  %v4974 = vunpack.c.l.bf16 %v4527
  %v4975 = vunpack.c.h.bf16 %v4527
  %v4976 = vunpack.c.l.bf16 %v4528
  %v4977 = vunpack.c.h.bf16 %v4528
  %v4978 = vunpack.c.l.bf16 %v4529
  %v4979 = vunpack.c.h.bf16 %v4529
  %v4980 = vunpack.c.l.bf16 %v4530
  %v4981 = vunpack.c.h.bf16 %v4530
  %v4982 = vunpack.c.l.bf16 %v4531
  %v4983 = vunpack.c.h.bf16 %v4531
  %v4984 = vunpack.c.l.bf16 %v4532
  %v4985 = vunpack.c.h.bf16 %v4532
  %v4986 = vunpack.c.l.bf16 %v4533
  %v4987 = vunpack.c.h.bf16 %v4533
  %v4988 = vunpack.c.l.bf16 %v4534
  %v4989 = vunpack.c.h.bf16 %v4534
  %v4990 = vunpack.c.l.bf16 %v4535
  %v4991 = vunpack.c.h.bf16 %v4535
  %v4992 = vunpack.c.l.bf16 %v4536
  %v4993 = vunpack.c.h.bf16 %v4536
  %v4994 = vunpack.c.l.bf16 %v4537
  %v4995 = vunpack.c.h.bf16 %v4537
  %v4996 = vunpack.c.l.bf16 %v4538
  %v4997 = vunpack.c.h.bf16 %v4538
  %v4998 = vunpack.c.l.bf16 %v4539
  %v4999 = vunpack.c.h.bf16 %v4539
  %v5000 = vunpack.c.l.bf16 %v4540
  %v5001 = vunpack.c.h.bf16 %v4540
  %v5002 = vunpack.c.l.bf16 %v4541
  %v5003 = vunpack.c.h.bf16 %v4541
  %v5004 = vunpack.c.l.bf16 %v4542
  %v5005 = vunpack.c.h.bf16 %v4542
  %v5006 = vunpack.c.l.bf16 %v4543
  %v5007 = vunpack.c.h.bf16 %v4543
  %v5008 = vunpack.c.l.bf16 %v4544
  %v5009 = vunpack.c.h.bf16 %v4544
  %v5010 = vunpack.c.l.bf16 %v4545
  %v5011 = vunpack.c.h.bf16 %v4545
  %v5012 = vunpack.c.l.bf16 %v4546
  %v5013 = vunpack.c.h.bf16 %v4546
  %v5014 = vunpack.c.l.bf16 %v4547
  %v5015 = vunpack.c.h.bf16 %v4547
  %v5016 = vunpack.c.l.bf16 %v4548
  %v5017 = vunpack.c.h.bf16 %v4548
  %v5018 = vunpack.c.l.bf16 %v4549
  %v5019 = vunpack.c.h.bf16 %v4549
  %v5020 = vunpack.c.l.bf16 %v4550
  %v5021 = vunpack.c.h.bf16 %v4550
  %v5022 = vunpack.c.l.bf16 %v4551
  %v5023 = vunpack.c.h.bf16 %v4551
  %v5024 = vunpack.c.l.bf16 %v4552
  %v5025 = vunpack.c.h.bf16 %v4552
  %v5026 = vunpack.c.l.bf16 %v4553
  %v5027 = vunpack.c.h.bf16 %v4553
  %v5028 = vunpack.c.l.bf16 %v4554
  %v5029 = vunpack.c.h.bf16 %v4554
  %v5030 = vunpack.c.l.bf16 %v4555
  %v5031 = vunpack.c.h.bf16 %v4555
  %v5032 = vunpack.c.l.bf16 %v4556
  %v5033 = vunpack.c.h.bf16 %v4556
  %v5034 = vunpack.c.l.bf16 %v4557
  %v5035 = vunpack.c.h.bf16 %v4557
  %v5036 = vunpack.c.l.bf16 %v4558
  %v5037 = vunpack.c.h.bf16 %v4558
  %v5038 = vunpack.c.l.bf16 %v4559
  %v5039 = vunpack.c.h.bf16 %v4559
  %v5040 = vunpack.c.l.bf16 %v4560
  %v5041 = vunpack.c.h.bf16 %v4560
  %v5042 = vunpack.c.l.bf16 %v4561
  %v5043 = vunpack.c.h.bf16 %v4561
  %v5044 = vunpack.c.l.bf16 %v4562
  %v5045 = vunpack.c.h.bf16 %v4562
  %v5046 = vunpack.c.l.bf16 %v4563
  %v5047 = vunpack.c.h.bf16 %v4563
  %v5048 = vunpack.c.l.bf16 %v4564
  %v5049 = vunpack.c.h.bf16 %v4564
  %v5050 = vunpack.c.l.bf16 %v4565
  %v5051 = vunpack.c.h.bf16 %v4565
  %v5052 = vunpack.c.l.bf16 %v4566
  %v5053 = vunpack.c.h.bf16 %v4566
  %v5054 = vunpack.c.l.bf16 %v4567
  %v5055 = vunpack.c.h.bf16 %v4567
  %v5056 = vunpack.c.l.bf16 %v4568
  %v5057 = vunpack.c.h.bf16 %v4568
  %v5058 = vunpack.c.l.bf16 %v4569
  %v5059 = vunpack.c.h.bf16 %v4569
  %v5060 = vunpack.c.l.bf16 %v4570
  %v5061 = vunpack.c.h.bf16 %v4570
  %v5062 = vunpack.c.l.bf16 %v4571
  %v5063 = vunpack.c.h.bf16 %v4571
  %v5064 = vunpack.c.l.bf16 %v4572
  %v5065 = vunpack.c.h.bf16 %v4572
  %v5066 = vunpack.c.l.bf16 %v4573
  %v5067 = vunpack.c.h.bf16 %v4573
  %v5068 = vunpack.c.l.bf16 %v4574
  %v5069 = vunpack.c.h.bf16 %v4574
  %v5070 = vunpack.c.l.bf16 %v4575
  %v5071 = vunpack.c.h.bf16 %v4575
  %v5072 = vunpack.c.l.bf16 %v4576
  %v5073 = vunpack.c.h.bf16 %v4576
  %v5074 = vunpack.c.l.bf16 %v4577
  %v5075 = vunpack.c.h.bf16 %v4577
  %v5076 = vunpack.c.l.bf16 %v4578
  %v5077 = vunpack.c.h.bf16 %v4578
  %v5078 = vunpack.c.l.bf16 %v4579
  %v5079 = vunpack.c.h.bf16 %v4579
  %v5080 = vunpack.c.l.bf16 %v4580
  %v5081 = vunpack.c.h.bf16 %v4580
  %v5082 = vunpack.c.l.bf16 %v4581
  %v5083 = vunpack.c.h.bf16 %v4581
  %v5084 = vunpack.c.l.bf16 %v4582
  %v5085 = vunpack.c.h.bf16 %v4582
  %v5086 = vunpack.c.l.bf16 %v4583
  %v5087 = vunpack.c.h.bf16 %v4583
  %v5088 = vunpack.c.l.bf16 %v4584
  %v5089 = vunpack.c.h.bf16 %v4584
  %v5090 = vunpack.c.l.bf16 %v4585
  %v5091 = vunpack.c.h.bf16 %v4585
  %v5092 = vunpack.c.l.bf16 %v4586
  %v5093 = vunpack.c.h.bf16 %v4586
  %v5094 = vunpack.c.l.bf16 %v4587
  %v5095 = vunpack.c.h.bf16 %v4587
  %v5096 = vunpack.c.l.bf16 %v4588
  %v5097 = vunpack.c.h.bf16 %v4588
  %v5098 = vunpack.c.l.bf16 %v4589
  %v5099 = vunpack.c.h.bf16 %v4589
  %v5100 = vunpack.c.l.bf16 %v4590
  %v5101 = vunpack.c.h.bf16 %v4590
  %v5102 = vunpack.c.l.bf16 %v4591
  %v5103 = vunpack.c.h.bf16 %v4591
  %v5104 = vld [vmem:[%s6] sm:$0xff]
  %v5105 = vld [vmem:[%s6 + $0x8] sm:$0xff]
  %v5106 = vld [vmem:[%s6 + $0x10] sm:$0xff]
  %v5107 = vld [vmem:[%s6 + $0x18] sm:$0xff]
  %v5112 = vlaneseq
  %v5113 = vshrl.u32 %v5112, 7
  %v5114 = vsub.s32 0, %v5113
  %v5115 = vrot.slane %v5104, %v5114
  %v5116 = vlaneseq
  %v5117 = vshrl.u32 %v5116, 7
  %v5118 = vsub.s32 1, %v5117
  %v5119 = vrot.slane %v5104, %v5118
  %v5120 = vlaneseq
  %v5121 = vshrl.u32 %v5120, 7
  %v5122 = vsub.s32 2, %v5121
  %v5123 = vrot.slane %v5104, %v5122
  %v5124 = vlaneseq
  %v5125 = vshrl.u32 %v5124, 7
  %v5126 = vsub.s32 3, %v5125
  %v5127 = vrot.slane %v5104, %v5126
  %v5128 = vlaneseq
  %v5129 = vshrl.u32 %v5128, 7
  %v5130 = vsub.s32 4, %v5129
  %v5131 = vrot.slane %v5104, %v5130
  %v5132 = vlaneseq
  %v5133 = vshrl.u32 %v5132, 7
  %v5134 = vsub.s32 5, %v5133
  %v5135 = vrot.slane %v5104, %v5134
  %v5136 = vlaneseq
  %v5137 = vshrl.u32 %v5136, 7
  %v5138 = vsub.s32 6, %v5137
  %v5139 = vrot.slane %v5104, %v5138
  %v5140 = vlaneseq
  %v5141 = vshrl.u32 %v5140, 7
  %v5142 = vsub.s32 7, %v5141
  %v5143 = vrot.slane %v5104, %v5142
  %v5144 = vlaneseq
  %v5145 = vshrl.u32 %v5144, 7
  %v5146 = vsub.s32 0, %v5145
  %v5147 = vrot.slane %v5105, %v5146
  %v5148 = vlaneseq
  %v5149 = vshrl.u32 %v5148, 7
  %v5150 = vsub.s32 1, %v5149
  %v5151 = vrot.slane %v5105, %v5150
  %v5152 = vlaneseq
  %v5153 = vshrl.u32 %v5152, 7
  %v5154 = vsub.s32 2, %v5153
  %v5155 = vrot.slane %v5105, %v5154
  %v5156 = vlaneseq
  %v5157 = vshrl.u32 %v5156, 7
  %v5158 = vsub.s32 3, %v5157
  %v5159 = vrot.slane %v5105, %v5158
  %v5160 = vlaneseq
  %v5161 = vshrl.u32 %v5160, 7
  %v5162 = vsub.s32 4, %v5161
  %v5163 = vrot.slane %v5105, %v5162
  %v5164 = vlaneseq
  %v5165 = vshrl.u32 %v5164, 7
  %v5166 = vsub.s32 5, %v5165
  %v5167 = vrot.slane %v5105, %v5166
  %v5168 = vlaneseq
  %v5169 = vshrl.u32 %v5168, 7
  %v5170 = vsub.s32 6, %v5169
  %v5171 = vrot.slane %v5105, %v5170
  %v5172 = vlaneseq
  %v5173 = vshrl.u32 %v5172, 7
  %v5174 = vsub.s32 7, %v5173
  %v5175 = vrot.slane %v5105, %v5174
  %v5176 = vlaneseq
  %v5177 = vshrl.u32 %v5176, 7
  %v5178 = vsub.s32 0, %v5177
  %v5179 = vrot.slane %v5106, %v5178
  %v5180 = vlaneseq
  %v5181 = vshrl.u32 %v5180, 7
  %v5182 = vsub.s32 1, %v5181
  %v5183 = vrot.slane %v5106, %v5182
  %v5184 = vlaneseq
  %v5185 = vshrl.u32 %v5184, 7
  %v5186 = vsub.s32 2, %v5185
  %v5187 = vrot.slane %v5106, %v5186
  %v5188 = vlaneseq
  %v5189 = vshrl.u32 %v5188, 7
  %v5190 = vsub.s32 3, %v5189
  %v5191 = vrot.slane %v5106, %v5190
  %v5192 = vlaneseq
  %v5193 = vshrl.u32 %v5192, 7
  %v5194 = vsub.s32 4, %v5193
  %v5195 = vrot.slane %v5106, %v5194
  %v5196 = vlaneseq
  %v5197 = vshrl.u32 %v5196, 7
  %v5198 = vsub.s32 5, %v5197
  %v5199 = vrot.slane %v5106, %v5198
  %v5200 = vlaneseq
  %v5201 = vshrl.u32 %v5200, 7
  %v5202 = vsub.s32 6, %v5201
  %v5203 = vrot.slane %v5106, %v5202
  %v5204 = vlaneseq
  %v5205 = vshrl.u32 %v5204, 7
  %v5206 = vsub.s32 7, %v5205
  %v5207 = vrot.slane %v5106, %v5206
  %v5208 = vlaneseq
  %v5209 = vshrl.u32 %v5208, 7
  %v5210 = vsub.s32 0, %v5209
  %v5211 = vrot.slane %v5107, %v5210
  %v5212 = vlaneseq
  %v5213 = vshrl.u32 %v5212, 7
  %v5214 = vsub.s32 1, %v5213
  %v5215 = vrot.slane %v5107, %v5214
  %v5216 = vlaneseq
  %v5217 = vshrl.u32 %v5216, 7
  %v5218 = vsub.s32 2, %v5217
  %v5219 = vrot.slane %v5107, %v5218
  %v5220 = vlaneseq
  %v5221 = vshrl.u32 %v5220, 7
  %v5222 = vsub.s32 3, %v5221
  %v5223 = vrot.slane %v5107, %v5222
  %v5224 = vlaneseq
  %v5225 = vshrl.u32 %v5224, 7
  %v5226 = vsub.s32 4, %v5225
  %v5227 = vrot.slane %v5107, %v5226
  %v5228 = vlaneseq
  %v5229 = vshrl.u32 %v5228, 7
  %v5230 = vsub.s32 5, %v5229
  %v5231 = vrot.slane %v5107, %v5230
  %v5232 = vlaneseq
  %v5233 = vshrl.u32 %v5232, 7
  %v5234 = vsub.s32 6, %v5233
  %v5235 = vrot.slane %v5107, %v5234
  %v5236 = vlaneseq
  %v5237 = vshrl.u32 %v5236, 7
  %v5238 = vsub.s32 7, %v5237
  %v5239 = vrot.slane %v5107, %v5238
  %vm5274 = vcmask 1041409
  %v5275 = vsel %vm5274, %v4335, %v4334
  %5277 = vmatprep.subr.mxu0 %v5073
  %5278 = vmatpush1.msra.mxu0 %v5072
  %5279 = vmatprep.subr.mxu0 %v5041
  %5280 = vmatpush1.msra.mxu0 %v5040
  %5281 = vmatprep.subr.mxu0 %v5009
  %5282 = vmatpush1.msra.mxu0 %v5008
  %5283 = vmatprep.subr.mxu0 %v4977
  %5284 = vmatpush1.msra.mxu0 %v4976
  %5285 = vmatprep.subr.mxu0 %v4945
  %5286 = vmatpush1.msra.mxu0 %v4944
  %5287 = vmatprep.subr.mxu0 %v4913
  %5288 = vmatpush1.msra.mxu0 %v4912
  %5289 = vmatprep.subr.mxu0 %v4881
  %5290 = vmatpush1.msra.mxu0 %v4880
  %5291 = vmatprep.subr.mxu0 %v4849
  %5292 = vmatpush1.msra.mxu0 %v4848
  %5293 = vmatprep.subr.mxu0 %v4817
  %5294 = vmatpush1.msra.mxu0 %v4816
  %5295 = vmatprep.subr.mxu0 %v4785
  %5296 = vmatpush1.msra.mxu0 %v4784
  %5297 = vmatprep.subr.mxu0 %v4753
  %5298 = vmatpush1.msra.mxu0 %v4752
  %5299 = vmatprep.subr.mxu0 %v4721
  %5300 = vmatpush1.msra.mxu0 %v4720
  %5301 = vmatprep.subr.mxu0 %v4689
  %5302 = vmatpush1.msra.mxu0 %v4688
  %5303 = vmatprep.subr.mxu0 %v4657
  %5304 = vmatpush1.msra.mxu0 %v4656
  %5305 = vmatprep.subr.mxu0 %v4625
  %5306 = vmatpush1.msra.mxu0 %v4624
  %5307 = vmatprep.subr.mxu0 %v4593
  %5308 = vmatpush1.msra.mxu0 %v4592
  %5309 = vmatprep.subr.mxu0 0.0
  %5310 = vmatpush2.msra.mxu0 0.0
  %5311 = vmatprep.subr.mxu0 0.0
  %5312 = vmatpush2.msra.mxu0 0.0
  %5313 = vmatprep.subr.mxu0 0.0
  %5314 = vmatpush2.msra.mxu0 0.0
  %5315 = vmatprep.subr.mxu0 0.0
  %5316 = vmatpush2.msra.mxu0 0.0
  %5317 = vmatprep.subr.mxu0 0.0
  %5318 = vmatpush2.msra.mxu0 0.0
  %5319 = vmatprep.subr.mxu0 0.0
  %5320 = vmatpush2.msra.mxu0 0.0
  %5321 = vmatprep.subr.mxu0 0.0
  %5322 = vmatpush2.msra.mxu0 0.0
  %5323 = vmatprep.subr.mxu0 0.0
  %5324 = vmatpush2.msra.mxu0 0.0
  %5325 = vmatprep.subr.mxu0 0.0
  %5326 = vmatpush2.msra.mxu0 0.0
  %5327 = vmatprep.subr.mxu0 0.0
  %5328 = vmatpush2.msra.mxu0 0.0
  %5329 = vmatprep.subr.mxu0 0.0
  %5330 = vmatpush2.msra.mxu0 0.0
  %5331 = vmatprep.subr.mxu0 0.0
  %5332 = vmatpush2.msra.mxu0 0.0
  %5333 = vmatprep.subr.mxu0 0.0
  %5334 = vmatpush2.msra.mxu0 0.0
  %5335 = vmatprep.subr.mxu0 0.0
  %5336 = vmatpush2.msra.mxu0 0.0
  %5337 = vmatprep.subr.mxu0 0.0
  %5338 = vmatpush2.msra.mxu0 0.0
  %5339 = vmatprep.subr.mxu0 0.0
  %5340 = vmatpush2.msra.mxu0 0.0
  %5341 = vmatprep.mubr.f32.mxu0 0.0
  %5342 = vmatmul.mubr.f32.gmra.mxu0 %v5275
  %v5343 = vpop.f32.mrf.mxu0
  %v5344 = vadd.f32 %v5115, %v5343
  %v5345 = vpop.f32.mrf.mxu0
  %v5346 = vadd.f32 %v5119, %v5345
  %5347 = vdwg.mxu0
  %5348 = vmatprep.subr.mxu0 %v5075
  %5349 = vmatpush1.msra.mxu0 %v5074
  %5350 = vmatprep.subr.mxu0 %v5043
  %5351 = vmatpush1.msra.mxu0 %v5042
  %5352 = vmatprep.subr.mxu0 %v5011
  %5353 = vmatpush1.msra.mxu0 %v5010
  %5354 = vmatprep.subr.mxu0 %v4979
  %5355 = vmatpush1.msra.mxu0 %v4978
  %5356 = vmatprep.subr.mxu0 %v4947
  %5357 = vmatpush1.msra.mxu0 %v4946
  %5358 = vmatprep.subr.mxu0 %v4915
  %5359 = vmatpush1.msra.mxu0 %v4914
  %5360 = vmatprep.subr.mxu0 %v4883
  %5361 = vmatpush1.msra.mxu0 %v4882
  %5362 = vmatprep.subr.mxu0 %v4851
  %5363 = vmatpush1.msra.mxu0 %v4850
  %5364 = vmatprep.subr.mxu0 %v4819
  %5365 = vmatpush1.msra.mxu0 %v4818
  %5366 = vmatprep.subr.mxu0 %v4787
  %5367 = vmatpush1.msra.mxu0 %v4786
  %5368 = vmatprep.subr.mxu0 %v4755
  %5369 = vmatpush1.msra.mxu0 %v4754
  %5370 = vmatprep.subr.mxu0 %v4723
  %5371 = vmatpush1.msra.mxu0 %v4722
  %5372 = vmatprep.subr.mxu0 %v4691
  %5373 = vmatpush1.msra.mxu0 %v4690
  %5374 = vmatprep.subr.mxu0 %v4659
  %5375 = vmatpush1.msra.mxu0 %v4658
  %5376 = vmatprep.subr.mxu0 %v4627
  %5377 = vmatpush1.msra.mxu0 %v4626
  %5378 = vmatprep.subr.mxu0 %v4595
  %5379 = vmatpush1.msra.mxu0 %v4594
  %5380 = vmatprep.subr.mxu0 0.0
  %5381 = vmatpush2.msra.mxu0 0.0
  %5382 = vmatprep.subr.mxu0 0.0
  %5383 = vmatpush2.msra.mxu0 0.0
  %5384 = vmatprep.subr.mxu0 0.0
  %5385 = vmatpush2.msra.mxu0 0.0
  %5386 = vmatprep.subr.mxu0 0.0
  %5387 = vmatpush2.msra.mxu0 0.0
  %5388 = vmatprep.subr.mxu0 0.0
  %5389 = vmatpush2.msra.mxu0 0.0
  %5390 = vmatprep.subr.mxu0 0.0
  %5391 = vmatpush2.msra.mxu0 0.0
  %5392 = vmatprep.subr.mxu0 0.0
  %5393 = vmatpush2.msra.mxu0 0.0
  %5394 = vmatprep.subr.mxu0 0.0
  %5395 = vmatpush2.msra.mxu0 0.0
  %5396 = vmatprep.subr.mxu0 0.0
  %5397 = vmatpush2.msra.mxu0 0.0
  %5398 = vmatprep.subr.mxu0 0.0
  %5399 = vmatpush2.msra.mxu0 0.0
  %5400 = vmatprep.subr.mxu0 0.0
  %5401 = vmatpush2.msra.mxu0 0.0
  %5402 = vmatprep.subr.mxu0 0.0
  %5403 = vmatpush2.msra.mxu0 0.0
  %5404 = vmatprep.subr.mxu0 0.0
  %5405 = vmatpush2.msra.mxu0 0.0
  %5406 = vmatprep.subr.mxu0 0.0
  %5407 = vmatpush2.msra.mxu0 0.0
  %5408 = vmatprep.subr.mxu0 0.0
  %5409 = vmatpush2.msra.mxu0 0.0
  %5410 = vmatprep.subr.mxu0 0.0
  %5411 = vmatpush2.msra.mxu0 0.0
  %5412 = vmatprep.mubr.f32.mxu0 0.0
  %5413 = vmatmul.mubr.f32.gmra.mxu0 %v5275
  %v5414 = vpop.f32.mrf.mxu0
  %v5415 = vadd.f32 %v5123, %v5414
  %v5416 = vpop.f32.mrf.mxu0
  %v5417 = vadd.f32 %v5127, %v5416
  %5418 = vdwg.mxu0
  %5419 = vmatprep.subr.mxu0 %v5077
  %5420 = vmatpush1.msra.mxu0 %v5076
  %5421 = vmatprep.subr.mxu0 %v5045
  %5422 = vmatpush1.msra.mxu0 %v5044
  %5423 = vmatprep.subr.mxu0 %v5013
  %5424 = vmatpush1.msra.mxu0 %v5012
  %5425 = vmatprep.subr.mxu0 %v4981
  %5426 = vmatpush1.msra.mxu0 %v4980
  %5427 = vmatprep.subr.mxu0 %v4949
  %5428 = vmatpush1.msra.mxu0 %v4948
  %5429 = vmatprep.subr.mxu0 %v4917
  %5430 = vmatpush1.msra.mxu0 %v4916
  %5431 = vmatprep.subr.mxu0 %v4885
  %5432 = vmatpush1.msra.mxu0 %v4884
  %5433 = vmatprep.subr.mxu0 %v4853
  %5434 = vmatpush1.msra.mxu0 %v4852
  %5435 = vmatprep.subr.mxu0 %v4821
  %5436 = vmatpush1.msra.mxu0 %v4820
  %5437 = vmatprep.subr.mxu0 %v4789
  %5438 = vmatpush1.msra.mxu0 %v4788
  %5439 = vmatprep.subr.mxu0 %v4757
  %5440 = vmatpush1.msra.mxu0 %v4756
  %5441 = vmatprep.subr.mxu0 %v4725
  %5442 = vmatpush1.msra.mxu0 %v4724
  %5443 = vmatprep.subr.mxu0 %v4693
  %5444 = vmatpush1.msra.mxu0 %v4692
  %5445 = vmatprep.subr.mxu0 %v4661
  %5446 = vmatpush1.msra.mxu0 %v4660
  %5447 = vmatprep.subr.mxu0 %v4629
  %5448 = vmatpush1.msra.mxu0 %v4628
  %5449 = vmatprep.subr.mxu0 %v4597
  %5450 = vmatpush1.msra.mxu0 %v4596
  %5451 = vmatprep.subr.mxu0 0.0
  %5452 = vmatpush2.msra.mxu0 0.0
  %5453 = vmatprep.subr.mxu0 0.0
  %5454 = vmatpush2.msra.mxu0 0.0
  %5455 = vmatprep.subr.mxu0 0.0
  %5456 = vmatpush2.msra.mxu0 0.0
  %5457 = vmatprep.subr.mxu0 0.0
  %5458 = vmatpush2.msra.mxu0 0.0
  %5459 = vmatprep.subr.mxu0 0.0
  %5460 = vmatpush2.msra.mxu0 0.0
  %5461 = vmatprep.subr.mxu0 0.0
  %5462 = vmatpush2.msra.mxu0 0.0
  %5463 = vmatprep.subr.mxu0 0.0
  %5464 = vmatpush2.msra.mxu0 0.0
  %5465 = vmatprep.subr.mxu0 0.0
  %5466 = vmatpush2.msra.mxu0 0.0
  %5467 = vmatprep.subr.mxu0 0.0
  %5468 = vmatpush2.msra.mxu0 0.0
  %5469 = vmatprep.subr.mxu0 0.0
  %5470 = vmatpush2.msra.mxu0 0.0
  %5471 = vmatprep.subr.mxu0 0.0
  %5472 = vmatpush2.msra.mxu0 0.0
  %5473 = vmatprep.subr.mxu0 0.0
  %5474 = vmatpush2.msra.mxu0 0.0
  %5475 = vmatprep.subr.mxu0 0.0
  %5476 = vmatpush2.msra.mxu0 0.0
  %5477 = vmatprep.subr.mxu0 0.0
  %5478 = vmatpush2.msra.mxu0 0.0
  %5479 = vmatprep.subr.mxu0 0.0
  %5480 = vmatpush2.msra.mxu0 0.0
  %5481 = vmatprep.subr.mxu0 0.0
  %5482 = vmatpush2.msra.mxu0 0.0
  %5483 = vmatprep.mubr.f32.mxu0 0.0
  %5484 = vmatmul.mubr.f32.gmra.mxu0 %v5275
  %v5485 = vpop.f32.mrf.mxu0
  %v5486 = vadd.f32 %v5131, %v5485
  %v5487 = vpop.f32.mrf.mxu0
  %v5488 = vadd.f32 %v5135, %v5487
  %5489 = vdwg.mxu0
  %5490 = vmatprep.subr.mxu0 %v5079
  %5491 = vmatpush1.msra.mxu0 %v5078
  %5492 = vmatprep.subr.mxu0 %v5047
  %5493 = vmatpush1.msra.mxu0 %v5046
  %5494 = vmatprep.subr.mxu0 %v5015
  %5495 = vmatpush1.msra.mxu0 %v5014
  %5496 = vmatprep.subr.mxu0 %v4983
  %5497 = vmatpush1.msra.mxu0 %v4982
  %5498 = vmatprep.subr.mxu0 %v4951
  %5499 = vmatpush1.msra.mxu0 %v4950
  %5500 = vmatprep.subr.mxu0 %v4919
  %5501 = vmatpush1.msra.mxu0 %v4918
  %5502 = vmatprep.subr.mxu0 %v4887
  %5503 = vmatpush1.msra.mxu0 %v4886
  %5504 = vmatprep.subr.mxu0 %v4855
  %5505 = vmatpush1.msra.mxu0 %v4854
  %5506 = vmatprep.subr.mxu0 %v4823
  %5507 = vmatpush1.msra.mxu0 %v4822
  %5508 = vmatprep.subr.mxu0 %v4791
  %5509 = vmatpush1.msra.mxu0 %v4790
  %5510 = vmatprep.subr.mxu0 %v4759
  %5511 = vmatpush1.msra.mxu0 %v4758
  %5512 = vmatprep.subr.mxu0 %v4727
  %5513 = vmatpush1.msra.mxu0 %v4726
  %5514 = vmatprep.subr.mxu0 %v4695
  %5515 = vmatpush1.msra.mxu0 %v4694
  %5516 = vmatprep.subr.mxu0 %v4663
  %5517 = vmatpush1.msra.mxu0 %v4662
  %5518 = vmatprep.subr.mxu0 %v4631
  %5519 = vmatpush1.msra.mxu0 %v4630
  %5520 = vmatprep.subr.mxu0 %v4599
  %5521 = vmatpush1.msra.mxu0 %v4598
  %5522 = vmatprep.subr.mxu0 0.0
  %5523 = vmatpush2.msra.mxu0 0.0
  %5524 = vmatprep.subr.mxu0 0.0
  %5525 = vmatpush2.msra.mxu0 0.0
  %5526 = vmatprep.subr.mxu0 0.0
  %5527 = vmatpush2.msra.mxu0 0.0
  %5528 = vmatprep.subr.mxu0 0.0
  %5529 = vmatpush2.msra.mxu0 0.0
  %5530 = vmatprep.subr.mxu0 0.0
  %5531 = vmatpush2.msra.mxu0 0.0
  %5532 = vmatprep.subr.mxu0 0.0
  %5533 = vmatpush2.msra.mxu0 0.0
  %5534 = vmatprep.subr.mxu0 0.0
  %5535 = vmatpush2.msra.mxu0 0.0
  %5536 = vmatprep.subr.mxu0 0.0
  %5537 = vmatpush2.msra.mxu0 0.0
  %5538 = vmatprep.subr.mxu0 0.0
  %5539 = vmatpush2.msra.mxu0 0.0
  %5540 = vmatprep.subr.mxu0 0.0
  %5541 = vmatpush2.msra.mxu0 0.0
  %5542 = vmatprep.subr.mxu0 0.0
  %5543 = vmatpush2.msra.mxu0 0.0
  %5544 = vmatprep.subr.mxu0 0.0
  %5545 = vmatpush2.msra.mxu0 0.0
  %5546 = vmatprep.subr.mxu0 0.0
  %5547 = vmatpush2.msra.mxu0 0.0
  %5548 = vmatprep.subr.mxu0 0.0
  %5549 = vmatpush2.msra.mxu0 0.0
  %5550 = vmatprep.subr.mxu0 0.0
  %5551 = vmatpush2.msra.mxu0 0.0
  %5552 = vmatprep.subr.mxu0 0.0
  %5553 = vmatpush2.msra.mxu0 0.0
  %5554 = vmatprep.mubr.f32.mxu0 0.0
  %5555 = vmatmul.mubr.f32.gmra.mxu0 %v5275
  %v5556 = vpop.f32.mrf.mxu0
  %v5557 = vadd.f32 %v5139, %v5556
  %v5558 = vpop.f32.mrf.mxu0
  %v5559 = vadd.f32 %v5143, %v5558
  %5560 = vdwg.mxu0
  %5561 = vmatprep.subr.mxu0 %v5081
  %5562 = vmatpush1.msra.mxu0 %v5080
  %5563 = vmatprep.subr.mxu0 %v5049
  %5564 = vmatpush1.msra.mxu0 %v5048
  %5565 = vmatprep.subr.mxu0 %v5017
  %5566 = vmatpush1.msra.mxu0 %v5016
  %5567 = vmatprep.subr.mxu0 %v4985
  %5568 = vmatpush1.msra.mxu0 %v4984
  %5569 = vmatprep.subr.mxu0 %v4953
  %5570 = vmatpush1.msra.mxu0 %v4952
  %5571 = vmatprep.subr.mxu0 %v4921
  %5572 = vmatpush1.msra.mxu0 %v4920
  %5573 = vmatprep.subr.mxu0 %v4889
  %5574 = vmatpush1.msra.mxu0 %v4888
  %5575 = vmatprep.subr.mxu0 %v4857
  %5576 = vmatpush1.msra.mxu0 %v4856
  %5577 = vmatprep.subr.mxu0 %v4825
  %5578 = vmatpush1.msra.mxu0 %v4824
  %5579 = vmatprep.subr.mxu0 %v4793
  %5580 = vmatpush1.msra.mxu0 %v4792
  %5581 = vmatprep.subr.mxu0 %v4761
  %5582 = vmatpush1.msra.mxu0 %v4760
  %5583 = vmatprep.subr.mxu0 %v4729
  %5584 = vmatpush1.msra.mxu0 %v4728
  %5585 = vmatprep.subr.mxu0 %v4697
  %5586 = vmatpush1.msra.mxu0 %v4696
  %5587 = vmatprep.subr.mxu0 %v4665
  %5588 = vmatpush1.msra.mxu0 %v4664
  %5589 = vmatprep.subr.mxu0 %v4633
  %5590 = vmatpush1.msra.mxu0 %v4632
  %5591 = vmatprep.subr.mxu0 %v4601
  %5592 = vmatpush1.msra.mxu0 %v4600
  %5593 = vmatprep.subr.mxu0 0.0
  %5594 = vmatpush2.msra.mxu0 0.0
  %5595 = vmatprep.subr.mxu0 0.0
  %5596 = vmatpush2.msra.mxu0 0.0
  %5597 = vmatprep.subr.mxu0 0.0
  %5598 = vmatpush2.msra.mxu0 0.0
  %5599 = vmatprep.subr.mxu0 0.0
  %5600 = vmatpush2.msra.mxu0 0.0
  %5601 = vmatprep.subr.mxu0 0.0
  %5602 = vmatpush2.msra.mxu0 0.0
  %5603 = vmatprep.subr.mxu0 0.0
  %5604 = vmatpush2.msra.mxu0 0.0
  %5605 = vmatprep.subr.mxu0 0.0
  %5606 = vmatpush2.msra.mxu0 0.0
  %5607 = vmatprep.subr.mxu0 0.0
  %5608 = vmatpush2.msra.mxu0 0.0
  %5609 = vmatprep.subr.mxu0 0.0
  %5610 = vmatpush2.msra.mxu0 0.0
  %5611 = vmatprep.subr.mxu0 0.0
  %5612 = vmatpush2.msra.mxu0 0.0
  %5613 = vmatprep.subr.mxu0 0.0
  %5614 = vmatpush2.msra.mxu0 0.0
  %5615 = vmatprep.subr.mxu0 0.0
  %5616 = vmatpush2.msra.mxu0 0.0
  %5617 = vmatprep.subr.mxu0 0.0
  %5618 = vmatpush2.msra.mxu0 0.0
  %5619 = vmatprep.subr.mxu0 0.0
  %5620 = vmatpush2.msra.mxu0 0.0
  %5621 = vmatprep.subr.mxu0 0.0
  %5622 = vmatpush2.msra.mxu0 0.0
  %5623 = vmatprep.subr.mxu0 0.0
  %5624 = vmatpush2.msra.mxu0 0.0
  %5625 = vmatprep.mubr.f32.mxu0 0.0
  %5626 = vmatmul.mubr.f32.gmra.mxu0 %v5275
  %v5627 = vpop.f32.mrf.mxu0
  %v5628 = vadd.f32 %v5147, %v5627
  %v5629 = vpop.f32.mrf.mxu0
  %v5630 = vadd.f32 %v5151, %v5629
  %5631 = vdwg.mxu0
  %5632 = vmatprep.subr.mxu0 %v5083
  %5633 = vmatpush1.msra.mxu0 %v5082
  %5634 = vmatprep.subr.mxu0 %v5051
  %5635 = vmatpush1.msra.mxu0 %v5050
  %5636 = vmatprep.subr.mxu0 %v5019
  %5637 = vmatpush1.msra.mxu0 %v5018
  %5638 = vmatprep.subr.mxu0 %v4987
  %5639 = vmatpush1.msra.mxu0 %v4986
  %5640 = vmatprep.subr.mxu0 %v4955
  %5641 = vmatpush1.msra.mxu0 %v4954
  %5642 = vmatprep.subr.mxu0 %v4923
  %5643 = vmatpush1.msra.mxu0 %v4922
  %5644 = vmatprep.subr.mxu0 %v4891
  %5645 = vmatpush1.msra.mxu0 %v4890
  %5646 = vmatprep.subr.mxu0 %v4859
  %5647 = vmatpush1.msra.mxu0 %v4858
  %5648 = vmatprep.subr.mxu0 %v4827
  %5649 = vmatpush1.msra.mxu0 %v4826
  %5650 = vmatprep.subr.mxu0 %v4795
  %5651 = vmatpush1.msra.mxu0 %v4794
  %5652 = vmatprep.subr.mxu0 %v4763
  %5653 = vmatpush1.msra.mxu0 %v4762
  %5654 = vmatprep.subr.mxu0 %v4731
  %5655 = vmatpush1.msra.mxu0 %v4730
  %5656 = vmatprep.subr.mxu0 %v4699
  %5657 = vmatpush1.msra.mxu0 %v4698
  %5658 = vmatprep.subr.mxu0 %v4667
  %5659 = vmatpush1.msra.mxu0 %v4666
  %5660 = vmatprep.subr.mxu0 %v4635
  %5661 = vmatpush1.msra.mxu0 %v4634
  %5662 = vmatprep.subr.mxu0 %v4603
  %5663 = vmatpush1.msra.mxu0 %v4602
  %5664 = vmatprep.subr.mxu0 0.0
  %5665 = vmatpush2.msra.mxu0 0.0
  %5666 = vmatprep.subr.mxu0 0.0
  %5667 = vmatpush2.msra.mxu0 0.0
  %5668 = vmatprep.subr.mxu0 0.0
  %5669 = vmatpush2.msra.mxu0 0.0
  %5670 = vmatprep.subr.mxu0 0.0
  %5671 = vmatpush2.msra.mxu0 0.0
  %5672 = vmatprep.subr.mxu0 0.0
  %5673 = vmatpush2.msra.mxu0 0.0
  %5674 = vmatprep.subr.mxu0 0.0
  %5675 = vmatpush2.msra.mxu0 0.0
  %5676 = vmatprep.subr.mxu0 0.0
  %5677 = vmatpush2.msra.mxu0 0.0
  %5678 = vmatprep.subr.mxu0 0.0
  %5679 = vmatpush2.msra.mxu0 0.0
  %5680 = vmatprep.subr.mxu0 0.0
  %5681 = vmatpush2.msra.mxu0 0.0
  %5682 = vmatprep.subr.mxu0 0.0
  %5683 = vmatpush2.msra.mxu0 0.0
  %5684 = vmatprep.subr.mxu0 0.0
  %5685 = vmatpush2.msra.mxu0 0.0
  %5686 = vmatprep.subr.mxu0 0.0
  %5687 = vmatpush2.msra.mxu0 0.0
  %5688 = vmatprep.subr.mxu0 0.0
  %5689 = vmatpush2.msra.mxu0 0.0
  %5690 = vmatprep.subr.mxu0 0.0
  %5691 = vmatpush2.msra.mxu0 0.0
  %5692 = vmatprep.subr.mxu0 0.0
  %5693 = vmatpush2.msra.mxu0 0.0
  %5694 = vmatprep.subr.mxu0 0.0
  %5695 = vmatpush2.msra.mxu0 0.0
  %5696 = vmatprep.mubr.f32.mxu0 0.0
  %5697 = vmatmul.mubr.f32.gmra.mxu0 %v5275
  %v5698 = vpop.f32.mrf.mxu0
  %v5699 = vadd.f32 %v5155, %v5698
  %v5700 = vpop.f32.mrf.mxu0
  %v5701 = vadd.f32 %v5159, %v5700
  %5702 = vdwg.mxu0
  %5703 = vmatprep.subr.mxu0 %v5085
  %5704 = vmatpush1.msra.mxu0 %v5084
  %5705 = vmatprep.subr.mxu0 %v5053
  %5706 = vmatpush1.msra.mxu0 %v5052
  %5707 = vmatprep.subr.mxu0 %v5021
  %5708 = vmatpush1.msra.mxu0 %v5020
  %5709 = vmatprep.subr.mxu0 %v4989
  %5710 = vmatpush1.msra.mxu0 %v4988
  %5711 = vmatprep.subr.mxu0 %v4957
  %5712 = vmatpush1.msra.mxu0 %v4956
  %5713 = vmatprep.subr.mxu0 %v4925
  %5714 = vmatpush1.msra.mxu0 %v4924
  %5715 = vmatprep.subr.mxu0 %v4893
  %5716 = vmatpush1.msra.mxu0 %v4892
  %5717 = vmatprep.subr.mxu0 %v4861
  %5718 = vmatpush1.msra.mxu0 %v4860
  %5719 = vmatprep.subr.mxu0 %v4829
  %5720 = vmatpush1.msra.mxu0 %v4828
  %5721 = vmatprep.subr.mxu0 %v4797
  %5722 = vmatpush1.msra.mxu0 %v4796
  %5723 = vmatprep.subr.mxu0 %v4765
  %5724 = vmatpush1.msra.mxu0 %v4764
  %5725 = vmatprep.subr.mxu0 %v4733
  %5726 = vmatpush1.msra.mxu0 %v4732
  %5727 = vmatprep.subr.mxu0 %v4701
  %5728 = vmatpush1.msra.mxu0 %v4700
  %5729 = vmatprep.subr.mxu0 %v4669
  %5730 = vmatpush1.msra.mxu0 %v4668
  %5731 = vmatprep.subr.mxu0 %v4637
  %5732 = vmatpush1.msra.mxu0 %v4636
  %5733 = vmatprep.subr.mxu0 %v4605
  %5734 = vmatpush1.msra.mxu0 %v4604
  %5735 = vmatprep.subr.mxu0 0.0
  %5736 = vmatpush2.msra.mxu0 0.0
  %5737 = vmatprep.subr.mxu0 0.0
  %5738 = vmatpush2.msra.mxu0 0.0
  %5739 = vmatprep.subr.mxu0 0.0
  %5740 = vmatpush2.msra.mxu0 0.0
  %5741 = vmatprep.subr.mxu0 0.0
  %5742 = vmatpush2.msra.mxu0 0.0
  %5743 = vmatprep.subr.mxu0 0.0
  %5744 = vmatpush2.msra.mxu0 0.0
  %5745 = vmatprep.subr.mxu0 0.0
  %5746 = vmatpush2.msra.mxu0 0.0
  %5747 = vmatprep.subr.mxu0 0.0
  %5748 = vmatpush2.msra.mxu0 0.0
  %5749 = vmatprep.subr.mxu0 0.0
  %5750 = vmatpush2.msra.mxu0 0.0
  %5751 = vmatprep.subr.mxu0 0.0
  %5752 = vmatpush2.msra.mxu0 0.0
  %5753 = vmatprep.subr.mxu0 0.0
  %5754 = vmatpush2.msra.mxu0 0.0
  %5755 = vmatprep.subr.mxu0 0.0
  %5756 = vmatpush2.msra.mxu0 0.0
  %5757 = vmatprep.subr.mxu0 0.0
  %5758 = vmatpush2.msra.mxu0 0.0
  %5759 = vmatprep.subr.mxu0 0.0
  %5760 = vmatpush2.msra.mxu0 0.0
  %5761 = vmatprep.subr.mxu0 0.0
  %5762 = vmatpush2.msra.mxu0 0.0
  %5763 = vmatprep.subr.mxu0 0.0
  %5764 = vmatpush2.msra.mxu0 0.0
  %5765 = vmatprep.subr.mxu0 0.0
  %5766 = vmatpush2.msra.mxu0 0.0
  %5767 = vmatprep.mubr.f32.mxu0 0.0
  %5768 = vmatmul.mubr.f32.gmra.mxu0 %v5275
  %v5769 = vpop.f32.mrf.mxu0
  %v5770 = vadd.f32 %v5163, %v5769
  %v5771 = vpop.f32.mrf.mxu0
  %v5772 = vadd.f32 %v5167, %v5771
  %5773 = vdwg.mxu0
  %5774 = vmatprep.subr.mxu0 %v5087
  %5775 = vmatpush1.msra.mxu0 %v5086
  %5776 = vmatprep.subr.mxu0 %v5055
  %5777 = vmatpush1.msra.mxu0 %v5054
  %5778 = vmatprep.subr.mxu0 %v5023
  %5779 = vmatpush1.msra.mxu0 %v5022
  %5780 = vmatprep.subr.mxu0 %v4991
  %5781 = vmatpush1.msra.mxu0 %v4990
  %5782 = vmatprep.subr.mxu0 %v4959
  %5783 = vmatpush1.msra.mxu0 %v4958
  %5784 = vmatprep.subr.mxu0 %v4927
  %5785 = vmatpush1.msra.mxu0 %v4926
  %5786 = vmatprep.subr.mxu0 %v4895
  %5787 = vmatpush1.msra.mxu0 %v4894
  %5788 = vmatprep.subr.mxu0 %v4863
  %5789 = vmatpush1.msra.mxu0 %v4862
  %5790 = vmatprep.subr.mxu0 %v4831
  %5791 = vmatpush1.msra.mxu0 %v4830
  %5792 = vmatprep.subr.mxu0 %v4799
  %5793 = vmatpush1.msra.mxu0 %v4798
  %5794 = vmatprep.subr.mxu0 %v4767
  %5795 = vmatpush1.msra.mxu0 %v4766
  %5796 = vmatprep.subr.mxu0 %v4735
  %5797 = vmatpush1.msra.mxu0 %v4734
  %5798 = vmatprep.subr.mxu0 %v4703
  %5799 = vmatpush1.msra.mxu0 %v4702
  %5800 = vmatprep.subr.mxu0 %v4671
  %5801 = vmatpush1.msra.mxu0 %v4670
  %5802 = vmatprep.subr.mxu0 %v4639
  %5803 = vmatpush1.msra.mxu0 %v4638
  %5804 = vmatprep.subr.mxu0 %v4607
  %5805 = vmatpush1.msra.mxu0 %v4606
  %5806 = vmatprep.subr.mxu0 0.0
  %5807 = vmatpush2.msra.mxu0 0.0
  %5808 = vmatprep.subr.mxu0 0.0
  %5809 = vmatpush2.msra.mxu0 0.0
  %5810 = vmatprep.subr.mxu0 0.0
  %5811 = vmatpush2.msra.mxu0 0.0
  %5812 = vmatprep.subr.mxu0 0.0
  %5813 = vmatpush2.msra.mxu0 0.0
  %5814 = vmatprep.subr.mxu0 0.0
  %5815 = vmatpush2.msra.mxu0 0.0
  %5816 = vmatprep.subr.mxu0 0.0
  %5817 = vmatpush2.msra.mxu0 0.0
  %5818 = vmatprep.subr.mxu0 0.0
  %5819 = vmatpush2.msra.mxu0 0.0
  %5820 = vmatprep.subr.mxu0 0.0
  %5821 = vmatpush2.msra.mxu0 0.0
  %5822 = vmatprep.subr.mxu0 0.0
  %5823 = vmatpush2.msra.mxu0 0.0
  %5824 = vmatprep.subr.mxu0 0.0
  %5825 = vmatpush2.msra.mxu0 0.0
  %5826 = vmatprep.subr.mxu0 0.0
  %5827 = vmatpush2.msra.mxu0 0.0
  %5828 = vmatprep.subr.mxu0 0.0
  %5829 = vmatpush2.msra.mxu0 0.0
  %5830 = vmatprep.subr.mxu0 0.0
  %5831 = vmatpush2.msra.mxu0 0.0
  %5832 = vmatprep.subr.mxu0 0.0
  %5833 = vmatpush2.msra.mxu0 0.0
  %5834 = vmatprep.subr.mxu0 0.0
  %5835 = vmatpush2.msra.mxu0 0.0
  %5836 = vmatprep.subr.mxu0 0.0
  %5837 = vmatpush2.msra.mxu0 0.0
  %5838 = vmatprep.mubr.f32.mxu0 0.0
  %5839 = vmatmul.mubr.f32.gmra.mxu0 %v5275
  %v5840 = vpop.f32.mrf.mxu0
  %v5841 = vadd.f32 %v5171, %v5840
  %v5842 = vpop.f32.mrf.mxu0
  %v5843 = vadd.f32 %v5175, %v5842
  %5844 = vdwg.mxu0
  %5845 = vmatprep.subr.mxu0 %v5089
  %5846 = vmatpush1.msra.mxu0 %v5088
  %5847 = vmatprep.subr.mxu0 %v5057
  %5848 = vmatpush1.msra.mxu0 %v5056
  %5849 = vmatprep.subr.mxu0 %v5025
  %5850 = vmatpush1.msra.mxu0 %v5024
  %5851 = vmatprep.subr.mxu0 %v4993
  %5852 = vmatpush1.msra.mxu0 %v4992
  %5853 = vmatprep.subr.mxu0 %v4961
  %5854 = vmatpush1.msra.mxu0 %v4960
  %5855 = vmatprep.subr.mxu0 %v4929
  %5856 = vmatpush1.msra.mxu0 %v4928
  %5857 = vmatprep.subr.mxu0 %v4897
  %5858 = vmatpush1.msra.mxu0 %v4896
  %5859 = vmatprep.subr.mxu0 %v4865
  %5860 = vmatpush1.msra.mxu0 %v4864
  %5861 = vmatprep.subr.mxu0 %v4833
  %5862 = vmatpush1.msra.mxu0 %v4832
  %5863 = vmatprep.subr.mxu0 %v4801
  %5864 = vmatpush1.msra.mxu0 %v4800
  %5865 = vmatprep.subr.mxu0 %v4769
  %5866 = vmatpush1.msra.mxu0 %v4768
  %5867 = vmatprep.subr.mxu0 %v4737
  %5868 = vmatpush1.msra.mxu0 %v4736
  %5869 = vmatprep.subr.mxu0 %v4705
  %5870 = vmatpush1.msra.mxu0 %v4704
  %5871 = vmatprep.subr.mxu0 %v4673
  %5872 = vmatpush1.msra.mxu0 %v4672
  %5873 = vmatprep.subr.mxu0 %v4641
  %5874 = vmatpush1.msra.mxu0 %v4640
  %5875 = vmatprep.subr.mxu0 %v4609
  %5876 = vmatpush1.msra.mxu0 %v4608
  %5877 = vmatprep.subr.mxu0 0.0
  %5878 = vmatpush2.msra.mxu0 0.0
  %5879 = vmatprep.subr.mxu0 0.0
  %5880 = vmatpush2.msra.mxu0 0.0
  %5881 = vmatprep.subr.mxu0 0.0
  %5882 = vmatpush2.msra.mxu0 0.0
  %5883 = vmatprep.subr.mxu0 0.0
  %5884 = vmatpush2.msra.mxu0 0.0
  %5885 = vmatprep.subr.mxu0 0.0
  %5886 = vmatpush2.msra.mxu0 0.0
  %5887 = vmatprep.subr.mxu0 0.0
  %5888 = vmatpush2.msra.mxu0 0.0
  %5889 = vmatprep.subr.mxu0 0.0
  %5890 = vmatpush2.msra.mxu0 0.0
  %5891 = vmatprep.subr.mxu0 0.0
  %5892 = vmatpush2.msra.mxu0 0.0
  %5893 = vmatprep.subr.mxu0 0.0
  %5894 = vmatpush2.msra.mxu0 0.0
  %5895 = vmatprep.subr.mxu0 0.0
  %5896 = vmatpush2.msra.mxu0 0.0
  %5897 = vmatprep.subr.mxu0 0.0
  %5898 = vmatpush2.msra.mxu0 0.0
  %5899 = vmatprep.subr.mxu0 0.0
  %5900 = vmatpush2.msra.mxu0 0.0
  %5901 = vmatprep.subr.mxu0 0.0
  %5902 = vmatpush2.msra.mxu0 0.0
  %5903 = vmatprep.subr.mxu0 0.0
  %5904 = vmatpush2.msra.mxu0 0.0
  %5905 = vmatprep.subr.mxu0 0.0
  %5906 = vmatpush2.msra.mxu0 0.0
  %5907 = vmatprep.subr.mxu0 0.0
  %5908 = vmatpush2.msra.mxu0 0.0
  %5909 = vmatprep.mubr.f32.mxu0 0.0
  %5910 = vmatmul.mubr.f32.gmra.mxu0 %v5275
  %v5911 = vpop.f32.mrf.mxu0
  %v5912 = vadd.f32 %v5179, %v5911
  %v5913 = vpop.f32.mrf.mxu0
  %v5914 = vadd.f32 %v5183, %v5913
  %5915 = vdwg.mxu0
  %5916 = vmatprep.subr.mxu0 %v5091
  %5917 = vmatpush1.msra.mxu0 %v5090
  %5918 = vmatprep.subr.mxu0 %v5059
  %5919 = vmatpush1.msra.mxu0 %v5058
  %5920 = vmatprep.subr.mxu0 %v5027
  %5921 = vmatpush1.msra.mxu0 %v5026
  %5922 = vmatprep.subr.mxu0 %v4995
  %5923 = vmatpush1.msra.mxu0 %v4994
  %5924 = vmatprep.subr.mxu0 %v4963
  %5925 = vmatpush1.msra.mxu0 %v4962
  %5926 = vmatprep.subr.mxu0 %v4931
  %5927 = vmatpush1.msra.mxu0 %v4930
  %5928 = vmatprep.subr.mxu0 %v4899
  %5929 = vmatpush1.msra.mxu0 %v4898
  %5930 = vmatprep.subr.mxu0 %v4867
  %5931 = vmatpush1.msra.mxu0 %v4866
  %5932 = vmatprep.subr.mxu0 %v4835
  %5933 = vmatpush1.msra.mxu0 %v4834
  %5934 = vmatprep.subr.mxu0 %v4803
  %5935 = vmatpush1.msra.mxu0 %v4802
  %5936 = vmatprep.subr.mxu0 %v4771
  %5937 = vmatpush1.msra.mxu0 %v4770
  %5938 = vmatprep.subr.mxu0 %v4739
  %5939 = vmatpush1.msra.mxu0 %v4738
  %5940 = vmatprep.subr.mxu0 %v4707
  %5941 = vmatpush1.msra.mxu0 %v4706
  %5942 = vmatprep.subr.mxu0 %v4675
  %5943 = vmatpush1.msra.mxu0 %v4674
  %5944 = vmatprep.subr.mxu0 %v4643
  %5945 = vmatpush1.msra.mxu0 %v4642
  %5946 = vmatprep.subr.mxu0 %v4611
  %5947 = vmatpush1.msra.mxu0 %v4610
  %5948 = vmatprep.subr.mxu0 0.0
  %5949 = vmatpush2.msra.mxu0 0.0
  %5950 = vmatprep.subr.mxu0 0.0
  %5951 = vmatpush2.msra.mxu0 0.0
  %5952 = vmatprep.subr.mxu0 0.0
  %5953 = vmatpush2.msra.mxu0 0.0
  %5954 = vmatprep.subr.mxu0 0.0
  %5955 = vmatpush2.msra.mxu0 0.0
  %5956 = vmatprep.subr.mxu0 0.0
  %5957 = vmatpush2.msra.mxu0 0.0
  %5958 = vmatprep.subr.mxu0 0.0
  %5959 = vmatpush2.msra.mxu0 0.0
  %5960 = vmatprep.subr.mxu0 0.0
  %5961 = vmatpush2.msra.mxu0 0.0
  %5962 = vmatprep.subr.mxu0 0.0
  %5963 = vmatpush2.msra.mxu0 0.0
  %5964 = vmatprep.subr.mxu0 0.0
  %5965 = vmatpush2.msra.mxu0 0.0
  %5966 = vmatprep.subr.mxu0 0.0
  %5967 = vmatpush2.msra.mxu0 0.0
  %5968 = vmatprep.subr.mxu0 0.0
  %5969 = vmatpush2.msra.mxu0 0.0
  %5970 = vmatprep.subr.mxu0 0.0
  %5971 = vmatpush2.msra.mxu0 0.0
  %5972 = vmatprep.subr.mxu0 0.0
  %5973 = vmatpush2.msra.mxu0 0.0
  %5974 = vmatprep.subr.mxu0 0.0
  %5975 = vmatpush2.msra.mxu0 0.0
  %5976 = vmatprep.subr.mxu0 0.0
  %5977 = vmatpush2.msra.mxu0 0.0
  %5978 = vmatprep.subr.mxu0 0.0
  %5979 = vmatpush2.msra.mxu0 0.0
  %5980 = vmatprep.mubr.f32.mxu0 0.0
  %5981 = vmatmul.mubr.f32.gmra.mxu0 %v5275
  %v5982 = vpop.f32.mrf.mxu0
  %v5983 = vadd.f32 %v5187, %v5982
  %v5984 = vpop.f32.mrf.mxu0
  %v5985 = vadd.f32 %v5191, %v5984
  %5986 = vdwg.mxu0
  %5987 = vmatprep.subr.mxu0 %v5093
  %5988 = vmatpush1.msra.mxu0 %v5092
  %5989 = vmatprep.subr.mxu0 %v5061
  %5990 = vmatpush1.msra.mxu0 %v5060
  %5991 = vmatprep.subr.mxu0 %v5029
  %5992 = vmatpush1.msra.mxu0 %v5028
  %5993 = vmatprep.subr.mxu0 %v4997
  %5994 = vmatpush1.msra.mxu0 %v4996
  %5995 = vmatprep.subr.mxu0 %v4965
  %5996 = vmatpush1.msra.mxu0 %v4964
  %5997 = vmatprep.subr.mxu0 %v4933
  %5998 = vmatpush1.msra.mxu0 %v4932
  %5999 = vmatprep.subr.mxu0 %v4901
  %6000 = vmatpush1.msra.mxu0 %v4900
  %6001 = vmatprep.subr.mxu0 %v4869
  %6002 = vmatpush1.msra.mxu0 %v4868
  %6003 = vmatprep.subr.mxu0 %v4837
  %6004 = vmatpush1.msra.mxu0 %v4836
  %6005 = vmatprep.subr.mxu0 %v4805
  %6006 = vmatpush1.msra.mxu0 %v4804
  %6007 = vmatprep.subr.mxu0 %v4773
  %6008 = vmatpush1.msra.mxu0 %v4772
  %6009 = vmatprep.subr.mxu0 %v4741
  %6010 = vmatpush1.msra.mxu0 %v4740
  %6011 = vmatprep.subr.mxu0 %v4709
  %6012 = vmatpush1.msra.mxu0 %v4708
  %6013 = vmatprep.subr.mxu0 %v4677
  %6014 = vmatpush1.msra.mxu0 %v4676
  %6015 = vmatprep.subr.mxu0 %v4645
  %6016 = vmatpush1.msra.mxu0 %v4644
  %6017 = vmatprep.subr.mxu0 %v4613
  %6018 = vmatpush1.msra.mxu0 %v4612
  %6019 = vmatprep.subr.mxu0 0.0
  %6020 = vmatpush2.msra.mxu0 0.0
  %6021 = vmatprep.subr.mxu0 0.0
  %6022 = vmatpush2.msra.mxu0 0.0
  %6023 = vmatprep.subr.mxu0 0.0
  %6024 = vmatpush2.msra.mxu0 0.0
  %6025 = vmatprep.subr.mxu0 0.0
  %6026 = vmatpush2.msra.mxu0 0.0
  %6027 = vmatprep.subr.mxu0 0.0
  %6028 = vmatpush2.msra.mxu0 0.0
  %6029 = vmatprep.subr.mxu0 0.0
  %6030 = vmatpush2.msra.mxu0 0.0
  %6031 = vmatprep.subr.mxu0 0.0
  %6032 = vmatpush2.msra.mxu0 0.0
  %6033 = vmatprep.subr.mxu0 0.0
  %6034 = vmatpush2.msra.mxu0 0.0
  %6035 = vmatprep.subr.mxu0 0.0
  %6036 = vmatpush2.msra.mxu0 0.0
  %6037 = vmatprep.subr.mxu0 0.0
  %6038 = vmatpush2.msra.mxu0 0.0
  %6039 = vmatprep.subr.mxu0 0.0
  %6040 = vmatpush2.msra.mxu0 0.0
  %6041 = vmatprep.subr.mxu0 0.0
  %6042 = vmatpush2.msra.mxu0 0.0
  %6043 = vmatprep.subr.mxu0 0.0
  %6044 = vmatpush2.msra.mxu0 0.0
  %6045 = vmatprep.subr.mxu0 0.0
  %6046 = vmatpush2.msra.mxu0 0.0
  %6047 = vmatprep.subr.mxu0 0.0
  %6048 = vmatpush2.msra.mxu0 0.0
  %6049 = vmatprep.subr.mxu0 0.0
  %6050 = vmatpush2.msra.mxu0 0.0
  %6051 = vmatprep.mubr.f32.mxu0 0.0
  %6052 = vmatmul.mubr.f32.gmra.mxu0 %v5275
  %v6053 = vpop.f32.mrf.mxu0
  %v6054 = vadd.f32 %v5195, %v6053
  %v6055 = vpop.f32.mrf.mxu0
  %v6056 = vadd.f32 %v5199, %v6055
  %6057 = vdwg.mxu0
  %6058 = vmatprep.subr.mxu0 %v5095
  %6059 = vmatpush1.msra.mxu0 %v5094
  %6060 = vmatprep.subr.mxu0 %v5063
  %6061 = vmatpush1.msra.mxu0 %v5062
  %6062 = vmatprep.subr.mxu0 %v5031
  %6063 = vmatpush1.msra.mxu0 %v5030
  %6064 = vmatprep.subr.mxu0 %v4999
  %6065 = vmatpush1.msra.mxu0 %v4998
  %6066 = vmatprep.subr.mxu0 %v4967
  %6067 = vmatpush1.msra.mxu0 %v4966
  %6068 = vmatprep.subr.mxu0 %v4935
  %6069 = vmatpush1.msra.mxu0 %v4934
  %6070 = vmatprep.subr.mxu0 %v4903
  %6071 = vmatpush1.msra.mxu0 %v4902
  %6072 = vmatprep.subr.mxu0 %v4871
  %6073 = vmatpush1.msra.mxu0 %v4870
  %6074 = vmatprep.subr.mxu0 %v4839
  %6075 = vmatpush1.msra.mxu0 %v4838
  %6076 = vmatprep.subr.mxu0 %v4807
  %6077 = vmatpush1.msra.mxu0 %v4806
  %6078 = vmatprep.subr.mxu0 %v4775
  %6079 = vmatpush1.msra.mxu0 %v4774
  %6080 = vmatprep.subr.mxu0 %v4743
  %6081 = vmatpush1.msra.mxu0 %v4742
  %6082 = vmatprep.subr.mxu0 %v4711
  %6083 = vmatpush1.msra.mxu0 %v4710
  %6084 = vmatprep.subr.mxu0 %v4679
  %6085 = vmatpush1.msra.mxu0 %v4678
  %6086 = vmatprep.subr.mxu0 %v4647
  %6087 = vmatpush1.msra.mxu0 %v4646
  %6088 = vmatprep.subr.mxu0 %v4615
  %6089 = vmatpush1.msra.mxu0 %v4614
  %6090 = vmatprep.subr.mxu0 0.0
  %6091 = vmatpush2.msra.mxu0 0.0
  %6092 = vmatprep.subr.mxu0 0.0
  %6093 = vmatpush2.msra.mxu0 0.0
  %6094 = vmatprep.subr.mxu0 0.0
  %6095 = vmatpush2.msra.mxu0 0.0
  %6096 = vmatprep.subr.mxu0 0.0
  %6097 = vmatpush2.msra.mxu0 0.0
  %6098 = vmatprep.subr.mxu0 0.0
  %6099 = vmatpush2.msra.mxu0 0.0
  %6100 = vmatprep.subr.mxu0 0.0
  %6101 = vmatpush2.msra.mxu0 0.0
  %6102 = vmatprep.subr.mxu0 0.0
  %6103 = vmatpush2.msra.mxu0 0.0
  %6104 = vmatprep.subr.mxu0 0.0
  %6105 = vmatpush2.msra.mxu0 0.0
  %6106 = vmatprep.subr.mxu0 0.0
  %6107 = vmatpush2.msra.mxu0 0.0
  %6108 = vmatprep.subr.mxu0 0.0
  %6109 = vmatpush2.msra.mxu0 0.0
  %6110 = vmatprep.subr.mxu0 0.0
  %6111 = vmatpush2.msra.mxu0 0.0
  %6112 = vmatprep.subr.mxu0 0.0
  %6113 = vmatpush2.msra.mxu0 0.0
  %6114 = vmatprep.subr.mxu0 0.0
  %6115 = vmatpush2.msra.mxu0 0.0
  %6116 = vmatprep.subr.mxu0 0.0
  %6117 = vmatpush2.msra.mxu0 0.0
  %6118 = vmatprep.subr.mxu0 0.0
  %6119 = vmatpush2.msra.mxu0 0.0
  %6120 = vmatprep.subr.mxu0 0.0
  %6121 = vmatpush2.msra.mxu0 0.0
  %6122 = vmatprep.mubr.f32.mxu0 0.0
  %6123 = vmatmul.mubr.f32.gmra.mxu0 %v5275
  %v6124 = vpop.f32.mrf.mxu0
  %v6125 = vadd.f32 %v5203, %v6124
  %v6126 = vpop.f32.mrf.mxu0
  %v6127 = vadd.f32 %v5207, %v6126
  %6128 = vdwg.mxu0
  %6129 = vmatprep.subr.mxu0 %v5097
  %6130 = vmatpush1.msra.mxu0 %v5096
  %6131 = vmatprep.subr.mxu0 %v5065
  %6132 = vmatpush1.msra.mxu0 %v5064
  %6133 = vmatprep.subr.mxu0 %v5033
  %6134 = vmatpush1.msra.mxu0 %v5032
  %6135 = vmatprep.subr.mxu0 %v5001
  %6136 = vmatpush1.msra.mxu0 %v5000
  %6137 = vmatprep.subr.mxu0 %v4969
  %6138 = vmatpush1.msra.mxu0 %v4968
  %6139 = vmatprep.subr.mxu0 %v4937
  %6140 = vmatpush1.msra.mxu0 %v4936
  %6141 = vmatprep.subr.mxu0 %v4905
  %6142 = vmatpush1.msra.mxu0 %v4904
  %6143 = vmatprep.subr.mxu0 %v4873
  %6144 = vmatpush1.msra.mxu0 %v4872
  %6145 = vmatprep.subr.mxu0 %v4841
  %6146 = vmatpush1.msra.mxu0 %v4840
  %6147 = vmatprep.subr.mxu0 %v4809
  %6148 = vmatpush1.msra.mxu0 %v4808
  %6149 = vmatprep.subr.mxu0 %v4777
  %6150 = vmatpush1.msra.mxu0 %v4776
  %6151 = vmatprep.subr.mxu0 %v4745
  %6152 = vmatpush1.msra.mxu0 %v4744
  %6153 = vmatprep.subr.mxu0 %v4713
  %6154 = vmatpush1.msra.mxu0 %v4712
  %6155 = vmatprep.subr.mxu0 %v4681
  %6156 = vmatpush1.msra.mxu0 %v4680
  %6157 = vmatprep.subr.mxu0 %v4649
  %6158 = vmatpush1.msra.mxu0 %v4648
  %6159 = vmatprep.subr.mxu0 %v4617
  %6160 = vmatpush1.msra.mxu0 %v4616
  %6161 = vmatprep.subr.mxu0 0.0
  %6162 = vmatpush2.msra.mxu0 0.0
  %6163 = vmatprep.subr.mxu0 0.0
  %6164 = vmatpush2.msra.mxu0 0.0
  %6165 = vmatprep.subr.mxu0 0.0
  %6166 = vmatpush2.msra.mxu0 0.0
  %6167 = vmatprep.subr.mxu0 0.0
  %6168 = vmatpush2.msra.mxu0 0.0
  %6169 = vmatprep.subr.mxu0 0.0
  %6170 = vmatpush2.msra.mxu0 0.0
  %6171 = vmatprep.subr.mxu0 0.0
  %6172 = vmatpush2.msra.mxu0 0.0
  %6173 = vmatprep.subr.mxu0 0.0
  %6174 = vmatpush2.msra.mxu0 0.0
  %6175 = vmatprep.subr.mxu0 0.0
  %6176 = vmatpush2.msra.mxu0 0.0
  %6177 = vmatprep.subr.mxu0 0.0
  %6178 = vmatpush2.msra.mxu0 0.0
  %6179 = vmatprep.subr.mxu0 0.0
  %6180 = vmatpush2.msra.mxu0 0.0
  %6181 = vmatprep.subr.mxu0 0.0
  %6182 = vmatpush2.msra.mxu0 0.0
  %6183 = vmatprep.subr.mxu0 0.0
  %6184 = vmatpush2.msra.mxu0 0.0
  %6185 = vmatprep.subr.mxu0 0.0
  %6186 = vmatpush2.msra.mxu0 0.0
  %6187 = vmatprep.subr.mxu0 0.0
  %6188 = vmatpush2.msra.mxu0 0.0
  %6189 = vmatprep.subr.mxu0 0.0
  %6190 = vmatpush2.msra.mxu0 0.0
  %6191 = vmatprep.subr.mxu0 0.0
  %6192 = vmatpush2.msra.mxu0 0.0
  %6193 = vmatprep.mubr.f32.mxu0 0.0
  %6194 = vmatmul.mubr.f32.gmra.mxu0 %v5275
  %v6195 = vpop.f32.mrf.mxu0
  %v6196 = vadd.f32 %v5211, %v6195
  %v6197 = vpop.f32.mrf.mxu0
  %v6198 = vadd.f32 %v5215, %v6197
  %6199 = vdwg.mxu0
  %6200 = vmatprep.subr.mxu0 %v5099
  %6201 = vmatpush1.msra.mxu0 %v5098
  %6202 = vmatprep.subr.mxu0 %v5067
  %6203 = vmatpush1.msra.mxu0 %v5066
  %6204 = vmatprep.subr.mxu0 %v5035
  %6205 = vmatpush1.msra.mxu0 %v5034
  %6206 = vmatprep.subr.mxu0 %v5003
  %6207 = vmatpush1.msra.mxu0 %v5002
  %6208 = vmatprep.subr.mxu0 %v4971
  %6209 = vmatpush1.msra.mxu0 %v4970
  %6210 = vmatprep.subr.mxu0 %v4939
  %6211 = vmatpush1.msra.mxu0 %v4938
  %6212 = vmatprep.subr.mxu0 %v4907
  %6213 = vmatpush1.msra.mxu0 %v4906
  %6214 = vmatprep.subr.mxu0 %v4875
  %6215 = vmatpush1.msra.mxu0 %v4874
  %6216 = vmatprep.subr.mxu0 %v4843
  %6217 = vmatpush1.msra.mxu0 %v4842
  %6218 = vmatprep.subr.mxu0 %v4811
  %6219 = vmatpush1.msra.mxu0 %v4810
  %6220 = vmatprep.subr.mxu0 %v4779
  %6221 = vmatpush1.msra.mxu0 %v4778
  %6222 = vmatprep.subr.mxu0 %v4747
  %6223 = vmatpush1.msra.mxu0 %v4746
  %6224 = vmatprep.subr.mxu0 %v4715
  %6225 = vmatpush1.msra.mxu0 %v4714
  %6226 = vmatprep.subr.mxu0 %v4683
  %6227 = vmatpush1.msra.mxu0 %v4682
  %6228 = vmatprep.subr.mxu0 %v4651
  %6229 = vmatpush1.msra.mxu0 %v4650
  %6230 = vmatprep.subr.mxu0 %v4619
  %6231 = vmatpush1.msra.mxu0 %v4618
  %6232 = vmatprep.subr.mxu0 0.0
  %6233 = vmatpush2.msra.mxu0 0.0
  %6234 = vmatprep.subr.mxu0 0.0
  %6235 = vmatpush2.msra.mxu0 0.0
  %6236 = vmatprep.subr.mxu0 0.0
  %6237 = vmatpush2.msra.mxu0 0.0
  %6238 = vmatprep.subr.mxu0 0.0
  %6239 = vmatpush2.msra.mxu0 0.0
  %6240 = vmatprep.subr.mxu0 0.0
  %6241 = vmatpush2.msra.mxu0 0.0
  %6242 = vmatprep.subr.mxu0 0.0
  %6243 = vmatpush2.msra.mxu0 0.0
  %6244 = vmatprep.subr.mxu0 0.0
  %6245 = vmatpush2.msra.mxu0 0.0
  %6246 = vmatprep.subr.mxu0 0.0
  %6247 = vmatpush2.msra.mxu0 0.0
  %6248 = vmatprep.subr.mxu0 0.0
  %6249 = vmatpush2.msra.mxu0 0.0
  %6250 = vmatprep.subr.mxu0 0.0
  %6251 = vmatpush2.msra.mxu0 0.0
  %6252 = vmatprep.subr.mxu0 0.0
  %6253 = vmatpush2.msra.mxu0 0.0
  %6254 = vmatprep.subr.mxu0 0.0
  %6255 = vmatpush2.msra.mxu0 0.0
  %6256 = vmatprep.subr.mxu0 0.0
  %6257 = vmatpush2.msra.mxu0 0.0
  %6258 = vmatprep.subr.mxu0 0.0
  %6259 = vmatpush2.msra.mxu0 0.0
  %6260 = vmatprep.subr.mxu0 0.0
  %6261 = vmatpush2.msra.mxu0 0.0
  %6262 = vmatprep.subr.mxu0 0.0
  %6263 = vmatpush2.msra.mxu0 0.0
  %6264 = vmatprep.mubr.f32.mxu0 0.0
  %6265 = vmatmul.mubr.f32.gmra.mxu0 %v5275
  %v6266 = vpop.f32.mrf.mxu0
  %v6267 = vadd.f32 %v5219, %v6266
  %v6268 = vpop.f32.mrf.mxu0
  %v6269 = vadd.f32 %v5223, %v6268
  %6270 = vdwg.mxu0
  %6271 = vmatprep.subr.mxu0 %v5101
  %6272 = vmatpush1.msra.mxu0 %v5100
  %6273 = vmatprep.subr.mxu0 %v5069
  %6274 = vmatpush1.msra.mxu0 %v5068
  %6275 = vmatprep.subr.mxu0 %v5037
  %6276 = vmatpush1.msra.mxu0 %v5036
  %6277 = vmatprep.subr.mxu0 %v5005
  %6278 = vmatpush1.msra.mxu0 %v5004
  %6279 = vmatprep.subr.mxu0 %v4973
  %6280 = vmatpush1.msra.mxu0 %v4972
  %6281 = vmatprep.subr.mxu0 %v4941
  %6282 = vmatpush1.msra.mxu0 %v4940
  %6283 = vmatprep.subr.mxu0 %v4909
  %6284 = vmatpush1.msra.mxu0 %v4908
  %6285 = vmatprep.subr.mxu0 %v4877
  %6286 = vmatpush1.msra.mxu0 %v4876
  %6287 = vmatprep.subr.mxu0 %v4845
  %6288 = vmatpush1.msra.mxu0 %v4844
  %6289 = vmatprep.subr.mxu0 %v4813
  %6290 = vmatpush1.msra.mxu0 %v4812
  %6291 = vmatprep.subr.mxu0 %v4781
  %6292 = vmatpush1.msra.mxu0 %v4780
  %6293 = vmatprep.subr.mxu0 %v4749
  %6294 = vmatpush1.msra.mxu0 %v4748
  %6295 = vmatprep.subr.mxu0 %v4717
  %6296 = vmatpush1.msra.mxu0 %v4716
  %6297 = vmatprep.subr.mxu0 %v4685
  %6298 = vmatpush1.msra.mxu0 %v4684
  %6299 = vmatprep.subr.mxu0 %v4653
  %6300 = vmatpush1.msra.mxu0 %v4652
  %6301 = vmatprep.subr.mxu0 %v4621
  %6302 = vmatpush1.msra.mxu0 %v4620
  %6303 = vmatprep.subr.mxu0 0.0
  %6304 = vmatpush2.msra.mxu0 0.0
  %6305 = vmatprep.subr.mxu0 0.0
  %6306 = vmatpush2.msra.mxu0 0.0
  %6307 = vmatprep.subr.mxu0 0.0
  %6308 = vmatpush2.msra.mxu0 0.0
  %6309 = vmatprep.subr.mxu0 0.0
  %6310 = vmatpush2.msra.mxu0 0.0
  %6311 = vmatprep.subr.mxu0 0.0
  %6312 = vmatpush2.msra.mxu0 0.0
  %6313 = vmatprep.subr.mxu0 0.0
  %6314 = vmatpush2.msra.mxu0 0.0
  %6315 = vmatprep.subr.mxu0 0.0
  %6316 = vmatpush2.msra.mxu0 0.0
  %6317 = vmatprep.subr.mxu0 0.0
  %6318 = vmatpush2.msra.mxu0 0.0
  %6319 = vmatprep.subr.mxu0 0.0
  %6320 = vmatpush2.msra.mxu0 0.0
  %6321 = vmatprep.subr.mxu0 0.0
  %6322 = vmatpush2.msra.mxu0 0.0
  %6323 = vmatprep.subr.mxu0 0.0
  %6324 = vmatpush2.msra.mxu0 0.0
  %6325 = vmatprep.subr.mxu0 0.0
  %6326 = vmatpush2.msra.mxu0 0.0
  %6327 = vmatprep.subr.mxu0 0.0
  %6328 = vmatpush2.msra.mxu0 0.0
  %6329 = vmatprep.subr.mxu0 0.0
  %6330 = vmatpush2.msra.mxu0 0.0
  %6331 = vmatprep.subr.mxu0 0.0
  %6332 = vmatpush2.msra.mxu0 0.0
  %6333 = vmatprep.subr.mxu0 0.0
  %6334 = vmatpush2.msra.mxu0 0.0
  %6335 = vmatprep.mubr.f32.mxu0 0.0
  %6336 = vmatmul.mubr.f32.gmra.mxu0 %v5275
  %v6337 = vpop.f32.mrf.mxu0
  %v6338 = vadd.f32 %v5227, %v6337
  %v6339 = vpop.f32.mrf.mxu0
  %v6340 = vadd.f32 %v5231, %v6339
  %6341 = vdwg.mxu0
  %6342 = vmatprep.subr.mxu0 %v5103
  %6343 = vmatpush1.msra.mxu0 %v5102
  %6344 = vmatprep.subr.mxu0 %v5071
  %6345 = vmatpush1.msra.mxu0 %v5070
  %6346 = vmatprep.subr.mxu0 %v5039
  %6347 = vmatpush1.msra.mxu0 %v5038
  %6348 = vmatprep.subr.mxu0 %v5007
  %6349 = vmatpush1.msra.mxu0 %v5006
  %6350 = vmatprep.subr.mxu0 %v4975
  %6351 = vmatpush1.msra.mxu0 %v4974
  %6352 = vmatprep.subr.mxu0 %v4943
  %6353 = vmatpush1.msra.mxu0 %v4942
  %6354 = vmatprep.subr.mxu0 %v4911
  %6355 = vmatpush1.msra.mxu0 %v4910
  %6356 = vmatprep.subr.mxu0 %v4879
  %6357 = vmatpush1.msra.mxu0 %v4878
  %6358 = vmatprep.subr.mxu0 %v4847
  %6359 = vmatpush1.msra.mxu0 %v4846
  %6360 = vmatprep.subr.mxu0 %v4815
  %6361 = vmatpush1.msra.mxu0 %v4814
  %6362 = vmatprep.subr.mxu0 %v4783
  %6363 = vmatpush1.msra.mxu0 %v4782
  %6364 = vmatprep.subr.mxu0 %v4751
  %6365 = vmatpush1.msra.mxu0 %v4750
  %6366 = vmatprep.subr.mxu0 %v4719
  %6367 = vmatpush1.msra.mxu0 %v4718
  %6368 = vmatprep.subr.mxu0 %v4687
  %6369 = vmatpush1.msra.mxu0 %v4686
  %6370 = vmatprep.subr.mxu0 %v4655
  %6371 = vmatpush1.msra.mxu0 %v4654
  %6372 = vmatprep.subr.mxu0 %v4623
  %6373 = vmatpush1.msra.mxu0 %v4622
  %6374 = vmatprep.subr.mxu0 0.0
  %6375 = vmatpush2.msra.mxu0 0.0
  %6376 = vmatprep.subr.mxu0 0.0
  %6377 = vmatpush2.msra.mxu0 0.0
  %6378 = vmatprep.subr.mxu0 0.0
  %6379 = vmatpush2.msra.mxu0 0.0
  %6380 = vmatprep.subr.mxu0 0.0
  %6381 = vmatpush2.msra.mxu0 0.0
  %6382 = vmatprep.subr.mxu0 0.0
  %6383 = vmatpush2.msra.mxu0 0.0
  %6384 = vmatprep.subr.mxu0 0.0
  %6385 = vmatpush2.msra.mxu0 0.0
  %6386 = vmatprep.subr.mxu0 0.0
  %6387 = vmatpush2.msra.mxu0 0.0
  %6388 = vmatprep.subr.mxu0 0.0
  %6389 = vmatpush2.msra.mxu0 0.0
  %6390 = vmatprep.subr.mxu0 0.0
  %6391 = vmatpush2.msra.mxu0 0.0
  %6392 = vmatprep.subr.mxu0 0.0
  %6393 = vmatpush2.msra.mxu0 0.0
  %6394 = vmatprep.subr.mxu0 0.0
  %6395 = vmatpush2.msra.mxu0 0.0
  %6396 = vmatprep.subr.mxu0 0.0
  %6397 = vmatpush2.msra.mxu0 0.0
  %6398 = vmatprep.subr.mxu0 0.0
  %6399 = vmatpush2.msra.mxu0 0.0
  %6400 = vmatprep.subr.mxu0 0.0
  %6401 = vmatpush2.msra.mxu0 0.0
  %6402 = vmatprep.subr.mxu0 0.0
  %6403 = vmatpush2.msra.mxu0 0.0
  %6404 = vmatprep.subr.mxu0 0.0
  %6405 = vmatpush2.msra.mxu0 0.0
  %6406 = vmatprep.mubr.f32.mxu0 0.0
  %6407 = vmatmul.mubr.f32.gmra.mxu0 %v5275
  %v6408 = vpop.f32.mrf.mxu0
  %v6409 = vadd.f32 %v5235, %v6408
  %v6410 = vpop.f32.mrf.mxu0
  %v6411 = vadd.f32 %v5239, %v6410
  %6412 = vdwg.mxu0
  %v6413 = vmax.f32 %v5344, 0.0
  %v6414 = vmax.f32 %v5346, 0.0
  %v6415 = vmax.f32 %v5415, 0.0
  %v6416 = vmax.f32 %v5417, 0.0
  %v6417 = vmax.f32 %v5486, 0.0
  %v6418 = vmax.f32 %v5488, 0.0
  %v6419 = vmax.f32 %v5557, 0.0
  %v6420 = vmax.f32 %v5559, 0.0
  %v6421 = vmax.f32 %v5628, 0.0
  %v6422 = vmax.f32 %v5630, 0.0
  %v6423 = vmax.f32 %v5699, 0.0
  %v6424 = vmax.f32 %v5701, 0.0
  %v6425 = vmax.f32 %v5770, 0.0
  %v6426 = vmax.f32 %v5772, 0.0
  %v6427 = vmax.f32 %v5841, 0.0
  %v6428 = vmax.f32 %v5843, 0.0
  %v6429 = vmax.f32 %v5912, 0.0
  %v6430 = vmax.f32 %v5914, 0.0
  %v6431 = vmax.f32 %v5983, 0.0
  %v6432 = vmax.f32 %v5985, 0.0
  %v6433 = vmax.f32 %v6054, 0.0
  %v6434 = vmax.f32 %v6056, 0.0
  %v6435 = vmax.f32 %v6125, 0.0
  %v6436 = vmax.f32 %v6127, 0.0
  %v6437 = vmax.f32 %v6196, 0.0
  %v6438 = vmax.f32 %v6198, 0.0
  %v6439 = vmax.f32 %v6267, 0.0
  %v6440 = vmax.f32 %v6269, 0.0
  %v6441 = vmax.f32 %v6338, 0.0
  %v6442 = vmax.f32 %v6340, 0.0
  %v6443 = vmax.f32 %v6409, 0.0
  %v6444 = vmax.f32 %v6411, 0.0
  %v6445 = vld [vmem:[%s7] sm:$0xff]
  %v6446 = vld [vmem:[%s7 + $0x8] sm:$0xff]
  %v6447 = vld [vmem:[%s7 + $0x10] sm:$0xff]
  %v6448 = vld [vmem:[%s7 + $0x18] sm:$0xff]
  %v6453 = vlaneseq
  %v6454 = vshrl.u32 %v6453, 7
  %v6455 = vsub.s32 0, %v6454
  %v6456 = vrot.slane %v6445, %v6455
  %v6457 = vlaneseq
  %v6458 = vshrl.u32 %v6457, 7
  %v6459 = vsub.s32 1, %v6458
  %v6460 = vrot.slane %v6445, %v6459
  %v6461 = vlaneseq
  %v6462 = vshrl.u32 %v6461, 7
  %v6463 = vsub.s32 2, %v6462
  %v6464 = vrot.slane %v6445, %v6463
  %v6465 = vlaneseq
  %v6466 = vshrl.u32 %v6465, 7
  %v6467 = vsub.s32 3, %v6466
  %v6468 = vrot.slane %v6445, %v6467
  %v6469 = vlaneseq
  %v6470 = vshrl.u32 %v6469, 7
  %v6471 = vsub.s32 4, %v6470
  %v6472 = vrot.slane %v6445, %v6471
  %v6473 = vlaneseq
  %v6474 = vshrl.u32 %v6473, 7
  %v6475 = vsub.s32 5, %v6474
  %v6476 = vrot.slane %v6445, %v6475
  %v6477 = vlaneseq
  %v6478 = vshrl.u32 %v6477, 7
  %v6479 = vsub.s32 6, %v6478
  %v6480 = vrot.slane %v6445, %v6479
  %v6481 = vlaneseq
  %v6482 = vshrl.u32 %v6481, 7
  %v6483 = vsub.s32 7, %v6482
  %v6484 = vrot.slane %v6445, %v6483
  %v6485 = vlaneseq
  %v6486 = vshrl.u32 %v6485, 7
  %v6487 = vsub.s32 0, %v6486
  %v6488 = vrot.slane %v6446, %v6487
  %v6489 = vlaneseq
  %v6490 = vshrl.u32 %v6489, 7
  %v6491 = vsub.s32 1, %v6490
  %v6492 = vrot.slane %v6446, %v6491
  %v6493 = vlaneseq
  %v6494 = vshrl.u32 %v6493, 7
  %v6495 = vsub.s32 2, %v6494
  %v6496 = vrot.slane %v6446, %v6495
  %v6497 = vlaneseq
  %v6498 = vshrl.u32 %v6497, 7
  %v6499 = vsub.s32 3, %v6498
  %v6500 = vrot.slane %v6446, %v6499
  %v6501 = vlaneseq
  %v6502 = vshrl.u32 %v6501, 7
  %v6503 = vsub.s32 4, %v6502
  %v6504 = vrot.slane %v6446, %v6503
  %v6505 = vlaneseq
  %v6506 = vshrl.u32 %v6505, 7
  %v6507 = vsub.s32 5, %v6506
  %v6508 = vrot.slane %v6446, %v6507
  %v6509 = vlaneseq
  %v6510 = vshrl.u32 %v6509, 7
  %v6511 = vsub.s32 6, %v6510
  %v6512 = vrot.slane %v6446, %v6511
  %v6513 = vlaneseq
  %v6514 = vshrl.u32 %v6513, 7
  %v6515 = vsub.s32 7, %v6514
  %v6516 = vrot.slane %v6446, %v6515
  %v6517 = vlaneseq
  %v6518 = vshrl.u32 %v6517, 7
  %v6519 = vsub.s32 0, %v6518
  %v6520 = vrot.slane %v6447, %v6519
  %v6521 = vlaneseq
  %v6522 = vshrl.u32 %v6521, 7
  %v6523 = vsub.s32 1, %v6522
  %v6524 = vrot.slane %v6447, %v6523
  %v6525 = vlaneseq
  %v6526 = vshrl.u32 %v6525, 7
  %v6527 = vsub.s32 2, %v6526
  %v6528 = vrot.slane %v6447, %v6527
  %v6529 = vlaneseq
  %v6530 = vshrl.u32 %v6529, 7
  %v6531 = vsub.s32 3, %v6530
  %v6532 = vrot.slane %v6447, %v6531
  %v6533 = vlaneseq
  %v6534 = vshrl.u32 %v6533, 7
  %v6535 = vsub.s32 4, %v6534
  %v6536 = vrot.slane %v6447, %v6535
  %v6537 = vlaneseq
  %v6538 = vshrl.u32 %v6537, 7
  %v6539 = vsub.s32 5, %v6538
  %v6540 = vrot.slane %v6447, %v6539
  %v6541 = vlaneseq
  %v6542 = vshrl.u32 %v6541, 7
  %v6543 = vsub.s32 6, %v6542
  %v6544 = vrot.slane %v6447, %v6543
  %v6545 = vlaneseq
  %v6546 = vshrl.u32 %v6545, 7
  %v6547 = vsub.s32 7, %v6546
  %v6548 = vrot.slane %v6447, %v6547
  %v6549 = vlaneseq
  %v6550 = vshrl.u32 %v6549, 7
  %v6551 = vsub.s32 0, %v6550
  %v6552 = vrot.slane %v6448, %v6551
  %v6553 = vlaneseq
  %v6554 = vshrl.u32 %v6553, 7
  %v6555 = vsub.s32 1, %v6554
  %v6556 = vrot.slane %v6448, %v6555
  %v6557 = vlaneseq
  %v6558 = vshrl.u32 %v6557, 7
  %v6559 = vsub.s32 2, %v6558
  %v6560 = vrot.slane %v6448, %v6559
  %v6561 = vlaneseq
  %v6562 = vshrl.u32 %v6561, 7
  %v6563 = vsub.s32 3, %v6562
  %v6564 = vrot.slane %v6448, %v6563
  %v6565 = vlaneseq
  %v6566 = vshrl.u32 %v6565, 7
  %v6567 = vsub.s32 4, %v6566
  %v6568 = vrot.slane %v6448, %v6567
  %v6569 = vlaneseq
  %v6570 = vshrl.u32 %v6569, 7
  %v6571 = vsub.s32 5, %v6570
  %v6572 = vrot.slane %v6448, %v6571
  %v6573 = vlaneseq
  %v6574 = vshrl.u32 %v6573, 7
  %v6575 = vsub.s32 6, %v6574
  %v6576 = vrot.slane %v6448, %v6575
  %v6577 = vlaneseq
  %v6578 = vshrl.u32 %v6577, 7
  %v6579 = vsub.s32 7, %v6578
  %v6580 = vrot.slane %v6448, %v6579
  %v6613 = vmul.f32 %v6413, %v6456
  %v6614 = vmul.f32 %v6414, %v6460
  %v6615 = vmul.f32 %v6415, %v6464
  %v6616 = vmul.f32 %v6416, %v6468
  %v6617 = vmul.f32 %v6417, %v6472
  %v6618 = vmul.f32 %v6418, %v6476
  %v6619 = vmul.f32 %v6419, %v6480
  %v6620 = vmul.f32 %v6420, %v6484
  %v6621 = vmul.f32 %v6421, %v6488
  %v6622 = vmul.f32 %v6422, %v6492
  %v6623 = vmul.f32 %v6423, %v6496
  %v6624 = vmul.f32 %v6424, %v6500
  %v6625 = vmul.f32 %v6425, %v6504
  %v6626 = vmul.f32 %v6426, %v6508
  %v6627 = vmul.f32 %v6427, %v6512
  %v6628 = vmul.f32 %v6428, %v6516
  %v6629 = vmul.f32 %v6429, %v6520
  %v6630 = vmul.f32 %v6430, %v6524
  %v6631 = vmul.f32 %v6431, %v6528
  %v6632 = vmul.f32 %v6432, %v6532
  %v6633 = vmul.f32 %v6433, %v6536
  %v6634 = vmul.f32 %v6434, %v6540
  %v6635 = vmul.f32 %v6435, %v6544
  %v6636 = vmul.f32 %v6436, %v6548
  %v6637 = vmul.f32 %v6437, %v6552
  %v6638 = vmul.f32 %v6438, %v6556
  %v6639 = vmul.f32 %v6439, %v6560
  %v6640 = vmul.f32 %v6440, %v6564
  %v6641 = vmul.f32 %v6441, %v6568
  %v6642 = vmul.f32 %v6442, %v6572
  %v6643 = vmul.f32 %v6443, %v6576
  %v6644 = vmul.f32 %v6444, %v6580
  %v6645 = vsel %vm657, %v6613, 0.0
  %v6646 = vsel %vm657, %v6614, 0.0
  %v6647 = vadd.f32 %v6645, %v6646
  %v6648 = vsel %vm657, %v6615, 0.0
  %v6649 = vadd.f32 %v6647, %v6648
  %v6650 = vsel %vm657, %v6616, 0.0
  %v6651 = vadd.f32 %v6649, %v6650
  %v6652 = vsel %vm657, %v6617, 0.0
  %v6653 = vadd.f32 %v6651, %v6652
  %v6654 = vsel %vm657, %v6618, 0.0
  %v6655 = vadd.f32 %v6653, %v6654
  %v6656 = vsel %vm657, %v6619, 0.0
  %v6657 = vadd.f32 %v6655, %v6656
  %v6658 = vsel %vm657, %v6620, 0.0
  %v6659 = vadd.f32 %v6657, %v6658
  %v6660 = vsel %vm657, %v6621, 0.0
  %v6661 = vadd.f32 %v6659, %v6660
  %v6662 = vsel %vm657, %v6622, 0.0
  %v6663 = vadd.f32 %v6661, %v6662
  %v6664 = vsel %vm657, %v6623, 0.0
  %v6665 = vadd.f32 %v6663, %v6664
  %v6666 = vsel %vm657, %v6624, 0.0
  %v6667 = vadd.f32 %v6665, %v6666
  %v6668 = vsel %vm657, %v6625, 0.0
  %v6669 = vadd.f32 %v6667, %v6668
  %v6670 = vsel %vm657, %v6626, 0.0
  %v6671 = vadd.f32 %v6669, %v6670
  %v6672 = vsel %vm657, %v6627, 0.0
  %v6673 = vadd.f32 %v6671, %v6672
  %v6674 = vsel %vm657, %v6628, 0.0
  %v6675 = vadd.f32 %v6673, %v6674
  %v6676 = vsel %vm657, %v6629, 0.0
  %v6677 = vadd.f32 %v6675, %v6676
  %v6678 = vsel %vm657, %v6630, 0.0
  %v6679 = vadd.f32 %v6677, %v6678
  %v6680 = vsel %vm657, %v6631, 0.0
  %v6681 = vadd.f32 %v6679, %v6680
  %v6682 = vsel %vm657, %v6632, 0.0
  %v6683 = vadd.f32 %v6681, %v6682
  %v6684 = vsel %vm657, %v6633, 0.0
  %v6685 = vadd.f32 %v6683, %v6684
  %v6686 = vsel %vm657, %v6634, 0.0
  %v6687 = vadd.f32 %v6685, %v6686
  %v6688 = vsel %vm657, %v6635, 0.0
  %v6689 = vadd.f32 %v6687, %v6688
  %v6690 = vsel %vm657, %v6636, 0.0
  %v6691 = vadd.f32 %v6689, %v6690
  %v6692 = vsel %vm657, %v6637, 0.0
  %v6693 = vadd.f32 %v6691, %v6692
  %v6694 = vsel %vm657, %v6638, 0.0
  %v6695 = vadd.f32 %v6693, %v6694
  %v6696 = vsel %vm657, %v6639, 0.0
  %v6697 = vadd.f32 %v6695, %v6696
  %v6698 = vsel %vm657, %v6640, 0.0
  %v6699 = vadd.f32 %v6697, %v6698
  %v6700 = vsel %vm657, %v6641, 0.0
  %v6701 = vadd.f32 %v6699, %v6700
  %v6702 = vsel %vm657, %v6642, 0.0
  %v6703 = vadd.f32 %v6701, %v6702
  %v6704 = vsel %vm657, %v6643, 0.0
  %v6705 = vadd.f32 %v6703, %v6704
  %v6706 = vsel %vm657, %v6644, 0.0
  %v6707 = vadd.f32 %v6705, %v6706
  %6708 = vadd.xlane.f32.xlu0 %v6707
  %v6709 = vpop.xlane.xlu0 %6708
  %v6710 = vld [vmem:[#allocation3] sm:$0x1]
  %v6712 = vlaneseq
  %v6713 = vshrl.u32 %v6712, 7
  %v6714 = vsub.s32 0, %v6713
  %v6715 = vrot.slane %v6710, %v6714
  %v6717 = vadd.f32 %v6709, %v6715
  %vm6718 = vcmask 1024
  %6719 = vst.msk [vmem:[%s9] sm:$0x3] %vm6718, %v6717
  // Predicated region
  $region38: #{aesthetic_predictor_forward.1} parent=0 // pred_check
    _
  $region39: #{aesthetic_predictor_forward.1} parent=0 // pred_check_branch
    %6721 = sbr.rel (0) target = $region41
  $region40: #{aesthetic_predictor_forward.1} parent=0 // pred_region
    _
  $region41: #{aesthetic_predictor_forward.1} parent=0 // pred_fallthru
    _
  // Predicated region
  $region42: #{aesthetic_predictor_forward.1} parent=0 // pred_check
    _
  $region43: #{aesthetic_predictor_forward.1} parent=0 // pred_check_branch
    %6723 = sbr.rel (0) target = $region45
  $region44: #{aesthetic_predictor_forward.1} parent=0 // pred_region
    _
  $region45: #{aesthetic_predictor_forward.1} parent=0 // pred_fallthru
    _

</llo_original>
